<compile_context>
chip_gen: v7x
topology: tpu7x:2x2x1
jax: 0.10.0
libtpu: 0.0.40
codegen_flags: <defaults>
</compile_context>

<pallas_src>
import jax
import jax.numpy as jnp
from jax.experimental import pallas as pl
from jax.experimental.pallas import tpu as pltpu

LANE = 128            # every feature dim is zero-padded to this lane width
GATES = 4 * LANE      # LSTM gate slab width per branch: [i | f | g | o]

_VMEM = pl.BlockSpec(memory_space=pltpu.MemorySpace.VMEM)
_SMEM = pl.BlockSpec(memory_space=pltpu.MemorySpace.SMEM)
_HBM = pl.BlockSpec(memory_space=pl.ANY)


# ----------------------------------------------------------------------------
# Fused Pallas kernel
# ----------------------------------------------------------------------------
def fused_forward_kernel(cust_ref, int_ids_ref, tok_ids_ref, int_tbl_ref, sent_tbl_ref,
                         wih_ref, whh_ref, lb_ref, enc_w1_ref, sq_w_ref, w384_ref,
                         head_w1_ref, b_ref,
                         out_ref,
                         xi_buf, xs_buf, pi_buf, ps_buf, gsem):
    """Whole forward pass.

    cust_ref    : (B, in_dim) f32      customer features (unpadded)
    int_ids_ref : (B, T_i) int32 SMEM  interest ids
    tok_ids_ref : (B, T_s) int32 SMEM  sentiment token ids
    int_tbl_ref : (num_interests, 128) f32 HBM   interest embedding table (lane-padded)
    sent_tbl_ref: (10000, 128) f32 HBM           sentiment embedding table (lane-padded)
    wih_ref     : (2, 128, 512) bf16   [int_wih, sent_wih] gate-padded
    whh_ref     : (256, 1024) bf16     block-diag [int_whh | sent_whh] gate-padded
    lb_ref      : (2, 512) f32         [int bias, sent bias] (bias_ih + bias_hh)
    enc_w1_ref  : (in_dim, 128) bf16
    sq_w_ref    : (3, 128, 128) bf16   [enc_w2, sent_classifier, fusion_w2]
    w384_ref    : (2, 384, 128) bf16   [fusion_w1 (row-blocked), heads_w2 (col 0/1/2)]
    head_w1_ref : (128, 384) bf16      [rec_w1 | bias_w1 | reward_w1] col blocks
    b_ref       : (9, 128) f32         packed biases (see init_params)
    out_ref     : (Bp, 128) f32        lanes 0/1/2 = recommendation / bias / reward
    """
    B, _ = cust_ref.shape
    Bp = out_ref.shape[0]
    T_i = xi_buf.shape[0] // Bp
    T_s = xs_buf.shape[0] // Bp
    f32, bf16 = jnp.float32, jnp.bfloat16

    # -- 1. embedding-row gather: one small HBM->VMEM DMA per (timestep, batch) --
    # Rows t*Bp + b of xi_buf/xs_buf hold timestep t of batch b; padded batch
    # rows (b >= B) stay uninitialised but are never mixed into real rows
    # (every op below is row-independent) and never read back out.
    copies = []
    k = 0
    for t in range(T_i):
        for b in range(B):
            cp = pltpu.make_async_copy(int_tbl_ref.at[int_ids_ref[b, t]],
                                       xi_buf.at[t * Bp + b], gsem.at[k])
            cp.start()
            copies.append(cp)
            k += 1
    for t in range(T_s):
        for b in range(B):
            cp = pltpu.make_async_copy(sent_tbl_ref.at[tok_ids_ref[b, t]],
                                       xs_buf.at[t * Bp + b], gsem.at[k])
            cp.start()
            copies.append(cp)
            k += 1

    def dotw(x, w):  # bf16 operands, f32 accumulation (== default TPU precision)
        return jnp.dot(x.astype(bf16), w, preferred_element_type=f32)

    def sigmoid(x):  # exactly sigma(x), single EUP transcendental
        return 0.5 * jnp.tanh(0.5 * x) + 0.5

    relu = jax.nn.relu

    # -- 2. customer encoder (independent of the gathers -> hides DMA latency) --
    cust = cust_ref[...]
    if Bp > B:
        cust = jnp.concatenate([cust, jnp.zeros((Bp - B, cust.shape[1]), f32)], axis=0)
    c1 = relu(dotw(cust, enc_w1_ref[...]) + b_ref[0:1, :])
    c2 = relu(dotw(c1, sq_w_ref[0]) + b_ref[1:2, :])

    # -- 3. wait for gathered rows, then hoisted LSTM input projections --------
    for cp in copies:
        cp.wait()
    pi_buf[...] = dotw(xi_buf[...], wih_ref[0]) + lb_ref[0:1, :]   # (T_i*Bp, 512)
    ps_buf[...] = dotw(xs_buf[...], wih_ref[1]) + lb_ref[1:2, :]   # (T_s*Bp, 512)

    def lstm_cell(g, c):          # PyTorch gate order i, f, g, o (128 lanes each)
        i = sigmoid(g[:, 0:LANE])
        f = sigmoid(g[:, LANE:2 * LANE])
        gg = jnp.tanh(g[:, 2 * LANE:3 * LANE])
        o = sigmoid(g[:, 3 * LANE:4 * LANE])
        c = f * c + i * gg
        return o * jnp.tanh(c), c

    # -- 4. merged block-diagonal recurrence (both LSTMs in one serial chain) --
    h_i = jnp.zeros((Bp, LANE), f32)
    c_i = jnp.zeros((Bp, LANE), f32)
    h_s = jnp.zeros((Bp, LANE), f32)
    c_s = jnp.zeros((Bp, LANE), f32)
    T_c = min(T_i, T_s)
    for t in range(T_c):                       # one (Bp,256)@(256,1024) per step
        hc = jnp.concatenate([h_i, h_s], axis=1)
        g_all = dotw(hc, whh_ref[...])
        h_i, c_i = lstm_cell(pi_buf[t * Bp:(t + 1) * Bp, :] + g_all[:, 0:GATES], c_i)
        h_s, c_s = lstm_cell(ps_buf[t * Bp:(t + 1) * Bp, :] + g_all[:, GATES:2 * GATES], c_s)
    for t in range(T_c, T_i):                  # exact tail for the longer branch
        g = pi_buf[t * Bp:(t + 1) * Bp, :] + dotw(h_i, whh_ref[0:LANE, 0:GATES])
        h_i, c_i = lstm_cell(g, c_i)
    for t in range(T_c, T_s):
        g = ps_buf[t * Bp:(t + 1) * Bp, :] + dotw(h_s, whh_ref[LANE:2 * LANE, GATES:2 * GATES])
        h_s, c_s = lstm_cell(g, c_s)

    # -- 5. sentiment classifier tail --------------------------------------------
    sent = jnp.tanh(dotw(h_s, sq_w_ref[1]) + b_ref[2:3, :])

    # -- 6. fusion: ONE lane-concat matmul over [customer | interest | sentiment] -
    z = relu(dotw(jnp.concatenate([c2, h_i, sent], axis=1), w384_ref[0]) + b_ref[3:4, :])
    fused = dotw(z, sq_w_ref[2]) + b_ref[4:5, :]

    # -- 7. three heads collapsed into two matmuls --------------------------------
    hb1 = jnp.concatenate([b_ref[5:6, :], b_ref[6:7, :], b_ref[7:8, :]], axis=1)  # (1,384)
    hh = relu(dotw(fused, head_w1_ref[...]) + hb1)                                # (Bp,384)
    logits = dotw(hh, w384_ref[1]) + b_ref[8:9, :]
    out_ref[...] = sigmoid(logits)


# ----------------------------------------------------------------------------
# Wrapper: one pallas_call, no grid, everything VMEM resident
# ----------------------------------------------------------------------------
def hyper_personalization_forward(params, customer_features, interests, token_ids):
    B, _ = customer_features.shape
    Bp = ((B + 7) // 8) * 8                 # 8-sublane-aligned batch
    T_i = interests.shape[1]
    T_s = token_ids.shape[1]

    out = pl.pallas_call(
        fused_forward_kernel,
        out_shape=jax.ShapeDtypeStruct((Bp, LANE), jnp.float32),
        in_specs=[_VMEM, _SMEM, _SMEM, _HBM, _HBM] + [_VMEM] * 8,
        out_specs=_VMEM,
        scratch_shapes=[
            pltpu.VMEM((T_i * Bp, LANE), jnp.float32),     # gathered interest rows
            pltpu.VMEM((T_s * Bp, LANE), jnp.float32),     # gathered token rows
            pltpu.VMEM((T_i * Bp, GATES), jnp.float32),    # hoisted interest projections
            pltpu.VMEM((T_s * Bp, GATES), jnp.float32),    # hoisted sentiment projections
            pltpu.SemaphoreType.DMA(((T_i + T_s) * B,)),   # one sem per gather DMA
        ],
        compiler_params=pltpu.CompilerParams(vmem_limit_bytes=16 * 1024 * 1024),
    )(customer_features, interests, token_ids,
      params["int_table"], params["sent_table"],
      params["lstm_wih"], params["lstm_whh"], params["lstm_b"],
      params["enc_w1"], params["sq_w"], params["w384"], params["head_w1"], params["b"])

    recommendations = out[:B, 0:1]
    bias_score = out[:B, 1:2]
    reward_prediction = out[:B, 2:3]
    # TODO(synk): RiskAssessor is not defined in the provided source; its
    # assess_risk() output cannot be reproduced, so it is returned as None.
    return recommendations, bias_score, {"reward_prediction": reward_prediction,
                                         "risk_assessment": None}


# ----------------------------------------------------------------------------
# Parameter init (deterministic, synthetic) + packing into padded bf16 slabs
# ----------------------------------------------------------------------------
def init_params(key, input_dim, hidden_dim, num_interests, interest_dim,
                sent_vocab=10000, sent_emb=100, sent_hidden=64):
    assert hidden_dim == LANE, "layout assumes hidden_dim == 128"
    assert max(input_dim, interest_dim, sent_emb, sent_hidden) <= LANE
    half = hidden_dim // 2
    scale = 0.1
    keys = jax.random.split(key, 16)

    def dense(k, fi, fo):
        kw, kb = jax.random.split(k)
        return (jax.random.normal(kw, (fi, fo), jnp.float32) * scale,
                jax.random.normal(kb, (fo,), jnp.float32) * scale)

    def lstm(k, e, h):
        k1, k2, k3 = jax.random.split(k, 3)
        return (jax.random.normal(k1, (e, 4 * h), jnp.float32) * scale,   # weight_ih^T
                jax.random.normal(k2, (h, 4 * h), jnp.float32) * scale,   # weight_hh^T
                jax.random.normal(k3, (4 * h,), jnp.float32) * scale)     # bias_ih+bias_hh

    def pad_w(w):                       # (fi, fo) -> (128, 128)
        return jnp.pad(w, ((0, LANE - w.shape[0]), (0, LANE - w.shape[1])))

    def pad_b(b):                       # (fo,) -> (128,)
        return jnp.pad(b, (0, LANE - b.shape[0]))

    def pad_lstm_w(w, e, h):            # (e, 4h) -> (128, 512): gate blocks @128
        w4 = w.reshape(e, 4, h)
        w4 = jnp.pad(w4, ((0, LANE - e), (0, 0), (0, LANE - h)))
        return w4.reshape(LANE, GATES)

    def pad_lstm_b(b, h):               # (4h,) -> (512,)
        return jnp.pad(b.reshape(4, h), ((0, 0), (0, LANE - h))).reshape(GATES)

    raw = {}
    raw["int_table"] = jax.random.normal(keys[0], (num_interests, interest_dim), jnp.float32) * scale
    raw["sent_table"] = jax.random.normal(keys[1], (sent_vocab, sent_emb), jnp.float32) * scale
    raw["int_wih"], raw["int_whh"], raw["int_b"] = lstm(keys[2], interest_dim, interest_dim)
    raw["sent_wih"], raw["sent_whh"], raw["sent_b"] = lstm(keys[3], sent_emb, sent_hidden)
    raw["e1w"], raw["e1b"] = dense(keys[4], input_dim, hidden_dim)
    raw["e2w"], raw["e2b"] = dense(keys[5], hidden_dim, hidden_dim)
    raw["scw"], raw["scb"] = dense(keys[6], sent_hidden, sent_hidden)
    raw["f1w"], raw["f1b"] = dense(keys[7], hidden_dim + interest_dim + sent_hidden, hidden_dim)
    raw["f2w"], raw["f2b"] = dense(keys[8], hidden_dim, hidden_dim)
    raw["r1w"], raw["r1b"] = dense(keys[9], hidden_dim, half)
    raw["r2w"], raw["r2b"] = dense(keys[10], half, 1)
    raw["b1w"], raw["b1b"] = dense(keys[11], hidden_dim, half)
    raw["b2w"], raw["b2b"] = dense(keys[12], half, 1)
    raw["w1w"], raw["w1b"] = dense(keys[13], hidden_dim, half)
    raw["w2w"], raw["w2b"] = dense(keys[14], half, 1)

    bf16 = jnp.bfloat16
    p = {"raw": raw}

    # Embedding tables, lane-padded, kept f32 in HBM (row DMAs stay sublane aligned).
    p["int_table"] = jnp.pad(raw["int_table"], ((0, 0), (0, LANE - interest_dim)))
    p["sent_table"] = jnp.pad(raw["sent_table"], ((0, 0), (0, LANE - sent_emb)))

    # LSTM weights: per-branch wih slab, block-diagonal merged whh.
    p["lstm_wih"] = jnp.stack([pad_lstm_w(raw["int_wih"], interest_dim, interest_dim),
                               pad_lstm_w(raw["sent_wih"], sent_emb, sent_hidden)]).astype(bf16)
    whh = jnp.zeros((2 * LANE, 2 * GATES), jnp.float32)
    whh = whh.at[0:LANE, 0:GATES].set(pad_lstm_w(raw["int_whh"], interest_dim, interest_dim))
    whh = whh.at[LANE:2 * LANE, GATES:2 * GATES].set(
        pad_lstm_w(raw["sent_whh"], sent_hidden, sent_hidden))
    p["lstm_whh"] = whh.astype(bf16)
    p["lstm_b"] = jnp.stack([pad_lstm_b(raw["int_b"], interest_dim),
                             pad_lstm_b(raw["sent_b"], sent_hidden)])

    # Dense weights (bf16 slabs).
    p["enc_w1"] = raw["e1w"].astype(bf16)                                   # (in_dim, 128)
    p["sq_w"] = jnp.stack([raw["e2w"], pad_w(raw["scw"]), raw["f2w"]]).astype(bf16)

    # fusion layer-1: concat rows [customer | interest(pad) | sentiment(pad)] -> (384,128)
    f1 = jnp.zeros((3 * LANE, LANE), jnp.float32)
    f1 = f1.at[0:hidden_dim, :].set(raw["f1w"][0:hidden_dim])
    f1 = f1.at[LANE:LANE + interest_dim, :].set(raw["f1w"][hidden_dim:hidden_dim + interest_dim])
    f1 = f1.at[2 * LANE:2 * LANE + sent_hidden, :].set(raw["f1w"][hidden_dim + interest_dim:])
    # heads layer-2: block rows -> output lanes 0 / 1 / 2
    h2 = jnp.zeros((3 * LANE, LANE), jnp.float32)
    h2 = h2.at[0:half, 0:1].set(raw["r2w"])
    h2 = h2.at[LANE:LANE + half, 1:2].set(raw["b2w"])
    h2 = h2.at[2 * LANE:2 * LANE + half, 2:3].set(raw["w2w"])
    p["w384"] = jnp.stack([f1, h2]).astype(bf16)

    # heads layer-1: one (128, 384) slab, each head in its own 128-lane block.
    hw1 = jnp.zeros((LANE, 3 * LANE), jnp.float32)
    hw1 = hw1.at[:, 0:half].set(raw["r1w"])
    hw1 = hw1.at[:, LANE:LANE + half].set(raw["b1w"])
    hw1 = hw1.at[:, 2 * LANE:2 * LANE + half].set(raw["w1w"])
    p["head_w1"] = hw1.astype(bf16)

    head2_b = (jnp.zeros((LANE,), jnp.float32)
               .at[0].set(raw["r2b"][0]).at[1].set(raw["b2b"][0]).at[2].set(raw["w2b"][0]))
    # rows: 0 enc_b1, 1 enc_b2, 2 sent_cb, 3 fus_b1, 4 fus_b2,
    #       5 rec_b1, 6 bias_b1, 7 reward_b1, 8 heads_b2 (lanes 0..2)
    p["b"] = jnp.stack([pad_b(raw["e1b"]), pad_b(raw["e2b"]), pad_b(raw["scb"]),
                        pad_b(raw["f1b"]), pad_b(raw["f2b"]),
                        pad_b(raw["r1b"]), pad_b(raw["b1b"]), pad_b(raw["w1b"]), head2_b])
    return p


# ----------------------------------------------------------------------------
# Pure-JAX reference (unpadded weights) for correctness checking
# ----------------------------------------------------------------------------
def reference_forward(raw, customer_features, interests, token_ids):
    def lstm_last(x, wih, whh, b):            # x (B, T, E)
        Bb, T, _ = x.shape
        H = whh.shape[0]
        h = jnp.zeros((Bb, H), jnp.float32)
        c = jnp.zeros((Bb, H), jnp.float32)
        for t in range(T):
            g = x[:, t, :] @ wih + h @ whh + b
            i = jax.nn.sigmoid(g[:, 0:H])
            f = jax.nn.sigmoid(g[:, H:2 * H])
            gg = jnp.tanh(g[:, 2 * H:3 * H])
            o = jax.nn.sigmoid(g[:, 3 * H:4 * H])
            c = f * c + i * gg
            h = o * jnp.tanh(c)
        return h

    relu = jax.nn.relu
    cust = relu(customer_features @ raw["e1w"] + raw["e1b"])
    cust = relu(cust @ raw["e2w"] + raw["e2b"])
    ih = lstm_last(raw["int_table"][interests], raw["int_wih"], raw["int_whh"], raw["int_b"])
    sh = lstm_last(raw["sent_table"][token_ids], raw["sent_wih"], raw["sent_whh"], raw["sent_b"])
    sent = jnp.tanh(sh @ raw["scw"] + raw["scb"])
    comb = jnp.concatenate([cust, ih, sent], axis=1)
    fused = relu(comb @ raw["f1w"] + raw["f1b"]) @ raw["f2w"] + raw["f2b"]
    rec = jax.nn.sigmoid(relu(fused @ raw["r1w"] + raw["r1b"]) @ raw["r2w"] + raw["r2b"])
    bia = jax.nn.sigmoid(relu(fused @ raw["b1w"] + raw["b1b"]) @ raw["b2w"] + raw["b2b"])
    rew = jax.nn.sigmoid(relu(fused @ raw["w1w"] + raw["w1b"]) @ raw["w2w"] + raw["w2b"])
    return rec, bia, rew


# ----------------------------------------------------------------------------
# Deterministic tokenizer (stand-in for Python hash(word) % 10000)
# ----------------------------------------------------------------------------
def tokenize(text_data, vocab=10000, max_len=8):
    toks = []
    for t in text_data:
        ids = [sum(ord(c) for c in w) % vocab for w in t.lower().split()] or [0]
        toks.append(ids)
    L = min(max(len(t) for t in toks), max_len)
    padded = [(t + [0] * L)[:L] for t in toks]
    return jnp.asarray(padded, jnp.int32)


# ----------------------------------------------------------------------------
# Main
# ----------------------------------------------------------------------------
if __name__ == "__main__":
    B = 2
    INPUT_DIM = 32
    HIDDEN_DIM = 128          # small but lane-aligned (module default is 256)
    NUM_INTERESTS = 100
    INTEREST_DIM = 100        # module default interest_embedding_dim
    SEQ_INTERESTS = 8

    key = jax.random.PRNGKey(0)
    k_param, k_feat, k_int = jax.random.split(key, 3)

    params = init_params(k_param, INPUT_DIM, HIDDEN_DIM, NUM_INTERESTS, INTEREST_DIM)

    customer_features = jax.random.normal(k_feat, (B, INPUT_DIM), jnp.float32)
    interests = jax.random.randint(k_int, (B, SEQ_INTERESTS), 0, NUM_INTERESTS,
                                   dtype=jnp.int32)
    text_data = ["great product experience overall", "needs better pricing and support"]
    token_ids = tokenize(text_data)           # (B, 5) -> exercises the unequal-T tail path

    rec, bias, extra = hyper_personalization_forward(
        params, customer_features, interests, token_ids)
    jax.block_until_ready((rec, bias, extra["reward_prediction"]))

    assert rec.shape == (B, 1) and bias.shape == (B, 1)
    assert extra["reward_prediction"].shape == (B, 1)
    assert bool(jnp.all(jnp.isfinite(rec))) and bool(jnp.all(jnp.isfinite(bias)))

    ref_rec, ref_bias, ref_rew = reference_forward(
        params["raw"], customer_features, interests, token_ids)
    max_err = float(jnp.max(jnp.abs(jnp.concatenate(
        [rec - ref_rec, bias - ref_bias, extra["reward_prediction"] - ref_rew], axis=1))))
    assert max_err < 3e-2, f"kernel/reference mismatch: max abs err = {max_err}"

    print("KERNEL_OK")
</pallas_src>

<mosaic_0001>
module attributes {stable_mosaic.version = 11 : i64} {
  func.func @fused_forward_kernel(%arg0: memref<2x32xf32, #tpu.memory_space<vmem>>, %arg1: memref<2x8xi32, #tpu.memory_space<smem>>, %arg2: memref<2x5xi32, #tpu.memory_space<smem>>, %arg3: memref<100x128xf32, #tpu.memory_space<any>>, %arg4: memref<10000x128xf32, #tpu.memory_space<any>>, %arg5: memref<2x128x512xbf16, #tpu.memory_space<vmem>>, %arg6: memref<256x1024xbf16, #tpu.memory_space<vmem>>, %arg7: memref<2x512xf32, #tpu.memory_space<vmem>>, %arg8: memref<32x128xbf16, #tpu.memory_space<vmem>>, %arg9: memref<3x128x128xbf16, #tpu.memory_space<vmem>>, %arg10: memref<2x384x128xbf16, #tpu.memory_space<vmem>>, %arg11: memref<128x384xbf16, #tpu.memory_space<vmem>>, %arg12: memref<9x128xf32, #tpu.memory_space<vmem>>, %arg13: memref<8x128xf32, #tpu.memory_space<vmem>>, %arg14: memref<64x128xf32, #tpu.memory_space<vmem>>, %arg15: memref<40x128xf32, #tpu.memory_space<vmem>>, %arg16: memref<64x512xf32, #tpu.memory_space<vmem>>, %arg17: memref<40x512xf32, #tpu.memory_space<vmem>>, %arg18: memref<26x!tpu.dma_semaphore, #tpu.memory_space<semaphore_mem>>) attributes {dimension_semantics = [], scalar_prefetch = 0 : i64, scratch_operands = 5 : i64, tpu.core_type = #tpu.core_type<tc>} {
    %c0 = arith.constant 0 : index
    %c0_0 = arith.constant 0 : index
    %0 = memref.load %arg1[%c0, %c0_0] : memref<2x8xi32, #tpu.memory_space<smem>>
    %c0_i32 = arith.constant 0 : i32
    %c0_i32_1 = arith.constant 0 : i32
    %c0_i32_2 = arith.constant 0 : i32
    %1 = tpu.memref_slice %arg3[%0, %c0_i32_2] : memref<100x128xf32, #tpu.memory_space<any>> -> memref<1x128xf32, #tpu.memory_space<any>>
    %2 = tpu.memref_squeeze %1 : memref<1x128xf32, #tpu.memory_space<any>> -> memref<128xf32, #tpu.memory_space<any>>
    %c0_i32_3 = arith.constant 0 : i32
    %3 = tpu.memref_slice %arg14[%c0_i32, %c0_i32_3] : memref<64x128xf32, #tpu.memory_space<vmem>> -> memref<1x128xf32, #tpu.memory_space<vmem>>
    %4 = tpu.memref_squeeze %3 : memref<1x128xf32, #tpu.memory_space<vmem>> -> memref<128xf32, #tpu.memory_space<vmem>>
    %5 = tpu.memref_slice %arg18[%c0_i32_1] : memref<26x!tpu.dma_semaphore, #tpu.memory_space<semaphore_mem>> -> memref<1x!tpu.dma_semaphore, #tpu.memory_space<semaphore_mem>>
    %6 = tpu.memref_squeeze %5 : memref<1x!tpu.dma_semaphore, #tpu.memory_space<semaphore_mem>> -> memref<!tpu.dma_semaphore, #tpu.memory_space<semaphore_mem>>
    tpu.enqueue_dma source(%2 : memref<128xf32, #tpu.memory_space<any>>) target(%4 : memref<128xf32, #tpu.memory_space<vmem>>) target_semaphore(%6 : memref<!tpu.dma_semaphore, #tpu.memory_space<semaphore_mem>>)
    %c1 = arith.constant 1 : index
    %c0_4 = arith.constant 0 : index
    %7 = memref.load %arg1[%c1, %c0_4] : memref<2x8xi32, #tpu.memory_space<smem>>
    %c1_i32 = arith.constant 1 : i32
    %c1_i32_5 = arith.constant 1 : i32
    %c0_i32_6 = arith.constant 0 : i32
    %8 = tpu.memref_slice %arg3[%7, %c0_i32_6] : memref<100x128xf32, #tpu.memory_space<any>> -> memref<1x128xf32, #tpu.memory_space<any>>
    %9 = tpu.memref_squeeze %8 : memref<1x128xf32, #tpu.memory_space<any>> -> memref<128xf32, #tpu.memory_space<any>>
    %c0_i32_7 = arith.constant 0 : i32
    %10 = tpu.memref_slice %arg14[%c1_i32, %c0_i32_7] : memref<64x128xf32, #tpu.memory_space<vmem>> -> memref<1x128xf32, #tpu.memory_space<vmem>>
    %11 = tpu.memref_squeeze %10 : memref<1x128xf32, #tpu.memory_space<vmem>> -> memref<128xf32, #tpu.memory_space<vmem>>
    %12 = tpu.memref_slice %arg18[%c1_i32_5] : memref<26x!tpu.dma_semaphore, #tpu.memory_space<semaphore_mem>> -> memref<1x!tpu.dma_semaphore, #tpu.memory_space<semaphore_mem>>
    %13 = tpu.memref_squeeze %12 : memref<1x!tpu.dma_semaphore, #tpu.memory_space<semaphore_mem>> -> memref<!tpu.dma_semaphore, #tpu.memory_space<semaphore_mem>>
    tpu.enqueue_dma source(%9 : memref<128xf32, #tpu.memory_space<any>>) target(%11 : memref<128xf32, #tpu.memory_space<vmem>>) target_semaphore(%13 : memref<!tpu.dma_semaphore, #tpu.memory_space<semaphore_mem>>)
    %c0_8 = arith.constant 0 : index
    %c1_9 = arith.constant 1 : index
    %14 = memref.load %arg1[%c0_8, %c1_9] : memref<2x8xi32, #tpu.memory_space<smem>>
    %c8_i32 = arith.constant 8 : i32
    %c2_i32 = arith.constant 2 : i32
    %c0_i32_10 = arith.constant 0 : i32
    %15 = tpu.memref_slice %arg3[%14, %c0_i32_10] : memref<100x128xf32, #tpu.memory_space<any>> -> memref<1x128xf32, #tpu.memory_space<any>>
    %16 = tpu.memref_squeeze %15 : memref<1x128xf32, #tpu.memory_space<any>> -> memref<128xf32, #tpu.memory_space<any>>
    %c0_i32_11 = arith.constant 0 : i32
    %17 = tpu.memref_slice %arg14[%c8_i32, %c0_i32_11] : memref<64x128xf32, #tpu.memory_space<vmem>> -> memref<1x128xf32, #tpu.memory_space<vmem>>
    %18 = tpu.memref_squeeze %17 : memref<1x128xf32, #tpu.memory_space<vmem>> -> memref<128xf32, #tpu.memory_space<vmem>>
    %19 = tpu.memref_slice %arg18[%c2_i32] : memref<26x!tpu.dma_semaphore, #tpu.memory_space<semaphore_mem>> -> memref<1x!tpu.dma_semaphore, #tpu.memory_space<semaphore_mem>>
    %20 = tpu.memref_squeeze %19 : memref<1x!tpu.dma_semaphore, #tpu.memory_space<semaphore_mem>> -> memref<!tpu.dma_semaphore, #tpu.memory_space<semaphore_mem>>
    tpu.enqueue_dma source(%16 : memref<128xf32, #tpu.memory_space<any>>) target(%18 : memref<128xf32, #tpu.memory_space<vmem>>) target_semaphore(%20 : memref<!tpu.dma_semaphore, #tpu.memory_space<semaphore_mem>>)
    %c1_12 = arith.constant 1 : index
    %c1_13 = arith.constant 1 : index
    %21 = memref.load %arg1[%c1_12, %c1_13] : memref<2x8xi32, #tpu.memory_space<smem>>
    %c9_i32 = arith.constant 9 : i32
    %c3_i32 = arith.constant 3 : i32
    %c0_i32_14 = arith.constant 0 : i32
    %22 = tpu.memref_slice %arg3[%21, %c0_i32_14] : memref<100x128xf32, #tpu.memory_space<any>> -> memref<1x128xf32, #tpu.memory_space<any>>
    %23 = tpu.memref_squeeze %22 : memref<1x128xf32, #tpu.memory_space<any>> -> memref<128xf32, #tpu.memory_space<any>>
    %c0_i32_15 = arith.constant 0 : i32
    %24 = tpu.memref_slice %arg14[%c9_i32, %c0_i32_15] : memref<64x128xf32, #tpu.memory_space<vmem>> -> memref<1x128xf32, #tpu.memory_space<vmem>>
    %25 = tpu.memref_squeeze %24 : memref<1x128xf32, #tpu.memory_space<vmem>> -> memref<128xf32, #tpu.memory_space<vmem>>
    %26 = tpu.memref_slice %arg18[%c3_i32] : memref<26x!tpu.dma_semaphore, #tpu.memory_space<semaphore_mem>> -> memref<1x!tpu.dma_semaphore, #tpu.memory_space<semaphore_mem>>
    %27 = tpu.memref_squeeze %26 : memref<1x!tpu.dma_semaphore, #tpu.memory_space<semaphore_mem>> -> memref<!tpu.dma_semaphore, #tpu.memory_space<semaphore_mem>>
    tpu.enqueue_dma source(%23 : memref<128xf32, #tpu.memory_space<any>>) target(%25 : memref<128xf32, #tpu.memory_space<vmem>>) target_semaphore(%27 : memref<!tpu.dma_semaphore, #tpu.memory_space<semaphore_mem>>)
    %c0_16 = arith.constant 0 : index
    %c2 = arith.constant 2 : index
    %28 = memref.load %arg1[%c0_16, %c2] : memref<2x8xi32, #tpu.memory_space<smem>>
    %c16_i32 = arith.constant 16 : i32
    %c4_i32 = arith.constant 4 : i32
    %c0_i32_17 = arith.constant 0 : i32
    %29 = tpu.memref_slice %arg3[%28, %c0_i32_17] : memref<100x128xf32, #tpu.memory_space<any>> -> memref<1x128xf32, #tpu.memory_space<any>>
    %30 = tpu.memref_squeeze %29 : memref<1x128xf32, #tpu.memory_space<any>> -> memref<128xf32, #tpu.memory_space<any>>
    %c0_i32_18 = arith.constant 0 : i32
    %31 = tpu.memref_slice %arg14[%c16_i32, %c0_i32_18] : memref<64x128xf32, #tpu.memory_space<vmem>> -> memref<1x128xf32, #tpu.memory_space<vmem>>
    %32 = tpu.memref_squeeze %31 : memref<1x128xf32, #tpu.memory_space<vmem>> -> memref<128xf32, #tpu.memory_space<vmem>>
    %33 = tpu.memref_slice %arg18[%c4_i32] : memref<26x!tpu.dma_semaphore, #tpu.memory_space<semaphore_mem>> -> memref<1x!tpu.dma_semaphore, #tpu.memory_space<semaphore_mem>>
    %34 = tpu.memref_squeeze %33 : memref<1x!tpu.dma_semaphore, #tpu.memory_space<semaphore_mem>> -> memref<!tpu.dma_semaphore, #tpu.memory_space<semaphore_mem>>
    tpu.enqueue_dma source(%30 : memref<128xf32, #tpu.memory_space<any>>) target(%32 : memref<128xf32, #tpu.memory_space<vmem>>) target_semaphore(%34 : memref<!tpu.dma_semaphore, #tpu.memory_space<semaphore_mem>>)
    %c1_19 = arith.constant 1 : index
    %c2_20 = arith.constant 2 : index
    %35 = memref.load %arg1[%c1_19, %c2_20] : memref<2x8xi32, #tpu.memory_space<smem>>
    %c17_i32 = arith.constant 17 : i32
    %c5_i32 = arith.constant 5 : i32
    %c0_i32_21 = arith.constant 0 : i32
    %36 = tpu.memref_slice %arg3[%35, %c0_i32_21] : memref<100x128xf32, #tpu.memory_space<any>> -> memref<1x128xf32, #tpu.memory_space<any>>
    %37 = tpu.memref_squeeze %36 : memref<1x128xf32, #tpu.memory_space<any>> -> memref<128xf32, #tpu.memory_space<any>>
    %c0_i32_22 = arith.constant 0 : i32
    %38 = tpu.memref_slice %arg14[%c17_i32, %c0_i32_22] : memref<64x128xf32, #tpu.memory_space<vmem>> -> memref<1x128xf32, #tpu.memory_space<vmem>>
    %39 = tpu.memref_squeeze %38 : memref<1x128xf32, #tpu.memory_space<vmem>> -> memref<128xf32, #tpu.memory_space<vmem>>
    %40 = tpu.memref_slice %arg18[%c5_i32] : memref<26x!tpu.dma_semaphore, #tpu.memory_space<semaphore_mem>> -> memref<1x!tpu.dma_semaphore, #tpu.memory_space<semaphore_mem>>
    %41 = tpu.memref_squeeze %40 : memref<1x!tpu.dma_semaphore, #tpu.memory_space<semaphore_mem>> -> memref<!tpu.dma_semaphore, #tpu.memory_space<semaphore_mem>>
    tpu.enqueue_dma source(%37 : memref<128xf32, #tpu.memory_space<any>>) target(%39 : memref<128xf32, #tpu.memory_space<vmem>>) target_semaphore(%41 : memref<!tpu.dma_semaphore, #tpu.memory_space<semaphore_mem>>)
    %c0_23 = arith.constant 0 : index
    %c3 = arith.constant 3 : index
    %42 = memref.load %arg1[%c0_23, %c3] : memref<2x8xi32, #tpu.memory_space<smem>>
    %c24_i32 = arith.constant 24 : i32
    %c6_i32 = arith.constant 6 : i32
    %c0_i32_24 = arith.constant 0 : i32
    %43 = tpu.memref_slice %arg3[%42, %c0_i32_24] : memref<100x128xf32, #tpu.memory_space<any>> -> memref<1x128xf32, #tpu.memory_space<any>>
    %44 = tpu.memref_squeeze %43 : memref<1x128xf32, #tpu.memory_space<any>> -> memref<128xf32, #tpu.memory_space<any>>
    %c0_i32_25 = arith.constant 0 : i32
    %45 = tpu.memref_slice %arg14[%c24_i32, %c0_i32_25] : memref<64x128xf32, #tpu.memory_space<vmem>> -> memref<1x128xf32, #tpu.memory_space<vmem>>
    %46 = tpu.memref_squeeze %45 : memref<1x128xf32, #tpu.memory_space<vmem>> -> memref<128xf32, #tpu.memory_space<vmem>>
    %47 = tpu.memref_slice %arg18[%c6_i32] : memref<26x!tpu.dma_semaphore, #tpu.memory_space<semaphore_mem>> -> memref<1x!tpu.dma_semaphore, #tpu.memory_space<semaphore_mem>>
    %48 = tpu.memref_squeeze %47 : memref<1x!tpu.dma_semaphore, #tpu.memory_space<semaphore_mem>> -> memref<!tpu.dma_semaphore, #tpu.memory_space<semaphore_mem>>
    tpu.enqueue_dma source(%44 : memref<128xf32, #tpu.memory_space<any>>) target(%46 : memref<128xf32, #tpu.memory_space<vmem>>) target_semaphore(%48 : memref<!tpu.dma_semaphore, #tpu.memory_space<semaphore_mem>>)
    %c1_26 = arith.constant 1 : index
    %c3_27 = arith.constant 3 : index
    %49 = memref.load %arg1[%c1_26, %c3_27] : memref<2x8xi32, #tpu.memory_space<smem>>
    %c25_i32 = arith.constant 25 : i32
    %c7_i32 = arith.constant 7 : i32
    %c0_i32_28 = arith.constant 0 : i32
    %50 = tpu.memref_slice %arg3[%49, %c0_i32_28] : memref<100x128xf32, #tpu.memory_space<any>> -> memref<1x128xf32, #tpu.memory_space<any>>
    %51 = tpu.memref_squeeze %50 : memref<1x128xf32, #tpu.memory_space<any>> -> memref<128xf32, #tpu.memory_space<any>>
    %c0_i32_29 = arith.constant 0 : i32
    %52 = tpu.memref_slice %arg14[%c25_i32, %c0_i32_29] : memref<64x128xf32, #tpu.memory_space<vmem>> -> memref<1x128xf32, #tpu.memory_space<vmem>>
    %53 = tpu.memref_squeeze %52 : memref<1x128xf32, #tpu.memory_space<vmem>> -> memref<128xf32, #tpu.memory_space<vmem>>
    %54 = tpu.memref_slice %arg18[%c7_i32] : memref<26x!tpu.dma_semaphore, #tpu.memory_space<semaphore_mem>> -> memref<1x!tpu.dma_semaphore, #tpu.memory_space<semaphore_mem>>
    %55 = tpu.memref_squeeze %54 : memref<1x!tpu.dma_semaphore, #tpu.memory_space<semaphore_mem>> -> memref<!tpu.dma_semaphore, #tpu.memory_space<semaphore_mem>>
    tpu.enqueue_dma source(%51 : memref<128xf32, #tpu.memory_space<any>>) target(%53 : memref<128xf32, #tpu.memory_space<vmem>>) target_semaphore(%55 : memref<!tpu.dma_semaphore, #tpu.memory_space<semaphore_mem>>)
    %c0_30 = arith.constant 0 : index
    %c4 = arith.constant 4 : index
    %56 = memref.load %arg1[%c0_30, %c4] : memref<2x8xi32, #tpu.memory_space<smem>>
    %c32_i32 = arith.constant 32 : i32
    %c8_i32_31 = arith.constant 8 : i32
    %c0_i32_32 = arith.constant 0 : i32
    %57 = tpu.memref_slice %arg3[%56, %c0_i32_32] : memref<100x128xf32, #tpu.memory_space<any>> -> memref<1x128xf32, #tpu.memory_space<any>>
    %58 = tpu.memref_squeeze %57 : memref<1x128xf32, #tpu.memory_space<any>> -> memref<128xf32, #tpu.memory_space<any>>
    %c0_i32_33 = arith.constant 0 : i32
    %59 = tpu.memref_slice %arg14[%c32_i32, %c0_i32_33] : memref<64x128xf32, #tpu.memory_space<vmem>> -> memref<1x128xf32, #tpu.memory_space<vmem>>
    %60 = tpu.memref_squeeze %59 : memref<1x128xf32, #tpu.memory_space<vmem>> -> memref<128xf32, #tpu.memory_space<vmem>>
    %61 = tpu.memref_slice %arg18[%c8_i32_31] : memref<26x!tpu.dma_semaphore, #tpu.memory_space<semaphore_mem>> -> memref<1x!tpu.dma_semaphore, #tpu.memory_space<semaphore_mem>>
    %62 = tpu.memref_squeeze %61 : memref<1x!tpu.dma_semaphore, #tpu.memory_space<semaphore_mem>> -> memref<!tpu.dma_semaphore, #tpu.memory_space<semaphore_mem>>
    tpu.enqueue_dma source(%58 : memref<128xf32, #tpu.memory_space<any>>) target(%60 : memref<128xf32, #tpu.memory_space<vmem>>) target_semaphore(%62 : memref<!tpu.dma_semaphore, #tpu.memory_space<semaphore_mem>>)
    %c1_34 = arith.constant 1 : index
    %c4_35 = arith.constant 4 : index
    %63 = memref.load %arg1[%c1_34, %c4_35] : memref<2x8xi32, #tpu.memory_space<smem>>
    %c33_i32 = arith.constant 33 : i32
    %c9_i32_36 = arith.constant 9 : i32
    %c0_i32_37 = arith.constant 0 : i32
    %64 = tpu.memref_slice %arg3[%63, %c0_i32_37] : memref<100x128xf32, #tpu.memory_space<any>> -> memref<1x128xf32, #tpu.memory_space<any>>
    %65 = tpu.memref_squeeze %64 : memref<1x128xf32, #tpu.memory_space<any>> -> memref<128xf32, #tpu.memory_space<any>>
    %c0_i32_38 = arith.constant 0 : i32
    %66 = tpu.memref_slice %arg14[%c33_i32, %c0_i32_38] : memref<64x128xf32, #tpu.memory_space<vmem>> -> memref<1x128xf32, #tpu.memory_space<vmem>>
    %67 = tpu.memref_squeeze %66 : memref<1x128xf32, #tpu.memory_space<vmem>> -> memref<128xf32, #tpu.memory_space<vmem>>
    %68 = tpu.memref_slice %arg18[%c9_i32_36] : memref<26x!tpu.dma_semaphore, #tpu.memory_space<semaphore_mem>> -> memref<1x!tpu.dma_semaphore, #tpu.memory_space<semaphore_mem>>
    %69 = tpu.memref_squeeze %68 : memref<1x!tpu.dma_semaphore, #tpu.memory_space<semaphore_mem>> -> memref<!tpu.dma_semaphore, #tpu.memory_space<semaphore_mem>>
    tpu.enqueue_dma source(%65 : memref<128xf32, #tpu.memory_space<any>>) target(%67 : memref<128xf32, #tpu.memory_space<vmem>>) target_semaphore(%69 : memref<!tpu.dma_semaphore, #tpu.memory_space<semaphore_mem>>)
    %c0_39 = arith.constant 0 : index
    %c5 = arith.constant 5 : index
    %70 = memref.load %arg1[%c0_39, %c5] : memref<2x8xi32, #tpu.memory_space<smem>>
    %c40_i32 = arith.constant 40 : i32
    %c10_i32 = arith.constant 10 : i32
    %c0_i32_40 = arith.constant 0 : i32
    %71 = tpu.memref_slice %arg3[%70, %c0_i32_40] : memref<100x128xf32, #tpu.memory_space<any>> -> memref<1x128xf32, #tpu.memory_space<any>>
    %72 = tpu.memref_squeeze %71 : memref<1x128xf32, #tpu.memory_space<any>> -> memref<128xf32, #tpu.memory_space<any>>
    %c0_i32_41 = arith.constant 0 : i32
    %73 = tpu.memref_slice %arg14[%c40_i32, %c0_i32_41] : memref<64x128xf32, #tpu.memory_space<vmem>> -> memref<1x128xf32, #tpu.memory_space<vmem>>
    %74 = tpu.memref_squeeze %73 : memref<1x128xf32, #tpu.memory_space<vmem>> -> memref<128xf32, #tpu.memory_space<vmem>>
    %75 = tpu.memref_slice %arg18[%c10_i32] : memref<26x!tpu.dma_semaphore, #tpu.memory_space<semaphore_mem>> -> memref<1x!tpu.dma_semaphore, #tpu.memory_space<semaphore_mem>>
    %76 = tpu.memref_squeeze %75 : memref<1x!tpu.dma_semaphore, #tpu.memory_space<semaphore_mem>> -> memref<!tpu.dma_semaphore, #tpu.memory_space<semaphore_mem>>
    tpu.enqueue_dma source(%72 : memref<128xf32, #tpu.memory_space<any>>) target(%74 : memref<128xf32, #tpu.memory_space<vmem>>) target_semaphore(%76 : memref<!tpu.dma_semaphore, #tpu.memory_space<semaphore_mem>>)
    %c1_42 = arith.constant 1 : index
    %c5_43 = arith.constant 5 : index
    %77 = memref.load %arg1[%c1_42, %c5_43] : memref<2x8xi32, #tpu.memory_space<smem>>
    %c41_i32 = arith.constant 41 : i32
    %c11_i32 = arith.constant 11 : i32
    %c0_i32_44 = arith.constant 0 : i32
    %78 = tpu.memref_slice %arg3[%77, %c0_i32_44] : memref<100x128xf32, #tpu.memory_space<any>> -> memref<1x128xf32, #tpu.memory_space<any>>
    %79 = tpu.memref_squeeze %78 : memref<1x128xf32, #tpu.memory_space<any>> -> memref<128xf32, #tpu.memory_space<any>>
    %c0_i32_45 = arith.constant 0 : i32
    %80 = tpu.memref_slice %arg14[%c41_i32, %c0_i32_45] : memref<64x128xf32, #tpu.memory_space<vmem>> -> memref<1x128xf32, #tpu.memory_space<vmem>>
    %81 = tpu.memref_squeeze %80 : memref<1x128xf32, #tpu.memory_space<vmem>> -> memref<128xf32, #tpu.memory_space<vmem>>
    %82 = tpu.memref_slice %arg18[%c11_i32] : memref<26x!tpu.dma_semaphore, #tpu.memory_space<semaphore_mem>> -> memref<1x!tpu.dma_semaphore, #tpu.memory_space<semaphore_mem>>
    %83 = tpu.memref_squeeze %82 : memref<1x!tpu.dma_semaphore, #tpu.memory_space<semaphore_mem>> -> memref<!tpu.dma_semaphore, #tpu.memory_space<semaphore_mem>>
    tpu.enqueue_dma source(%79 : memref<128xf32, #tpu.memory_space<any>>) target(%81 : memref<128xf32, #tpu.memory_space<vmem>>) target_semaphore(%83 : memref<!tpu.dma_semaphore, #tpu.memory_space<semaphore_mem>>)
    %c0_46 = arith.constant 0 : index
    %c6 = arith.constant 6 : index
    %84 = memref.load %arg1[%c0_46, %c6] : memref<2x8xi32, #tpu.memory_space<smem>>
    %c48_i32 = arith.constant 48 : i32
    %c12_i32 = arith.constant 12 : i32
    %c0_i32_47 = arith.constant 0 : i32
    %85 = tpu.memref_slice %arg3[%84, %c0_i32_47] : memref<100x128xf32, #tpu.memory_space<any>> -> memref<1x128xf32, #tpu.memory_space<any>>
    %86 = tpu.memref_squeeze %85 : memref<1x128xf32, #tpu.memory_space<any>> -> memref<128xf32, #tpu.memory_space<any>>
    %c0_i32_48 = arith.constant 0 : i32
    %87 = tpu.memref_slice %arg14[%c48_i32, %c0_i32_48] : memref<64x128xf32, #tpu.memory_space<vmem>> -> memref<1x128xf32, #tpu.memory_space<vmem>>
    %88 = tpu.memref_squeeze %87 : memref<1x128xf32, #tpu.memory_space<vmem>> -> memref<128xf32, #tpu.memory_space<vmem>>
    %89 = tpu.memref_slice %arg18[%c12_i32] : memref<26x!tpu.dma_semaphore, #tpu.memory_space<semaphore_mem>> -> memref<1x!tpu.dma_semaphore, #tpu.memory_space<semaphore_mem>>
    %90 = tpu.memref_squeeze %89 : memref<1x!tpu.dma_semaphore, #tpu.memory_space<semaphore_mem>> -> memref<!tpu.dma_semaphore, #tpu.memory_space<semaphore_mem>>
    tpu.enqueue_dma source(%86 : memref<128xf32, #tpu.memory_space<any>>) target(%88 : memref<128xf32, #tpu.memory_space<vmem>>) target_semaphore(%90 : memref<!tpu.dma_semaphore, #tpu.memory_space<semaphore_mem>>)
    %c1_49 = arith.constant 1 : index
    %c6_50 = arith.constant 6 : index
    %91 = memref.load %arg1[%c1_49, %c6_50] : memref<2x8xi32, #tpu.memory_space<smem>>
    %c49_i32 = arith.constant 49 : i32
    %c13_i32 = arith.constant 13 : i32
    %c0_i32_51 = arith.constant 0 : i32
    %92 = tpu.memref_slice %arg3[%91, %c0_i32_51] : memref<100x128xf32, #tpu.memory_space<any>> -> memref<1x128xf32, #tpu.memory_space<any>>
    %93 = tpu.memref_squeeze %92 : memref<1x128xf32, #tpu.memory_space<any>> -> memref<128xf32, #tpu.memory_space<any>>
    %c0_i32_52 = arith.constant 0 : i32
    %94 = tpu.memref_slice %arg14[%c49_i32, %c0_i32_52] : memref<64x128xf32, #tpu.memory_space<vmem>> -> memref<1x128xf32, #tpu.memory_space<vmem>>
    %95 = tpu.memref_squeeze %94 : memref<1x128xf32, #tpu.memory_space<vmem>> -> memref<128xf32, #tpu.memory_space<vmem>>
    %96 = tpu.memref_slice %arg18[%c13_i32] : memref<26x!tpu.dma_semaphore, #tpu.memory_space<semaphore_mem>> -> memref<1x!tpu.dma_semaphore, #tpu.memory_space<semaphore_mem>>
    %97 = tpu.memref_squeeze %96 : memref<1x!tpu.dma_semaphore, #tpu.memory_space<semaphore_mem>> -> memref<!tpu.dma_semaphore, #tpu.memory_space<semaphore_mem>>
    tpu.enqueue_dma source(%93 : memref<128xf32, #tpu.memory_space<any>>) target(%95 : memref<128xf32, #tpu.memory_space<vmem>>) target_semaphore(%97 : memref<!tpu.dma_semaphore, #tpu.memory_space<semaphore_mem>>)
    %c0_53 = arith.constant 0 : index
    %c7 = arith.constant 7 : index
    %98 = memref.load %arg1[%c0_53, %c7] : memref<2x8xi32, #tpu.memory_space<smem>>
    %c56_i32 = arith.constant 56 : i32
    %c14_i32 = arith.constant 14 : i32
    %c0_i32_54 = arith.constant 0 : i32
    %99 = tpu.memref_slice %arg3[%98, %c0_i32_54] : memref<100x128xf32, #tpu.memory_space<any>> -> memref<1x128xf32, #tpu.memory_space<any>>
    %100 = tpu.memref_squeeze %99 : memref<1x128xf32, #tpu.memory_space<any>> -> memref<128xf32, #tpu.memory_space<any>>
    %c0_i32_55 = arith.constant 0 : i32
    %101 = tpu.memref_slice %arg14[%c56_i32, %c0_i32_55] : memref<64x128xf32, #tpu.memory_space<vmem>> -> memref<1x128xf32, #tpu.memory_space<vmem>>
    %102 = tpu.memref_squeeze %101 : memref<1x128xf32, #tpu.memory_space<vmem>> -> memref<128xf32, #tpu.memory_space<vmem>>
    %103 = tpu.memref_slice %arg18[%c14_i32] : memref<26x!tpu.dma_semaphore, #tpu.memory_space<semaphore_mem>> -> memref<1x!tpu.dma_semaphore, #tpu.memory_space<semaphore_mem>>
    %104 = tpu.memref_squeeze %103 : memref<1x!tpu.dma_semaphore, #tpu.memory_space<semaphore_mem>> -> memref<!tpu.dma_semaphore, #tpu.memory_space<semaphore_mem>>
    tpu.enqueue_dma source(%100 : memref<128xf32, #tpu.memory_space<any>>) target(%102 : memref<128xf32, #tpu.memory_space<vmem>>) target_semaphore(%104 : memref<!tpu.dma_semaphore, #tpu.memory_space<semaphore_mem>>)
    %c1_56 = arith.constant 1 : index
    %c7_57 = arith.constant 7 : index
    %105 = memref.load %arg1[%c1_56, %c7_57] : memref<2x8xi32, #tpu.memory_space<smem>>
    %c57_i32 = arith.constant 57 : i32
    %c15_i32 = arith.constant 15 : i32
    %c0_i32_58 = arith.constant 0 : i32
    %106 = tpu.memref_slice %arg3[%105, %c0_i32_58] : memref<100x128xf32, #tpu.memory_space<any>> -> memref<1x128xf32, #tpu.memory_space<any>>
    %107 = tpu.memref_squeeze %106 : memref<1x128xf32, #tpu.memory_space<any>> -> memref<128xf32, #tpu.memory_space<any>>
    %c0_i32_59 = arith.constant 0 : i32
    %108 = tpu.memref_slice %arg14[%c57_i32, %c0_i32_59] : memref<64x128xf32, #tpu.memory_space<vmem>> -> memref<1x128xf32, #tpu.memory_space<vmem>>
    %109 = tpu.memref_squeeze %108 : memref<1x128xf32, #tpu.memory_space<vmem>> -> memref<128xf32, #tpu.memory_space<vmem>>
    %110 = tpu.memref_slice %arg18[%c15_i32] : memref<26x!tpu.dma_semaphore, #tpu.memory_space<semaphore_mem>> -> memref<1x!tpu.dma_semaphore, #tpu.memory_space<semaphore_mem>>
    %111 = tpu.memref_squeeze %110 : memref<1x!tpu.dma_semaphore, #tpu.memory_space<semaphore_mem>> -> memref<!tpu.dma_semaphore, #tpu.memory_space<semaphore_mem>>
    tpu.enqueue_dma source(%107 : memref<128xf32, #tpu.memory_space<any>>) target(%109 : memref<128xf32, #tpu.memory_space<vmem>>) target_semaphore(%111 : memref<!tpu.dma_semaphore, #tpu.memory_space<semaphore_mem>>)
    %c0_60 = arith.constant 0 : index
    %c0_61 = arith.constant 0 : index
    %112 = memref.load %arg2[%c0_60, %c0_61] : memref<2x5xi32, #tpu.memory_space<smem>>
    %c0_i32_62 = arith.constant 0 : i32
    %c16_i32_63 = arith.constant 16 : i32
    %c0_i32_64 = arith.constant 0 : i32
    %113 = tpu.memref_slice %arg4[%112, %c0_i32_64] : memref<10000x128xf32, #tpu.memory_space<any>> -> memref<1x128xf32, #tpu.memory_space<any>>
    %114 = tpu.memref_squeeze %113 : memref<1x128xf32, #tpu.memory_space<any>> -> memref<128xf32, #tpu.memory_space<any>>
    %c0_i32_65 = arith.constant 0 : i32
    %115 = tpu.memref_slice %arg15[%c0_i32_62, %c0_i32_65] : memref<40x128xf32, #tpu.memory_space<vmem>> -> memref<1x128xf32, #tpu.memory_space<vmem>>
    %116 = tpu.memref_squeeze %115 : memref<1x128xf32, #tpu.memory_space<vmem>> -> memref<128xf32, #tpu.memory_space<vmem>>
    %117 = tpu.memref_slice %arg18[%c16_i32_63] : memref<26x!tpu.dma_semaphore, #tpu.memory_space<semaphore_mem>> -> memref<1x!tpu.dma_semaphore, #tpu.memory_space<semaphore_mem>>
    %118 = tpu.memref_squeeze %117 : memref<1x!tpu.dma_semaphore, #tpu.memory_space<semaphore_mem>> -> memref<!tpu.dma_semaphore, #tpu.memory_space<semaphore_mem>>
    tpu.enqueue_dma source(%114 : memref<128xf32, #tpu.memory_space<any>>) target(%116 : memref<128xf32, #tpu.memory_space<vmem>>) target_semaphore(%118 : memref<!tpu.dma_semaphore, #tpu.memory_space<semaphore_mem>>)
    %c1_66 = arith.constant 1 : index
    %c0_67 = arith.constant 0 : index
    %119 = memref.load %arg2[%c1_66, %c0_67] : memref<2x5xi32, #tpu.memory_space<smem>>
    %c1_i32_68 = arith.constant 1 : i32
    %c17_i32_69 = arith.constant 17 : i32
    %c0_i32_70 = arith.constant 0 : i32
    %120 = tpu.memref_slice %arg4[%119, %c0_i32_70] : memref<10000x128xf32, #tpu.memory_space<any>> -> memref<1x128xf32, #tpu.memory_space<any>>
    %121 = tpu.memref_squeeze %120 : memref<1x128xf32, #tpu.memory_space<any>> -> memref<128xf32, #tpu.memory_space<any>>
    %c0_i32_71 = arith.constant 0 : i32
    %122 = tpu.memref_slice %arg15[%c1_i32_68, %c0_i32_71] : memref<40x128xf32, #tpu.memory_space<vmem>> -> memref<1x128xf32, #tpu.memory_space<vmem>>
    %123 = tpu.memref_squeeze %122 : memref<1x128xf32, #tpu.memory_space<vmem>> -> memref<128xf32, #tpu.memory_space<vmem>>
    %124 = tpu.memref_slice %arg18[%c17_i32_69] : memref<26x!tpu.dma_semaphore, #tpu.memory_space<semaphore_mem>> -> memref<1x!tpu.dma_semaphore, #tpu.memory_space<semaphore_mem>>
    %125 = tpu.memref_squeeze %124 : memref<1x!tpu.dma_semaphore, #tpu.memory_space<semaphore_mem>> -> memref<!tpu.dma_semaphore, #tpu.memory_space<semaphore_mem>>
    tpu.enqueue_dma source(%121 : memref<128xf32, #tpu.memory_space<any>>) target(%123 : memref<128xf32, #tpu.memory_space<vmem>>) target_semaphore(%125 : memref<!tpu.dma_semaphore, #tpu.memory_space<semaphore_mem>>)
    %c0_72 = arith.constant 0 : index
    %c1_73 = arith.constant 1 : index
    %126 = memref.load %arg2[%c0_72, %c1_73] : memref<2x5xi32, #tpu.memory_space<smem>>
    %c8_i32_74 = arith.constant 8 : i32
    %c18_i32 = arith.constant 18 : i32
    %c0_i32_75 = arith.constant 0 : i32
    %127 = tpu.memref_slice %arg4[%126, %c0_i32_75] : memref<10000x128xf32, #tpu.memory_space<any>> -> memref<1x128xf32, #tpu.memory_space<any>>
    %128 = tpu.memref_squeeze %127 : memref<1x128xf32, #tpu.memory_space<any>> -> memref<128xf32, #tpu.memory_space<any>>
    %c0_i32_76 = arith.constant 0 : i32
    %129 = tpu.memref_slice %arg15[%c8_i32_74, %c0_i32_76] : memref<40x128xf32, #tpu.memory_space<vmem>> -> memref<1x128xf32, #tpu.memory_space<vmem>>
    %130 = tpu.memref_squeeze %129 : memref<1x128xf32, #tpu.memory_space<vmem>> -> memref<128xf32, #tpu.memory_space<vmem>>
    %131 = tpu.memref_slice %arg18[%c18_i32] : memref<26x!tpu.dma_semaphore, #tpu.memory_space<semaphore_mem>> -> memref<1x!tpu.dma_semaphore, #tpu.memory_space<semaphore_mem>>
    %132 = tpu.memref_squeeze %131 : memref<1x!tpu.dma_semaphore, #tpu.memory_space<semaphore_mem>> -> memref<!tpu.dma_semaphore, #tpu.memory_space<semaphore_mem>>
    tpu.enqueue_dma source(%128 : memref<128xf32, #tpu.memory_space<any>>) target(%130 : memref<128xf32, #tpu.memory_space<vmem>>) target_semaphore(%132 : memref<!tpu.dma_semaphore, #tpu.memory_space<semaphore_mem>>)
    %c1_77 = arith.constant 1 : index
    %c1_78 = arith.constant 1 : index
    %133 = memref.load %arg2[%c1_77, %c1_78] : memref<2x5xi32, #tpu.memory_space<smem>>
    %c9_i32_79 = arith.constant 9 : i32
    %c19_i32 = arith.constant 19 : i32
    %c0_i32_80 = arith.constant 0 : i32
    %134 = tpu.memref_slice %arg4[%133, %c0_i32_80] : memref<10000x128xf32, #tpu.memory_space<any>> -> memref<1x128xf32, #tpu.memory_space<any>>
    %135 = tpu.memref_squeeze %134 : memref<1x128xf32, #tpu.memory_space<any>> -> memref<128xf32, #tpu.memory_space<any>>
    %c0_i32_81 = arith.constant 0 : i32
    %136 = tpu.memref_slice %arg15[%c9_i32_79, %c0_i32_81] : memref<40x128xf32, #tpu.memory_space<vmem>> -> memref<1x128xf32, #tpu.memory_space<vmem>>
    %137 = tpu.memref_squeeze %136 : memref<1x128xf32, #tpu.memory_space<vmem>> -> memref<128xf32, #tpu.memory_space<vmem>>
    %138 = tpu.memref_slice %arg18[%c19_i32] : memref<26x!tpu.dma_semaphore, #tpu.memory_space<semaphore_mem>> -> memref<1x!tpu.dma_semaphore, #tpu.memory_space<semaphore_mem>>
    %139 = tpu.memref_squeeze %138 : memref<1x!tpu.dma_semaphore, #tpu.memory_space<semaphore_mem>> -> memref<!tpu.dma_semaphore, #tpu.memory_space<semaphore_mem>>
    tpu.enqueue_dma source(%135 : memref<128xf32, #tpu.memory_space<any>>) target(%137 : memref<128xf32, #tpu.memory_space<vmem>>) target_semaphore(%139 : memref<!tpu.dma_semaphore, #tpu.memory_space<semaphore_mem>>)
    %c0_82 = arith.constant 0 : index
    %c2_83 = arith.constant 2 : index
    %140 = memref.load %arg2[%c0_82, %c2_83] : memref<2x5xi32, #tpu.memory_space<smem>>
    %c16_i32_84 = arith.constant 16 : i32
    %c20_i32 = arith.constant 20 : i32
    %c0_i32_85 = arith.constant 0 : i32
    %141 = tpu.memref_slice %arg4[%140, %c0_i32_85] : memref<10000x128xf32, #tpu.memory_space<any>> -> memref<1x128xf32, #tpu.memory_space<any>>
    %142 = tpu.memref_squeeze %141 : memref<1x128xf32, #tpu.memory_space<any>> -> memref<128xf32, #tpu.memory_space<any>>
    %c0_i32_86 = arith.constant 0 : i32
    %143 = tpu.memref_slice %arg15[%c16_i32_84, %c0_i32_86] : memref<40x128xf32, #tpu.memory_space<vmem>> -> memref<1x128xf32, #tpu.memory_space<vmem>>
    %144 = tpu.memref_squeeze %143 : memref<1x128xf32, #tpu.memory_space<vmem>> -> memref<128xf32, #tpu.memory_space<vmem>>
    %145 = tpu.memref_slice %arg18[%c20_i32] : memref<26x!tpu.dma_semaphore, #tpu.memory_space<semaphore_mem>> -> memref<1x!tpu.dma_semaphore, #tpu.memory_space<semaphore_mem>>
    %146 = tpu.memref_squeeze %145 : memref<1x!tpu.dma_semaphore, #tpu.memory_space<semaphore_mem>> -> memref<!tpu.dma_semaphore, #tpu.memory_space<semaphore_mem>>
    tpu.enqueue_dma source(%142 : memref<128xf32, #tpu.memory_space<any>>) target(%144 : memref<128xf32, #tpu.memory_space<vmem>>) target_semaphore(%146 : memref<!tpu.dma_semaphore, #tpu.memory_space<semaphore_mem>>)
    %c1_87 = arith.constant 1 : index
    %c2_88 = arith.constant 2 : index
    %147 = memref.load %arg2[%c1_87, %c2_88] : memref<2x5xi32, #tpu.memory_space<smem>>
    %c17_i32_89 = arith.constant 17 : i32
    %c21_i32 = arith.constant 21 : i32
    %c0_i32_90 = arith.constant 0 : i32
    %148 = tpu.memref_slice %arg4[%147, %c0_i32_90] : memref<10000x128xf32, #tpu.memory_space<any>> -> memref<1x128xf32, #tpu.memory_space<any>>
    %149 = tpu.memref_squeeze %148 : memref<1x128xf32, #tpu.memory_space<any>> -> memref<128xf32, #tpu.memory_space<any>>
    %c0_i32_91 = arith.constant 0 : i32
    %150 = tpu.memref_slice %arg15[%c17_i32_89, %c0_i32_91] : memref<40x128xf32, #tpu.memory_space<vmem>> -> memref<1x128xf32, #tpu.memory_space<vmem>>
    %151 = tpu.memref_squeeze %150 : memref<1x128xf32, #tpu.memory_space<vmem>> -> memref<128xf32, #tpu.memory_space<vmem>>
    %152 = tpu.memref_slice %arg18[%c21_i32] : memref<26x!tpu.dma_semaphore, #tpu.memory_space<semaphore_mem>> -> memref<1x!tpu.dma_semaphore, #tpu.memory_space<semaphore_mem>>
    %153 = tpu.memref_squeeze %152 : memref<1x!tpu.dma_semaphore, #tpu.memory_space<semaphore_mem>> -> memref<!tpu.dma_semaphore, #tpu.memory_space<semaphore_mem>>
    tpu.enqueue_dma source(%149 : memref<128xf32, #tpu.memory_space<any>>) target(%151 : memref<128xf32, #tpu.memory_space<vmem>>) target_semaphore(%153 : memref<!tpu.dma_semaphore, #tpu.memory_space<semaphore_mem>>)
    %c0_92 = arith.constant 0 : index
    %c3_93 = arith.constant 3 : index
    %154 = memref.load %arg2[%c0_92, %c3_93] : memref<2x5xi32, #tpu.memory_space<smem>>
    %c24_i32_94 = arith.constant 24 : i32
    %c22_i32 = arith.constant 22 : i32
    %c0_i32_95 = arith.constant 0 : i32
    %155 = tpu.memref_slice %arg4[%154, %c0_i32_95] : memref<10000x128xf32, #tpu.memory_space<any>> -> memref<1x128xf32, #tpu.memory_space<any>>
    %156 = tpu.memref_squeeze %155 : memref<1x128xf32, #tpu.memory_space<any>> -> memref<128xf32, #tpu.memory_space<any>>
    %c0_i32_96 = arith.constant 0 : i32
    %157 = tpu.memref_slice %arg15[%c24_i32_94, %c0_i32_96] : memref<40x128xf32, #tpu.memory_space<vmem>> -> memref<1x128xf32, #tpu.memory_space<vmem>>
    %158 = tpu.memref_squeeze %157 : memref<1x128xf32, #tpu.memory_space<vmem>> -> memref<128xf32, #tpu.memory_space<vmem>>
    %159 = tpu.memref_slice %arg18[%c22_i32] : memref<26x!tpu.dma_semaphore, #tpu.memory_space<semaphore_mem>> -> memref<1x!tpu.dma_semaphore, #tpu.memory_space<semaphore_mem>>
    %160 = tpu.memref_squeeze %159 : memref<1x!tpu.dma_semaphore, #tpu.memory_space<semaphore_mem>> -> memref<!tpu.dma_semaphore, #tpu.memory_space<semaphore_mem>>
    tpu.enqueue_dma source(%156 : memref<128xf32, #tpu.memory_space<any>>) target(%158 : memref<128xf32, #tpu.memory_space<vmem>>) target_semaphore(%160 : memref<!tpu.dma_semaphore, #tpu.memory_space<semaphore_mem>>)
    %c1_97 = arith.constant 1 : index
    %c3_98 = arith.constant 3 : index
    %161 = memref.load %arg2[%c1_97, %c3_98] : memref<2x5xi32, #tpu.memory_space<smem>>
    %c25_i32_99 = arith.constant 25 : i32
    %c23_i32 = arith.constant 23 : i32
    %c0_i32_100 = arith.constant 0 : i32
    %162 = tpu.memref_slice %arg4[%161, %c0_i32_100] : memref<10000x128xf32, #tpu.memory_space<any>> -> memref<1x128xf32, #tpu.memory_space<any>>
    %163 = tpu.memref_squeeze %162 : memref<1x128xf32, #tpu.memory_space<any>> -> memref<128xf32, #tpu.memory_space<any>>
    %c0_i32_101 = arith.constant 0 : i32
    %164 = tpu.memref_slice %arg15[%c25_i32_99, %c0_i32_101] : memref<40x128xf32, #tpu.memory_space<vmem>> -> memref<1x128xf32, #tpu.memory_space<vmem>>
    %165 = tpu.memref_squeeze %164 : memref<1x128xf32, #tpu.memory_space<vmem>> -> memref<128xf32, #tpu.memory_space<vmem>>
    %166 = tpu.memref_slice %arg18[%c23_i32] : memref<26x!tpu.dma_semaphore, #tpu.memory_space<semaphore_mem>> -> memref<1x!tpu.dma_semaphore, #tpu.memory_space<semaphore_mem>>
    %167 = tpu.memref_squeeze %166 : memref<1x!tpu.dma_semaphore, #tpu.memory_space<semaphore_mem>> -> memref<!tpu.dma_semaphore, #tpu.memory_space<semaphore_mem>>
    tpu.enqueue_dma source(%163 : memref<128xf32, #tpu.memory_space<any>>) target(%165 : memref<128xf32, #tpu.memory_space<vmem>>) target_semaphore(%167 : memref<!tpu.dma_semaphore, #tpu.memory_space<semaphore_mem>>)
    %c0_102 = arith.constant 0 : index
    %c4_103 = arith.constant 4 : index
    %168 = memref.load %arg2[%c0_102, %c4_103] : memref<2x5xi32, #tpu.memory_space<smem>>
    %c32_i32_104 = arith.constant 32 : i32
    %c24_i32_105 = arith.constant 24 : i32
    %c0_i32_106 = arith.constant 0 : i32
    %169 = tpu.memref_slice %arg4[%168, %c0_i32_106] : memref<10000x128xf32, #tpu.memory_space<any>> -> memref<1x128xf32, #tpu.memory_space<any>>
    %170 = tpu.memref_squeeze %169 : memref<1x128xf32, #tpu.memory_space<any>> -> memref<128xf32, #tpu.memory_space<any>>
    %c0_i32_107 = arith.constant 0 : i32
    %171 = tpu.memref_slice %arg15[%c32_i32_104, %c0_i32_107] : memref<40x128xf32, #tpu.memory_space<vmem>> -> memref<1x128xf32, #tpu.memory_space<vmem>>
    %172 = tpu.memref_squeeze %171 : memref<1x128xf32, #tpu.memory_space<vmem>> -> memref<128xf32, #tpu.memory_space<vmem>>
    %173 = tpu.memref_slice %arg18[%c24_i32_105] : memref<26x!tpu.dma_semaphore, #tpu.memory_space<semaphore_mem>> -> memref<1x!tpu.dma_semaphore, #tpu.memory_space<semaphore_mem>>
    %174 = tpu.memref_squeeze %173 : memref<1x!tpu.dma_semaphore, #tpu.memory_space<semaphore_mem>> -> memref<!tpu.dma_semaphore, #tpu.memory_space<semaphore_mem>>
    tpu.enqueue_dma source(%170 : memref<128xf32, #tpu.memory_space<any>>) target(%172 : memref<128xf32, #tpu.memory_space<vmem>>) target_semaphore(%174 : memref<!tpu.dma_semaphore, #tpu.memory_space<semaphore_mem>>)
    %c1_108 = arith.constant 1 : index
    %c4_109 = arith.constant 4 : index
    %175 = memref.load %arg2[%c1_108, %c4_109] : memref<2x5xi32, #tpu.memory_space<smem>>
    %c33_i32_110 = arith.constant 33 : i32
    %c25_i32_111 = arith.constant 25 : i32
    %c0_i32_112 = arith.constant 0 : i32
    %176 = tpu.memref_slice %arg4[%175, %c0_i32_112] : memref<10000x128xf32, #tpu.memory_space<any>> -> memref<1x128xf32, #tpu.memory_space<any>>
    %177 = tpu.memref_squeeze %176 : memref<1x128xf32, #tpu.memory_space<any>> -> memref<128xf32, #tpu.memory_space<any>>
    %c0_i32_113 = arith.constant 0 : i32
    %178 = tpu.memref_slice %arg15[%c33_i32_110, %c0_i32_113] : memref<40x128xf32, #tpu.memory_space<vmem>> -> memref<1x128xf32, #tpu.memory_space<vmem>>
    %179 = tpu.memref_squeeze %178 : memref<1x128xf32, #tpu.memory_space<vmem>> -> memref<128xf32, #tpu.memory_space<vmem>>
    %180 = tpu.memref_slice %arg18[%c25_i32_111] : memref<26x!tpu.dma_semaphore, #tpu.memory_space<semaphore_mem>> -> memref<1x!tpu.dma_semaphore, #tpu.memory_space<semaphore_mem>>
    %181 = tpu.memref_squeeze %180 : memref<1x!tpu.dma_semaphore, #tpu.memory_space<semaphore_mem>> -> memref<!tpu.dma_semaphore, #tpu.memory_space<semaphore_mem>>
    tpu.enqueue_dma source(%177 : memref<128xf32, #tpu.memory_space<any>>) target(%179 : memref<128xf32, #tpu.memory_space<vmem>>) target_semaphore(%181 : memref<!tpu.dma_semaphore, #tpu.memory_space<semaphore_mem>>)
    %c0_114 = arith.constant 0 : index
    %c0_115 = arith.constant 0 : index
    %182 = vector.load %arg0[%c0_114, %c0_115] : memref<2x32xf32, #tpu.memory_space<vmem>>, vector<2x32xf32>
    %cst = arith.constant 0.000000e+00 : f32
    %183 = vector.broadcast %cst : f32 to vector<6x32xf32>
    %184 = tpu.concatenate %182, %183 in 0 : vector<2x32xf32>, vector<6x32xf32> -> vector<8x32xf32>
    %c0_116 = arith.constant 0 : index
    %c0_117 = arith.constant 0 : index
    %185 = vector.load %arg8[%c0_116, %c0_117] : memref<32x128xbf16, #tpu.memory_space<vmem>>, vector<32x128xbf16>
    %186 = arith.truncf %184 : vector<8x32xf32> to vector<8x32xbf16>
    %cst_118 = arith.constant dense<0.000000e+00> : vector<8x128xf32>
    %187 = tpu.matmul %186, %185, %cst_118 {dimension_numbers = #tpu.dot_dimension_numbers<[1], [0], [0], [1], [0, 0, 1, 1], [], []>} : vector<8x32xbf16>, vector<32x128xbf16>, vector<8x128xf32> -> vector<8x128xf32>
    %c0_119 = arith.constant 0 : index
    %c0_120 = arith.constant 0 : index
    %188 = vector.load %arg12[%c0_119, %c0_120] : memref<9x128xf32, #tpu.memory_space<vmem>>, vector<1x128xf32>
    %189 = vector.broadcast %188 : vector<1x128xf32> to vector<8x128xf32>
    %190 = arith.addf %187, %189 : vector<8x128xf32>
    %cst_121 = arith.constant 0.000000e+00 : f32
    %191 = vector.broadcast %cst_121 : f32 to vector<8x128xf32>
    %192 = arith.maximumf %190, %191 : vector<8x128xf32>
    %c0_122 = arith.constant 0 : index
    %c0_123 = arith.constant 0 : index
    %c0_124 = arith.constant 0 : index
    %193 = vector.load %arg9[%c0_122, %c0_123, %c0_124] : memref<3x128x128xbf16, #tpu.memory_space<vmem>>, vector<1x128x128xbf16>
    %194 = vector.shape_cast %193 : vector<1x128x128xbf16> to vector<128x128xbf16>
    %195 = arith.truncf %192 : vector<8x128xf32> to vector<8x128xbf16>
    %cst_125 = arith.constant dense<0.000000e+00> : vector<8x128xf32>
    %196 = tpu.matmul %195, %194, %cst_125 {dimension_numbers = #tpu.dot_dimension_numbers<[1], [0], [0], [1], [0, 0, 1, 1], [], []>} : vector<8x128xbf16>, vector<128x128xbf16>, vector<8x128xf32> -> vector<8x128xf32>
    %c1_126 = arith.constant 1 : index
    %c0_127 = arith.constant 0 : index
    %197 = vector.load %arg12[%c1_126, %c0_127] : memref<9x128xf32, #tpu.memory_space<vmem>>, vector<1x128xf32>
    %198 = vector.broadcast %197 : vector<1x128xf32> to vector<8x128xf32>
    %199 = arith.addf %196, %198 : vector<8x128xf32>
    %cst_128 = arith.constant 0.000000e+00 : f32
    %200 = vector.broadcast %cst_128 : f32 to vector<8x128xf32>
    %201 = arith.maximumf %199, %200 : vector<8x128xf32>
    %c0_i32_129 = arith.constant 0 : i32
    %c0_i32_130 = arith.constant 0 : i32
    %c0_i32_131 = arith.constant 0 : i32
    %202 = tpu.memref_slice %arg3[%0, %c0_i32_131] : memref<100x128xf32, #tpu.memory_space<any>> -> memref<1x128xf32, #tpu.memory_space<any>>
    %203 = tpu.memref_squeeze %202 : memref<1x128xf32, #tpu.memory_space<any>> -> memref<128xf32, #tpu.memory_space<any>>
    %c0_i32_132 = arith.constant 0 : i32
    %204 = tpu.memref_slice %arg14[%c0_i32_129, %c0_i32_132] : memref<64x128xf32, #tpu.memory_space<vmem>> -> memref<1x128xf32, #tpu.memory_space<vmem>>
    %205 = tpu.memref_squeeze %204 : memref<1x128xf32, #tpu.memory_space<vmem>> -> memref<128xf32, #tpu.memory_space<vmem>>
    %206 = tpu.memref_slice %arg18[%c0_i32_130] : memref<26x!tpu.dma_semaphore, #tpu.memory_space<semaphore_mem>> -> memref<1x!tpu.dma_semaphore, #tpu.memory_space<semaphore_mem>>
    %207 = tpu.memref_squeeze %206 : memref<1x!tpu.dma_semaphore, #tpu.memory_space<semaphore_mem>> -> memref<!tpu.dma_semaphore, #tpu.memory_space<semaphore_mem>>
    tpu.wait_dma2 semaphore(%207 : memref<!tpu.dma_semaphore, #tpu.memory_space<semaphore_mem>>) src(%203 : memref<128xf32, #tpu.memory_space<any>>) dst(%205 : memref<128xf32, #tpu.memory_space<vmem>>)
    %c1_i32_133 = arith.constant 1 : i32
    %c1_i32_134 = arith.constant 1 : i32
    %c0_i32_135 = arith.constant 0 : i32
    %208 = tpu.memref_slice %arg3[%7, %c0_i32_135] : memref<100x128xf32, #tpu.memory_space<any>> -> memref<1x128xf32, #tpu.memory_space<any>>
    %209 = tpu.memref_squeeze %208 : memref<1x128xf32, #tpu.memory_space<any>> -> memref<128xf32, #tpu.memory_space<any>>
    %c0_i32_136 = arith.constant 0 : i32
    %210 = tpu.memref_slice %arg14[%c1_i32_133, %c0_i32_136] : memref<64x128xf32, #tpu.memory_space<vmem>> -> memref<1x128xf32, #tpu.memory_space<vmem>>
    %211 = tpu.memref_squeeze %210 : memref<1x128xf32, #tpu.memory_space<vmem>> -> memref<128xf32, #tpu.memory_space<vmem>>
    %212 = tpu.memref_slice %arg18[%c1_i32_134] : memref<26x!tpu.dma_semaphore, #tpu.memory_space<semaphore_mem>> -> memref<1x!tpu.dma_semaphore, #tpu.memory_space<semaphore_mem>>
    %213 = tpu.memref_squeeze %212 : memref<1x!tpu.dma_semaphore, #tpu.memory_space<semaphore_mem>> -> memref<!tpu.dma_semaphore, #tpu.memory_space<semaphore_mem>>
    tpu.wait_dma2 semaphore(%213 : memref<!tpu.dma_semaphore, #tpu.memory_space<semaphore_mem>>) src(%209 : memref<128xf32, #tpu.memory_space<any>>) dst(%211 : memref<128xf32, #tpu.memory_space<vmem>>)
    %c8_i32_137 = arith.constant 8 : i32
    %c2_i32_138 = arith.constant 2 : i32
    %c0_i32_139 = arith.constant 0 : i32
    %214 = tpu.memref_slice %arg3[%14, %c0_i32_139] : memref<100x128xf32, #tpu.memory_space<any>> -> memref<1x128xf32, #tpu.memory_space<any>>
    %215 = tpu.memref_squeeze %214 : memref<1x128xf32, #tpu.memory_space<any>> -> memref<128xf32, #tpu.memory_space<any>>
    %c0_i32_140 = arith.constant 0 : i32
    %216 = tpu.memref_slice %arg14[%c8_i32_137, %c0_i32_140] : memref<64x128xf32, #tpu.memory_space<vmem>> -> memref<1x128xf32, #tpu.memory_space<vmem>>
    %217 = tpu.memref_squeeze %216 : memref<1x128xf32, #tpu.memory_space<vmem>> -> memref<128xf32, #tpu.memory_space<vmem>>
    %218 = tpu.memref_slice %arg18[%c2_i32_138] : memref<26x!tpu.dma_semaphore, #tpu.memory_space<semaphore_mem>> -> memref<1x!tpu.dma_semaphore, #tpu.memory_space<semaphore_mem>>
    %219 = tpu.memref_squeeze %218 : memref<1x!tpu.dma_semaphore, #tpu.memory_space<semaphore_mem>> -> memref<!tpu.dma_semaphore, #tpu.memory_space<semaphore_mem>>
    tpu.wait_dma2 semaphore(%219 : memref<!tpu.dma_semaphore, #tpu.memory_space<semaphore_mem>>) src(%215 : memref<128xf32, #tpu.memory_space<any>>) dst(%217 : memref<128xf32, #tpu.memory_space<vmem>>)
    %c9_i32_141 = arith.constant 9 : i32
    %c3_i32_142 = arith.constant 3 : i32
    %c0_i32_143 = arith.constant 0 : i32
    %220 = tpu.memref_slice %arg3[%21, %c0_i32_143] : memref<100x128xf32, #tpu.memory_space<any>> -> memref<1x128xf32, #tpu.memory_space<any>>
    %221 = tpu.memref_squeeze %220 : memref<1x128xf32, #tpu.memory_space<any>> -> memref<128xf32, #tpu.memory_space<any>>
    %c0_i32_144 = arith.constant 0 : i32
    %222 = tpu.memref_slice %arg14[%c9_i32_141, %c0_i32_144] : memref<64x128xf32, #tpu.memory_space<vmem>> -> memref<1x128xf32, #tpu.memory_space<vmem>>
    %223 = tpu.memref_squeeze %222 : memref<1x128xf32, #tpu.memory_space<vmem>> -> memref<128xf32, #tpu.memory_space<vmem>>
    %224 = tpu.memref_slice %arg18[%c3_i32_142] : memref<26x!tpu.dma_semaphore, #tpu.memory_space<semaphore_mem>> -> memref<1x!tpu.dma_semaphore, #tpu.memory_space<semaphore_mem>>
    %225 = tpu.memref_squeeze %224 : memref<1x!tpu.dma_semaphore, #tpu.memory_space<semaphore_mem>> -> memref<!tpu.dma_semaphore, #tpu.memory_space<semaphore_mem>>
    tpu.wait_dma2 semaphore(%225 : memref<!tpu.dma_semaphore, #tpu.memory_space<semaphore_mem>>) src(%221 : memref<128xf32, #tpu.memory_space<any>>) dst(%223 : memref<128xf32, #tpu.memory_space<vmem>>)
    %c16_i32_145 = arith.constant 16 : i32
    %c4_i32_146 = arith.constant 4 : i32
    %c0_i32_147 = arith.constant 0 : i32
    %226 = tpu.memref_slice %arg3[%28, %c0_i32_147] : memref<100x128xf32, #tpu.memory_space<any>> -> memref<1x128xf32, #tpu.memory_space<any>>
    %227 = tpu.memref_squeeze %226 : memref<1x128xf32, #tpu.memory_space<any>> -> memref<128xf32, #tpu.memory_space<any>>
    %c0_i32_148 = arith.constant 0 : i32
    %228 = tpu.memref_slice %arg14[%c16_i32_145, %c0_i32_148] : memref<64x128xf32, #tpu.memory_space<vmem>> -> memref<1x128xf32, #tpu.memory_space<vmem>>
    %229 = tpu.memref_squeeze %228 : memref<1x128xf32, #tpu.memory_space<vmem>> -> memref<128xf32, #tpu.memory_space<vmem>>
    %230 = tpu.memref_slice %arg18[%c4_i32_146] : memref<26x!tpu.dma_semaphore, #tpu.memory_space<semaphore_mem>> -> memref<1x!tpu.dma_semaphore, #tpu.memory_space<semaphore_mem>>
    %231 = tpu.memref_squeeze %230 : memref<1x!tpu.dma_semaphore, #tpu.memory_space<semaphore_mem>> -> memref<!tpu.dma_semaphore, #tpu.memory_space<semaphore_mem>>
    tpu.wait_dma2 semaphore(%231 : memref<!tpu.dma_semaphore, #tpu.memory_space<semaphore_mem>>) src(%227 : memref<128xf32, #tpu.memory_space<any>>) dst(%229 : memref<128xf32, #tpu.memory_space<vmem>>)
    %c17_i32_149 = arith.constant 17 : i32
    %c5_i32_150 = arith.constant 5 : i32
    %c0_i32_151 = arith.constant 0 : i32
    %232 = tpu.memref_slice %arg3[%35, %c0_i32_151] : memref<100x128xf32, #tpu.memory_space<any>> -> memref<1x128xf32, #tpu.memory_space<any>>
    %233 = tpu.memref_squeeze %232 : memref<1x128xf32, #tpu.memory_space<any>> -> memref<128xf32, #tpu.memory_space<any>>
    %c0_i32_152 = arith.constant 0 : i32
    %234 = tpu.memref_slice %arg14[%c17_i32_149, %c0_i32_152] : memref<64x128xf32, #tpu.memory_space<vmem>> -> memref<1x128xf32, #tpu.memory_space<vmem>>
    %235 = tpu.memref_squeeze %234 : memref<1x128xf32, #tpu.memory_space<vmem>> -> memref<128xf32, #tpu.memory_space<vmem>>
    %236 = tpu.memref_slice %arg18[%c5_i32_150] : memref<26x!tpu.dma_semaphore, #tpu.memory_space<semaphore_mem>> -> memref<1x!tpu.dma_semaphore, #tpu.memory_space<semaphore_mem>>
    %237 = tpu.memref_squeeze %236 : memref<1x!tpu.dma_semaphore, #tpu.memory_space<semaphore_mem>> -> memref<!tpu.dma_semaphore, #tpu.memory_space<semaphore_mem>>
    tpu.wait_dma2 semaphore(%237 : memref<!tpu.dma_semaphore, #tpu.memory_space<semaphore_mem>>) src(%233 : memref<128xf32, #tpu.memory_space<any>>) dst(%235 : memref<128xf32, #tpu.memory_space<vmem>>)
    %c24_i32_153 = arith.constant 24 : i32
    %c6_i32_154 = arith.constant 6 : i32
    %c0_i32_155 = arith.constant 0 : i32
    %238 = tpu.memref_slice %arg3[%42, %c0_i32_155] : memref<100x128xf32, #tpu.memory_space<any>> -> memref<1x128xf32, #tpu.memory_space<any>>
    %239 = tpu.memref_squeeze %238 : memref<1x128xf32, #tpu.memory_space<any>> -> memref<128xf32, #tpu.memory_space<any>>
    %c0_i32_156 = arith.constant 0 : i32
    %240 = tpu.memref_slice %arg14[%c24_i32_153, %c0_i32_156] : memref<64x128xf32, #tpu.memory_space<vmem>> -> memref<1x128xf32, #tpu.memory_space<vmem>>
    %241 = tpu.memref_squeeze %240 : memref<1x128xf32, #tpu.memory_space<vmem>> -> memref<128xf32, #tpu.memory_space<vmem>>
    %242 = tpu.memref_slice %arg18[%c6_i32_154] : memref<26x!tpu.dma_semaphore, #tpu.memory_space<semaphore_mem>> -> memref<1x!tpu.dma_semaphore, #tpu.memory_space<semaphore_mem>>
    %243 = tpu.memref_squeeze %242 : memref<1x!tpu.dma_semaphore, #tpu.memory_space<semaphore_mem>> -> memref<!tpu.dma_semaphore, #tpu.memory_space<semaphore_mem>>
    tpu.wait_dma2 semaphore(%243 : memref<!tpu.dma_semaphore, #tpu.memory_space<semaphore_mem>>) src(%239 : memref<128xf32, #tpu.memory_space<any>>) dst(%241 : memref<128xf32, #tpu.memory_space<vmem>>)
    %c25_i32_157 = arith.constant 25 : i32
    %c7_i32_158 = arith.constant 7 : i32
    %c0_i32_159 = arith.constant 0 : i32
    %244 = tpu.memref_slice %arg3[%49, %c0_i32_159] : memref<100x128xf32, #tpu.memory_space<any>> -> memref<1x128xf32, #tpu.memory_space<any>>
    %245 = tpu.memref_squeeze %244 : memref<1x128xf32, #tpu.memory_space<any>> -> memref<128xf32, #tpu.memory_space<any>>
    %c0_i32_160 = arith.constant 0 : i32
    %246 = tpu.memref_slice %arg14[%c25_i32_157, %c0_i32_160] : memref<64x128xf32, #tpu.memory_space<vmem>> -> memref<1x128xf32, #tpu.memory_space<vmem>>
    %247 = tpu.memref_squeeze %246 : memref<1x128xf32, #tpu.memory_space<vmem>> -> memref<128xf32, #tpu.memory_space<vmem>>
    %248 = tpu.memref_slice %arg18[%c7_i32_158] : memref<26x!tpu.dma_semaphore, #tpu.memory_space<semaphore_mem>> -> memref<1x!tpu.dma_semaphore, #tpu.memory_space<semaphore_mem>>
    %249 = tpu.memref_squeeze %248 : memref<1x!tpu.dma_semaphore, #tpu.memory_space<semaphore_mem>> -> memref<!tpu.dma_semaphore, #tpu.memory_space<semaphore_mem>>
    tpu.wait_dma2 semaphore(%249 : memref<!tpu.dma_semaphore, #tpu.memory_space<semaphore_mem>>) src(%245 : memref<128xf32, #tpu.memory_space<any>>) dst(%247 : memref<128xf32, #tpu.memory_space<vmem>>)
    %c32_i32_161 = arith.constant 32 : i32
    %c8_i32_162 = arith.constant 8 : i32
    %c0_i32_163 = arith.constant 0 : i32
    %250 = tpu.memref_slice %arg3[%56, %c0_i32_163] : memref<100x128xf32, #tpu.memory_space<any>> -> memref<1x128xf32, #tpu.memory_space<any>>
    %251 = tpu.memref_squeeze %250 : memref<1x128xf32, #tpu.memory_space<any>> -> memref<128xf32, #tpu.memory_space<any>>
    %c0_i32_164 = arith.constant 0 : i32
    %252 = tpu.memref_slice %arg14[%c32_i32_161, %c0_i32_164] : memref<64x128xf32, #tpu.memory_space<vmem>> -> memref<1x128xf32, #tpu.memory_space<vmem>>
    %253 = tpu.memref_squeeze %252 : memref<1x128xf32, #tpu.memory_space<vmem>> -> memref<128xf32, #tpu.memory_space<vmem>>
    %254 = tpu.memref_slice %arg18[%c8_i32_162] : memref<26x!tpu.dma_semaphore, #tpu.memory_space<semaphore_mem>> -> memref<1x!tpu.dma_semaphore, #tpu.memory_space<semaphore_mem>>
    %255 = tpu.memref_squeeze %254 : memref<1x!tpu.dma_semaphore, #tpu.memory_space<semaphore_mem>> -> memref<!tpu.dma_semaphore, #tpu.memory_space<semaphore_mem>>
    tpu.wait_dma2 semaphore(%255 : memref<!tpu.dma_semaphore, #tpu.memory_space<semaphore_mem>>) src(%251 : memref<128xf32, #tpu.memory_space<any>>) dst(%253 : memref<128xf32, #tpu.memory_space<vmem>>)
    %c33_i32_165 = arith.constant 33 : i32
    %c9_i32_166 = arith.constant 9 : i32
    %c0_i32_167 = arith.constant 0 : i32
    %256 = tpu.memref_slice %arg3[%63, %c0_i32_167] : memref<100x128xf32, #tpu.memory_space<any>> -> memref<1x128xf32, #tpu.memory_space<any>>
    %257 = tpu.memref_squeeze %256 : memref<1x128xf32, #tpu.memory_space<any>> -> memref<128xf32, #tpu.memory_space<any>>
    %c0_i32_168 = arith.constant 0 : i32
    %258 = tpu.memref_slice %arg14[%c33_i32_165, %c0_i32_168] : memref<64x128xf32, #tpu.memory_space<vmem>> -> memref<1x128xf32, #tpu.memory_space<vmem>>
    %259 = tpu.memref_squeeze %258 : memref<1x128xf32, #tpu.memory_space<vmem>> -> memref<128xf32, #tpu.memory_space<vmem>>
    %260 = tpu.memref_slice %arg18[%c9_i32_166] : memref<26x!tpu.dma_semaphore, #tpu.memory_space<semaphore_mem>> -> memref<1x!tpu.dma_semaphore, #tpu.memory_space<semaphore_mem>>
    %261 = tpu.memref_squeeze %260 : memref<1x!tpu.dma_semaphore, #tpu.memory_space<semaphore_mem>> -> memref<!tpu.dma_semaphore, #tpu.memory_space<semaphore_mem>>
    tpu.wait_dma2 semaphore(%261 : memref<!tpu.dma_semaphore, #tpu.memory_space<semaphore_mem>>) src(%257 : memref<128xf32, #tpu.memory_space<any>>) dst(%259 : memref<128xf32, #tpu.memory_space<vmem>>)
    %c40_i32_169 = arith.constant 40 : i32
    %c10_i32_170 = arith.constant 10 : i32
    %c0_i32_171 = arith.constant 0 : i32
    %262 = tpu.memref_slice %arg3[%70, %c0_i32_171] : memref<100x128xf32, #tpu.memory_space<any>> -> memref<1x128xf32, #tpu.memory_space<any>>
    %263 = tpu.memref_squeeze %262 : memref<1x128xf32, #tpu.memory_space<any>> -> memref<128xf32, #tpu.memory_space<any>>
    %c0_i32_172 = arith.constant 0 : i32
    %264 = tpu.memref_slice %arg14[%c40_i32_169, %c0_i32_172] : memref<64x128xf32, #tpu.memory_space<vmem>> -> memref<1x128xf32, #tpu.memory_space<vmem>>
    %265 = tpu.memref_squeeze %264 : memref<1x128xf32, #tpu.memory_space<vmem>> -> memref<128xf32, #tpu.memory_space<vmem>>
    %266 = tpu.memref_slice %arg18[%c10_i32_170] : memref<26x!tpu.dma_semaphore, #tpu.memory_space<semaphore_mem>> -> memref<1x!tpu.dma_semaphore, #tpu.memory_space<semaphore_mem>>
    %267 = tpu.memref_squeeze %266 : memref<1x!tpu.dma_semaphore, #tpu.memory_space<semaphore_mem>> -> memref<!tpu.dma_semaphore, #tpu.memory_space<semaphore_mem>>
    tpu.wait_dma2 semaphore(%267 : memref<!tpu.dma_semaphore, #tpu.memory_space<semaphore_mem>>) src(%263 : memref<128xf32, #tpu.memory_space<any>>) dst(%265 : memref<128xf32, #tpu.memory_space<vmem>>)
    %c41_i32_173 = arith.constant 41 : i32
    %c11_i32_174 = arith.constant 11 : i32
    %c0_i32_175 = arith.constant 0 : i32
    %268 = tpu.memref_slice %arg3[%77, %c0_i32_175] : memref<100x128xf32, #tpu.memory_space<any>> -> memref<1x128xf32, #tpu.memory_space<any>>
    %269 = tpu.memref_squeeze %268 : memref<1x128xf32, #tpu.memory_space<any>> -> memref<128xf32, #tpu.memory_space<any>>
    %c0_i32_176 = arith.constant 0 : i32
    %270 = tpu.memref_slice %arg14[%c41_i32_173, %c0_i32_176] : memref<64x128xf32, #tpu.memory_space<vmem>> -> memref<1x128xf32, #tpu.memory_space<vmem>>
    %271 = tpu.memref_squeeze %270 : memref<1x128xf32, #tpu.memory_space<vmem>> -> memref<128xf32, #tpu.memory_space<vmem>>
    %272 = tpu.memref_slice %arg18[%c11_i32_174] : memref<26x!tpu.dma_semaphore, #tpu.memory_space<semaphore_mem>> -> memref<1x!tpu.dma_semaphore, #tpu.memory_space<semaphore_mem>>
    %273 = tpu.memref_squeeze %272 : memref<1x!tpu.dma_semaphore, #tpu.memory_space<semaphore_mem>> -> memref<!tpu.dma_semaphore, #tpu.memory_space<semaphore_mem>>
    tpu.wait_dma2 semaphore(%273 : memref<!tpu.dma_semaphore, #tpu.memory_space<semaphore_mem>>) src(%269 : memref<128xf32, #tpu.memory_space<any>>) dst(%271 : memref<128xf32, #tpu.memory_space<vmem>>)
    %c48_i32_177 = arith.constant 48 : i32
    %c12_i32_178 = arith.constant 12 : i32
    %c0_i32_179 = arith.constant 0 : i32
    %274 = tpu.memref_slice %arg3[%84, %c0_i32_179] : memref<100x128xf32, #tpu.memory_space<any>> -> memref<1x128xf32, #tpu.memory_space<any>>
    %275 = tpu.memref_squeeze %274 : memref<1x128xf32, #tpu.memory_space<any>> -> memref<128xf32, #tpu.memory_space<any>>
    %c0_i32_180 = arith.constant 0 : i32
    %276 = tpu.memref_slice %arg14[%c48_i32_177, %c0_i32_180] : memref<64x128xf32, #tpu.memory_space<vmem>> -> memref<1x128xf32, #tpu.memory_space<vmem>>
    %277 = tpu.memref_squeeze %276 : memref<1x128xf32, #tpu.memory_space<vmem>> -> memref<128xf32, #tpu.memory_space<vmem>>
    %278 = tpu.memref_slice %arg18[%c12_i32_178] : memref<26x!tpu.dma_semaphore, #tpu.memory_space<semaphore_mem>> -> memref<1x!tpu.dma_semaphore, #tpu.memory_space<semaphore_mem>>
    %279 = tpu.memref_squeeze %278 : memref<1x!tpu.dma_semaphore, #tpu.memory_space<semaphore_mem>> -> memref<!tpu.dma_semaphore, #tpu.memory_space<semaphore_mem>>
    tpu.wait_dma2 semaphore(%279 : memref<!tpu.dma_semaphore, #tpu.memory_space<semaphore_mem>>) src(%275 : memref<128xf32, #tpu.memory_space<any>>) dst(%277 : memref<128xf32, #tpu.memory_space<vmem>>)
    %c49_i32_181 = arith.constant 49 : i32
    %c13_i32_182 = arith.constant 13 : i32
    %c0_i32_183 = arith.constant 0 : i32
    %280 = tpu.memref_slice %arg3[%91, %c0_i32_183] : memref<100x128xf32, #tpu.memory_space<any>> -> memref<1x128xf32, #tpu.memory_space<any>>
    %281 = tpu.memref_squeeze %280 : memref<1x128xf32, #tpu.memory_space<any>> -> memref<128xf32, #tpu.memory_space<any>>
    %c0_i32_184 = arith.constant 0 : i32
    %282 = tpu.memref_slice %arg14[%c49_i32_181, %c0_i32_184] : memref<64x128xf32, #tpu.memory_space<vmem>> -> memref<1x128xf32, #tpu.memory_space<vmem>>
    %283 = tpu.memref_squeeze %282 : memref<1x128xf32, #tpu.memory_space<vmem>> -> memref<128xf32, #tpu.memory_space<vmem>>
    %284 = tpu.memref_slice %arg18[%c13_i32_182] : memref<26x!tpu.dma_semaphore, #tpu.memory_space<semaphore_mem>> -> memref<1x!tpu.dma_semaphore, #tpu.memory_space<semaphore_mem>>
    %285 = tpu.memref_squeeze %284 : memref<1x!tpu.dma_semaphore, #tpu.memory_space<semaphore_mem>> -> memref<!tpu.dma_semaphore, #tpu.memory_space<semaphore_mem>>
    tpu.wait_dma2 semaphore(%285 : memref<!tpu.dma_semaphore, #tpu.memory_space<semaphore_mem>>) src(%281 : memref<128xf32, #tpu.memory_space<any>>) dst(%283 : memref<128xf32, #tpu.memory_space<vmem>>)
    %c56_i32_185 = arith.constant 56 : i32
    %c14_i32_186 = arith.constant 14 : i32
    %c0_i32_187 = arith.constant 0 : i32
    %286 = tpu.memref_slice %arg3[%98, %c0_i32_187] : memref<100x128xf32, #tpu.memory_space<any>> -> memref<1x128xf32, #tpu.memory_space<any>>
    %287 = tpu.memref_squeeze %286 : memref<1x128xf32, #tpu.memory_space<any>> -> memref<128xf32, #tpu.memory_space<any>>
    %c0_i32_188 = arith.constant 0 : i32
    %288 = tpu.memref_slice %arg14[%c56_i32_185, %c0_i32_188] : memref<64x128xf32, #tpu.memory_space<vmem>> -> memref<1x128xf32, #tpu.memory_space<vmem>>
    %289 = tpu.memref_squeeze %288 : memref<1x128xf32, #tpu.memory_space<vmem>> -> memref<128xf32, #tpu.memory_space<vmem>>
    %290 = tpu.memref_slice %arg18[%c14_i32_186] : memref<26x!tpu.dma_semaphore, #tpu.memory_space<semaphore_mem>> -> memref<1x!tpu.dma_semaphore, #tpu.memory_space<semaphore_mem>>
    %291 = tpu.memref_squeeze %290 : memref<1x!tpu.dma_semaphore, #tpu.memory_space<semaphore_mem>> -> memref<!tpu.dma_semaphore, #tpu.memory_space<semaphore_mem>>
    tpu.wait_dma2 semaphore(%291 : memref<!tpu.dma_semaphore, #tpu.memory_space<semaphore_mem>>) src(%287 : memref<128xf32, #tpu.memory_space<any>>) dst(%289 : memref<128xf32, #tpu.memory_space<vmem>>)
    %c57_i32_189 = arith.constant 57 : i32
    %c15_i32_190 = arith.constant 15 : i32
    %c0_i32_191 = arith.constant 0 : i32
    %292 = tpu.memref_slice %arg3[%105, %c0_i32_191] : memref<100x128xf32, #tpu.memory_space<any>> -> memref<1x128xf32, #tpu.memory_space<any>>
    %293 = tpu.memref_squeeze %292 : memref<1x128xf32, #tpu.memory_space<any>> -> memref<128xf32, #tpu.memory_space<any>>
    %c0_i32_192 = arith.constant 0 : i32
    %294 = tpu.memref_slice %arg14[%c57_i32_189, %c0_i32_192] : memref<64x128xf32, #tpu.memory_space<vmem>> -> memref<1x128xf32, #tpu.memory_space<vmem>>
    %295 = tpu.memref_squeeze %294 : memref<1x128xf32, #tpu.memory_space<vmem>> -> memref<128xf32, #tpu.memory_space<vmem>>
    %296 = tpu.memref_slice %arg18[%c15_i32_190] : memref<26x!tpu.dma_semaphore, #tpu.memory_space<semaphore_mem>> -> memref<1x!tpu.dma_semaphore, #tpu.memory_space<semaphore_mem>>
    %297 = tpu.memref_squeeze %296 : memref<1x!tpu.dma_semaphore, #tpu.memory_space<semaphore_mem>> -> memref<!tpu.dma_semaphore, #tpu.memory_space<semaphore_mem>>
    tpu.wait_dma2 semaphore(%297 : memref<!tpu.dma_semaphore, #tpu.memory_space<semaphore_mem>>) src(%293 : memref<128xf32, #tpu.memory_space<any>>) dst(%295 : memref<128xf32, #tpu.memory_space<vmem>>)
    %c0_i32_193 = arith.constant 0 : i32
    %c16_i32_194 = arith.constant 16 : i32
    %c0_i32_195 = arith.constant 0 : i32
    %298 = tpu.memref_slice %arg4[%112, %c0_i32_195] : memref<10000x128xf32, #tpu.memory_space<any>> -> memref<1x128xf32, #tpu.memory_space<any>>
    %299 = tpu.memref_squeeze %298 : memref<1x128xf32, #tpu.memory_space<any>> -> memref<128xf32, #tpu.memory_space<any>>
    %c0_i32_196 = arith.constant 0 : i32
    %300 = tpu.memref_slice %arg15[%c0_i32_193, %c0_i32_196] : memref<40x128xf32, #tpu.memory_space<vmem>> -> memref<1x128xf32, #tpu.memory_space<vmem>>
    %301 = tpu.memref_squeeze %300 : memref<1x128xf32, #tpu.memory_space<vmem>> -> memref<128xf32, #tpu.memory_space<vmem>>
    %302 = tpu.memref_slice %arg18[%c16_i32_194] : memref<26x!tpu.dma_semaphore, #tpu.memory_space<semaphore_mem>> -> memref<1x!tpu.dma_semaphore, #tpu.memory_space<semaphore_mem>>
    %303 = tpu.memref_squeeze %302 : memref<1x!tpu.dma_semaphore, #tpu.memory_space<semaphore_mem>> -> memref<!tpu.dma_semaphore, #tpu.memory_space<semaphore_mem>>
    tpu.wait_dma2 semaphore(%303 : memref<!tpu.dma_semaphore, #tpu.memory_space<semaphore_mem>>) src(%299 : memref<128xf32, #tpu.memory_space<any>>) dst(%301 : memref<128xf32, #tpu.memory_space<vmem>>)
    %c1_i32_197 = arith.constant 1 : i32
    %c17_i32_198 = arith.constant 17 : i32
    %c0_i32_199 = arith.constant 0 : i32
    %304 = tpu.memref_slice %arg4[%119, %c0_i32_199] : memref<10000x128xf32, #tpu.memory_space<any>> -> memref<1x128xf32, #tpu.memory_space<any>>
    %305 = tpu.memref_squeeze %304 : memref<1x128xf32, #tpu.memory_space<any>> -> memref<128xf32, #tpu.memory_space<any>>
    %c0_i32_200 = arith.constant 0 : i32
    %306 = tpu.memref_slice %arg15[%c1_i32_197, %c0_i32_200] : memref<40x128xf32, #tpu.memory_space<vmem>> -> memref<1x128xf32, #tpu.memory_space<vmem>>
    %307 = tpu.memref_squeeze %306 : memref<1x128xf32, #tpu.memory_space<vmem>> -> memref<128xf32, #tpu.memory_space<vmem>>
    %308 = tpu.memref_slice %arg18[%c17_i32_198] : memref<26x!tpu.dma_semaphore, #tpu.memory_space<semaphore_mem>> -> memref<1x!tpu.dma_semaphore, #tpu.memory_space<semaphore_mem>>
    %309 = tpu.memref_squeeze %308 : memref<1x!tpu.dma_semaphore, #tpu.memory_space<semaphore_mem>> -> memref<!tpu.dma_semaphore, #tpu.memory_space<semaphore_mem>>
    tpu.wait_dma2 semaphore(%309 : memref<!tpu.dma_semaphore, #tpu.memory_space<semaphore_mem>>) src(%305 : memref<128xf32, #tpu.memory_space<any>>) dst(%307 : memref<128xf32, #tpu.memory_space<vmem>>)
    %c8_i32_201 = arith.constant 8 : i32
    %c18_i32_202 = arith.constant 18 : i32
    %c0_i32_203 = arith.constant 0 : i32
    %310 = tpu.memref_slice %arg4[%126, %c0_i32_203] : memref<10000x128xf32, #tpu.memory_space<any>> -> memref<1x128xf32, #tpu.memory_space<any>>
    %311 = tpu.memref_squeeze %310 : memref<1x128xf32, #tpu.memory_space<any>> -> memref<128xf32, #tpu.memory_space<any>>
    %c0_i32_204 = arith.constant 0 : i32
    %312 = tpu.memref_slice %arg15[%c8_i32_201, %c0_i32_204] : memref<40x128xf32, #tpu.memory_space<vmem>> -> memref<1x128xf32, #tpu.memory_space<vmem>>
    %313 = tpu.memref_squeeze %312 : memref<1x128xf32, #tpu.memory_space<vmem>> -> memref<128xf32, #tpu.memory_space<vmem>>
    %314 = tpu.memref_slice %arg18[%c18_i32_202] : memref<26x!tpu.dma_semaphore, #tpu.memory_space<semaphore_mem>> -> memref<1x!tpu.dma_semaphore, #tpu.memory_space<semaphore_mem>>
    %315 = tpu.memref_squeeze %314 : memref<1x!tpu.dma_semaphore, #tpu.memory_space<semaphore_mem>> -> memref<!tpu.dma_semaphore, #tpu.memory_space<semaphore_mem>>
    tpu.wait_dma2 semaphore(%315 : memref<!tpu.dma_semaphore, #tpu.memory_space<semaphore_mem>>) src(%311 : memref<128xf32, #tpu.memory_space<any>>) dst(%313 : memref<128xf32, #tpu.memory_space<vmem>>)
    %c9_i32_205 = arith.constant 9 : i32
    %c19_i32_206 = arith.constant 19 : i32
    %c0_i32_207 = arith.constant 0 : i32
    %316 = tpu.memref_slice %arg4[%133, %c0_i32_207] : memref<10000x128xf32, #tpu.memory_space<any>> -> memref<1x128xf32, #tpu.memory_space<any>>
    %317 = tpu.memref_squeeze %316 : memref<1x128xf32, #tpu.memory_space<any>> -> memref<128xf32, #tpu.memory_space<any>>
    %c0_i32_208 = arith.constant 0 : i32
    %318 = tpu.memref_slice %arg15[%c9_i32_205, %c0_i32_208] : memref<40x128xf32, #tpu.memory_space<vmem>> -> memref<1x128xf32, #tpu.memory_space<vmem>>
    %319 = tpu.memref_squeeze %318 : memref<1x128xf32, #tpu.memory_space<vmem>> -> memref<128xf32, #tpu.memory_space<vmem>>
    %320 = tpu.memref_slice %arg18[%c19_i32_206] : memref<26x!tpu.dma_semaphore, #tpu.memory_space<semaphore_mem>> -> memref<1x!tpu.dma_semaphore, #tpu.memory_space<semaphore_mem>>
    %321 = tpu.memref_squeeze %320 : memref<1x!tpu.dma_semaphore, #tpu.memory_space<semaphore_mem>> -> memref<!tpu.dma_semaphore, #tpu.memory_space<semaphore_mem>>
    tpu.wait_dma2 semaphore(%321 : memref<!tpu.dma_semaphore, #tpu.memory_space<semaphore_mem>>) src(%317 : memref<128xf32, #tpu.memory_space<any>>) dst(%319 : memref<128xf32, #tpu.memory_space<vmem>>)
    %c16_i32_209 = arith.constant 16 : i32
    %c20_i32_210 = arith.constant 20 : i32
    %c0_i32_211 = arith.constant 0 : i32
    %322 = tpu.memref_slice %arg4[%140, %c0_i32_211] : memref<10000x128xf32, #tpu.memory_space<any>> -> memref<1x128xf32, #tpu.memory_space<any>>
    %323 = tpu.memref_squeeze %322 : memref<1x128xf32, #tpu.memory_space<any>> -> memref<128xf32, #tpu.memory_space<any>>
    %c0_i32_212 = arith.constant 0 : i32
    %324 = tpu.memref_slice %arg15[%c16_i32_209, %c0_i32_212] : memref<40x128xf32, #tpu.memory_space<vmem>> -> memref<1x128xf32, #tpu.memory_space<vmem>>
    %325 = tpu.memref_squeeze %324 : memref<1x128xf32, #tpu.memory_space<vmem>> -> memref<128xf32, #tpu.memory_space<vmem>>
    %326 = tpu.memref_slice %arg18[%c20_i32_210] : memref<26x!tpu.dma_semaphore, #tpu.memory_space<semaphore_mem>> -> memref<1x!tpu.dma_semaphore, #tpu.memory_space<semaphore_mem>>
    %327 = tpu.memref_squeeze %326 : memref<1x!tpu.dma_semaphore, #tpu.memory_space<semaphore_mem>> -> memref<!tpu.dma_semaphore, #tpu.memory_space<semaphore_mem>>
    tpu.wait_dma2 semaphore(%327 : memref<!tpu.dma_semaphore, #tpu.memory_space<semaphore_mem>>) src(%323 : memref<128xf32, #tpu.memory_space<any>>) dst(%325 : memref<128xf32, #tpu.memory_space<vmem>>)
    %c17_i32_213 = arith.constant 17 : i32
    %c21_i32_214 = arith.constant 21 : i32
    %c0_i32_215 = arith.constant 0 : i32
    %328 = tpu.memref_slice %arg4[%147, %c0_i32_215] : memref<10000x128xf32, #tpu.memory_space<any>> -> memref<1x128xf32, #tpu.memory_space<any>>
    %329 = tpu.memref_squeeze %328 : memref<1x128xf32, #tpu.memory_space<any>> -> memref<128xf32, #tpu.memory_space<any>>
    %c0_i32_216 = arith.constant 0 : i32
    %330 = tpu.memref_slice %arg15[%c17_i32_213, %c0_i32_216] : memref<40x128xf32, #tpu.memory_space<vmem>> -> memref<1x128xf32, #tpu.memory_space<vmem>>
    %331 = tpu.memref_squeeze %330 : memref<1x128xf32, #tpu.memory_space<vmem>> -> memref<128xf32, #tpu.memory_space<vmem>>
    %332 = tpu.memref_slice %arg18[%c21_i32_214] : memref<26x!tpu.dma_semaphore, #tpu.memory_space<semaphore_mem>> -> memref<1x!tpu.dma_semaphore, #tpu.memory_space<semaphore_mem>>
    %333 = tpu.memref_squeeze %332 : memref<1x!tpu.dma_semaphore, #tpu.memory_space<semaphore_mem>> -> memref<!tpu.dma_semaphore, #tpu.memory_space<semaphore_mem>>
    tpu.wait_dma2 semaphore(%333 : memref<!tpu.dma_semaphore, #tpu.memory_space<semaphore_mem>>) src(%329 : memref<128xf32, #tpu.memory_space<any>>) dst(%331 : memref<128xf32, #tpu.memory_space<vmem>>)
    %c24_i32_217 = arith.constant 24 : i32
    %c22_i32_218 = arith.constant 22 : i32
    %c0_i32_219 = arith.constant 0 : i32
    %334 = tpu.memref_slice %arg4[%154, %c0_i32_219] : memref<10000x128xf32, #tpu.memory_space<any>> -> memref<1x128xf32, #tpu.memory_space<any>>
    %335 = tpu.memref_squeeze %334 : memref<1x128xf32, #tpu.memory_space<any>> -> memref<128xf32, #tpu.memory_space<any>>
    %c0_i32_220 = arith.constant 0 : i32
    %336 = tpu.memref_slice %arg15[%c24_i32_217, %c0_i32_220] : memref<40x128xf32, #tpu.memory_space<vmem>> -> memref<1x128xf32, #tpu.memory_space<vmem>>
    %337 = tpu.memref_squeeze %336 : memref<1x128xf32, #tpu.memory_space<vmem>> -> memref<128xf32, #tpu.memory_space<vmem>>
    %338 = tpu.memref_slice %arg18[%c22_i32_218] : memref<26x!tpu.dma_semaphore, #tpu.memory_space<semaphore_mem>> -> memref<1x!tpu.dma_semaphore, #tpu.memory_space<semaphore_mem>>
    %339 = tpu.memref_squeeze %338 : memref<1x!tpu.dma_semaphore, #tpu.memory_space<semaphore_mem>> -> memref<!tpu.dma_semaphore, #tpu.memory_space<semaphore_mem>>
    tpu.wait_dma2 semaphore(%339 : memref<!tpu.dma_semaphore, #tpu.memory_space<semaphore_mem>>) src(%335 : memref<128xf32, #tpu.memory_space<any>>) dst(%337 : memref<128xf32, #tpu.memory_space<vmem>>)
    %c25_i32_221 = arith.constant 25 : i32
    %c23_i32_222 = arith.constant 23 : i32
    %c0_i32_223 = arith.constant 0 : i32
    %340 = tpu.memref_slice %arg4[%161, %c0_i32_223] : memref<10000x128xf32, #tpu.memory_space<any>> -> memref<1x128xf32, #tpu.memory_space<any>>
    %341 = tpu.memref_squeeze %340 : memref<1x128xf32, #tpu.memory_space<any>> -> memref<128xf32, #tpu.memory_space<any>>
    %c0_i32_224 = arith.constant 0 : i32
    %342 = tpu.memref_slice %arg15[%c25_i32_221, %c0_i32_224] : memref<40x128xf32, #tpu.memory_space<vmem>> -> memref<1x128xf32, #tpu.memory_space<vmem>>
    %343 = tpu.memref_squeeze %342 : memref<1x128xf32, #tpu.memory_space<vmem>> -> memref<128xf32, #tpu.memory_space<vmem>>
    %344 = tpu.memref_slice %arg18[%c23_i32_222] : memref<26x!tpu.dma_semaphore, #tpu.memory_space<semaphore_mem>> -> memref<1x!tpu.dma_semaphore, #tpu.memory_space<semaphore_mem>>
    %345 = tpu.memref_squeeze %344 : memref<1x!tpu.dma_semaphore, #tpu.memory_space<semaphore_mem>> -> memref<!tpu.dma_semaphore, #tpu.memory_space<semaphore_mem>>
    tpu.wait_dma2 semaphore(%345 : memref<!tpu.dma_semaphore, #tpu.memory_space<semaphore_mem>>) src(%341 : memref<128xf32, #tpu.memory_space<any>>) dst(%343 : memref<128xf32, #tpu.memory_space<vmem>>)
    %c32_i32_225 = arith.constant 32 : i32
    %c24_i32_226 = arith.constant 24 : i32
    %c0_i32_227 = arith.constant 0 : i32
    %346 = tpu.memref_slice %arg4[%168, %c0_i32_227] : memref<10000x128xf32, #tpu.memory_space<any>> -> memref<1x128xf32, #tpu.memory_space<any>>
    %347 = tpu.memref_squeeze %346 : memref<1x128xf32, #tpu.memory_space<any>> -> memref<128xf32, #tpu.memory_space<any>>
    %c0_i32_228 = arith.constant 0 : i32
    %348 = tpu.memref_slice %arg15[%c32_i32_225, %c0_i32_228] : memref<40x128xf32, #tpu.memory_space<vmem>> -> memref<1x128xf32, #tpu.memory_space<vmem>>
    %349 = tpu.memref_squeeze %348 : memref<1x128xf32, #tpu.memory_space<vmem>> -> memref<128xf32, #tpu.memory_space<vmem>>
    %350 = tpu.memref_slice %arg18[%c24_i32_226] : memref<26x!tpu.dma_semaphore, #tpu.memory_space<semaphore_mem>> -> memref<1x!tpu.dma_semaphore, #tpu.memory_space<semaphore_mem>>
    %351 = tpu.memref_squeeze %350 : memref<1x!tpu.dma_semaphore, #tpu.memory_space<semaphore_mem>> -> memref<!tpu.dma_semaphore, #tpu.memory_space<semaphore_mem>>
    tpu.wait_dma2 semaphore(%351 : memref<!tpu.dma_semaphore, #tpu.memory_space<semaphore_mem>>) src(%347 : memref<128xf32, #tpu.memory_space<any>>) dst(%349 : memref<128xf32, #tpu.memory_space<vmem>>)
    %c33_i32_229 = arith.constant 33 : i32
    %c25_i32_230 = arith.constant 25 : i32
    %c0_i32_231 = arith.constant 0 : i32
    %352 = tpu.memref_slice %arg4[%175, %c0_i32_231] : memref<10000x128xf32, #tpu.memory_space<any>> -> memref<1x128xf32, #tpu.memory_space<any>>
    %353 = tpu.memref_squeeze %352 : memref<1x128xf32, #tpu.memory_space<any>> -> memref<128xf32, #tpu.memory_space<any>>
    %c0_i32_232 = arith.constant 0 : i32
    %354 = tpu.memref_slice %arg15[%c33_i32_229, %c0_i32_232] : memref<40x128xf32, #tpu.memory_space<vmem>> -> memref<1x128xf32, #tpu.memory_space<vmem>>
    %355 = tpu.memref_squeeze %354 : memref<1x128xf32, #tpu.memory_space<vmem>> -> memref<128xf32, #tpu.memory_space<vmem>>
    %356 = tpu.memref_slice %arg18[%c25_i32_230] : memref<26x!tpu.dma_semaphore, #tpu.memory_space<semaphore_mem>> -> memref<1x!tpu.dma_semaphore, #tpu.memory_space<semaphore_mem>>
    %357 = tpu.memref_squeeze %356 : memref<1x!tpu.dma_semaphore, #tpu.memory_space<semaphore_mem>> -> memref<!tpu.dma_semaphore, #tpu.memory_space<semaphore_mem>>
    tpu.wait_dma2 semaphore(%357 : memref<!tpu.dma_semaphore, #tpu.memory_space<semaphore_mem>>) src(%353 : memref<128xf32, #tpu.memory_space<any>>) dst(%355 : memref<128xf32, #tpu.memory_space<vmem>>)
    %c0_233 = arith.constant 0 : index
    %c0_234 = arith.constant 0 : index
    %358 = vector.load %arg14[%c0_233, %c0_234] : memref<64x128xf32, #tpu.memory_space<vmem>>, vector<64x128xf32>
    %c0_235 = arith.constant 0 : index
    %c0_236 = arith.constant 0 : index
    %c0_237 = arith.constant 0 : index
    %359 = vector.load %arg5[%c0_235, %c0_236, %c0_237] : memref<2x128x512xbf16, #tpu.memory_space<vmem>>, vector<1x128x512xbf16>
    %360 = vector.shape_cast %359 : vector<1x128x512xbf16> to vector<128x512xbf16>
    %361 = arith.truncf %358 : vector<64x128xf32> to vector<64x128xbf16>
    %cst_238 = arith.constant dense<0.000000e+00> : vector<64x512xf32>
    %362 = tpu.matmul %361, %360, %cst_238 {dimension_numbers = #tpu.dot_dimension_numbers<[1], [0], [0], [1], [0, 0, 1, 1], [], []>} : vector<64x128xbf16>, vector<128x512xbf16>, vector<64x512xf32> -> vector<64x512xf32>
    %c0_239 = arith.constant 0 : index
    %c0_240 = arith.constant 0 : index
    %363 = vector.load %arg7[%c0_239, %c0_240] : memref<2x512xf32, #tpu.memory_space<vmem>>, vector<1x512xf32>
    %364 = vector.broadcast %363 : vector<1x512xf32> to vector<64x512xf32>
    %365 = arith.addf %362, %364 : vector<64x512xf32>
    %c0_241 = arith.constant 0 : index
    %c0_242 = arith.constant 0 : index
    %366 = vector.load %arg16[%c0_241, %c0_242] : memref<64x512xf32, #tpu.memory_space<vmem>>, vector<64x512xf32>
    tpu.vector_store %arg16[%c0_241, %c0_242], %365 {strides = array<i32>} : memref<64x512xf32, #tpu.memory_space<vmem>>, vector<64x512xf32>,
    %c0_243 = arith.constant 0 : index
    %c0_244 = arith.constant 0 : index
    %367 = vector.load %arg15[%c0_243, %c0_244] : memref<40x128xf32, #tpu.memory_space<vmem>>, vector<40x128xf32>
    %c1_245 = arith.constant 1 : index
    %c0_246 = arith.constant 0 : index
    %c0_247 = arith.constant 0 : index
    %368 = vector.load %arg5[%c1_245, %c0_246, %c0_247] : memref<2x128x512xbf16, #tpu.memory_space<vmem>>, vector<1x128x512xbf16>
    %369 = vector.shape_cast %368 : vector<1x128x512xbf16> to vector<128x512xbf16>
    %370 = arith.truncf %367 : vector<40x128xf32> to vector<40x128xbf16>
    %cst_248 = arith.constant dense<0.000000e+00> : vector<40x512xf32>
    %371 = tpu.matmul %370, %369, %cst_248 {dimension_numbers = #tpu.dot_dimension_numbers<[1], [0], [0], [1], [0, 0, 1, 1], [], []>} : vector<40x128xbf16>, vector<128x512xbf16>, vector<40x512xf32> -> vector<40x512xf32>
    %c1_249 = arith.constant 1 : index
    %c0_250 = arith.constant 0 : index
    %372 = vector.load %arg7[%c1_249, %c0_250] : memref<2x512xf32, #tpu.memory_space<vmem>>, vector<1x512xf32>
    %373 = vector.broadcast %372 : vector<1x512xf32> to vector<40x512xf32>
    %374 = arith.addf %371, %373 : vector<40x512xf32>
    %c0_251 = arith.constant 0 : index
    %c0_252 = arith.constant 0 : index
    %375 = vector.load %arg17[%c0_251, %c0_252] : memref<40x512xf32, #tpu.memory_space<vmem>>, vector<40x512xf32>
    tpu.vector_store %arg17[%c0_251, %c0_252], %374 {strides = array<i32>} : memref<40x512xf32, #tpu.memory_space<vmem>>, vector<40x512xf32>,
    %cst_253 = arith.constant 0.000000e+00 : f32
    %376 = vector.broadcast %cst_253 : f32 to vector<8x128xf32>
    %cst_254 = arith.constant 0.000000e+00 : f32
    %377 = vector.broadcast %cst_254 : f32 to vector<8x128xf32>
    %cst_255 = arith.constant 0.000000e+00 : f32
    %378 = vector.broadcast %cst_255 : f32 to vector<8x128xf32>
    %cst_256 = arith.constant 0.000000e+00 : f32
    %379 = vector.broadcast %cst_256 : f32 to vector<8x128xf32>
    %380 = tpu.concatenate %376, %378 in 1 : vector<8x128xf32>, vector<8x128xf32> -> vector<8x256xf32>
    %c0_257 = arith.constant 0 : index
    %c0_258 = arith.constant 0 : index
    %381 = vector.load %arg6[%c0_257, %c0_258] : memref<256x1024xbf16, #tpu.memory_space<vmem>>, vector<256x1024xbf16>
    %382 = arith.truncf %380 : vector<8x256xf32> to vector<8x256xbf16>
    %cst_259 = arith.constant dense<0.000000e+00> : vector<8x1024xf32>
    %383 = tpu.matmul %382, %381, %cst_259 {dimension_numbers = #tpu.dot_dimension_numbers<[1], [0], [0], [1], [0, 0, 1, 1], [], []>} : vector<8x256xbf16>, vector<256x1024xbf16>, vector<8x1024xf32> -> vector<8x1024xf32>
    %c0_260 = arith.constant 0 : index
    %c0_261 = arith.constant 0 : index
    %384 = vector.load %arg16[%c0_260, %c0_261] : memref<64x512xf32, #tpu.memory_space<vmem>>, vector<8x512xf32>
    %385 = vector.extract_strided_slice %383 {offsets = [0, 0], sizes = [8, 512], strides = [1, 1]} : vector<8x1024xf32> to vector<8x512xf32>
    %386 = arith.addf %384, %385 : vector<8x512xf32>
    %387 = vector.extract_strided_slice %386 {offsets = [0, 0], sizes = [8, 128], strides = [1, 1]} : vector<8x512xf32> to vector<8x128xf32>
    %cst_262 = arith.constant 5.000000e-01 : f32
    %388 = vector.broadcast %cst_262 : f32 to vector<8x128xf32>
    %389 = arith.mulf %388, %387 : vector<8x128xf32>
    %390 = math.tanh %389 : vector<8x128xf32>
    %cst_263 = arith.constant 5.000000e-01 : f32
    %391 = vector.broadcast %cst_263 : f32 to vector<8x128xf32>
    %392 = arith.mulf %391, %390 : vector<8x128xf32>
    %cst_264 = arith.constant 5.000000e-01 : f32
    %393 = vector.broadcast %cst_264 : f32 to vector<8x128xf32>
    %394 = arith.addf %392, %393 : vector<8x128xf32>
    %395 = vector.extract_strided_slice %386 {offsets = [0, 128], sizes = [8, 128], strides = [1, 1]} : vector<8x512xf32> to vector<8x128xf32>
    %cst_265 = arith.constant 5.000000e-01 : f32
    %396 = vector.broadcast %cst_265 : f32 to vector<8x128xf32>
    %397 = arith.mulf %396, %395 : vector<8x128xf32>
    %398 = math.tanh %397 : vector<8x128xf32>
    %cst_266 = arith.constant 5.000000e-01 : f32
    %399 = vector.broadcast %cst_266 : f32 to vector<8x128xf32>
    %400 = arith.mulf %399, %398 : vector<8x128xf32>
    %cst_267 = arith.constant 5.000000e-01 : f32
    %401 = vector.broadcast %cst_267 : f32 to vector<8x128xf32>
    %402 = arith.addf %400, %401 : vector<8x128xf32>
    %403 = vector.extract_strided_slice %386 {offsets = [0, 256], sizes = [8, 128], strides = [1, 1]} : vector<8x512xf32> to vector<8x128xf32>
    %404 = math.tanh %403 : vector<8x128xf32>
    %405 = vector.extract_strided_slice %386 {offsets = [0, 384], sizes = [8, 128], strides = [1, 1]} : vector<8x512xf32> to vector<8x128xf32>
    %cst_268 = arith.constant 5.000000e-01 : f32
    %406 = vector.broadcast %cst_268 : f32 to vector<8x128xf32>
    %407 = arith.mulf %406, %405 : vector<8x128xf32>
    %408 = math.tanh %407 : vector<8x128xf32>
    %cst_269 = arith.constant 5.000000e-01 : f32
    %409 = vector.broadcast %cst_269 : f32 to vector<8x128xf32>
    %410 = arith.mulf %409, %408 : vector<8x128xf32>
    %cst_270 = arith.constant 5.000000e-01 : f32
    %411 = vector.broadcast %cst_270 : f32 to vector<8x128xf32>
    %412 = arith.addf %410, %411 : vector<8x128xf32>
    %413 = arith.mulf %402, %377 : vector<8x128xf32>
    %414 = arith.mulf %394, %404 : vector<8x128xf32>
    %415 = arith.addf %413, %414 : vector<8x128xf32>
    %416 = math.tanh %415 : vector<8x128xf32>
    %417 = arith.mulf %412, %416 : vector<8x128xf32>
    %c0_271 = arith.constant 0 : index
    %c0_272 = arith.constant 0 : index
    %418 = vector.load %arg17[%c0_271, %c0_272] : memref<40x512xf32, #tpu.memory_space<vmem>>, vector<8x512xf32>
    %419 = vector.extract_strided_slice %383 {offsets = [0, 512], sizes = [8, 512], strides = [1, 1]} : vector<8x1024xf32> to vector<8x512xf32>
    %420 = arith.addf %418, %419 : vector<8x512xf32>
    %421 = vector.extract_strided_slice %420 {offsets = [0, 0], sizes = [8, 128], strides = [1, 1]} : vector<8x512xf32> to vector<8x128xf32>
    %cst_273 = arith.constant 5.000000e-01 : f32
    %422 = vector.broadcast %cst_273 : f32 to vector<8x128xf32>
    %423 = arith.mulf %422, %421 : vector<8x128xf32>
    %424 = math.tanh %423 : vector<8x128xf32>
    %cst_274 = arith.constant 5.000000e-01 : f32
    %425 = vector.broadcast %cst_274 : f32 to vector<8x128xf32>
    %426 = arith.mulf %425, %424 : vector<8x128xf32>
    %cst_275 = arith.constant 5.000000e-01 : f32
    %427 = vector.broadcast %cst_275 : f32 to vector<8x128xf32>
    %428 = arith.addf %426, %427 : vector<8x128xf32>
    %429 = vector.extract_strided_slice %420 {offsets = [0, 128], sizes = [8, 128], strides = [1, 1]} : vector<8x512xf32> to vector<8x128xf32>
    %cst_276 = arith.constant 5.000000e-01 : f32
    %430 = vector.broadcast %cst_276 : f32 to vector<8x128xf32>
    %431 = arith.mulf %430, %429 : vector<8x128xf32>
    %432 = math.tanh %431 : vector<8x128xf32>
    %cst_277 = arith.constant 5.000000e-01 : f32
    %433 = vector.broadcast %cst_277 : f32 to vector<8x128xf32>
    %434 = arith.mulf %433, %432 : vector<8x128xf32>
    %cst_278 = arith.constant 5.000000e-01 : f32
    %435 = vector.broadcast %cst_278 : f32 to vector<8x128xf32>
    %436 = arith.addf %434, %435 : vector<8x128xf32>
    %437 = vector.extract_strided_slice %420 {offsets = [0, 256], sizes = [8, 128], strides = [1, 1]} : vector<8x512xf32> to vector<8x128xf32>
    %438 = math.tanh %437 : vector<8x128xf32>
    %439 = vector.extract_strided_slice %420 {offsets = [0, 384], sizes = [8, 128], strides = [1, 1]} : vector<8x512xf32> to vector<8x128xf32>
    %cst_279 = arith.constant 5.000000e-01 : f32
    %440 = vector.broadcast %cst_279 : f32 to vector<8x128xf32>
    %441 = arith.mulf %440, %439 : vector<8x128xf32>
    %442 = math.tanh %441 : vector<8x128xf32>
    %cst_280 = arith.constant 5.000000e-01 : f32
    %443 = vector.broadcast %cst_280 : f32 to vector<8x128xf32>
    %444 = arith.mulf %443, %442 : vector<8x128xf32>
    %cst_281 = arith.constant 5.000000e-01 : f32
    %445 = vector.broadcast %cst_281 : f32 to vector<8x128xf32>
    %446 = arith.addf %444, %445 : vector<8x128xf32>
    %447 = arith.mulf %436, %379 : vector<8x128xf32>
    %448 = arith.mulf %428, %438 : vector<8x128xf32>
    %449 = arith.addf %447, %448 : vector<8x128xf32>
    %450 = math.tanh %449 : vector<8x128xf32>
    %451 = arith.mulf %446, %450 : vector<8x128xf32>
    %452 = tpu.concatenate %417, %451 in 1 : vector<8x128xf32>, vector<8x128xf32> -> vector<8x256xf32>
    %c0_282 = arith.constant 0 : index
    %c0_283 = arith.constant 0 : index
    %453 = vector.load %arg6[%c0_282, %c0_283] : memref<256x1024xbf16, #tpu.memory_space<vmem>>, vector<256x1024xbf16>
    %454 = arith.truncf %452 : vector<8x256xf32> to vector<8x256xbf16>
    %cst_284 = arith.constant dense<0.000000e+00> : vector<8x1024xf32>
    %455 = tpu.matmul %454, %453, %cst_284 {dimension_numbers = #tpu.dot_dimension_numbers<[1], [0], [0], [1], [0, 0, 1, 1], [], []>} : vector<8x256xbf16>, vector<256x1024xbf16>, vector<8x1024xf32> -> vector<8x1024xf32>
    %c8 = arith.constant 8 : index
    %c0_285 = arith.constant 0 : index
    %456 = vector.load %arg16[%c8, %c0_285] : memref<64x512xf32, #tpu.memory_space<vmem>>, vector<8x512xf32>
    %457 = vector.extract_strided_slice %455 {offsets = [0, 0], sizes = [8, 512], strides = [1, 1]} : vector<8x1024xf32> to vector<8x512xf32>
    %458 = arith.addf %456, %457 : vector<8x512xf32>
    %459 = vector.extract_strided_slice %458 {offsets = [0, 0], sizes = [8, 128], strides = [1, 1]} : vector<8x512xf32> to vector<8x128xf32>
    %cst_286 = arith.constant 5.000000e-01 : f32
    %460 = vector.broadcast %cst_286 : f32 to vector<8x128xf32>
    %461 = arith.mulf %460, %459 : vector<8x128xf32>
    %462 = math.tanh %461 : vector<8x128xf32>
    %cst_287 = arith.constant 5.000000e-01 : f32
    %463 = vector.broadcast %cst_287 : f32 to vector<8x128xf32>
    %464 = arith.mulf %463, %462 : vector<8x128xf32>
    %cst_288 = arith.constant 5.000000e-01 : f32
    %465 = vector.broadcast %cst_288 : f32 to vector<8x128xf32>
    %466 = arith.addf %464, %465 : vector<8x128xf32>
    %467 = vector.extract_strided_slice %458 {offsets = [0, 128], sizes = [8, 128], strides = [1, 1]} : vector<8x512xf32> to vector<8x128xf32>
    %cst_289 = arith.constant 5.000000e-01 : f32
    %468 = vector.broadcast %cst_289 : f32 to vector<8x128xf32>
    %469 = arith.mulf %468, %467 : vector<8x128xf32>
    %470 = math.tanh %469 : vector<8x128xf32>
    %cst_290 = arith.constant 5.000000e-01 : f32
    %471 = vector.broadcast %cst_290 : f32 to vector<8x128xf32>
    %472 = arith.mulf %471, %470 : vector<8x128xf32>
    %cst_291 = arith.constant 5.000000e-01 : f32
    %473 = vector.broadcast %cst_291 : f32 to vector<8x128xf32>
    %474 = arith.addf %472, %473 : vector<8x128xf32>
    %475 = vector.extract_strided_slice %458 {offsets = [0, 256], sizes = [8, 128], strides = [1, 1]} : vector<8x512xf32> to vector<8x128xf32>
    %476 = math.tanh %475 : vector<8x128xf32>
    %477 = vector.extract_strided_slice %458 {offsets = [0, 384], sizes = [8, 128], strides = [1, 1]} : vector<8x512xf32> to vector<8x128xf32>
    %cst_292 = arith.constant 5.000000e-01 : f32
    %478 = vector.broadcast %cst_292 : f32 to vector<8x128xf32>
    %479 = arith.mulf %478, %477 : vector<8x128xf32>
    %480 = math.tanh %479 : vector<8x128xf32>
    %cst_293 = arith.constant 5.000000e-01 : f32
    %481 = vector.broadcast %cst_293 : f32 to vector<8x128xf32>
    %482 = arith.mulf %481, %480 : vector<8x128xf32>
    %cst_294 = arith.constant 5.000000e-01 : f32
    %483 = vector.broadcast %cst_294 : f32 to vector<8x128xf32>
    %484 = arith.addf %482, %483 : vector<8x128xf32>
    %485 = arith.mulf %474, %415 : vector<8x128xf32>
    %486 = arith.mulf %466, %476 : vector<8x128xf32>
    %487 = arith.addf %485, %486 : vector<8x128xf32>
    %488 = math.tanh %487 : vector<8x128xf32>
    %489 = arith.mulf %484, %488 : vector<8x128xf32>
    %c8_295 = arith.constant 8 : index
    %c0_296 = arith.constant 0 : index
    %490 = vector.load %arg17[%c8_295, %c0_296] : memref<40x512xf32, #tpu.memory_space<vmem>>, vector<8x512xf32>
    %491 = vector.extract_strided_slice %455 {offsets = [0, 512], sizes = [8, 512], strides = [1, 1]} : vector<8x1024xf32> to vector<8x512xf32>
    %492 = arith.addf %490, %491 : vector<8x512xf32>
    %493 = vector.extract_strided_slice %492 {offsets = [0, 0], sizes = [8, 128], strides = [1, 1]} : vector<8x512xf32> to vector<8x128xf32>
    %cst_297 = arith.constant 5.000000e-01 : f32
    %494 = vector.broadcast %cst_297 : f32 to vector<8x128xf32>
    %495 = arith.mulf %494, %493 : vector<8x128xf32>
    %496 = math.tanh %495 : vector<8x128xf32>
    %cst_298 = arith.constant 5.000000e-01 : f32
    %497 = vector.broadcast %cst_298 : f32 to vector<8x128xf32>
    %498 = arith.mulf %497, %496 : vector<8x128xf32>
    %cst_299 = arith.constant 5.000000e-01 : f32
    %499 = vector.broadcast %cst_299 : f32 to vector<8x128xf32>
    %500 = arith.addf %498, %499 : vector<8x128xf32>
    %501 = vector.extract_strided_slice %492 {offsets = [0, 128], sizes = [8, 128], strides = [1, 1]} : vector<8x512xf32> to vector<8x128xf32>
    %cst_300 = arith.constant 5.000000e-01 : f32
    %502 = vector.broadcast %cst_300 : f32 to vector<8x128xf32>
    %503 = arith.mulf %502, %501 : vector<8x128xf32>
    %504 = math.tanh %503 : vector<8x128xf32>
    %cst_301 = arith.constant 5.000000e-01 : f32
    %505 = vector.broadcast %cst_301 : f32 to vector<8x128xf32>
    %506 = arith.mulf %505, %504 : vector<8x128xf32>
    %cst_302 = arith.constant 5.000000e-01 : f32
    %507 = vector.broadcast %cst_302 : f32 to vector<8x128xf32>
    %508 = arith.addf %506, %507 : vector<8x128xf32>
    %509 = vector.extract_strided_slice %492 {offsets = [0, 256], sizes = [8, 128], strides = [1, 1]} : vector<8x512xf32> to vector<8x128xf32>
    %510 = math.tanh %509 : vector<8x128xf32>
    %511 = vector.extract_strided_slice %492 {offsets = [0, 384], sizes = [8, 128], strides = [1, 1]} : vector<8x512xf32> to vector<8x128xf32>
    %cst_303 = arith.constant 5.000000e-01 : f32
    %512 = vector.broadcast %cst_303 : f32 to vector<8x128xf32>
    %513 = arith.mulf %512, %511 : vector<8x128xf32>
    %514 = math.tanh %513 : vector<8x128xf32>
    %cst_304 = arith.constant 5.000000e-01 : f32
    %515 = vector.broadcast %cst_304 : f32 to vector<8x128xf32>
    %516 = arith.mulf %515, %514 : vector<8x128xf32>
    %cst_305 = arith.constant 5.000000e-01 : f32
    %517 = vector.broadcast %cst_305 : f32 to vector<8x128xf32>
    %518 = arith.addf %516, %517 : vector<8x128xf32>
    %519 = arith.mulf %508, %449 : vector<8x128xf32>
    %520 = arith.mulf %500, %510 : vector<8x128xf32>
    %521 = arith.addf %519, %520 : vector<8x128xf32>
    %522 = math.tanh %521 : vector<8x128xf32>
    %523 = arith.mulf %518, %522 : vector<8x128xf32>
    %524 = tpu.concatenate %489, %523 in 1 : vector<8x128xf32>, vector<8x128xf32> -> vector<8x256xf32>
    %c0_306 = arith.constant 0 : index
    %c0_307 = arith.constant 0 : index
    %525 = vector.load %arg6[%c0_306, %c0_307] : memref<256x1024xbf16, #tpu.memory_space<vmem>>, vector<256x1024xbf16>
    %526 = arith.truncf %524 : vector<8x256xf32> to vector<8x256xbf16>
    %cst_308 = arith.constant dense<0.000000e+00> : vector<8x1024xf32>
    %527 = tpu.matmul %526, %525, %cst_308 {dimension_numbers = #tpu.dot_dimension_numbers<[1], [0], [0], [1], [0, 0, 1, 1], [], []>} : vector<8x256xbf16>, vector<256x1024xbf16>, vector<8x1024xf32> -> vector<8x1024xf32>
    %c16 = arith.constant 16 : index
    %c0_309 = arith.constant 0 : index
    %528 = vector.load %arg16[%c16, %c0_309] : memref<64x512xf32, #tpu.memory_space<vmem>>, vector<8x512xf32>
    %529 = vector.extract_strided_slice %527 {offsets = [0, 0], sizes = [8, 512], strides = [1, 1]} : vector<8x1024xf32> to vector<8x512xf32>
    %530 = arith.addf %528, %529 : vector<8x512xf32>
    %531 = vector.extract_strided_slice %530 {offsets = [0, 0], sizes = [8, 128], strides = [1, 1]} : vector<8x512xf32> to vector<8x128xf32>
    %cst_310 = arith.constant 5.000000e-01 : f32
    %532 = vector.broadcast %cst_310 : f32 to vector<8x128xf32>
    %533 = arith.mulf %532, %531 : vector<8x128xf32>
    %534 = math.tanh %533 : vector<8x128xf32>
    %cst_311 = arith.constant 5.000000e-01 : f32
    %535 = vector.broadcast %cst_311 : f32 to vector<8x128xf32>
    %536 = arith.mulf %535, %534 : vector<8x128xf32>
    %cst_312 = arith.constant 5.000000e-01 : f32
    %537 = vector.broadcast %cst_312 : f32 to vector<8x128xf32>
    %538 = arith.addf %536, %537 : vector<8x128xf32>
    %539 = vector.extract_strided_slice %530 {offsets = [0, 128], sizes = [8, 128], strides = [1, 1]} : vector<8x512xf32> to vector<8x128xf32>
    %cst_313 = arith.constant 5.000000e-01 : f32
    %540 = vector.broadcast %cst_313 : f32 to vector<8x128xf32>
    %541 = arith.mulf %540, %539 : vector<8x128xf32>
    %542 = math.tanh %541 : vector<8x128xf32>
    %cst_314 = arith.constant 5.000000e-01 : f32
    %543 = vector.broadcast %cst_314 : f32 to vector<8x128xf32>
    %544 = arith.mulf %543, %542 : vector<8x128xf32>
    %cst_315 = arith.constant 5.000000e-01 : f32
    %545 = vector.broadcast %cst_315 : f32 to vector<8x128xf32>
    %546 = arith.addf %544, %545 : vector<8x128xf32>
    %547 = vector.extract_strided_slice %530 {offsets = [0, 256], sizes = [8, 128], strides = [1, 1]} : vector<8x512xf32> to vector<8x128xf32>
    %548 = math.tanh %547 : vector<8x128xf32>
    %549 = vector.extract_strided_slice %530 {offsets = [0, 384], sizes = [8, 128], strides = [1, 1]} : vector<8x512xf32> to vector<8x128xf32>
    %cst_316 = arith.constant 5.000000e-01 : f32
    %550 = vector.broadcast %cst_316 : f32 to vector<8x128xf32>
    %551 = arith.mulf %550, %549 : vector<8x128xf32>
    %552 = math.tanh %551 : vector<8x128xf32>
    %cst_317 = arith.constant 5.000000e-01 : f32
    %553 = vector.broadcast %cst_317 : f32 to vector<8x128xf32>
    %554 = arith.mulf %553, %552 : vector<8x128xf32>
    %cst_318 = arith.constant 5.000000e-01 : f32
    %555 = vector.broadcast %cst_318 : f32 to vector<8x128xf32>
    %556 = arith.addf %554, %555 : vector<8x128xf32>
    %557 = arith.mulf %546, %487 : vector<8x128xf32>
    %558 = arith.mulf %538, %548 : vector<8x128xf32>
    %559 = arith.addf %557, %558 : vector<8x128xf32>
    %560 = math.tanh %559 : vector<8x128xf32>
    %561 = arith.mulf %556, %560 : vector<8x128xf32>
    %c16_319 = arith.constant 16 : index
    %c0_320 = arith.constant 0 : index
    %562 = vector.load %arg17[%c16_319, %c0_320] : memref<40x512xf32, #tpu.memory_space<vmem>>, vector<8x512xf32>
    %563 = vector.extract_strided_slice %527 {offsets = [0, 512], sizes = [8, 512], strides = [1, 1]} : vector<8x1024xf32> to vector<8x512xf32>
    %564 = arith.addf %562, %563 : vector<8x512xf32>
    %565 = vector.extract_strided_slice %564 {offsets = [0, 0], sizes = [8, 128], strides = [1, 1]} : vector<8x512xf32> to vector<8x128xf32>
    %cst_321 = arith.constant 5.000000e-01 : f32
    %566 = vector.broadcast %cst_321 : f32 to vector<8x128xf32>
    %567 = arith.mulf %566, %565 : vector<8x128xf32>
    %568 = math.tanh %567 : vector<8x128xf32>
    %cst_322 = arith.constant 5.000000e-01 : f32
    %569 = vector.broadcast %cst_322 : f32 to vector<8x128xf32>
    %570 = arith.mulf %569, %568 : vector<8x128xf32>
    %cst_323 = arith.constant 5.000000e-01 : f32
    %571 = vector.broadcast %cst_323 : f32 to vector<8x128xf32>
    %572 = arith.addf %570, %571 : vector<8x128xf32>
    %573 = vector.extract_strided_slice %564 {offsets = [0, 128], sizes = [8, 128], strides = [1, 1]} : vector<8x512xf32> to vector<8x128xf32>
    %cst_324 = arith.constant 5.000000e-01 : f32
    %574 = vector.broadcast %cst_324 : f32 to vector<8x128xf32>
    %575 = arith.mulf %574, %573 : vector<8x128xf32>
    %576 = math.tanh %575 : vector<8x128xf32>
    %cst_325 = arith.constant 5.000000e-01 : f32
    %577 = vector.broadcast %cst_325 : f32 to vector<8x128xf32>
    %578 = arith.mulf %577, %576 : vector<8x128xf32>
    %cst_326 = arith.constant 5.000000e-01 : f32
    %579 = vector.broadcast %cst_326 : f32 to vector<8x128xf32>
    %580 = arith.addf %578, %579 : vector<8x128xf32>
    %581 = vector.extract_strided_slice %564 {offsets = [0, 256], sizes = [8, 128], strides = [1, 1]} : vector<8x512xf32> to vector<8x128xf32>
    %582 = math.tanh %581 : vector<8x128xf32>
    %583 = vector.extract_strided_slice %564 {offsets = [0, 384], sizes = [8, 128], strides = [1, 1]} : vector<8x512xf32> to vector<8x128xf32>
    %cst_327 = arith.constant 5.000000e-01 : f32
    %584 = vector.broadcast %cst_327 : f32 to vector<8x128xf32>
    %585 = arith.mulf %584, %583 : vector<8x128xf32>
    %586 = math.tanh %585 : vector<8x128xf32>
    %cst_328 = arith.constant 5.000000e-01 : f32
    %587 = vector.broadcast %cst_328 : f32 to vector<8x128xf32>
    %588 = arith.mulf %587, %586 : vector<8x128xf32>
    %cst_329 = arith.constant 5.000000e-01 : f32
    %589 = vector.broadcast %cst_329 : f32 to vector<8x128xf32>
    %590 = arith.addf %588, %589 : vector<8x128xf32>
    %591 = arith.mulf %580, %521 : vector<8x128xf32>
    %592 = arith.mulf %572, %582 : vector<8x128xf32>
    %593 = arith.addf %591, %592 : vector<8x128xf32>
    %594 = math.tanh %593 : vector<8x128xf32>
    %595 = arith.mulf %590, %594 : vector<8x128xf32>
    %596 = tpu.concatenate %561, %595 in 1 : vector<8x128xf32>, vector<8x128xf32> -> vector<8x256xf32>
    %c0_330 = arith.constant 0 : index
    %c0_331 = arith.constant 0 : index
    %597 = vector.load %arg6[%c0_330, %c0_331] : memref<256x1024xbf16, #tpu.memory_space<vmem>>, vector<256x1024xbf16>
    %598 = arith.truncf %596 : vector<8x256xf32> to vector<8x256xbf16>
    %cst_332 = arith.constant dense<0.000000e+00> : vector<8x1024xf32>
    %599 = tpu.matmul %598, %597, %cst_332 {dimension_numbers = #tpu.dot_dimension_numbers<[1], [0], [0], [1], [0, 0, 1, 1], [], []>} : vector<8x256xbf16>, vector<256x1024xbf16>, vector<8x1024xf32> -> vector<8x1024xf32>
    %c24 = arith.constant 24 : index
    %c0_333 = arith.constant 0 : index
    %600 = vector.load %arg16[%c24, %c0_333] : memref<64x512xf32, #tpu.memory_space<vmem>>, vector<8x512xf32>
    %601 = vector.extract_strided_slice %599 {offsets = [0, 0], sizes = [8, 512], strides = [1, 1]} : vector<8x1024xf32> to vector<8x512xf32>
    %602 = arith.addf %600, %601 : vector<8x512xf32>
    %603 = vector.extract_strided_slice %602 {offsets = [0, 0], sizes = [8, 128], strides = [1, 1]} : vector<8x512xf32> to vector<8x128xf32>
    %cst_334 = arith.constant 5.000000e-01 : f32
    %604 = vector.broadcast %cst_334 : f32 to vector<8x128xf32>
    %605 = arith.mulf %604, %603 : vector<8x128xf32>
    %606 = math.tanh %605 : vector<8x128xf32>
    %cst_335 = arith.constant 5.000000e-01 : f32
    %607 = vector.broadcast %cst_335 : f32 to vector<8x128xf32>
    %608 = arith.mulf %607, %606 : vector<8x128xf32>
    %cst_336 = arith.constant 5.000000e-01 : f32
    %609 = vector.broadcast %cst_336 : f32 to vector<8x128xf32>
    %610 = arith.addf %608, %609 : vector<8x128xf32>
    %611 = vector.extract_strided_slice %602 {offsets = [0, 128], sizes = [8, 128], strides = [1, 1]} : vector<8x512xf32> to vector<8x128xf32>
    %cst_337 = arith.constant 5.000000e-01 : f32
    %612 = vector.broadcast %cst_337 : f32 to vector<8x128xf32>
    %613 = arith.mulf %612, %611 : vector<8x128xf32>
    %614 = math.tanh %613 : vector<8x128xf32>
    %cst_338 = arith.constant 5.000000e-01 : f32
    %615 = vector.broadcast %cst_338 : f32 to vector<8x128xf32>
    %616 = arith.mulf %615, %614 : vector<8x128xf32>
    %cst_339 = arith.constant 5.000000e-01 : f32
    %617 = vector.broadcast %cst_339 : f32 to vector<8x128xf32>
    %618 = arith.addf %616, %617 : vector<8x128xf32>
    %619 = vector.extract_strided_slice %602 {offsets = [0, 256], sizes = [8, 128], strides = [1, 1]} : vector<8x512xf32> to vector<8x128xf32>
    %620 = math.tanh %619 : vector<8x128xf32>
    %621 = vector.extract_strided_slice %602 {offsets = [0, 384], sizes = [8, 128], strides = [1, 1]} : vector<8x512xf32> to vector<8x128xf32>
    %cst_340 = arith.constant 5.000000e-01 : f32
    %622 = vector.broadcast %cst_340 : f32 to vector<8x128xf32>
    %623 = arith.mulf %622, %621 : vector<8x128xf32>
    %624 = math.tanh %623 : vector<8x128xf32>
    %cst_341 = arith.constant 5.000000e-01 : f32
    %625 = vector.broadcast %cst_341 : f32 to vector<8x128xf32>
    %626 = arith.mulf %625, %624 : vector<8x128xf32>
    %cst_342 = arith.constant 5.000000e-01 : f32
    %627 = vector.broadcast %cst_342 : f32 to vector<8x128xf32>
    %628 = arith.addf %626, %627 : vector<8x128xf32>
    %629 = arith.mulf %618, %559 : vector<8x128xf32>
    %630 = arith.mulf %610, %620 : vector<8x128xf32>
    %631 = arith.addf %629, %630 : vector<8x128xf32>
    %632 = math.tanh %631 : vector<8x128xf32>
    %633 = arith.mulf %628, %632 : vector<8x128xf32>
    %c24_343 = arith.constant 24 : index
    %c0_344 = arith.constant 0 : index
    %634 = vector.load %arg17[%c24_343, %c0_344] : memref<40x512xf32, #tpu.memory_space<vmem>>, vector<8x512xf32>
    %635 = vector.extract_strided_slice %599 {offsets = [0, 512], sizes = [8, 512], strides = [1, 1]} : vector<8x1024xf32> to vector<8x512xf32>
    %636 = arith.addf %634, %635 : vector<8x512xf32>
    %637 = vector.extract_strided_slice %636 {offsets = [0, 0], sizes = [8, 128], strides = [1, 1]} : vector<8x512xf32> to vector<8x128xf32>
    %cst_345 = arith.constant 5.000000e-01 : f32
    %638 = vector.broadcast %cst_345 : f32 to vector<8x128xf32>
    %639 = arith.mulf %638, %637 : vector<8x128xf32>
    %640 = math.tanh %639 : vector<8x128xf32>
    %cst_346 = arith.constant 5.000000e-01 : f32
    %641 = vector.broadcast %cst_346 : f32 to vector<8x128xf32>
    %642 = arith.mulf %641, %640 : vector<8x128xf32>
    %cst_347 = arith.constant 5.000000e-01 : f32
    %643 = vector.broadcast %cst_347 : f32 to vector<8x128xf32>
    %644 = arith.addf %642, %643 : vector<8x128xf32>
    %645 = vector.extract_strided_slice %636 {offsets = [0, 128], sizes = [8, 128], strides = [1, 1]} : vector<8x512xf32> to vector<8x128xf32>
    %cst_348 = arith.constant 5.000000e-01 : f32
    %646 = vector.broadcast %cst_348 : f32 to vector<8x128xf32>
    %647 = arith.mulf %646, %645 : vector<8x128xf32>
    %648 = math.tanh %647 : vector<8x128xf32>
    %cst_349 = arith.constant 5.000000e-01 : f32
    %649 = vector.broadcast %cst_349 : f32 to vector<8x128xf32>
    %650 = arith.mulf %649, %648 : vector<8x128xf32>
    %cst_350 = arith.constant 5.000000e-01 : f32
    %651 = vector.broadcast %cst_350 : f32 to vector<8x128xf32>
    %652 = arith.addf %650, %651 : vector<8x128xf32>
    %653 = vector.extract_strided_slice %636 {offsets = [0, 256], sizes = [8, 128], strides = [1, 1]} : vector<8x512xf32> to vector<8x128xf32>
    %654 = math.tanh %653 : vector<8x128xf32>
    %655 = vector.extract_strided_slice %636 {offsets = [0, 384], sizes = [8, 128], strides = [1, 1]} : vector<8x512xf32> to vector<8x128xf32>
    %cst_351 = arith.constant 5.000000e-01 : f32
    %656 = vector.broadcast %cst_351 : f32 to vector<8x128xf32>
    %657 = arith.mulf %656, %655 : vector<8x128xf32>
    %658 = math.tanh %657 : vector<8x128xf32>
    %cst_352 = arith.constant 5.000000e-01 : f32
    %659 = vector.broadcast %cst_352 : f32 to vector<8x128xf32>
    %660 = arith.mulf %659, %658 : vector<8x128xf32>
    %cst_353 = arith.constant 5.000000e-01 : f32
    %661 = vector.broadcast %cst_353 : f32 to vector<8x128xf32>
    %662 = arith.addf %660, %661 : vector<8x128xf32>
    %663 = arith.mulf %652, %593 : vector<8x128xf32>
    %664 = arith.mulf %644, %654 : vector<8x128xf32>
    %665 = arith.addf %663, %664 : vector<8x128xf32>
    %666 = math.tanh %665 : vector<8x128xf32>
    %667 = arith.mulf %662, %666 : vector<8x128xf32>
    %668 = tpu.concatenate %633, %667 in 1 : vector<8x128xf32>, vector<8x128xf32> -> vector<8x256xf32>
    %c0_354 = arith.constant 0 : index
    %c0_355 = arith.constant 0 : index
    %669 = vector.load %arg6[%c0_354, %c0_355] : memref<256x1024xbf16, #tpu.memory_space<vmem>>, vector<256x1024xbf16>
    %670 = arith.truncf %668 : vector<8x256xf32> to vector<8x256xbf16>
    %cst_356 = arith.constant dense<0.000000e+00> : vector<8x1024xf32>
    %671 = tpu.matmul %670, %669, %cst_356 {dimension_numbers = #tpu.dot_dimension_numbers<[1], [0], [0], [1], [0, 0, 1, 1], [], []>} : vector<8x256xbf16>, vector<256x1024xbf16>, vector<8x1024xf32> -> vector<8x1024xf32>
    %c32 = arith.constant 32 : index
    %c0_357 = arith.constant 0 : index
    %672 = vector.load %arg16[%c32, %c0_357] : memref<64x512xf32, #tpu.memory_space<vmem>>, vector<8x512xf32>
    %673 = vector.extract_strided_slice %671 {offsets = [0, 0], sizes = [8, 512], strides = [1, 1]} : vector<8x1024xf32> to vector<8x512xf32>
    %674 = arith.addf %672, %673 : vector<8x512xf32>
    %675 = vector.extract_strided_slice %674 {offsets = [0, 0], sizes = [8, 128], strides = [1, 1]} : vector<8x512xf32> to vector<8x128xf32>
    %cst_358 = arith.constant 5.000000e-01 : f32
    %676 = vector.broadcast %cst_358 : f32 to vector<8x128xf32>
    %677 = arith.mulf %676, %675 : vector<8x128xf32>
    %678 = math.tanh %677 : vector<8x128xf32>
    %cst_359 = arith.constant 5.000000e-01 : f32
    %679 = vector.broadcast %cst_359 : f32 to vector<8x128xf32>
    %680 = arith.mulf %679, %678 : vector<8x128xf32>
    %cst_360 = arith.constant 5.000000e-01 : f32
    %681 = vector.broadcast %cst_360 : f32 to vector<8x128xf32>
    %682 = arith.addf %680, %681 : vector<8x128xf32>
    %683 = vector.extract_strided_slice %674 {offsets = [0, 128], sizes = [8, 128], strides = [1, 1]} : vector<8x512xf32> to vector<8x128xf32>
    %cst_361 = arith.constant 5.000000e-01 : f32
    %684 = vector.broadcast %cst_361 : f32 to vector<8x128xf32>
    %685 = arith.mulf %684, %683 : vector<8x128xf32>
    %686 = math.tanh %685 : vector<8x128xf32>
    %cst_362 = arith.constant 5.000000e-01 : f32
    %687 = vector.broadcast %cst_362 : f32 to vector<8x128xf32>
    %688 = arith.mulf %687, %686 : vector<8x128xf32>
    %cst_363 = arith.constant 5.000000e-01 : f32
    %689 = vector.broadcast %cst_363 : f32 to vector<8x128xf32>
    %690 = arith.addf %688, %689 : vector<8x128xf32>
    %691 = vector.extract_strided_slice %674 {offsets = [0, 256], sizes = [8, 128], strides = [1, 1]} : vector<8x512xf32> to vector<8x128xf32>
    %692 = math.tanh %691 : vector<8x128xf32>
    %693 = vector.extract_strided_slice %674 {offsets = [0, 384], sizes = [8, 128], strides = [1, 1]} : vector<8x512xf32> to vector<8x128xf32>
    %cst_364 = arith.constant 5.000000e-01 : f32
    %694 = vector.broadcast %cst_364 : f32 to vector<8x128xf32>
    %695 = arith.mulf %694, %693 : vector<8x128xf32>
    %696 = math.tanh %695 : vector<8x128xf32>
    %cst_365 = arith.constant 5.000000e-01 : f32
    %697 = vector.broadcast %cst_365 : f32 to vector<8x128xf32>
    %698 = arith.mulf %697, %696 : vector<8x128xf32>
    %cst_366 = arith.constant 5.000000e-01 : f32
    %699 = vector.broadcast %cst_366 : f32 to vector<8x128xf32>
    %700 = arith.addf %698, %699 : vector<8x128xf32>
    %701 = arith.mulf %690, %631 : vector<8x128xf32>
    %702 = arith.mulf %682, %692 : vector<8x128xf32>
    %703 = arith.addf %701, %702 : vector<8x128xf32>
    %704 = math.tanh %703 : vector<8x128xf32>
    %705 = arith.mulf %700, %704 : vector<8x128xf32>
    %c32_367 = arith.constant 32 : index
    %c0_368 = arith.constant 0 : index
    %706 = vector.load %arg17[%c32_367, %c0_368] : memref<40x512xf32, #tpu.memory_space<vmem>>, vector<8x512xf32>
    %707 = vector.extract_strided_slice %671 {offsets = [0, 512], sizes = [8, 512], strides = [1, 1]} : vector<8x1024xf32> to vector<8x512xf32>
    %708 = arith.addf %706, %707 : vector<8x512xf32>
    %709 = vector.extract_strided_slice %708 {offsets = [0, 0], sizes = [8, 128], strides = [1, 1]} : vector<8x512xf32> to vector<8x128xf32>
    %cst_369 = arith.constant 5.000000e-01 : f32
    %710 = vector.broadcast %cst_369 : f32 to vector<8x128xf32>
    %711 = arith.mulf %710, %709 : vector<8x128xf32>
    %712 = math.tanh %711 : vector<8x128xf32>
    %cst_370 = arith.constant 5.000000e-01 : f32
    %713 = vector.broadcast %cst_370 : f32 to vector<8x128xf32>
    %714 = arith.mulf %713, %712 : vector<8x128xf32>
    %cst_371 = arith.constant 5.000000e-01 : f32
    %715 = vector.broadcast %cst_371 : f32 to vector<8x128xf32>
    %716 = arith.addf %714, %715 : vector<8x128xf32>
    %717 = vector.extract_strided_slice %708 {offsets = [0, 128], sizes = [8, 128], strides = [1, 1]} : vector<8x512xf32> to vector<8x128xf32>
    %cst_372 = arith.constant 5.000000e-01 : f32
    %718 = vector.broadcast %cst_372 : f32 to vector<8x128xf32>
    %719 = arith.mulf %718, %717 : vector<8x128xf32>
    %720 = math.tanh %719 : vector<8x128xf32>
    %cst_373 = arith.constant 5.000000e-01 : f32
    %721 = vector.broadcast %cst_373 : f32 to vector<8x128xf32>
    %722 = arith.mulf %721, %720 : vector<8x128xf32>
    %cst_374 = arith.constant 5.000000e-01 : f32
    %723 = vector.broadcast %cst_374 : f32 to vector<8x128xf32>
    %724 = arith.addf %722, %723 : vector<8x128xf32>
    %725 = vector.extract_strided_slice %708 {offsets = [0, 256], sizes = [8, 128], strides = [1, 1]} : vector<8x512xf32> to vector<8x128xf32>
    %726 = math.tanh %725 : vector<8x128xf32>
    %727 = vector.extract_strided_slice %708 {offsets = [0, 384], sizes = [8, 128], strides = [1, 1]} : vector<8x512xf32> to vector<8x128xf32>
    %cst_375 = arith.constant 5.000000e-01 : f32
    %728 = vector.broadcast %cst_375 : f32 to vector<8x128xf32>
    %729 = arith.mulf %728, %727 : vector<8x128xf32>
    %730 = math.tanh %729 : vector<8x128xf32>
    %cst_376 = arith.constant 5.000000e-01 : f32
    %731 = vector.broadcast %cst_376 : f32 to vector<8x128xf32>
    %732 = arith.mulf %731, %730 : vector<8x128xf32>
    %cst_377 = arith.constant 5.000000e-01 : f32
    %733 = vector.broadcast %cst_377 : f32 to vector<8x128xf32>
    %734 = arith.addf %732, %733 : vector<8x128xf32>
    %735 = arith.mulf %724, %665 : vector<8x128xf32>
    %736 = arith.mulf %716, %726 : vector<8x128xf32>
    %737 = arith.addf %735, %736 : vector<8x128xf32>
    %738 = math.tanh %737 : vector<8x128xf32>
    %739 = arith.mulf %734, %738 : vector<8x128xf32>
    %c40 = arith.constant 40 : index
    %c0_378 = arith.constant 0 : index
    %740 = vector.load %arg16[%c40, %c0_378] : memref<64x512xf32, #tpu.memory_space<vmem>>, vector<8x512xf32>
    %c0_379 = arith.constant 0 : index
    %c0_380 = arith.constant 0 : index
    %741 = vector.load %arg6[%c0_379, %c0_380] : memref<256x1024xbf16, #tpu.memory_space<vmem>>, vector<128x512xbf16>
    %742 = arith.truncf %705 : vector<8x128xf32> to vector<8x128xbf16>
    %cst_381 = arith.constant dense<0.000000e+00> : vector<8x512xf32>
    %743 = tpu.matmul %742, %741, %cst_381 {dimension_numbers = #tpu.dot_dimension_numbers<[1], [0], [0], [1], [0, 0, 1, 1], [], []>} : vector<8x128xbf16>, vector<128x512xbf16>, vector<8x512xf32> -> vector<8x512xf32>
    %744 = arith.addf %740, %743 : vector<8x512xf32>
    %745 = vector.extract_strided_slice %744 {offsets = [0, 0], sizes = [8, 128], strides = [1, 1]} : vector<8x512xf32> to vector<8x128xf32>
    %cst_382 = arith.constant 5.000000e-01 : f32
    %746 = vector.broadcast %cst_382 : f32 to vector<8x128xf32>
    %747 = arith.mulf %746, %745 : vector<8x128xf32>
    %748 = math.tanh %747 : vector<8x128xf32>
    %cst_383 = arith.constant 5.000000e-01 : f32
    %749 = vector.broadcast %cst_383 : f32 to vector<8x128xf32>
    %750 = arith.mulf %749, %748 : vector<8x128xf32>
    %cst_384 = arith.constant 5.000000e-01 : f32
    %751 = vector.broadcast %cst_384 : f32 to vector<8x128xf32>
    %752 = arith.addf %750, %751 : vector<8x128xf32>
    %753 = vector.extract_strided_slice %744 {offsets = [0, 128], sizes = [8, 128], strides = [1, 1]} : vector<8x512xf32> to vector<8x128xf32>
    %cst_385 = arith.constant 5.000000e-01 : f32
    %754 = vector.broadcast %cst_385 : f32 to vector<8x128xf32>
    %755 = arith.mulf %754, %753 : vector<8x128xf32>
    %756 = math.tanh %755 : vector<8x128xf32>
    %cst_386 = arith.constant 5.000000e-01 : f32
    %757 = vector.broadcast %cst_386 : f32 to vector<8x128xf32>
    %758 = arith.mulf %757, %756 : vector<8x128xf32>
    %cst_387 = arith.constant 5.000000e-01 : f32
    %759 = vector.broadcast %cst_387 : f32 to vector<8x128xf32>
    %760 = arith.addf %758, %759 : vector<8x128xf32>
    %761 = vector.extract_strided_slice %744 {offsets = [0, 256], sizes = [8, 128], strides = [1, 1]} : vector<8x512xf32> to vector<8x128xf32>
    %762 = math.tanh %761 : vector<8x128xf32>
    %763 = vector.extract_strided_slice %744 {offsets = [0, 384], sizes = [8, 128], strides = [1, 1]} : vector<8x512xf32> to vector<8x128xf32>
    %cst_388 = arith.constant 5.000000e-01 : f32
    %764 = vector.broadcast %cst_388 : f32 to vector<8x128xf32>
    %765 = arith.mulf %764, %763 : vector<8x128xf32>
    %766 = math.tanh %765 : vector<8x128xf32>
    %cst_389 = arith.constant 5.000000e-01 : f32
    %767 = vector.broadcast %cst_389 : f32 to vector<8x128xf32>
    %768 = arith.mulf %767, %766 : vector<8x128xf32>
    %cst_390 = arith.constant 5.000000e-01 : f32
    %769 = vector.broadcast %cst_390 : f32 to vector<8x128xf32>
    %770 = arith.addf %768, %769 : vector<8x128xf32>
    %771 = arith.mulf %760, %703 : vector<8x128xf32>
    %772 = arith.mulf %752, %762 : vector<8x128xf32>
    %773 = arith.addf %771, %772 : vector<8x128xf32>
    %774 = math.tanh %773 : vector<8x128xf32>
    %775 = arith.mulf %770, %774 : vector<8x128xf32>
    %c48 = arith.constant 48 : index
    %c0_391 = arith.constant 0 : index
    %776 = vector.load %arg16[%c48, %c0_391] : memref<64x512xf32, #tpu.memory_space<vmem>>, vector<8x512xf32>
    %c0_392 = arith.constant 0 : index
    %c0_393 = arith.constant 0 : index
    %777 = vector.load %arg6[%c0_392, %c0_393] : memref<256x1024xbf16, #tpu.memory_space<vmem>>, vector<128x512xbf16>
    %778 = arith.truncf %775 : vector<8x128xf32> to vector<8x128xbf16>
    %cst_394 = arith.constant dense<0.000000e+00> : vector<8x512xf32>
    %779 = tpu.matmul %778, %777, %cst_394 {dimension_numbers = #tpu.dot_dimension_numbers<[1], [0], [0], [1], [0, 0, 1, 1], [], []>} : vector<8x128xbf16>, vector<128x512xbf16>, vector<8x512xf32> -> vector<8x512xf32>
    %780 = arith.addf %776, %779 : vector<8x512xf32>
    %781 = vector.extract_strided_slice %780 {offsets = [0, 0], sizes = [8, 128], strides = [1, 1]} : vector<8x512xf32> to vector<8x128xf32>
    %cst_395 = arith.constant 5.000000e-01 : f32
    %782 = vector.broadcast %cst_395 : f32 to vector<8x128xf32>
    %783 = arith.mulf %782, %781 : vector<8x128xf32>
    %784 = math.tanh %783 : vector<8x128xf32>
    %cst_396 = arith.constant 5.000000e-01 : f32
    %785 = vector.broadcast %cst_396 : f32 to vector<8x128xf32>
    %786 = arith.mulf %785, %784 : vector<8x128xf32>
    %cst_397 = arith.constant 5.000000e-01 : f32
    %787 = vector.broadcast %cst_397 : f32 to vector<8x128xf32>
    %788 = arith.addf %786, %787 : vector<8x128xf32>
    %789 = vector.extract_strided_slice %780 {offsets = [0, 128], sizes = [8, 128], strides = [1, 1]} : vector<8x512xf32> to vector<8x128xf32>
    %cst_398 = arith.constant 5.000000e-01 : f32
    %790 = vector.broadcast %cst_398 : f32 to vector<8x128xf32>
    %791 = arith.mulf %790, %789 : vector<8x128xf32>
    %792 = math.tanh %791 : vector<8x128xf32>
    %cst_399 = arith.constant 5.000000e-01 : f32
    %793 = vector.broadcast %cst_399 : f32 to vector<8x128xf32>
    %794 = arith.mulf %793, %792 : vector<8x128xf32>
    %cst_400 = arith.constant 5.000000e-01 : f32
    %795 = vector.broadcast %cst_400 : f32 to vector<8x128xf32>
    %796 = arith.addf %794, %795 : vector<8x128xf32>
    %797 = vector.extract_strided_slice %780 {offsets = [0, 256], sizes = [8, 128], strides = [1, 1]} : vector<8x512xf32> to vector<8x128xf32>
    %798 = math.tanh %797 : vector<8x128xf32>
    %799 = vector.extract_strided_slice %780 {offsets = [0, 384], sizes = [8, 128], strides = [1, 1]} : vector<8x512xf32> to vector<8x128xf32>
    %cst_401 = arith.constant 5.000000e-01 : f32
    %800 = vector.broadcast %cst_401 : f32 to vector<8x128xf32>
    %801 = arith.mulf %800, %799 : vector<8x128xf32>
    %802 = math.tanh %801 : vector<8x128xf32>
    %cst_402 = arith.constant 5.000000e-01 : f32
    %803 = vector.broadcast %cst_402 : f32 to vector<8x128xf32>
    %804 = arith.mulf %803, %802 : vector<8x128xf32>
    %cst_403 = arith.constant 5.000000e-01 : f32
    %805 = vector.broadcast %cst_403 : f32 to vector<8x128xf32>
    %806 = arith.addf %804, %805 : vector<8x128xf32>
    %807 = arith.mulf %796, %773 : vector<8x128xf32>
    %808 = arith.mulf %788, %798 : vector<8x128xf32>
    %809 = arith.addf %807, %808 : vector<8x128xf32>
    %810 = math.tanh %809 : vector<8x128xf32>
    %811 = arith.mulf %806, %810 : vector<8x128xf32>
    %c56 = arith.constant 56 : index
    %c0_404 = arith.constant 0 : index
    %812 = vector.load %arg16[%c56, %c0_404] : memref<64x512xf32, #tpu.memory_space<vmem>>, vector<8x512xf32>
    %c0_405 = arith.constant 0 : index
    %c0_406 = arith.constant 0 : index
    %813 = vector.load %arg6[%c0_405, %c0_406] : memref<256x1024xbf16, #tpu.memory_space<vmem>>, vector<128x512xbf16>
    %814 = arith.truncf %811 : vector<8x128xf32> to vector<8x128xbf16>
    %cst_407 = arith.constant dense<0.000000e+00> : vector<8x512xf32>
    %815 = tpu.matmul %814, %813, %cst_407 {dimension_numbers = #tpu.dot_dimension_numbers<[1], [0], [0], [1], [0, 0, 1, 1], [], []>} : vector<8x128xbf16>, vector<128x512xbf16>, vector<8x512xf32> -> vector<8x512xf32>
    %816 = arith.addf %812, %815 : vector<8x512xf32>
    %817 = vector.extract_strided_slice %816 {offsets = [0, 0], sizes = [8, 128], strides = [1, 1]} : vector<8x512xf32> to vector<8x128xf32>
    %cst_408 = arith.constant 5.000000e-01 : f32
    %818 = vector.broadcast %cst_408 : f32 to vector<8x128xf32>
    %819 = arith.mulf %818, %817 : vector<8x128xf32>
    %820 = math.tanh %819 : vector<8x128xf32>
    %cst_409 = arith.constant 5.000000e-01 : f32
    %821 = vector.broadcast %cst_409 : f32 to vector<8x128xf32>
    %822 = arith.mulf %821, %820 : vector<8x128xf32>
    %cst_410 = arith.constant 5.000000e-01 : f32
    %823 = vector.broadcast %cst_410 : f32 to vector<8x128xf32>
    %824 = arith.addf %822, %823 : vector<8x128xf32>
    %825 = vector.extract_strided_slice %816 {offsets = [0, 128], sizes = [8, 128], strides = [1, 1]} : vector<8x512xf32> to vector<8x128xf32>
    %cst_411 = arith.constant 5.000000e-01 : f32
    %826 = vector.broadcast %cst_411 : f32 to vector<8x128xf32>
    %827 = arith.mulf %826, %825 : vector<8x128xf32>
    %828 = math.tanh %827 : vector<8x128xf32>
    %cst_412 = arith.constant 5.000000e-01 : f32
    %829 = vector.broadcast %cst_412 : f32 to vector<8x128xf32>
    %830 = arith.mulf %829, %828 : vector<8x128xf32>
    %cst_413 = arith.constant 5.000000e-01 : f32
    %831 = vector.broadcast %cst_413 : f32 to vector<8x128xf32>
    %832 = arith.addf %830, %831 : vector<8x128xf32>
    %833 = vector.extract_strided_slice %816 {offsets = [0, 256], sizes = [8, 128], strides = [1, 1]} : vector<8x512xf32> to vector<8x128xf32>
    %834 = math.tanh %833 : vector<8x128xf32>
    %835 = vector.extract_strided_slice %816 {offsets = [0, 384], sizes = [8, 128], strides = [1, 1]} : vector<8x512xf32> to vector<8x128xf32>
    %cst_414 = arith.constant 5.000000e-01 : f32
    %836 = vector.broadcast %cst_414 : f32 to vector<8x128xf32>
    %837 = arith.mulf %836, %835 : vector<8x128xf32>
    %838 = math.tanh %837 : vector<8x128xf32>
    %cst_415 = arith.constant 5.000000e-01 : f32
    %839 = vector.broadcast %cst_415 : f32 to vector<8x128xf32>
    %840 = arith.mulf %839, %838 : vector<8x128xf32>
    %cst_416 = arith.constant 5.000000e-01 : f32
    %841 = vector.broadcast %cst_416 : f32 to vector<8x128xf32>
    %842 = arith.addf %840, %841 : vector<8x128xf32>
    %843 = arith.mulf %832, %809 : vector<8x128xf32>
    %844 = arith.mulf %824, %834 : vector<8x128xf32>
    %845 = arith.addf %843, %844 : vector<8x128xf32>
    %846 = math.tanh %845 : vector<8x128xf32>
    %847 = arith.mulf %842, %846 : vector<8x128xf32>
    %c1_417 = arith.constant 1 : index
    %c0_418 = arith.constant 0 : index
    %c0_419 = arith.constant 0 : index
    %848 = vector.load %arg9[%c1_417, %c0_418, %c0_419] : memref<3x128x128xbf16, #tpu.memory_space<vmem>>, vector<1x128x128xbf16>
    %849 = vector.shape_cast %848 : vector<1x128x128xbf16> to vector<128x128xbf16>
    %850 = arith.truncf %739 : vector<8x128xf32> to vector<8x128xbf16>
    %cst_420 = arith.constant dense<0.000000e+00> : vector<8x128xf32>
    %851 = tpu.matmul %850, %849, %cst_420 {dimension_numbers = #tpu.dot_dimension_numbers<[1], [0], [0], [1], [0, 0, 1, 1], [], []>} : vector<8x128xbf16>, vector<128x128xbf16>, vector<8x128xf32> -> vector<8x128xf32>
    %c2_421 = arith.constant 2 : index
    %c0_422 = arith.constant 0 : index
    %852 = vector.load %arg12[%c2_421, %c0_422] : memref<9x128xf32, #tpu.memory_space<vmem>>, vector<1x128xf32>
    %853 = vector.broadcast %852 : vector<1x128xf32> to vector<8x128xf32>
    %854 = arith.addf %851, %853 : vector<8x128xf32>
    %855 = math.tanh %854 : vector<8x128xf32>
    %856 = tpu.concatenate %201, %847, %855 in 1 : vector<8x128xf32>, vector<8x128xf32>, vector<8x128xf32> -> vector<8x384xf32>
    %c0_423 = arith.constant 0 : index
    %c0_424 = arith.constant 0 : index
    %c0_425 = arith.constant 0 : index
    %857 = vector.load %arg10[%c0_423, %c0_424, %c0_425] : memref<2x384x128xbf16, #tpu.memory_space<vmem>>, vector<1x384x128xbf16>
    %858 = vector.shape_cast %857 : vector<1x384x128xbf16> to vector<384x128xbf16>
    %859 = arith.truncf %856 : vector<8x384xf32> to vector<8x384xbf16>
    %cst_426 = arith.constant dense<0.000000e+00> : vector<8x128xf32>
    %860 = tpu.matmul %859, %858, %cst_426 {dimension_numbers = #tpu.dot_dimension_numbers<[1], [0], [0], [1], [0, 0, 1, 1], [], []>} : vector<8x384xbf16>, vector<384x128xbf16>, vector<8x128xf32> -> vector<8x128xf32>
    %c3_427 = arith.constant 3 : index
    %c0_428 = arith.constant 0 : index
    %861 = vector.load %arg12[%c3_427, %c0_428] : memref<9x128xf32, #tpu.memory_space<vmem>>, vector<1x128xf32>
    %862 = vector.broadcast %861 : vector<1x128xf32> to vector<8x128xf32>
    %863 = arith.addf %860, %862 : vector<8x128xf32>
    %cst_429 = arith.constant 0.000000e+00 : f32
    %864 = vector.broadcast %cst_429 : f32 to vector<8x128xf32>
    %865 = arith.maximumf %863, %864 : vector<8x128xf32>
    %c2_430 = arith.constant 2 : index
    %c0_431 = arith.constant 0 : index
    %c0_432 = arith.constant 0 : index
    %866 = vector.load %arg9[%c2_430, %c0_431, %c0_432] : memref<3x128x128xbf16, #tpu.memory_space<vmem>>, vector<1x128x128xbf16>
    %867 = vector.shape_cast %866 : vector<1x128x128xbf16> to vector<128x128xbf16>
    %868 = arith.truncf %865 : vector<8x128xf32> to vector<8x128xbf16>
    %cst_433 = arith.constant dense<0.000000e+00> : vector<8x128xf32>
    %869 = tpu.matmul %868, %867, %cst_433 {dimension_numbers = #tpu.dot_dimension_numbers<[1], [0], [0], [1], [0, 0, 1, 1], [], []>} : vector<8x128xbf16>, vector<128x128xbf16>, vector<8x128xf32> -> vector<8x128xf32>
    %c4_434 = arith.constant 4 : index
    %c0_435 = arith.constant 0 : index
    %870 = vector.load %arg12[%c4_434, %c0_435] : memref<9x128xf32, #tpu.memory_space<vmem>>, vector<1x128xf32>
    %871 = vector.broadcast %870 : vector<1x128xf32> to vector<8x128xf32>
    %872 = arith.addf %869, %871 : vector<8x128xf32>
    %c5_436 = arith.constant 5 : index
    %c0_437 = arith.constant 0 : index
    %873 = vector.load %arg12[%c5_436, %c0_437] : memref<9x128xf32, #tpu.memory_space<vmem>>, vector<1x128xf32>
    %c6_438 = arith.constant 6 : index
    %c0_439 = arith.constant 0 : index
    %874 = vector.load %arg12[%c6_438, %c0_439] : memref<9x128xf32, #tpu.memory_space<vmem>>, vector<1x128xf32>
    %c7_440 = arith.constant 7 : index
    %c0_441 = arith.constant 0 : index
    %875 = vector.load %arg12[%c7_440, %c0_441] : memref<9x128xf32, #tpu.memory_space<vmem>>, vector<1x128xf32>
    %876 = tpu.concatenate %873, %874, %875 in 1 : vector<1x128xf32>, vector<1x128xf32>, vector<1x128xf32> -> vector<1x384xf32>
    %c0_442 = arith.constant 0 : index
    %c0_443 = arith.constant 0 : index
    %877 = vector.load %arg11[%c0_442, %c0_443] : memref<128x384xbf16, #tpu.memory_space<vmem>>, vector<128x384xbf16>
    %878 = arith.truncf %872 : vector<8x128xf32> to vector<8x128xbf16>
    %cst_444 = arith.constant dense<0.000000e+00> : vector<8x384xf32>
    %879 = tpu.matmul %878, %877, %cst_444 {dimension_numbers = #tpu.dot_dimension_numbers<[1], [0], [0], [1], [0, 0, 1, 1], [], []>} : vector<8x128xbf16>, vector<128x384xbf16>, vector<8x384xf32> -> vector<8x384xf32>
    %880 = vector.broadcast %876 : vector<1x384xf32> to vector<8x384xf32>
    %881 = arith.addf %879, %880 : vector<8x384xf32>
    %cst_445 = arith.constant 0.000000e+00 : f32
    %882 = vector.broadcast %cst_445 : f32 to vector<8x384xf32>
    %883 = arith.maximumf %881, %882 : vector<8x384xf32>
    %c1_446 = arith.constant 1 : index
    %c0_447 = arith.constant 0 : index
    %c0_448 = arith.constant 0 : index
    %884 = vector.load %arg10[%c1_446, %c0_447, %c0_448] : memref<2x384x128xbf16, #tpu.memory_space<vmem>>, vector<1x384x128xbf16>
    %885 = vector.shape_cast %884 : vector<1x384x128xbf16> to vector<384x128xbf16>
    %886 = arith.truncf %883 : vector<8x384xf32> to vector<8x384xbf16>
    %cst_449 = arith.constant dense<0.000000e+00> : vector<8x128xf32>
    %887 = tpu.matmul %886, %885, %cst_449 {dimension_numbers = #tpu.dot_dimension_numbers<[1], [0], [0], [1], [0, 0, 1, 1], [], []>} : vector<8x384xbf16>, vector<384x128xbf16>, vector<8x128xf32> -> vector<8x128xf32>
    %c8_450 = arith.constant 8 : index
    %c0_451 = arith.constant 0 : index
    %888 = vector.load %arg12[%c8_450, %c0_451] : memref<9x128xf32, #tpu.memory_space<vmem>>, vector<1x128xf32>
    %889 = vector.broadcast %888 : vector<1x128xf32> to vector<8x128xf32>
    %890 = arith.addf %887, %889 : vector<8x128xf32>
    %cst_452 = arith.constant 5.000000e-01 : f32
    %891 = vector.broadcast %cst_452 : f32 to vector<8x128xf32>
    %892 = arith.mulf %891, %890 : vector<8x128xf32>
    %893 = math.tanh %892 : vector<8x128xf32>
    %cst_453 = arith.constant 5.000000e-01 : f32
    %894 = vector.broadcast %cst_453 : f32 to vector<8x128xf32>
    %895 = arith.mulf %894, %893 : vector<8x128xf32>
    %cst_454 = arith.constant 5.000000e-01 : f32
    %896 = vector.broadcast %cst_454 : f32 to vector<8x128xf32>
    %897 = arith.addf %895, %896 : vector<8x128xf32>
    %c0_455 = arith.constant 0 : index
    %c0_456 = arith.constant 0 : index
    %898 = vector.load %arg13[%c0_455, %c0_456] : memref<8x128xf32, #tpu.memory_space<vmem>>, vector<8x128xf32>
    tpu.vector_store %arg13[%c0_455, %c0_456], %897 {strides = array<i32>} : memref<8x128xf32, #tpu.memory_space<vmem>>, vector<8x128xf32>,
    return
  }
}

</mosaic_0001>

<llo_original>
// kernel: tpu_custom_call.1
$region0: #{tpu_custom_call.1}
  #allocation0 [shape = 'u32[]', space=smem, size = 0x4, offset = 0x4, fixed_abs, tag = 'smem constant byte address 0x4 - core index']
  #allocation1 [shape = 'u32[144,128]{1,0:T(1,128)}', space=vmem, size = 0x12000, scoped, tag = 'internal scratch']
  #allocation2 [shape = 'f32[64,128]{1,0:T(8,128)}', space=vmem, size = 0x8000, scoped, tag = 'scratch operand']
  #allocation3 [shape = 'f32[40,128]{1,0:T(8,128)}', space=vmem, size = 0x5000, scoped, tag = 'scratch operand']
  #allocation4 [shape = 'f32[64,512]{1,0:T(8,128)}', space=vmem, size = 0x20000, scoped, tag = 'scratch operand']
  #allocation5 [shape = 'f32[40,512]{1,0:T(8,128)}', space=vmem, size = 0x14000, scoped, tag = 'scratch operand']
  #allocation6 [shape = 's32[26]{0}', space=sflag, size = 0x68, scoped, tag = 'scratch operand']
  #allocation27 [shape = 's32[]', space=sflag, size = 0x4, offset = 0, fixed_abs, tag = 'sflag constant byte address 0x0 - dummy sync flag']
  #allocation28 [shape = 's32[]', space=sflag, size = 0x4, offset = 0, fixed_abs, tag = 'sflag constant byte address 0x0 - dummy sync flag']
  #allocation29 [shape = 'u32[]', space=smem, size = 0x4, offset = 0x44, fixed_abs, tag = 'smem constant byte address 0x44 - assertion arg 0']
  #allocation30 [shape = 'u32[]', space=smem, size = 0x4, offset = 0x48, fixed_abs, tag = 'smem constant byte address 0x48 - assertion arg 1']
  #allocation31 [shape = 's32[]', space=sflag, size = 0x4, offset = 0, fixed_abs, tag = 'sflag constant byte address 0x0 - dummy sync flag']
  #allocation32 [shape = 's32[]', space=sflag, size = 0x4, offset = 0, fixed_abs, tag = 'sflag constant byte address 0x0 - dummy sync flag']
  #allocation33 [shape = 's32[]', space=sflag, size = 0x4, offset = 0, fixed_abs, tag = 'sflag constant byte address 0x0 - dummy sync flag']
  #allocation34 [shape = 's32[]', space=sflag, size = 0x4, offset = 0, fixed_abs, tag = 'sflag constant byte address 0x0 - dummy sync flag']
  #allocation35 [shape = 's32[]', space=sflag, size = 0x4, offset = 0, fixed_abs, tag = 'sflag constant byte address 0x0 - dummy sync flag']
  #allocation36 [shape = 's32[]', space=sflag, size = 0x4, offset = 0, fixed_abs, tag = 'sflag constant byte address 0x0 - dummy sync flag']
  #allocation37 [shape = 's32[]', space=sflag, size = 0x4, offset = 0, fixed_abs, tag = 'sflag constant byte address 0x0 - dummy sync flag']
  #allocation38 [shape = 's32[]', space=sflag, size = 0x4, offset = 0, fixed_abs, tag = 'sflag constant byte address 0x0 - dummy sync flag']
  #allocation39 [shape = 's32[]', space=sflag, size = 0x4, offset = 0, fixed_abs, tag = 'sflag constant byte address 0x0 - dummy sync flag']
  #allocation40 [shape = 's32[]', space=sflag, size = 0x4, offset = 0, fixed_abs, tag = 'sflag constant byte address 0x0 - dummy sync flag']
  #allocation41 [shape = 's32[]', space=sflag, size = 0x4, offset = 0, fixed_abs, tag = 'sflag constant byte address 0x0 - dummy sync flag']
  #allocation42 [shape = 's32[]', space=sflag, size = 0x4, offset = 0, fixed_abs, tag = 'sflag constant byte address 0x0 - dummy sync flag']
  #allocation43 [shape = 's32[]', space=sflag, size = 0x4, offset = 0, fixed_abs, tag = 'sflag constant byte address 0x0 - dummy sync flag']
  #allocation44 [shape = 's32[]', space=sflag, size = 0x4, offset = 0, fixed_abs, tag = 'sflag constant byte address 0x0 - dummy sync flag']
  #allocation45 [shape = 's32[]', space=sflag, size = 0x4, offset = 0, fixed_abs, tag = 'sflag constant byte address 0x0 - dummy sync flag']
  #allocation46 [shape = 's32[]', space=sflag, size = 0x4, offset = 0, fixed_abs, tag = 'sflag constant byte address 0x0 - dummy sync flag']
  #allocation47 [shape = 's32[]', space=sflag, size = 0x4, offset = 0, fixed_abs, tag = 'sflag constant byte address 0x0 - dummy sync flag']
  #allocation48 [shape = 's32[]', space=sflag, size = 0x4, offset = 0, fixed_abs, tag = 'sflag constant byte address 0x0 - dummy sync flag']
  #allocation49 [shape = 's32[]', space=sflag, size = 0x4, offset = 0, fixed_abs, tag = 'sflag constant byte address 0x0 - dummy sync flag']
  #allocation50 [shape = 's32[]', space=sflag, size = 0x4, offset = 0, fixed_abs, tag = 'sflag constant byte address 0x0 - dummy sync flag']
  #allocation51 [shape = 's32[]', space=sflag, size = 0x4, offset = 0, fixed_abs, tag = 'sflag constant byte address 0x0 - dummy sync flag']
  #allocation52 [shape = 's32[]', space=sflag, size = 0x4, offset = 0, fixed_abs, tag = 'sflag constant byte address 0x0 - dummy sync flag']
  #allocation53 [shape = 's32[]', space=sflag, size = 0x4, offset = 0, fixed_abs, tag = 'sflag constant byte address 0x0 - dummy sync flag']
  #allocation54 [shape = 's32[]', space=sflag, size = 0x4, offset = 0, fixed_abs, tag = 'sflag constant byte address 0x0 - dummy sync flag']
  #allocation55 [shape = 's32[]', space=sflag, size = 0x4, offset = 0, fixed_abs, tag = 'sflag constant byte address 0x0 - dummy sync flag']
  #allocation56 [shape = 's32[]', space=sflag, size = 0x4, offset = 0, fixed_abs, tag = 'sflag constant byte address 0x0 - dummy sync flag']
  #allocation57 [shape = 's32[]', space=sflag, size = 0x4, offset = 0, fixed_abs, tag = 'sflag constant byte address 0x0 - dummy sync flag']
  #allocation58 [shape = 's32[]', space=sflag, size = 0x4, offset = 0, fixed_abs, tag = 'sflag constant byte address 0x0 - dummy sync flag']
  #allocation59 [shape = 's32[]', space=sflag, size = 0x4, offset = 0, fixed_abs, tag = 'sflag constant byte address 0x0 - dummy sync flag']
  #allocation60 [shape = 's32[]', space=sflag, size = 0x4, offset = 0, fixed_abs, tag = 'sflag constant byte address 0x0 - dummy sync flag']
  #allocation61 [shape = 's32[]', space=sflag, size = 0x4, offset = 0, fixed_abs, tag = 'sflag constant byte address 0x0 - dummy sync flag']
  #allocation62 [shape = 's32[]', space=sflag, size = 0x4, offset = 0, fixed_abs, tag = 'sflag constant byte address 0x0 - dummy sync flag']
  #allocation63 [shape = 's32[]', space=sflag, size = 0x4, offset = 0, fixed_abs, tag = 'sflag constant byte address 0x0 - dummy sync flag']
  #allocation64 [shape = 's32[]', space=sflag, size = 0x4, offset = 0, fixed_abs, tag = 'sflag constant byte address 0x0 - dummy sync flag']
  #allocation65 [shape = 's32[]', space=sflag, size = 0x4, offset = 0, fixed_abs, tag = 'sflag constant byte address 0x0 - dummy sync flag']
  #allocation66 [shape = 's32[]', space=sflag, size = 0x4, offset = 0, fixed_abs, tag = 'sflag constant byte address 0x0 - dummy sync flag']
  #allocation67 [shape = 's32[]', space=sflag, size = 0x4, offset = 0, fixed_abs, tag = 'sflag constant byte address 0x0 - dummy sync flag']
  #allocation68 [shape = 's32[]', space=sflag, size = 0x4, offset = 0, fixed_abs, tag = 'sflag constant byte address 0x0 - dummy sync flag']
  #allocation69 [shape = 's32[]', space=sflag, size = 0x4, offset = 0, fixed_abs, tag = 'sflag constant byte address 0x0 - dummy sync flag']
  #allocation70 [shape = 's32[]', space=sflag, size = 0x4, offset = 0, fixed_abs, tag = 'sflag constant byte address 0x0 - dummy sync flag']
  #allocation71 [shape = 's32[]', space=sflag, size = 0x4, offset = 0, fixed_abs, tag = 'sflag constant byte address 0x0 - dummy sync flag']
  #allocation72 [shape = 's32[]', space=sflag, size = 0x4, offset = 0, fixed_abs, tag = 'sflag constant byte address 0x0 - dummy sync flag']
  #allocation73 [shape = 's32[]', space=sflag, size = 0x4, offset = 0, fixed_abs, tag = 'sflag constant byte address 0x0 - dummy sync flag']
  #allocation74 [shape = 's32[]', space=sflag, size = 0x4, offset = 0, fixed_abs, tag = 'sflag constant byte address 0x0 - dummy sync flag']
  #allocation75 [shape = 's32[]', space=sflag, size = 0x4, offset = 0, fixed_abs, tag = 'sflag constant byte address 0x0 - dummy sync flag']
  #allocation76 [shape = 's32[]', space=sflag, size = 0x4, offset = 0, fixed_abs, tag = 'sflag constant byte address 0x0 - dummy sync flag']
  #allocation77 [shape = 's32[]', space=sflag, size = 0x4, offset = 0, fixed_abs, tag = 'sflag constant byte address 0x0 - dummy sync flag']
  #allocation78 [shape = 's32[]', space=sflag, size = 0x4, offset = 0, fixed_abs, tag = 'sflag constant byte address 0x0 - dummy sync flag']
  #allocation79 [shape = 's32[]', space=sflag, size = 0x4, offset = 0, fixed_abs, tag = 'sflag constant byte address 0x0 - dummy sync flag']
  #allocation80 [shape = 's32[]', space=sflag, size = 0x4, offset = 0, fixed_abs, tag = 'sflag constant byte address 0x0 - dummy sync flag']
  %s0 = inlined_call_operand.hbm [shape: f32[2,32], index: 0, kind: input, shape index: {}]
  %s1 = inlined_call_operand.hbm [shape: s32[2,8], index: 1, kind: input, shape index: {}]
  %s2 = inlined_call_operand.hbm [shape: s32[2,5], index: 2, kind: input, shape index: {}]
  %s3 = inlined_call_operand.hbm [shape: f32[100,128], index: 3, kind: input, shape index: {}]
  %s4 = inlined_call_operand.hbm [shape: f32[10000,128], index: 4, kind: input, shape index: {}]
  %s5 = inlined_call_operand.hbm [shape: bf16[2,128,512], index: 5, kind: input, shape index: {}]
  %s6 = inlined_call_operand.hbm [shape: bf16[256,1024], index: 6, kind: input, shape index: {}]
  %s7 = inlined_call_operand.hbm [shape: f32[2,512], index: 7, kind: input, shape index: {}]
  %s8 = inlined_call_operand.hbm [shape: bf16[32,128], index: 8, kind: input, shape index: {}]
  %s9 = inlined_call_operand.hbm [shape: bf16[3,128,128], index: 9, kind: input, shape index: {}]
  %s10 = inlined_call_operand.hbm [shape: bf16[2,384,128], index: 10, kind: input, shape index: {}]
  %s11 = inlined_call_operand.hbm [shape: bf16[128,384], index: 11, kind: input, shape index: {}]
  %s12 = inlined_call_operand.hbm [shape: f32[9,128], index: 12, kind: input, shape index: {}]
  %s13 = inlined_call_operand.hbm [shape: f32[8,128], index: 13, kind: output, shape index: {}]
  %s14 = sld [smem:[#allocation0]]
  $region202: #{tpu_custom_call.1} parent=0
    _
  %s16 = ssub.s32 1, %s14
  %s17 = scalar_select 0, %s16, %s14
  $region1: #{tpu_custom_call.1} parent=0
    #allocation7 [shape = 'u8[1024]{0}', space=vmem, size = 0x400, scoped, tag = 'input window, operand 0, single buffered']
    #allocation8 [shape = 's32[1]{0}', space=sflag, size = 0x4, scoped, tag = 'scoped memory for tpu_custom_call.1']
    #allocation9 [shape = 's32[1]{0}', space=sflag, size = 0x4, scoped, tag = 'scoped memory for tpu_custom_call.1']
    #allocation10 [shape = 's32[1]{0}', space=sflag, size = 0x4, scoped, tag = 'scoped memory for tpu_custom_call.1']
    #allocation11 [shape = 'u8[1024]{0}', space=smem, size = 0x400, scoped, tag = 'input window, operand 1, single buffered']
    #allocation12 [shape = 'u8[1024]{0}', space=smem, size = 0x400, scoped, tag = 'input window, operand 2, single buffered']
    #allocation13 [shape = 's32[1]{0}', space=sflag, size = 0x4, scoped, tag = 'scoped memory for tpu_custom_call.1']
    #allocation14 [shape = 'u8[262144]{0}', space=vmem, size = 0x40000, scoped, tag = 'input window, operand 5, single buffered']
    #allocation15 [shape = 's32[1]{0}', space=sflag, size = 0x4, scoped, tag = 'scoped memory for tpu_custom_call.1']
    #allocation16 [shape = 'u8[524288]{0}', space=vmem, size = 0x80000, scoped, tag = 'input window, operand 6, single buffered']
    #allocation17 [shape = 'u8[4096]{0}', space=vmem, size = 0x1000, scoped, tag = 'input window, operand 7, single buffered']
    #allocation18 [shape = 's32[1]{0}', space=sflag, size = 0x4, scoped, tag = 'scoped memory for tpu_custom_call.1']
    #allocation19 [shape = 'u8[8192]{0}', space=vmem, size = 0x2000, scoped, tag = 'input window, operand 8, single buffered']
    #allocation20 [shape = 'u8[98304]{0}', space=vmem, size = 0x18000, scoped, tag = 'input window, operand 9, single buffered']
    #allocation21 [shape = 's32[1]{0}', space=sflag, size = 0x4, scoped, tag = 'scoped memory for tpu_custom_call.1']
    #allocation22 [shape = 'u8[196608]{0}', space=vmem, size = 0x30000, scoped, tag = 'input window, operand 10, single buffered']
    #allocation23 [shape = 'u8[98304]{0}', space=vmem, size = 0x18000, scoped, tag = 'input window, operand 11, single buffered']
    #allocation24 [shape = 's32[1]{0}', space=sflag, size = 0x4, scoped, tag = 'scoped memory for tpu_custom_call.1']
    #allocation25 [shape = 'u8[8192]{0}', space=vmem, size = 0x2000, scoped, tag = 'input window, operand 12, single buffered']
    #allocation26 [shape = 'u8[4096]{0}', space=vmem, size = 0x1000, scoped, tag = 'output window, operand 0, single buffered']
    %18 = vsyncpa [#allocation8], 0
    %19 = vsyncpa [#allocation10], 0
    %20 = vsyncpa [#allocation13], 0
    %21 = vsyncpa [#allocation15], 0
    %22 = vsyncpa [#allocation18], 0
    %23 = vsyncpa [#allocation21], 0
    %24 = vsyncpa [#allocation24], 0
    %25 = vsyncpa [#allocation9], 0
    // Predicated region
    $region2: #{tpu_custom_call.1} parent=1 // pred_check
      _
    $region3: #{tpu_custom_call.1} parent=1 // pred_check_branch
      %27 = sbr.rel (0) target = $region5
    $region4: #{tpu_custom_call.1} parent=1 // pred_region
      %s29 = ssub.s32 32, 32
      %30 = vsyncadd [#allocation8], %s29
      %s32 = sshll.u32 [#allocation7], 4
      %s33 = int_to_ptr.vmem [resolvable:$true] %s32
      %35 = dma.hbm_to_vmem [thread:$0]  %s0, 32, %s33, [#allocation8]
    $region5: #{tpu_custom_call.1} parent=1 // pred_fallthru
      _
    // Predicated region
    $region6: #{tpu_custom_call.1} parent=1 // pred_check
      _
    $region7: #{tpu_custom_call.1} parent=1 // pred_check_branch
      %37 = sbr.rel (0) target = $region9
    $region8: #{tpu_custom_call.1} parent=1 // pred_region
      %s39 = ssub.s32 32, 32
      %40 = vsyncadd [#allocation10], %s39
      %43 = dma.hbm_to_smem %s1, 32, [#allocation11], [#allocation10]
    $region9: #{tpu_custom_call.1} parent=1 // pred_fallthru
      _
    // Predicated region
    $region10: #{tpu_custom_call.1} parent=1 // pred_check
      _
    $region11: #{tpu_custom_call.1} parent=1 // pred_check_branch
      %45 = sbr.rel (0) target = $region13
    $region12: #{tpu_custom_call.1} parent=1 // pred_region
      %s47 = ssub.s32 32, 32
      %48 = vsyncadd [#allocation13], %s47
      %51 = dma.hbm_to_smem %s2, 32, [#allocation12], [#allocation13]
    $region13: #{tpu_custom_call.1} parent=1 // pred_fallthru
      _
    // Predicated region
    $region14: #{tpu_custom_call.1} parent=1 // pred_check
      _
    $region15: #{tpu_custom_call.1} parent=1 // pred_check_branch
      %53 = sbr.rel (0) target = $region17
    $region16: #{tpu_custom_call.1} parent=1 // pred_region
      %s55 = ssub.s32 8192, 8192
      %56 = vsyncadd [#allocation15], %s55
      %s57 = sshll.u32 [#allocation14], 4
      %s58 = int_to_ptr.vmem [resolvable:$true] %s57
      %63 = dma.hbm_to_vmem [thread:$0]  %s5, 8192, %s58, [#allocation15], 256, 256, 16
    $region17: #{tpu_custom_call.1} parent=1 // pred_fallthru
      _
    // Predicated region
    $region18: #{tpu_custom_call.1} parent=1 // pred_check
      _
    $region19: #{tpu_custom_call.1} parent=1 // pred_check_branch
      %65 = sbr.rel (0) target = $region21
    $region20: #{tpu_custom_call.1} parent=1 // pred_region
      %s67 = ssub.s32 16384, 16384
      %68 = vsyncadd [#allocation15], %s67
      %s69 = sshll.u32 [#allocation16], 4
      %s70 = int_to_ptr.vmem [resolvable:$true] %s69
      %75 = dma.hbm_to_vmem [thread:$0]  %s6, 16384, %s70, [#allocation15], 512, 512, 32
    $region21: #{tpu_custom_call.1} parent=1 // pred_fallthru
      _
    // Predicated region
    $region22: #{tpu_custom_call.1} parent=1 // pred_check
      _
    $region23: #{tpu_custom_call.1} parent=1 // pred_check_branch
      %77 = sbr.rel (0) target = $region25
    $region24: #{tpu_custom_call.1} parent=1 // pred_region
      %s79 = ssub.s32 128, 128
      %80 = vsyncadd [#allocation18], %s79
      %s82 = sshll.u32 [#allocation17], 4
      %s83 = int_to_ptr.vmem [resolvable:$true] %s82
      %85 = dma.hbm_to_vmem [thread:$0]  %s7, 128, %s83, [#allocation18]
    $region25: #{tpu_custom_call.1} parent=1 // pred_fallthru
      _
    // Predicated region
    $region26: #{tpu_custom_call.1} parent=1 // pred_check
      _
    $region27: #{tpu_custom_call.1} parent=1 // pred_check_branch
      %87 = sbr.rel (0) target = $region29
    $region28: #{tpu_custom_call.1} parent=1 // pred_region
      %s89 = ssub.s32 256, 256
      %90 = vsyncadd [#allocation18], %s89
      %s91 = sshll.u32 [#allocation19], 4
      %s92 = int_to_ptr.vmem [resolvable:$true] %s91
      %97 = dma.hbm_to_vmem [thread:$0]  %s8, 256, %s92, [#allocation18], 64, 64, 4
    $region29: #{tpu_custom_call.1} parent=1 // pred_fallthru
      _
    // Predicated region
    $region30: #{tpu_custom_call.1} parent=1 // pred_check
      _
    $region31: #{tpu_custom_call.1} parent=1 // pred_check_branch
      %99 = sbr.rel (0) target = $region33
    $region32: #{tpu_custom_call.1} parent=1 // pred_region
      %s101 = ssub.s32 3072, 3072
      %102 = vsyncadd [#allocation21], %s101
      %s103 = sshll.u32 [#allocation20], 4
      %s104 = int_to_ptr.vmem [resolvable:$true] %s103
      %109 = dma.hbm_to_vmem [thread:$0]  %s9, 3072, %s104, [#allocation21], 64, 64, 4
    $region33: #{tpu_custom_call.1} parent=1 // pred_fallthru
      _
    // Predicated region
    $region34: #{tpu_custom_call.1} parent=1 // pred_check
      _
    $region35: #{tpu_custom_call.1} parent=1 // pred_check_branch
      %111 = sbr.rel (0) target = $region37
    $region36: #{tpu_custom_call.1} parent=1 // pred_region
      %s113 = ssub.s32 6144, 6144
      %114 = vsyncadd [#allocation21], %s113
      %s115 = sshll.u32 [#allocation22], 4
      %s116 = int_to_ptr.vmem [resolvable:$true] %s115
      %121 = dma.hbm_to_vmem [thread:$0]  %s10, 6144, %s116, [#allocation21], 64, 64, 4
    $region37: #{tpu_custom_call.1} parent=1 // pred_fallthru
      _
    // Predicated region
    $region38: #{tpu_custom_call.1} parent=1 // pred_check
      _
    $region39: #{tpu_custom_call.1} parent=1 // pred_check_branch
      %123 = sbr.rel (0) target = $region41
    $region40: #{tpu_custom_call.1} parent=1 // pred_region
      %s125 = ssub.s32 3072, 3072
      %126 = vsyncadd [#allocation24], %s125
      %s127 = sshll.u32 [#allocation23], 4
      %s128 = int_to_ptr.vmem [resolvable:$true] %s127
      %133 = dma.hbm_to_vmem [thread:$0]  %s11, 3072, %s128, [#allocation24], 192, 192, 12
    $region41: #{tpu_custom_call.1} parent=1 // pred_fallthru
      _
    // Predicated region
    $region42: #{tpu_custom_call.1} parent=1 // pred_check
      _
    $region43: #{tpu_custom_call.1} parent=1 // pred_check_branch
      %135 = sbr.rel (0) target = $region45
    $region44: #{tpu_custom_call.1} parent=1 // pred_region
      %s137 = ssub.s32 256, 256
      %138 = vsyncadd [#allocation24], %s137
      %s139 = sshll.u32 [#allocation25], 4
      %s140 = int_to_ptr.vmem [resolvable:$true] %s139
      %145 = dma.hbm_to_vmem [thread:$0]  %s12, 256, %s140, [#allocation24], 128, 128, 8
    $region45: #{tpu_custom_call.1} parent=1 // pred_fallthru
      _
    // Predicated region
    $region46: #{tpu_custom_call.1} parent=1 // pred_check
      _
    $region47: #{tpu_custom_call.1} parent=1 // pred_check_branch
      %147 = sbr.rel (0) target = $region49
    $region48: #{tpu_custom_call.1} parent=1 // pred_region
      %148 = dma.done [#allocation8], 32
    $region49: #{tpu_custom_call.1} parent=1 // pred_fallthru
      _
    // Predicated region
    $region50: #{tpu_custom_call.1} parent=1 // pred_check
      _
    $region51: #{tpu_custom_call.1} parent=1 // pred_check_branch
      %150 = sbr.rel (0) target = $region53
    $region52: #{tpu_custom_call.1} parent=1 // pred_region
      %151 = dma.done [#allocation10], 32
    $region53: #{tpu_custom_call.1} parent=1 // pred_fallthru
      _
    // Predicated region
    $region54: #{tpu_custom_call.1} parent=1 // pred_check
      _
    $region55: #{tpu_custom_call.1} parent=1 // pred_check_branch
      %153 = sbr.rel (0) target = $region57
    $region56: #{tpu_custom_call.1} parent=1 // pred_region
      %154 = dma.done [#allocation13], 32
    $region57: #{tpu_custom_call.1} parent=1 // pred_fallthru
      _
    // Predicated region
    $region58: #{tpu_custom_call.1} parent=1 // pred_check
      _
    $region59: #{tpu_custom_call.1} parent=1 // pred_check_branch
      %156 = sbr.rel (0) target = $region61
    $region60: #{tpu_custom_call.1} parent=1 // pred_region
      %157 = dma.done [#allocation15], 8192
    $region61: #{tpu_custom_call.1} parent=1 // pred_fallthru
      _
    // Predicated region
    $region62: #{tpu_custom_call.1} parent=1 // pred_check
      _
    $region63: #{tpu_custom_call.1} parent=1 // pred_check_branch
      %159 = sbr.rel (0) target = $region65
    $region64: #{tpu_custom_call.1} parent=1 // pred_region
      %160 = dma.done [#allocation15], 16384
    $region65: #{tpu_custom_call.1} parent=1 // pred_fallthru
      _
    // Predicated region
    $region66: #{tpu_custom_call.1} parent=1 // pred_check
      _
    $region67: #{tpu_custom_call.1} parent=1 // pred_check_branch
      %162 = sbr.rel (0) target = $region69
    $region68: #{tpu_custom_call.1} parent=1 // pred_region
      %163 = dma.done [#allocation18], 128
    $region69: #{tpu_custom_call.1} parent=1 // pred_fallthru
      _
    // Predicated region
    $region70: #{tpu_custom_call.1} parent=1 // pred_check
      _
    $region71: #{tpu_custom_call.1} parent=1 // pred_check_branch
      %165 = sbr.rel (0) target = $region73
    $region72: #{tpu_custom_call.1} parent=1 // pred_region
      %166 = dma.done [#allocation18], 256
    $region73: #{tpu_custom_call.1} parent=1 // pred_fallthru
      _
    // Predicated region
    $region74: #{tpu_custom_call.1} parent=1 // pred_check
      _
    $region75: #{tpu_custom_call.1} parent=1 // pred_check_branch
      %168 = sbr.rel (0) target = $region77
    $region76: #{tpu_custom_call.1} parent=1 // pred_region
      %169 = dma.done [#allocation21], 3072
    $region77: #{tpu_custom_call.1} parent=1 // pred_fallthru
      _
    // Predicated region
    $region78: #{tpu_custom_call.1} parent=1 // pred_check
      _
    $region79: #{tpu_custom_call.1} parent=1 // pred_check_branch
      %171 = sbr.rel (0) target = $region81
    $region80: #{tpu_custom_call.1} parent=1 // pred_region
      %172 = dma.done [#allocation21], 6144
    $region81: #{tpu_custom_call.1} parent=1 // pred_fallthru
      _
    // Predicated region
    $region82: #{tpu_custom_call.1} parent=1 // pred_check
      _
    $region83: #{tpu_custom_call.1} parent=1 // pred_check_branch
      %174 = sbr.rel (0) target = $region85
    $region84: #{tpu_custom_call.1} parent=1 // pred_region
      %175 = dma.done [#allocation24], 3072
    $region85: #{tpu_custom_call.1} parent=1 // pred_fallthru
      _
    // Predicated region
    $region86: #{tpu_custom_call.1} parent=1 // pred_check
      _
    $region87: #{tpu_custom_call.1} parent=1 // pred_check_branch
      %177 = sbr.rel (0) target = $region89
    $region88: #{tpu_custom_call.1} parent=1 // pred_region
      %178 = dma.done [#allocation24], 256
    $region89: #{tpu_custom_call.1} parent=1 // pred_fallthru
      _
    %179 = sfence
    %s181 = sld [smem:[#allocation11]]
    %s182 = smul.addr %s181, 16
    %s183 = scalar_lea.hbm %s3, %s182
    // Predicated region
    $region90: #{tpu_custom_call.1} parent=1 // pred_check
      _
    $region91: #{tpu_custom_call.1} parent=1 // pred_check_branch
      %185 = sbr.rel target = $region93
    $region92: #{tpu_custom_call.1} parent=1 // pred_region
      %186 = sst [smem:[#allocation29]] [#allocation28]
      %187 = sst [smem:[#allocation30]] [#allocation27]
    $region93: #{tpu_custom_call.1} parent=1 // pred_fallthru
      _
    %189 = shalt.err (0)
    %s191 = sshll.u32 [#allocation2], 4
    %s192 = int_to_ptr.vmem [resolvable:$true] %s191
    %194 = dma.hbm_to_vmem [thread:$0]  %s183, 16, %s192, [#allocation6]
    %s195 = sld [smem:[#allocation11 + $0x80]]
    %s196 = smul.addr %s195, 16
    %s197 = scalar_lea.hbm %s3, %s196
    %s198 = scalar_lea.vmem [#allocation2], 1
    %s199 = scalar_lea.sflag [#allocation6], 1
    // Predicated region
    $region94: #{tpu_custom_call.1} parent=1 // pred_check
      _
    $region95: #{tpu_custom_call.1} parent=1 // pred_check_branch
      %201 = sbr.rel target = $region97
    $region96: #{tpu_custom_call.1} parent=1 // pred_region
      %202 = sst [smem:[#allocation29]] [#allocation32]
      %203 = sst [smem:[#allocation30]] [#allocation31]
    $region97: #{tpu_custom_call.1} parent=1 // pred_fallthru
      _
    %205 = shalt.err (0)
    %s207 = sshll.u32 %s198, 4
    %s208 = int_to_ptr.vmem [resolvable:$true] %s207
    %210 = dma.hbm_to_vmem [thread:$0]  %s197, 16, %s208, %s199
    %s211 = sld [smem:[#allocation11 + $0x1]]
    %s212 = smul.addr %s211, 16
    %s213 = scalar_lea.hbm %s3, %s212
    %s214 = scalar_lea.vmem [#allocation2], 8
    %s215 = scalar_lea.sflag [#allocation6], 2
    // Predicated region
    $region98: #{tpu_custom_call.1} parent=1 // pred_check
      _
    $region99: #{tpu_custom_call.1} parent=1 // pred_check_branch
      %217 = sbr.rel target = $region101
    $region100: #{tpu_custom_call.1} parent=1 // pred_region
      %218 = sst [smem:[#allocation29]] [#allocation34]
      %219 = sst [smem:[#allocation30]] [#allocation33]
    $region101: #{tpu_custom_call.1} parent=1 // pred_fallthru
      _
    %221 = shalt.err (0)
    %s223 = sshll.u32 %s214, 4
    %s224 = int_to_ptr.vmem [resolvable:$true] %s223
    %226 = dma.hbm_to_vmem [thread:$0]  %s213, 16, %s224, %s215
    %s227 = sld [smem:[#allocation11 + $0x81]]
    %s228 = smul.addr %s227, 16
    %s229 = scalar_lea.hbm %s3, %s228
    %s230 = scalar_lea.vmem [#allocation2], 9
    %s231 = scalar_lea.sflag [#allocation6], 3
    // Predicated region
    $region102: #{tpu_custom_call.1} parent=1 // pred_check
      _
    $region103: #{tpu_custom_call.1} parent=1 // pred_check_branch
      %233 = sbr.rel target = $region105
    $region104: #{tpu_custom_call.1} parent=1 // pred_region
      %234 = sst [smem:[#allocation29]] [#allocation36]
      %235 = sst [smem:[#allocation30]] [#allocation35]
    $region105: #{tpu_custom_call.1} parent=1 // pred_fallthru
      _
    %237 = shalt.err (0)
    %s239 = sshll.u32 %s230, 4
    %s240 = int_to_ptr.vmem [resolvable:$true] %s239
    %242 = dma.hbm_to_vmem [thread:$0]  %s229, 16, %s240, %s231
    %s243 = sld [smem:[#allocation11 + $0x2]]
    %s244 = smul.addr %s243, 16
    %s245 = scalar_lea.hbm %s3, %s244
    %s246 = scalar_lea.vmem [#allocation2], 16
    %s247 = scalar_lea.sflag [#allocation6], 4
    // Predicated region
    $region106: #{tpu_custom_call.1} parent=1 // pred_check
      _
    $region107: #{tpu_custom_call.1} parent=1 // pred_check_branch
      %249 = sbr.rel target = $region109
    $region108: #{tpu_custom_call.1} parent=1 // pred_region
      %250 = sst [smem:[#allocation29]] [#allocation38]
      %251 = sst [smem:[#allocation30]] [#allocation37]
    $region109: #{tpu_custom_call.1} parent=1 // pred_fallthru
      _
    %253 = shalt.err (0)
    %s255 = sshll.u32 %s246, 4
    %s256 = int_to_ptr.vmem [resolvable:$true] %s255
    %258 = dma.hbm_to_vmem [thread:$0]  %s245, 16, %s256, %s247
    %s259 = sld [smem:[#allocation11 + $0x82]]
    %s260 = smul.addr %s259, 16
    %s261 = scalar_lea.hbm %s3, %s260
    %s262 = scalar_lea.vmem [#allocation2], 17
    %s263 = scalar_lea.sflag [#allocation6], 5
    // Predicated region
    $region110: #{tpu_custom_call.1} parent=1 // pred_check
      _
    $region111: #{tpu_custom_call.1} parent=1 // pred_check_branch
      %265 = sbr.rel target = $region113
    $region112: #{tpu_custom_call.1} parent=1 // pred_region
      %266 = sst [smem:[#allocation29]] [#allocation40]
      %267 = sst [smem:[#allocation30]] [#allocation39]
    $region113: #{tpu_custom_call.1} parent=1 // pred_fallthru
      _
    %269 = shalt.err (0)
    %s271 = sshll.u32 %s262, 4
    %s272 = int_to_ptr.vmem [resolvable:$true] %s271
    %274 = dma.hbm_to_vmem [thread:$0]  %s261, 16, %s272, %s263
    %s275 = sld [smem:[#allocation11 + $0x3]]
    %s276 = smul.addr %s275, 16
    %s277 = scalar_lea.hbm %s3, %s276
    %s278 = scalar_lea.vmem [#allocation2], 24
    %s279 = scalar_lea.sflag [#allocation6], 6
    // Predicated region
    $region114: #{tpu_custom_call.1} parent=1 // pred_check
      _
    $region115: #{tpu_custom_call.1} parent=1 // pred_check_branch
      %281 = sbr.rel target = $region117
    $region116: #{tpu_custom_call.1} parent=1 // pred_region
      %282 = sst [smem:[#allocation29]] [#allocation42]
      %283 = sst [smem:[#allocation30]] [#allocation41]
    $region117: #{tpu_custom_call.1} parent=1 // pred_fallthru
      _
    %285 = shalt.err (0)
    %s287 = sshll.u32 %s278, 4
    %s288 = int_to_ptr.vmem [resolvable:$true] %s287
    %290 = dma.hbm_to_vmem [thread:$0]  %s277, 16, %s288, %s279
    %s291 = sld [smem:[#allocation11 + $0x83]]
    %s292 = smul.addr %s291, 16
    %s293 = scalar_lea.hbm %s3, %s292
    %s294 = scalar_lea.vmem [#allocation2], 25
    %s295 = scalar_lea.sflag [#allocation6], 7
    // Predicated region
    $region118: #{tpu_custom_call.1} parent=1 // pred_check
      _
    $region119: #{tpu_custom_call.1} parent=1 // pred_check_branch
      %297 = sbr.rel target = $region121
    $region120: #{tpu_custom_call.1} parent=1 // pred_region
      %298 = sst [smem:[#allocation29]] [#allocation44]
      %299 = sst [smem:[#allocation30]] [#allocation43]
    $region121: #{tpu_custom_call.1} parent=1 // pred_fallthru
      _
    %301 = shalt.err (0)
    %s303 = sshll.u32 %s294, 4
    %s304 = int_to_ptr.vmem [resolvable:$true] %s303
    %306 = dma.hbm_to_vmem [thread:$0]  %s293, 16, %s304, %s295
    %s307 = sld [smem:[#allocation11 + $0x4]]
    %s308 = smul.addr %s307, 16
    %s309 = scalar_lea.hbm %s3, %s308
    %s310 = scalar_lea.vmem [#allocation2], 32
    %s311 = scalar_lea.sflag [#allocation6], 8
    // Predicated region
    $region122: #{tpu_custom_call.1} parent=1 // pred_check
      _
    $region123: #{tpu_custom_call.1} parent=1 // pred_check_branch
      %313 = sbr.rel target = $region125
    $region124: #{tpu_custom_call.1} parent=1 // pred_region
      %314 = sst [smem:[#allocation29]] [#allocation46]
      %315 = sst [smem:[#allocation30]] [#allocation45]
    $region125: #{tpu_custom_call.1} parent=1 // pred_fallthru
      _
    %317 = shalt.err (0)
    %s319 = sshll.u32 %s310, 4
    %s320 = int_to_ptr.vmem [resolvable:$true] %s319
    %322 = dma.hbm_to_vmem [thread:$0]  %s309, 16, %s320, %s311
    %s323 = sld [smem:[#allocation11 + $0x84]]
    %s324 = smul.addr %s323, 16
    %s325 = scalar_lea.hbm %s3, %s324
    %s326 = scalar_lea.vmem [#allocation2], 33
    %s327 = scalar_lea.sflag [#allocation6], 9
    // Predicated region
    $region126: #{tpu_custom_call.1} parent=1 // pred_check
      _
    $region127: #{tpu_custom_call.1} parent=1 // pred_check_branch
      %329 = sbr.rel target = $region129
    $region128: #{tpu_custom_call.1} parent=1 // pred_region
      %330 = sst [smem:[#allocation29]] [#allocation48]
      %331 = sst [smem:[#allocation30]] [#allocation47]
    $region129: #{tpu_custom_call.1} parent=1 // pred_fallthru
      _
    %333 = shalt.err (0)
    %s335 = sshll.u32 %s326, 4
    %s336 = int_to_ptr.vmem [resolvable:$true] %s335
    %338 = dma.hbm_to_vmem [thread:$0]  %s325, 16, %s336, %s327
    %s339 = sld [smem:[#allocation11 + $0x5]]
    %s340 = smul.addr %s339, 16
    %s341 = scalar_lea.hbm %s3, %s340
    %s342 = scalar_lea.vmem [#allocation2], 40
    %s343 = scalar_lea.sflag [#allocation6], 10
    // Predicated region
    $region130: #{tpu_custom_call.1} parent=1 // pred_check
      _
    $region131: #{tpu_custom_call.1} parent=1 // pred_check_branch
      %345 = sbr.rel target = $region133
    $region132: #{tpu_custom_call.1} parent=1 // pred_region
      %346 = sst [smem:[#allocation29]] [#allocation50]
      %347 = sst [smem:[#allocation30]] [#allocation49]
    $region133: #{tpu_custom_call.1} parent=1 // pred_fallthru
      _
    %349 = shalt.err (0)
    %s351 = sshll.u32 %s342, 4
    %s352 = int_to_ptr.vmem [resolvable:$true] %s351
    %354 = dma.hbm_to_vmem [thread:$0]  %s341, 16, %s352, %s343
    %s355 = sld [smem:[#allocation11 + $0x85]]
    %s356 = smul.addr %s355, 16
    %s357 = scalar_lea.hbm %s3, %s356
    %s358 = scalar_lea.vmem [#allocation2], 41
    %s359 = scalar_lea.sflag [#allocation6], 11
    // Predicated region
    $region134: #{tpu_custom_call.1} parent=1 // pred_check
      _
    $region135: #{tpu_custom_call.1} parent=1 // pred_check_branch
      %361 = sbr.rel target = $region137
    $region136: #{tpu_custom_call.1} parent=1 // pred_region
      %362 = sst [smem:[#allocation29]] [#allocation52]
      %363 = sst [smem:[#allocation30]] [#allocation51]
    $region137: #{tpu_custom_call.1} parent=1 // pred_fallthru
      _
    %365 = shalt.err (0)
    %s367 = sshll.u32 %s358, 4
    %s368 = int_to_ptr.vmem [resolvable:$true] %s367
    %370 = dma.hbm_to_vmem [thread:$0]  %s357, 16, %s368, %s359
    %s371 = sld [smem:[#allocation11 + $0x6]]
    %s372 = smul.addr %s371, 16
    %s373 = scalar_lea.hbm %s3, %s372
    %s374 = scalar_lea.vmem [#allocation2], 48
    %s375 = scalar_lea.sflag [#allocation6], 12
    // Predicated region
    $region138: #{tpu_custom_call.1} parent=1 // pred_check
      _
    $region139: #{tpu_custom_call.1} parent=1 // pred_check_branch
      %377 = sbr.rel target = $region141
    $region140: #{tpu_custom_call.1} parent=1 // pred_region
      %378 = sst [smem:[#allocation29]] [#allocation54]
      %379 = sst [smem:[#allocation30]] [#allocation53]
    $region141: #{tpu_custom_call.1} parent=1 // pred_fallthru
      _
    %381 = shalt.err (0)
    %s383 = sshll.u32 %s374, 4
    %s384 = int_to_ptr.vmem [resolvable:$true] %s383
    %386 = dma.hbm_to_vmem [thread:$0]  %s373, 16, %s384, %s375
    %s387 = sld [smem:[#allocation11 + $0x86]]
    %s388 = smul.addr %s387, 16
    %s389 = scalar_lea.hbm %s3, %s388
    %s390 = scalar_lea.vmem [#allocation2], 49
    %s391 = scalar_lea.sflag [#allocation6], 13
    // Predicated region
    $region142: #{tpu_custom_call.1} parent=1 // pred_check
      _
    $region143: #{tpu_custom_call.1} parent=1 // pred_check_branch
      %393 = sbr.rel target = $region145
    $region144: #{tpu_custom_call.1} parent=1 // pred_region
      %394 = sst [smem:[#allocation29]] [#allocation56]
      %395 = sst [smem:[#allocation30]] [#allocation55]
    $region145: #{tpu_custom_call.1} parent=1 // pred_fallthru
      _
    %397 = shalt.err (0)
    %s399 = sshll.u32 %s390, 4
    %s400 = int_to_ptr.vmem [resolvable:$true] %s399
    %402 = dma.hbm_to_vmem [thread:$0]  %s389, 16, %s400, %s391
    %s403 = sld [smem:[#allocation11 + $0x7]]
    %s404 = smul.addr %s403, 16
    %s405 = scalar_lea.hbm %s3, %s404
    %s406 = scalar_lea.vmem [#allocation2], 56
    %s407 = scalar_lea.sflag [#allocation6], 14
    // Predicated region
    $region146: #{tpu_custom_call.1} parent=1 // pred_check
      _
    $region147: #{tpu_custom_call.1} parent=1 // pred_check_branch
      %409 = sbr.rel target = $region149
    $region148: #{tpu_custom_call.1} parent=1 // pred_region
      %410 = sst [smem:[#allocation29]] [#allocation58]
      %411 = sst [smem:[#allocation30]] [#allocation57]
    $region149: #{tpu_custom_call.1} parent=1 // pred_fallthru
      _
    %413 = shalt.err (0)
    %s415 = sshll.u32 %s406, 4
    %s416 = int_to_ptr.vmem [resolvable:$true] %s415
    %418 = dma.hbm_to_vmem [thread:$0]  %s405, 16, %s416, %s407
    %s419 = sld [smem:[#allocation11 + $0x87]]
    %s420 = smul.addr %s419, 16
    %s421 = scalar_lea.hbm %s3, %s420
    %s422 = scalar_lea.vmem [#allocation2], 57
    %s423 = scalar_lea.sflag [#allocation6], 15
    // Predicated region
    $region150: #{tpu_custom_call.1} parent=1 // pred_check
      _
    $region151: #{tpu_custom_call.1} parent=1 // pred_check_branch
      %425 = sbr.rel target = $region153
    $region152: #{tpu_custom_call.1} parent=1 // pred_region
      %426 = sst [smem:[#allocation29]] [#allocation60]
      %427 = sst [smem:[#allocation30]] [#allocation59]
    $region153: #{tpu_custom_call.1} parent=1 // pred_fallthru
      _
    %429 = shalt.err (0)
    %s431 = sshll.u32 %s422, 4
    %s432 = int_to_ptr.vmem [resolvable:$true] %s431
    %434 = dma.hbm_to_vmem [thread:$0]  %s421, 16, %s432, %s423
    %s435 = sld [smem:[#allocation12]]
    %s436 = smul.addr %s435, 16
    %s437 = scalar_lea.hbm %s4, %s436
    %s438 = scalar_lea.sflag [#allocation6], 16
    // Predicated region
    $region154: #{tpu_custom_call.1} parent=1 // pred_check
      _
    $region155: #{tpu_custom_call.1} parent=1 // pred_check_branch
      %440 = sbr.rel target = $region157
    $region156: #{tpu_custom_call.1} parent=1 // pred_region
      %441 = sst [smem:[#allocation29]] [#allocation62]
      %442 = sst [smem:[#allocation30]] [#allocation61]
    $region157: #{tpu_custom_call.1} parent=1 // pred_fallthru
      _
    %444 = shalt.err (0)
    %s446 = sshll.u32 [#allocation3], 4
    %s447 = int_to_ptr.vmem [resolvable:$true] %s446
    %449 = dma.hbm_to_vmem [thread:$0]  %s437, 16, %s447, %s438
    %s450 = sld [smem:[#allocation12 + $0x80]]
    %s451 = smul.addr %s450, 16
    %s452 = scalar_lea.hbm %s4, %s451
    %s453 = scalar_lea.vmem [#allocation3], 1
    %s454 = scalar_lea.sflag [#allocation6], 17
    // Predicated region
    $region158: #{tpu_custom_call.1} parent=1 // pred_check
      _
    $region159: #{tpu_custom_call.1} parent=1 // pred_check_branch
      %456 = sbr.rel target = $region161
    $region160: #{tpu_custom_call.1} parent=1 // pred_region
      %457 = sst [smem:[#allocation29]] [#allocation64]
      %458 = sst [smem:[#allocation30]] [#allocation63]
    $region161: #{tpu_custom_call.1} parent=1 // pred_fallthru
      _
    %460 = shalt.err (0)
    %s462 = sshll.u32 %s453, 4
    %s463 = int_to_ptr.vmem [resolvable:$true] %s462
    %465 = dma.hbm_to_vmem [thread:$0]  %s452, 16, %s463, %s454
    %s466 = sld [smem:[#allocation12 + $0x1]]
    %s467 = smul.addr %s466, 16
    %s468 = scalar_lea.hbm %s4, %s467
    %s469 = scalar_lea.vmem [#allocation3], 8
    %s470 = scalar_lea.sflag [#allocation6], 18
    // Predicated region
    $region162: #{tpu_custom_call.1} parent=1 // pred_check
      _
    $region163: #{tpu_custom_call.1} parent=1 // pred_check_branch
      %472 = sbr.rel target = $region165
    $region164: #{tpu_custom_call.1} parent=1 // pred_region
      %473 = sst [smem:[#allocation29]] [#allocation66]
      %474 = sst [smem:[#allocation30]] [#allocation65]
    $region165: #{tpu_custom_call.1} parent=1 // pred_fallthru
      _
    %476 = shalt.err (0)
    %s478 = sshll.u32 %s469, 4
    %s479 = int_to_ptr.vmem [resolvable:$true] %s478
    %481 = dma.hbm_to_vmem [thread:$0]  %s468, 16, %s479, %s470
    %s482 = sld [smem:[#allocation12 + $0x81]]
    %s483 = smul.addr %s482, 16
    %s484 = scalar_lea.hbm %s4, %s483
    %s485 = scalar_lea.vmem [#allocation3], 9
    %s486 = scalar_lea.sflag [#allocation6], 19
    // Predicated region
    $region166: #{tpu_custom_call.1} parent=1 // pred_check
      _
    $region167: #{tpu_custom_call.1} parent=1 // pred_check_branch
      %488 = sbr.rel target = $region169
    $region168: #{tpu_custom_call.1} parent=1 // pred_region
      %489 = sst [smem:[#allocation29]] [#allocation68]
      %490 = sst [smem:[#allocation30]] [#allocation67]
    $region169: #{tpu_custom_call.1} parent=1 // pred_fallthru
      _
    %492 = shalt.err (0)
    %s494 = sshll.u32 %s485, 4
    %s495 = int_to_ptr.vmem [resolvable:$true] %s494
    %497 = dma.hbm_to_vmem [thread:$0]  %s484, 16, %s495, %s486
    %s498 = sld [smem:[#allocation12 + $0x2]]
    %s499 = smul.addr %s498, 16
    %s500 = scalar_lea.hbm %s4, %s499
    %s501 = scalar_lea.vmem [#allocation3], 16
    %s502 = scalar_lea.sflag [#allocation6], 20
    // Predicated region
    $region170: #{tpu_custom_call.1} parent=1 // pred_check
      _
    $region171: #{tpu_custom_call.1} parent=1 // pred_check_branch
      %504 = sbr.rel target = $region173
    $region172: #{tpu_custom_call.1} parent=1 // pred_region
      %505 = sst [smem:[#allocation29]] [#allocation70]
      %506 = sst [smem:[#allocation30]] [#allocation69]
    $region173: #{tpu_custom_call.1} parent=1 // pred_fallthru
      _
    %508 = shalt.err (0)
    %s510 = sshll.u32 %s501, 4
    %s511 = int_to_ptr.vmem [resolvable:$true] %s510
    %513 = dma.hbm_to_vmem [thread:$0]  %s500, 16, %s511, %s502
    %s514 = sld [smem:[#allocation12 + $0x82]]
    %s515 = smul.addr %s514, 16
    %s516 = scalar_lea.hbm %s4, %s515
    %s517 = scalar_lea.vmem [#allocation3], 17
    %s518 = scalar_lea.sflag [#allocation6], 21
    // Predicated region
    $region174: #{tpu_custom_call.1} parent=1 // pred_check
      _
    $region175: #{tpu_custom_call.1} parent=1 // pred_check_branch
      %520 = sbr.rel target = $region177
    $region176: #{tpu_custom_call.1} parent=1 // pred_region
      %521 = sst [smem:[#allocation29]] [#allocation72]
      %522 = sst [smem:[#allocation30]] [#allocation71]
    $region177: #{tpu_custom_call.1} parent=1 // pred_fallthru
      _
    %524 = shalt.err (0)
    %s526 = sshll.u32 %s517, 4
    %s527 = int_to_ptr.vmem [resolvable:$true] %s526
    %529 = dma.hbm_to_vmem [thread:$0]  %s516, 16, %s527, %s518
    %s530 = sld [smem:[#allocation12 + $0x3]]
    %s531 = smul.addr %s530, 16
    %s532 = scalar_lea.hbm %s4, %s531
    %s533 = scalar_lea.vmem [#allocation3], 24
    %s534 = scalar_lea.sflag [#allocation6], 22
    // Predicated region
    $region178: #{tpu_custom_call.1} parent=1 // pred_check
      _
    $region179: #{tpu_custom_call.1} parent=1 // pred_check_branch
      %536 = sbr.rel target = $region181
    $region180: #{tpu_custom_call.1} parent=1 // pred_region
      %537 = sst [smem:[#allocation29]] [#allocation74]
      %538 = sst [smem:[#allocation30]] [#allocation73]
    $region181: #{tpu_custom_call.1} parent=1 // pred_fallthru
      _
    %540 = shalt.err (0)
    %s542 = sshll.u32 %s533, 4
    %s543 = int_to_ptr.vmem [resolvable:$true] %s542
    %545 = dma.hbm_to_vmem [thread:$0]  %s532, 16, %s543, %s534
    %s546 = sld [smem:[#allocation12 + $0x83]]
    %s547 = smul.addr %s546, 16
    %s548 = scalar_lea.hbm %s4, %s547
    %s549 = scalar_lea.vmem [#allocation3], 25
    %s550 = scalar_lea.sflag [#allocation6], 23
    // Predicated region
    $region182: #{tpu_custom_call.1} parent=1 // pred_check
      _
    $region183: #{tpu_custom_call.1} parent=1 // pred_check_branch
      %552 = sbr.rel target = $region185
    $region184: #{tpu_custom_call.1} parent=1 // pred_region
      %553 = sst [smem:[#allocation29]] [#allocation76]
      %554 = sst [smem:[#allocation30]] [#allocation75]
    $region185: #{tpu_custom_call.1} parent=1 // pred_fallthru
      _
    %556 = shalt.err (0)
    %s558 = sshll.u32 %s549, 4
    %s559 = int_to_ptr.vmem [resolvable:$true] %s558
    %561 = dma.hbm_to_vmem [thread:$0]  %s548, 16, %s559, %s550
    %s562 = sld [smem:[#allocation12 + $0x4]]
    %s563 = smul.addr %s562, 16
    %s564 = scalar_lea.hbm %s4, %s563
    %s565 = scalar_lea.vmem [#allocation3], 32
    %s566 = scalar_lea.sflag [#allocation6], 24
    // Predicated region
    $region186: #{tpu_custom_call.1} parent=1 // pred_check
      _
    $region187: #{tpu_custom_call.1} parent=1 // pred_check_branch
      %568 = sbr.rel target = $region189
    $region188: #{tpu_custom_call.1} parent=1 // pred_region
      %569 = sst [smem:[#allocation29]] [#allocation78]
      %570 = sst [smem:[#allocation30]] [#allocation77]
    $region189: #{tpu_custom_call.1} parent=1 // pred_fallthru
      _
    %572 = shalt.err (0)
    %s574 = sshll.u32 %s565, 4
    %s575 = int_to_ptr.vmem [resolvable:$true] %s574
    %577 = dma.hbm_to_vmem [thread:$0]  %s564, 16, %s575, %s566
    %s578 = sld [smem:[#allocation12 + $0x84]]
    %s579 = smul.addr %s578, 16
    %s580 = scalar_lea.hbm %s4, %s579
    %s581 = scalar_lea.vmem [#allocation3], 33
    %s582 = scalar_lea.sflag [#allocation6], 25
    // Predicated region
    $region190: #{tpu_custom_call.1} parent=1 // pred_check
      _
    $region191: #{tpu_custom_call.1} parent=1 // pred_check_branch
      %584 = sbr.rel target = $region193
    $region192: #{tpu_custom_call.1} parent=1 // pred_region
      %585 = sst [smem:[#allocation29]] [#allocation80]
      %586 = sst [smem:[#allocation30]] [#allocation79]
    $region193: #{tpu_custom_call.1} parent=1 // pred_fallthru
      _
    %588 = shalt.err (0)
    %s590 = sshll.u32 %s581, 4
    %s591 = int_to_ptr.vmem [resolvable:$true] %s590
    %593 = dma.hbm_to_vmem [thread:$0]  %s580, 16, %s591, %s582
    %v594 = vld [vmem:[#allocation7] sm:$0x3]
    %vm595 = vcmask 1041408
    %v596 = vsel %vm595, %v594, 0.0
    %v597 = vld [vmem:[#allocation19] sm:$0xf]
    %v598 = vld [vmem:[#allocation19 + $0x4] sm:$0xf]
    %v599 = vld [vmem:[#allocation19 + $0x8] sm:$0xf]
    %v600 = vld [vmem:[#allocation19 + $0xc] sm:$0xf]
    %v601 = vpack.c.bf16 %v596, %v596
    %v602 = vld [vmem:[#allocation25] sm:$0x1]
    %v603 = vlaneseq
    %v604 = vshrl.u32 %v603, 7
    %v605 = vsub.s32 0, %v604
    %v606 = vrot.slane %v602, %v605
    %v611 = vunpack.c.l.b16 %v597
    %v612 = vunpack.c.l.b16 %v598
    %v613 = vunpack.c.l.b16 %v599
    %v614 = vunpack.c.l.b16 %v600
    %v615 = vpack.c.b16 %v612, %v611
    %v616 = vpack.c.b16 %v614, %v613
    %vm619 = vcmask 261120
    %v621 = vsel %vm619, %v601, 0
    %623 = vmatprep.subr.bf16.mxu0 0
    %624 = vmatpush1.bf16.msra.mxu0 %v615
    %625 = vmatprep.subr.bf16.mxu0 0
    %626 = vmatpush1.bf16.msra.mxu0 %v616
    %627 = vmatprep.subr.bf16.mxu0 0
    %628 = vmatpush1.bf16.msra.mxu0 0
    %629 = vmatprep.subr.bf16.mxu0 0
    %630 = vmatpush1.bf16.msra.mxu0 0
    %631 = vmatprep.subr.bf16.mxu0 0
    %632 = vmatpush1.bf16.msra.mxu0 0
    %633 = vmatprep.subr.bf16.mxu0 0
    %634 = vmatpush1.bf16.msra.mxu0 0
    %635 = vmatprep.subr.bf16.mxu0 0
    %636 = vmatpush1.bf16.msra.mxu0 0
    %637 = vmatprep.subr.bf16.mxu0 0
    %638 = vmatpush1.bf16.msra.mxu0 0
    %639 = vmatprep.subr.bf16.mxu0 0
    %640 = vmatpush1.bf16.msra.mxu0 0
    %641 = vmatprep.subr.bf16.mxu0 0
    %642 = vmatpush1.bf16.msra.mxu0 0
    %643 = vmatprep.subr.bf16.mxu0 0
    %644 = vmatpush1.bf16.msra.mxu0 0
    %645 = vmatprep.subr.bf16.mxu0 0
    %646 = vmatpush1.bf16.msra.mxu0 0
    %647 = vmatprep.subr.bf16.mxu0 0
    %648 = vmatpush1.bf16.msra.mxu0 0
    %649 = vmatprep.subr.bf16.mxu0 0
    %650 = vmatpush1.bf16.msra.mxu0 0
    %651 = vmatprep.subr.bf16.mxu0 0
    %652 = vmatpush1.bf16.msra.mxu0 0
    %653 = vmatprep.subr.bf16.mxu0 0
    %654 = vmatpush1.bf16.msra.mxu0 0
    %655 = vmatprep.mubr.bf16.mxu0 0
    %656 = vmatmul.mubr.bf16.gmra.mrb[0].mxu0 %v621
    %v657 = vpop.f32.mrb[0].mxu0
    %v658 = vadd.f32 %v606, %v657
    %v659 = vpop.f32.mrb[0].mxu0
    %v660 = vpop.f32.mrb[0].mxu0
    %v661 = vpop.f32.mrb[0].mxu0
    %662 = vdwg.mxu0
    %v663 = vmax.f32 %v658, 0.0
    %v664 = vld [vmem:[#allocation20] sm:$0xf]
    %v665 = vld [vmem:[#allocation20 + $0x4] sm:$0xf]
    %v666 = vld [vmem:[#allocation20 + $0x8] sm:$0xf]
    %v667 = vld [vmem:[#allocation20 + $0xc] sm:$0xf]
    %v668 = vld [vmem:[#allocation20 + $0x10] sm:$0xf]
    %v669 = vld [vmem:[#allocation20 + $0x14] sm:$0xf]
    %v670 = vld [vmem:[#allocation20 + $0x18] sm:$0xf]
    %v671 = vld [vmem:[#allocation20 + $0x1c] sm:$0xf]
    %v672 = vld [vmem:[#allocation20 + $0x20] sm:$0xf]
    %v673 = vld [vmem:[#allocation20 + $0x24] sm:$0xf]
    %v674 = vld [vmem:[#allocation20 + $0x28] sm:$0xf]
    %v675 = vld [vmem:[#allocation20 + $0x2c] sm:$0xf]
    %v676 = vld [vmem:[#allocation20 + $0x30] sm:$0xf]
    %v677 = vld [vmem:[#allocation20 + $0x34] sm:$0xf]
    %v678 = vld [vmem:[#allocation20 + $0x38] sm:$0xf]
    %v679 = vld [vmem:[#allocation20 + $0x3c] sm:$0xf]
    %v680 = vpack.c.bf16 %v663, %v663
    %v681 = vld [vmem:[#allocation25 + $0x1] sm:$0x1]
    %v682 = vlaneseq
    %v683 = vshrl.u32 %v682, 7
    %v684 = vsub.s32 0, %v683
    %v685 = vrot.slane %v681, %v684
    %v702 = vunpack.c.l.b16 %v664
    %v703 = vunpack.c.l.b16 %v665
    %v704 = vunpack.c.l.b16 %v666
    %v705 = vunpack.c.l.b16 %v667
    %v706 = vunpack.c.l.b16 %v668
    %v707 = vunpack.c.l.b16 %v669
    %v708 = vunpack.c.l.b16 %v670
    %v709 = vunpack.c.l.b16 %v671
    %v710 = vunpack.c.l.b16 %v672
    %v711 = vunpack.c.l.b16 %v673
    %v712 = vunpack.c.l.b16 %v674
    %v713 = vunpack.c.l.b16 %v675
    %v714 = vunpack.c.l.b16 %v676
    %v715 = vunpack.c.l.b16 %v677
    %v716 = vunpack.c.l.b16 %v678
    %v717 = vunpack.c.l.b16 %v679
    %v718 = vpack.c.b16 %v703, %v702
    %v719 = vpack.c.b16 %v705, %v704
    %v720 = vpack.c.b16 %v707, %v706
    %v721 = vpack.c.b16 %v709, %v708
    %v722 = vpack.c.b16 %v711, %v710
    %v723 = vpack.c.b16 %v713, %v712
    %v724 = vpack.c.b16 %v715, %v714
    %v725 = vpack.c.b16 %v717, %v716
    %734 = vmatprep.subr.bf16.mxu0 0
    %735 = vmatpush1.bf16.msra.mxu0 %v718
    %736 = vmatprep.subr.bf16.mxu0 0
    %737 = vmatpush1.bf16.msra.mxu0 %v719
    %738 = vmatprep.subr.bf16.mxu0 0
    %739 = vmatpush1.bf16.msra.mxu0 %v720
    %740 = vmatprep.subr.bf16.mxu0 0
    %741 = vmatpush1.bf16.msra.mxu0 %v721
    %742 = vmatprep.subr.bf16.mxu0 0
    %743 = vmatpush1.bf16.msra.mxu0 %v722
    %744 = vmatprep.subr.bf16.mxu0 0
    %745 = vmatpush1.bf16.msra.mxu0 %v723
    %746 = vmatprep.subr.bf16.mxu0 0
    %747 = vmatpush1.bf16.msra.mxu0 %v724
    %748 = vmatprep.subr.bf16.mxu0 0
    %749 = vmatpush1.bf16.msra.mxu0 %v725
    %750 = vmatprep.subr.bf16.mxu0 0
    %751 = vmatpush1.bf16.msra.mxu0 0
    %752 = vmatprep.subr.bf16.mxu0 0
    %753 = vmatpush1.bf16.msra.mxu0 0
    %754 = vmatprep.subr.bf16.mxu0 0
    %755 = vmatpush1.bf16.msra.mxu0 0
    %756 = vmatprep.subr.bf16.mxu0 0
    %757 = vmatpush1.bf16.msra.mxu0 0
    %758 = vmatprep.subr.bf16.mxu0 0
    %759 = vmatpush1.bf16.msra.mxu0 0
    %760 = vmatprep.subr.bf16.mxu0 0
    %761 = vmatpush1.bf16.msra.mxu0 0
    %762 = vmatprep.subr.bf16.mxu0 0
    %763 = vmatpush1.bf16.msra.mxu0 0
    %764 = vmatprep.subr.bf16.mxu0 0
    %765 = vmatpush1.bf16.msra.mxu0 0
    %766 = vmatprep.mubr.bf16.mxu0 0
    %767 = vmatmul.mubr.bf16.gmra.mrb[0].mxu0 %v680
    %v768 = vpop.f32.mrb[0].mxu0
    %v769 = vadd.f32 %v685, %v768
    %v770 = vpop.f32.mrb[0].mxu0
    %v771 = vpop.f32.mrb[0].mxu0
    %v772 = vpop.f32.mrb[0].mxu0
    %773 = vdwg.mxu0
    %v774 = vmax.f32 %v769, 0.0
    %776 = dma.done [#allocation6], 16
    %778 = dma.done %s199, 16
    %780 = dma.done %s215, 16
    %782 = dma.done %s231, 16
    %784 = dma.done %s247, 16
    %786 = dma.done %s263, 16
    %788 = dma.done %s279, 16
    %790 = dma.done %s295, 16
    %792 = dma.done %s311, 16
    %794 = dma.done %s327, 16
    %796 = dma.done %s343, 16
    %798 = dma.done %s359, 16
    %800 = dma.done %s375, 16
    %802 = dma.done %s391, 16
    %804 = dma.done %s407, 16
    %806 = dma.done %s423, 16
    %808 = dma.done %s438, 16
    %810 = dma.done %s454, 16
    %812 = dma.done %s470, 16
    %814 = dma.done %s486, 16
    %816 = dma.done %s502, 16
    %818 = dma.done %s518, 16
    %820 = dma.done %s534, 16
    %822 = dma.done %s550, 16
    %824 = dma.done %s566, 16
    %826 = dma.done %s582, 16
    %v827 = vld [vmem:[#allocation2] sm:$0xff]
    %v828 = vld [vmem:[#allocation2 + $0x8] sm:$0xff]
    %v829 = vld [vmem:[#allocation2 + $0x10] sm:$0xff]
    %v830 = vld [vmem:[#allocation2 + $0x18] sm:$0xff]
    %v831 = vld [vmem:[#allocation2 + $0x20] sm:$0xff]
    %v832 = vld [vmem:[#allocation2 + $0x28] sm:$0xff]
    %v833 = vld [vmem:[#allocation2 + $0x30] sm:$0xff]
    %v834 = vld [vmem:[#allocation2 + $0x38] sm:$0xff]
    %v835 = vld [vmem:[#allocation14] sm:$0xff]
    %v836 = vld [vmem:[#allocation14 + $0x8] sm:$0xff]
    %v837 = vld [vmem:[#allocation14 + $0x10] sm:$0xff]
    %v838 = vld [vmem:[#allocation14 + $0x18] sm:$0xff]
    %v839 = vld [vmem:[#allocation14 + $0x20] sm:$0xff]
    %v840 = vld [vmem:[#allocation14 + $0x28] sm:$0xff]
    %v841 = vld [vmem:[#allocation14 + $0x30] sm:$0xff]
    %v842 = vld [vmem:[#allocation14 + $0x38] sm:$0xff]
    %v843 = vld [vmem:[#allocation14 + $0x40] sm:$0xff]
    %v844 = vld [vmem:[#allocation14 + $0x48] sm:$0xff]
    %v845 = vld [vmem:[#allocation14 + $0x50] sm:$0xff]
    %v846 = vld [vmem:[#allocation14 + $0x58] sm:$0xff]
    %v847 = vld [vmem:[#allocation14 + $0x60] sm:$0xff]
    %v848 = vld [vmem:[#allocation14 + $0x68] sm:$0xff]
    %v849 = vld [vmem:[#allocation14 + $0x70] sm:$0xff]
    %v850 = vld [vmem:[#allocation14 + $0x78] sm:$0xff]
    %v851 = vld [vmem:[#allocation14 + $0x80] sm:$0xff]
    %v852 = vld [vmem:[#allocation14 + $0x88] sm:$0xff]
    %v853 = vld [vmem:[#allocation14 + $0x90] sm:$0xff]
    %v854 = vld [vmem:[#allocation14 + $0x98] sm:$0xff]
    %v855 = vld [vmem:[#allocation14 + $0xa0] sm:$0xff]
    %v856 = vld [vmem:[#allocation14 + $0xa8] sm:$0xff]
    %v857 = vld [vmem:[#allocation14 + $0xb0] sm:$0xff]
    %v858 = vld [vmem:[#allocation14 + $0xb8] sm:$0xff]
    %v859 = vld [vmem:[#allocation14 + $0xc0] sm:$0xff]
    %v860 = vld [vmem:[#allocation14 + $0xc8] sm:$0xff]
    %v861 = vld [vmem:[#allocation14 + $0xd0] sm:$0xff]
    %v862 = vld [vmem:[#allocation14 + $0xd8] sm:$0xff]
    %v863 = vld [vmem:[#allocation14 + $0xe0] sm:$0xff]
    %v864 = vld [vmem:[#allocation14 + $0xe8] sm:$0xff]
    %v865 = vld [vmem:[#allocation14 + $0xf0] sm:$0xff]
    %v866 = vld [vmem:[#allocation14 + $0xf8] sm:$0xff]
    %v867 = vpack.c.bf16 %v828, %v827
    %v868 = vpack.c.bf16 %v830, %v829
    %v869 = vpack.c.bf16 %v832, %v831
    %v870 = vpack.c.bf16 %v834, %v833
    %v871 = vld [vmem:[#allocation17] ss:$2 sm:$0xf]
    %v873 = vlaneseq
    %v874 = vshrl.u32 %v873, 7
    %v875 = vsub.s32 0, %v874
    %v876 = vrot.slane %v871, %v875
    %v877 = vlaneseq
    %v878 = vshrl.u32 %v877, 7
    %v879 = vsub.s32 1, %v878
    %v880 = vrot.slane %v871, %v879
    %v881 = vlaneseq
    %v882 = vshrl.u32 %v881, 7
    %v883 = vsub.s32 2, %v882
    %v884 = vrot.slane %v871, %v883
    %v885 = vlaneseq
    %v886 = vshrl.u32 %v885, 7
    %v887 = vsub.s32 3, %v886
    %v888 = vrot.slane %v871, %v887
    %v925 = vunpack.c.l.b16 %v835
    %v926 = vunpack.c.h.b16 %v835
    %v927 = vunpack.c.l.b16 %v836
    %v928 = vunpack.c.h.b16 %v836
    %v929 = vunpack.c.l.b16 %v837
    %v930 = vunpack.c.h.b16 %v837
    %v931 = vunpack.c.l.b16 %v838
    %v932 = vunpack.c.h.b16 %v838
    %v933 = vunpack.c.l.b16 %v839
    %v934 = vunpack.c.h.b16 %v839
    %v935 = vunpack.c.l.b16 %v840
    %v936 = vunpack.c.h.b16 %v840
    %v937 = vunpack.c.l.b16 %v841
    %v938 = vunpack.c.h.b16 %v841
    %v939 = vunpack.c.l.b16 %v842
    %v940 = vunpack.c.h.b16 %v842
    %v941 = vunpack.c.l.b16 %v843
    %v942 = vunpack.c.h.b16 %v843
    %v943 = vunpack.c.l.b16 %v844
    %v944 = vunpack.c.h.b16 %v844
    %v945 = vunpack.c.l.b16 %v845
    %v946 = vunpack.c.h.b16 %v845
    %v947 = vunpack.c.l.b16 %v846
    %v948 = vunpack.c.h.b16 %v846
    %v949 = vunpack.c.l.b16 %v847
    %v950 = vunpack.c.h.b16 %v847
    %v951 = vunpack.c.l.b16 %v848
    %v952 = vunpack.c.h.b16 %v848
    %v953 = vunpack.c.l.b16 %v849
    %v954 = vunpack.c.h.b16 %v849
    %v955 = vunpack.c.l.b16 %v850
    %v956 = vunpack.c.h.b16 %v850
    %v957 = vunpack.c.l.b16 %v851
    %v958 = vunpack.c.h.b16 %v851
    %v959 = vunpack.c.l.b16 %v852
    %v960 = vunpack.c.h.b16 %v852
    %v961 = vunpack.c.l.b16 %v853
    %v962 = vunpack.c.h.b16 %v853
    %v963 = vunpack.c.l.b16 %v854
    %v964 = vunpack.c.h.b16 %v854
    %v965 = vunpack.c.l.b16 %v855
    %v966 = vunpack.c.h.b16 %v855
    %v967 = vunpack.c.l.b16 %v856
    %v968 = vunpack.c.h.b16 %v856
    %v969 = vunpack.c.l.b16 %v857
    %v970 = vunpack.c.h.b16 %v857
    %v971 = vunpack.c.l.b16 %v858
    %v972 = vunpack.c.h.b16 %v858
    %v973 = vunpack.c.l.b16 %v859
    %v974 = vunpack.c.h.b16 %v859
    %v975 = vunpack.c.l.b16 %v860
    %v976 = vunpack.c.h.b16 %v860
    %v977 = vunpack.c.l.b16 %v861
    %v978 = vunpack.c.h.b16 %v861
    %v979 = vunpack.c.l.b16 %v862
    %v980 = vunpack.c.h.b16 %v862
    %v981 = vunpack.c.l.b16 %v863
    %v982 = vunpack.c.h.b16 %v863
    %v983 = vunpack.c.l.b16 %v864
    %v984 = vunpack.c.h.b16 %v864
    %v985 = vunpack.c.l.b16 %v865
    %v986 = vunpack.c.h.b16 %v865
    %v987 = vunpack.c.l.b16 %v866
    %v988 = vunpack.c.h.b16 %v866
    %v989 = vpack.c.b16 %v929, %v925
    %v990 = vpack.c.b16 %v930, %v926
    %v991 = vpack.c.b16 %v931, %v927
    %v992 = vpack.c.b16 %v932, %v928
    %v993 = vpack.c.b16 %v937, %v933
    %v994 = vpack.c.b16 %v938, %v934
    %v995 = vpack.c.b16 %v939, %v935
    %v996 = vpack.c.b16 %v940, %v936
    %v997 = vpack.c.b16 %v945, %v941
    %v998 = vpack.c.b16 %v946, %v942
    %v999 = vpack.c.b16 %v947, %v943
    %v1000 = vpack.c.b16 %v948, %v944
    %v1001 = vpack.c.b16 %v953, %v949
    %v1002 = vpack.c.b16 %v954, %v950
    %v1003 = vpack.c.b16 %v955, %v951
    %v1004 = vpack.c.b16 %v956, %v952
    %v1005 = vpack.c.b16 %v961, %v957
    %v1006 = vpack.c.b16 %v962, %v958
    %v1007 = vpack.c.b16 %v963, %v959
    %v1008 = vpack.c.b16 %v964, %v960
    %v1009 = vpack.c.b16 %v969, %v965
    %v1010 = vpack.c.b16 %v970, %v966
    %v1011 = vpack.c.b16 %v971, %v967
    %v1012 = vpack.c.b16 %v972, %v968
    %v1013 = vpack.c.b16 %v977, %v973
    %v1014 = vpack.c.b16 %v978, %v974
    %v1015 = vpack.c.b16 %v979, %v975
    %v1016 = vpack.c.b16 %v980, %v976
    %v1017 = vpack.c.b16 %v985, %v981
    %v1018 = vpack.c.b16 %v986, %v982
    %v1019 = vpack.c.b16 %v987, %v983
    %v1020 = vpack.c.b16 %v988, %v984
    %1053 = vmatprep.subr.bf16.mxu0 %v990
    %1054 = vmatpush1.bf16.msra.mxu0 %v989
    %1055 = vmatprep.subr.bf16.mxu0 %v994
    %1056 = vmatpush1.bf16.msra.mxu0 %v993
    %1057 = vmatprep.subr.bf16.mxu0 %v998
    %1058 = vmatpush1.bf16.msra.mxu0 %v997
    %1059 = vmatprep.subr.bf16.mxu0 %v1002
    %1060 = vmatpush1.bf16.msra.mxu0 %v1001
    %1061 = vmatprep.subr.bf16.mxu0 %v1006
    %1062 = vmatpush1.bf16.msra.mxu0 %v1005
    %1063 = vmatprep.subr.bf16.mxu0 %v1010
    %1064 = vmatpush1.bf16.msra.mxu0 %v1009
    %1065 = vmatprep.subr.bf16.mxu0 %v1014
    %1066 = vmatpush1.bf16.msra.mxu0 %v1013
    %1067 = vmatprep.subr.bf16.mxu0 %v1018
    %1068 = vmatpush1.bf16.msra.mxu0 %v1017
    %1069 = vmatprep.subr.bf16.mxu0 0
    %1070 = vmatpush1.bf16.msra.mxu0 0
    %1071 = vmatprep.subr.bf16.mxu0 0
    %1072 = vmatpush1.bf16.msra.mxu0 0
    %1073 = vmatprep.subr.bf16.mxu0 0
    %1074 = vmatpush1.bf16.msra.mxu0 0
    %1075 = vmatprep.subr.bf16.mxu0 0
    %1076 = vmatpush1.bf16.msra.mxu0 0
    %1077 = vmatprep.subr.bf16.mxu0 0
    %1078 = vmatpush1.bf16.msra.mxu0 0
    %1079 = vmatprep.subr.bf16.mxu0 0
    %1080 = vmatpush1.bf16.msra.mxu0 0
    %1081 = vmatprep.subr.bf16.mxu0 0
    %1082 = vmatpush1.bf16.msra.mxu0 0
    %1083 = vmatprep.subr.bf16.mxu0 0
    %1084 = vmatpush1.bf16.msra.mxu0 0
    %1085 = vmatprep.mubr.bf16.mxu0 0
    %1086 = vmatmul.mubr.bf16.gmra.mrb[0].mxu0 %v867
    %v1087 = vpop.f32.mrb[0].mxu0
    %v1088 = vadd.f32 %v876, %v1087
    %v1089 = vpop.f32.mrb[0].mxu0
    %v1090 = vadd.f32 %v880, %v1089
    %v1091 = vpop.f32.mrb[0].mxu0
    %v1092 = vadd.f32 %v876, %v1091
    %v1093 = vpop.f32.mrb[0].mxu0
    %v1094 = vadd.f32 %v880, %v1093
    %1095 = vmatprep.mubr.bf16.mxu0 0
    %1096 = vmatmul.mubr.bf16.gmra.mrb[0].mxu0 %v868
    %v1097 = vpop.f32.mrb[0].mxu0
    %v1098 = vadd.f32 %v876, %v1097
    %v1099 = vpop.f32.mrb[0].mxu0
    %v1100 = vadd.f32 %v880, %v1099
    %v1101 = vpop.f32.mrb[0].mxu0
    %v1102 = vadd.f32 %v876, %v1101
    %v1103 = vpop.f32.mrb[0].mxu0
    %v1104 = vadd.f32 %v880, %v1103
    %1105 = vmatprep.mubr.bf16.mxu0 0
    %1106 = vmatmul.mubr.bf16.gmra.mrb[0].mxu0 %v869
    %v1107 = vpop.f32.mrb[0].mxu0
    %v1108 = vadd.f32 %v876, %v1107
    %v1109 = vpop.f32.mrb[0].mxu0
    %v1110 = vadd.f32 %v880, %v1109
    %v1111 = vpop.f32.mrb[0].mxu0
    %v1112 = vadd.f32 %v876, %v1111
    %v1113 = vpop.f32.mrb[0].mxu0
    %v1114 = vadd.f32 %v880, %v1113
    %1115 = vmatprep.mubr.bf16.mxu0 0
    %1116 = vmatmul.mubr.bf16.gmra.mrb[0].mxu0 %v870
    %v1117 = vpop.f32.mrb[0].mxu0
    %v1118 = vadd.f32 %v876, %v1117
    %v1119 = vpop.f32.mrb[0].mxu0
    %v1120 = vadd.f32 %v880, %v1119
    %v1121 = vpop.f32.mrb[0].mxu0
    %v1122 = vadd.f32 %v876, %v1121
    %v1123 = vpop.f32.mrb[0].mxu0
    %v1124 = vadd.f32 %v880, %v1123
    %1125 = vdwg.mxu0
    %1126 = vmatprep.subr.bf16.mxu0 %v992
    %1127 = vmatpush1.bf16.msra.mxu0 %v991
    %1128 = vmatprep.subr.bf16.mxu0 %v996
    %1129 = vmatpush1.bf16.msra.mxu0 %v995
    %1130 = vmatprep.subr.bf16.mxu0 %v1000
    %1131 = vmatpush1.bf16.msra.mxu0 %v999
    %1132 = vmatprep.subr.bf16.mxu0 %v1004
    %1133 = vmatpush1.bf16.msra.mxu0 %v1003
    %1134 = vmatprep.subr.bf16.mxu0 %v1008
    %1135 = vmatpush1.bf16.msra.mxu0 %v1007
    %1136 = vmatprep.subr.bf16.mxu0 %v1012
    %1137 = vmatpush1.bf16.msra.mxu0 %v1011
    %1138 = vmatprep.subr.bf16.mxu0 %v1016
    %1139 = vmatpush1.bf16.msra.mxu0 %v1015
    %1140 = vmatprep.subr.bf16.mxu0 %v1020
    %1141 = vmatpush1.bf16.msra.mxu0 %v1019
    %1142 = vmatprep.subr.bf16.mxu0 0
    %1143 = vmatpush1.bf16.msra.mxu0 0
    %1144 = vmatprep.subr.bf16.mxu0 0
    %1145 = vmatpush1.bf16.msra.mxu0 0
    %1146 = vmatprep.subr.bf16.mxu0 0
    %1147 = vmatpush1.bf16.msra.mxu0 0
    %1148 = vmatprep.subr.bf16.mxu0 0
    %1149 = vmatpush1.bf16.msra.mxu0 0
    %1150 = vmatprep.subr.bf16.mxu0 0
    %1151 = vmatpush1.bf16.msra.mxu0 0
    %1152 = vmatprep.subr.bf16.mxu0 0
    %1153 = vmatpush1.bf16.msra.mxu0 0
    %1154 = vmatprep.subr.bf16.mxu0 0
    %1155 = vmatpush1.bf16.msra.mxu0 0
    %1156 = vmatprep.subr.bf16.mxu0 0
    %1157 = vmatpush1.bf16.msra.mxu0 0
    %1158 = vmatprep.mubr.bf16.mxu0 0
    %1159 = vmatmul.mubr.bf16.gmra.mrb[0].mxu0 %v867
    %v1160 = vpop.f32.mrb[0].mxu0
    %v1161 = vadd.f32 %v884, %v1160
    %v1162 = vpop.f32.mrb[0].mxu0
    %v1163 = vadd.f32 %v888, %v1162
    %v1164 = vpop.f32.mrb[0].mxu0
    %v1165 = vadd.f32 %v884, %v1164
    %v1166 = vpop.f32.mrb[0].mxu0
    %v1167 = vadd.f32 %v888, %v1166
    %1168 = vmatprep.mubr.bf16.mxu0 0
    %1169 = vmatmul.mubr.bf16.gmra.mrb[0].mxu0 %v868
    %v1170 = vpop.f32.mrb[0].mxu0
    %v1171 = vadd.f32 %v884, %v1170
    %v1172 = vpop.f32.mrb[0].mxu0
    %v1173 = vadd.f32 %v888, %v1172
    %v1174 = vpop.f32.mrb[0].mxu0
    %v1175 = vadd.f32 %v884, %v1174
    %v1176 = vpop.f32.mrb[0].mxu0
    %v1177 = vadd.f32 %v888, %v1176
    %1178 = vmatprep.mubr.bf16.mxu0 0
    %1179 = vmatmul.mubr.bf16.gmra.mrb[0].mxu0 %v869
    %v1180 = vpop.f32.mrb[0].mxu0
    %v1181 = vadd.f32 %v884, %v1180
    %v1182 = vpop.f32.mrb[0].mxu0
    %v1183 = vadd.f32 %v888, %v1182
    %v1184 = vpop.f32.mrb[0].mxu0
    %v1185 = vadd.f32 %v884, %v1184
    %v1186 = vpop.f32.mrb[0].mxu0
    %v1187 = vadd.f32 %v888, %v1186
    %1188 = vmatprep.mubr.bf16.mxu0 0
    %1189 = vmatmul.mubr.bf16.gmra.mrb[0].mxu0 %v870
    %v1190 = vpop.f32.mrb[0].mxu0
    %v1191 = vadd.f32 %v884, %v1190
    %v1192 = vpop.f32.mrb[0].mxu0
    %v1193 = vadd.f32 %v888, %v1192
    %v1194 = vpop.f32.mrb[0].mxu0
    %v1195 = vadd.f32 %v884, %v1194
    %v1196 = vpop.f32.mrb[0].mxu0
    %v1197 = vadd.f32 %v888, %v1196
    %1198 = vdwg.mxu0
    %1199 = vst [vmem:[#allocation4] sm:$0xff] %v1088
    %1200 = vst [vmem:[#allocation4 + $0x8] sm:$0xff] %v1090
    %1201 = vst [vmem:[#allocation4 + $0x10] sm:$0xff] %v1161
    %1202 = vst [vmem:[#allocation4 + $0x18] sm:$0xff] %v1163
    %1203 = vst [vmem:[#allocation4 + $0x20] sm:$0xff] %v1092
    %1204 = vst [vmem:[#allocation4 + $0x28] sm:$0xff] %v1094
    %1205 = vst [vmem:[#allocation4 + $0x30] sm:$0xff] %v1165
    %1206 = vst [vmem:[#allocation4 + $0x38] sm:$0xff] %v1167
    %1207 = vst [vmem:[#allocation4 + $0x40] sm:$0xff] %v1098
    %1208 = vst [vmem:[#allocation4 + $0x48] sm:$0xff] %v1100
    %1209 = vst [vmem:[#allocation4 + $0x50] sm:$0xff] %v1171
    %1210 = vst [vmem:[#allocation4 + $0x58] sm:$0xff] %v1173
    %1211 = vst [vmem:[#allocation4 + $0x60] sm:$0xff] %v1102
    %1212 = vst [vmem:[#allocation4 + $0x68] sm:$0xff] %v1104
    %1213 = vst [vmem:[#allocation4 + $0x70] sm:$0xff] %v1175
    %1214 = vst [vmem:[#allocation4 + $0x78] sm:$0xff] %v1177
    %1215 = vst [vmem:[#allocation4 + $0x80] sm:$0xff] %v1108
    %1216 = vst [vmem:[#allocation4 + $0x88] sm:$0xff] %v1110
    %1217 = vst [vmem:[#allocation4 + $0x90] sm:$0xff] %v1181
    %1218 = vst [vmem:[#allocation4 + $0x98] sm:$0xff] %v1183
    %1219 = vst [vmem:[#allocation4 + $0xa0] sm:$0xff] %v1112
    %1220 = vst [vmem:[#allocation4 + $0xa8] sm:$0xff] %v1114
    %1221 = vst [vmem:[#allocation4 + $0xb0] sm:$0xff] %v1185
    %1222 = vst [vmem:[#allocation4 + $0xb8] sm:$0xff] %v1187
    %1223 = vst [vmem:[#allocation4 + $0xc0] sm:$0xff] %v1118
    %1224 = vst [vmem:[#allocation4 + $0xc8] sm:$0xff] %v1120
    %1225 = vst [vmem:[#allocation4 + $0xd0] sm:$0xff] %v1191
    %1226 = vst [vmem:[#allocation4 + $0xd8] sm:$0xff] %v1193
    %1227 = vst [vmem:[#allocation4 + $0xe0] sm:$0xff] %v1122
    %1228 = vst [vmem:[#allocation4 + $0xe8] sm:$0xff] %v1124
    %1229 = vst [vmem:[#allocation4 + $0xf0] sm:$0xff] %v1195
    %1230 = vst [vmem:[#allocation4 + $0xf8] sm:$0xff] %v1197
    %v1231 = vld [vmem:[#allocation3] sm:$0xff]
    %v1232 = vld [vmem:[#allocation3 + $0x8] sm:$0xff]
    %v1233 = vld [vmem:[#allocation3 + $0x10] sm:$0xff]
    %v1234 = vld [vmem:[#allocation3 + $0x18] sm:$0xff]
    %v1235 = vld [vmem:[#allocation3 + $0x20] sm:$0xff]
    %s1236 = scalar_lea.vmem [#allocation14], 256
    %v1237 = vld [vmem:[%s1236] sm:$0xff]
    %v1238 = vld [vmem:[%s1236 + $0x8] sm:$0xff]
    %v1239 = vld [vmem:[%s1236 + $0x10] sm:$0xff]
    %v1240 = vld [vmem:[%s1236 + $0x18] sm:$0xff]
    %v1241 = vld [vmem:[%s1236 + $0x20] sm:$0xff]
    %v1242 = vld [vmem:[%s1236 + $0x28] sm:$0xff]
    %v1243 = vld [vmem:[%s1236 + $0x30] sm:$0xff]
    %v1244 = vld [vmem:[%s1236 + $0x38] sm:$0xff]
    %v1245 = vld [vmem:[%s1236 + $0x40] sm:$0xff]
    %v1246 = vld [vmem:[%s1236 + $0x48] sm:$0xff]
    %v1247 = vld [vmem:[%s1236 + $0x50] sm:$0xff]
    %v1248 = vld [vmem:[%s1236 + $0x58] sm:$0xff]
    %v1249 = vld [vmem:[%s1236 + $0x60] sm:$0xff]
    %v1250 = vld [vmem:[%s1236 + $0x68] sm:$0xff]
    %v1251 = vld [vmem:[%s1236 + $0x70] sm:$0xff]
    %v1252 = vld [vmem:[%s1236 + $0x78] sm:$0xff]
    %v1253 = vld [vmem:[%s1236 + $0x80] sm:$0xff]
    %v1254 = vld [vmem:[%s1236 + $0x88] sm:$0xff]
    %v1255 = vld [vmem:[%s1236 + $0x90] sm:$0xff]
    %v1256 = vld [vmem:[%s1236 + $0x98] sm:$0xff]
    %v1257 = vld [vmem:[%s1236 + $0xa0] sm:$0xff]
    %v1258 = vld [vmem:[%s1236 + $0xa8] sm:$0xff]
    %v1259 = vld [vmem:[%s1236 + $0xb0] sm:$0xff]
    %v1260 = vld [vmem:[%s1236 + $0xb8] sm:$0xff]
    %v1261 = vld [vmem:[%s1236 + $0xc0] sm:$0xff]
    %v1262 = vld [vmem:[%s1236 + $0xc8] sm:$0xff]
    %v1263 = vld [vmem:[%s1236 + $0xd0] sm:$0xff]
    %v1264 = vld [vmem:[%s1236 + $0xd8] sm:$0xff]
    %v1265 = vld [vmem:[%s1236 + $0xe0] sm:$0xff]
    %v1266 = vld [vmem:[%s1236 + $0xe8] sm:$0xff]
    %v1267 = vld [vmem:[%s1236 + $0xf0] sm:$0xff]
    %v1268 = vld [vmem:[%s1236 + $0xf8] sm:$0xff]
    %v1269 = vpack.c.bf16 %v1232, %v1231
    %v1270 = vpack.c.bf16 %v1234, %v1233
    %v1271 = vpack.c.bf16 %v1235, %v1235
    %s1272 = scalar_lea.vmem [#allocation17], 1
    %v1273 = vld [vmem:[%s1272] ss:$2 sm:$0xf]
    %v1275 = vlaneseq
    %v1276 = vshrl.u32 %v1275, 7
    %v1277 = vsub.s32 0, %v1276
    %v1278 = vrot.slane %v1273, %v1277
    %v1279 = vlaneseq
    %v1280 = vshrl.u32 %v1279, 7
    %v1281 = vsub.s32 1, %v1280
    %v1282 = vrot.slane %v1273, %v1281
    %v1283 = vlaneseq
    %v1284 = vshrl.u32 %v1283, 7
    %v1285 = vsub.s32 2, %v1284
    %v1286 = vrot.slane %v1273, %v1285
    %v1287 = vlaneseq
    %v1288 = vshrl.u32 %v1287, 7
    %v1289 = vsub.s32 3, %v1288
    %v1290 = vrot.slane %v1273, %v1289
    %v1327 = vunpack.c.l.b16 %v1237
    %v1328 = vunpack.c.h.b16 %v1237
    %v1329 = vunpack.c.l.b16 %v1238
    %v1330 = vunpack.c.h.b16 %v1238
    %v1331 = vunpack.c.l.b16 %v1239
    %v1332 = vunpack.c.h.b16 %v1239
    %v1333 = vunpack.c.l.b16 %v1240
    %v1334 = vunpack.c.h.b16 %v1240
    %v1335 = vunpack.c.l.b16 %v1241
    %v1336 = vunpack.c.h.b16 %v1241
    %v1337 = vunpack.c.l.b16 %v1242
    %v1338 = vunpack.c.h.b16 %v1242
    %v1339 = vunpack.c.l.b16 %v1243
    %v1340 = vunpack.c.h.b16 %v1243
    %v1341 = vunpack.c.l.b16 %v1244
    %v1342 = vunpack.c.h.b16 %v1244
    %v1343 = vunpack.c.l.b16 %v1245
    %v1344 = vunpack.c.h.b16 %v1245
    %v1345 = vunpack.c.l.b16 %v1246
    %v1346 = vunpack.c.h.b16 %v1246
    %v1347 = vunpack.c.l.b16 %v1247
    %v1348 = vunpack.c.h.b16 %v1247
    %v1349 = vunpack.c.l.b16 %v1248
    %v1350 = vunpack.c.h.b16 %v1248
    %v1351 = vunpack.c.l.b16 %v1249
    %v1352 = vunpack.c.h.b16 %v1249
    %v1353 = vunpack.c.l.b16 %v1250
    %v1354 = vunpack.c.h.b16 %v1250
    %v1355 = vunpack.c.l.b16 %v1251
    %v1356 = vunpack.c.h.b16 %v1251
    %v1357 = vunpack.c.l.b16 %v1252
    %v1358 = vunpack.c.h.b16 %v1252
    %v1359 = vunpack.c.l.b16 %v1253
    %v1360 = vunpack.c.h.b16 %v1253
    %v1361 = vunpack.c.l.b16 %v1254
    %v1362 = vunpack.c.h.b16 %v1254
    %v1363 = vunpack.c.l.b16 %v1255
    %v1364 = vunpack.c.h.b16 %v1255
    %v1365 = vunpack.c.l.b16 %v1256
    %v1366 = vunpack.c.h.b16 %v1256
    %v1367 = vunpack.c.l.b16 %v1257
    %v1368 = vunpack.c.h.b16 %v1257
    %v1369 = vunpack.c.l.b16 %v1258
    %v1370 = vunpack.c.h.b16 %v1258
    %v1371 = vunpack.c.l.b16 %v1259
    %v1372 = vunpack.c.h.b16 %v1259
    %v1373 = vunpack.c.l.b16 %v1260
    %v1374 = vunpack.c.h.b16 %v1260
    %v1375 = vunpack.c.l.b16 %v1261
    %v1376 = vunpack.c.h.b16 %v1261
    %v1377 = vunpack.c.l.b16 %v1262
    %v1378 = vunpack.c.h.b16 %v1262
    %v1379 = vunpack.c.l.b16 %v1263
    %v1380 = vunpack.c.h.b16 %v1263
    %v1381 = vunpack.c.l.b16 %v1264
    %v1382 = vunpack.c.h.b16 %v1264
    %v1383 = vunpack.c.l.b16 %v1265
    %v1384 = vunpack.c.h.b16 %v1265
    %v1385 = vunpack.c.l.b16 %v1266
    %v1386 = vunpack.c.h.b16 %v1266
    %v1387 = vunpack.c.l.b16 %v1267
    %v1388 = vunpack.c.h.b16 %v1267
    %v1389 = vunpack.c.l.b16 %v1268
    %v1390 = vunpack.c.h.b16 %v1268
    %v1391 = vpack.c.b16 %v1331, %v1327
    %v1392 = vpack.c.b16 %v1332, %v1328
    %v1393 = vpack.c.b16 %v1333, %v1329
    %v1394 = vpack.c.b16 %v1334, %v1330
    %v1395 = vpack.c.b16 %v1339, %v1335
    %v1396 = vpack.c.b16 %v1340, %v1336
    %v1397 = vpack.c.b16 %v1341, %v1337
    %v1398 = vpack.c.b16 %v1342, %v1338
    %v1399 = vpack.c.b16 %v1347, %v1343
    %v1400 = vpack.c.b16 %v1348, %v1344
    %v1401 = vpack.c.b16 %v1349, %v1345
    %v1402 = vpack.c.b16 %v1350, %v1346
    %v1403 = vpack.c.b16 %v1355, %v1351
    %v1404 = vpack.c.b16 %v1356, %v1352
    %v1405 = vpack.c.b16 %v1357, %v1353
    %v1406 = vpack.c.b16 %v1358, %v1354
    %v1407 = vpack.c.b16 %v1363, %v1359
    %v1408 = vpack.c.b16 %v1364, %v1360
    %v1409 = vpack.c.b16 %v1365, %v1361
    %v1410 = vpack.c.b16 %v1366, %v1362
    %v1411 = vpack.c.b16 %v1371, %v1367
    %v1412 = vpack.c.b16 %v1372, %v1368
    %v1413 = vpack.c.b16 %v1373, %v1369
    %v1414 = vpack.c.b16 %v1374, %v1370
    %v1415 = vpack.c.b16 %v1379, %v1375
    %v1416 = vpack.c.b16 %v1380, %v1376
    %v1417 = vpack.c.b16 %v1381, %v1377
    %v1418 = vpack.c.b16 %v1382, %v1378
    %v1419 = vpack.c.b16 %v1387, %v1383
    %v1420 = vpack.c.b16 %v1388, %v1384
    %v1421 = vpack.c.b16 %v1389, %v1385
    %v1422 = vpack.c.b16 %v1390, %v1386
    %1455 = vmatprep.subr.bf16.mxu0 %v1392
    %1456 = vmatpush1.bf16.msra.mxu0 %v1391
    %1457 = vmatprep.subr.bf16.mxu0 %v1396
    %1458 = vmatpush1.bf16.msra.mxu0 %v1395
    %1459 = vmatprep.subr.bf16.mxu0 %v1400
    %1460 = vmatpush1.bf16.msra.mxu0 %v1399
    %1461 = vmatprep.subr.bf16.mxu0 %v1404
    %1462 = vmatpush1.bf16.msra.mxu0 %v1403
    %1463 = vmatprep.subr.bf16.mxu0 %v1408
    %1464 = vmatpush1.bf16.msra.mxu0 %v1407
    %1465 = vmatprep.subr.bf16.mxu0 %v1412
    %1466 = vmatpush1.bf16.msra.mxu0 %v1411
    %1467 = vmatprep.subr.bf16.mxu0 %v1416
    %1468 = vmatpush1.bf16.msra.mxu0 %v1415
    %1469 = vmatprep.subr.bf16.mxu0 %v1420
    %1470 = vmatpush1.bf16.msra.mxu0 %v1419
    %1471 = vmatprep.subr.bf16.mxu0 0
    %1472 = vmatpush1.bf16.msra.mxu0 0
    %1473 = vmatprep.subr.bf16.mxu0 0
    %1474 = vmatpush1.bf16.msra.mxu0 0
    %1475 = vmatprep.subr.bf16.mxu0 0
    %1476 = vmatpush1.bf16.msra.mxu0 0
    %1477 = vmatprep.subr.bf16.mxu0 0
    %1478 = vmatpush1.bf16.msra.mxu0 0
    %1479 = vmatprep.subr.bf16.mxu0 0
    %1480 = vmatpush1.bf16.msra.mxu0 0
    %1481 = vmatprep.subr.bf16.mxu0 0
    %1482 = vmatpush1.bf16.msra.mxu0 0
    %1483 = vmatprep.subr.bf16.mxu0 0
    %1484 = vmatpush1.bf16.msra.mxu0 0
    %1485 = vmatprep.subr.bf16.mxu0 0
    %1486 = vmatpush1.bf16.msra.mxu0 0
    %1487 = vmatprep.mubr.bf16.mxu0 0
    %1488 = vmatmul.mubr.bf16.gmra.mrb[0].mxu0 %v1269
    %v1489 = vpop.f32.mrb[0].mxu0
    %v1490 = vadd.f32 %v1278, %v1489
    %v1491 = vpop.f32.mrb[0].mxu0
    %v1492 = vadd.f32 %v1282, %v1491
    %v1493 = vpop.f32.mrb[0].mxu0
    %v1494 = vadd.f32 %v1278, %v1493
    %v1495 = vpop.f32.mrb[0].mxu0
    %v1496 = vadd.f32 %v1282, %v1495
    %1497 = vmatprep.mubr.bf16.mxu0 0
    %1498 = vmatmul.mubr.bf16.gmra.mrb[0].mxu0 %v1270
    %v1499 = vpop.f32.mrb[0].mxu0
    %v1500 = vadd.f32 %v1278, %v1499
    %v1501 = vpop.f32.mrb[0].mxu0
    %v1502 = vadd.f32 %v1282, %v1501
    %v1503 = vpop.f32.mrb[0].mxu0
    %v1504 = vadd.f32 %v1278, %v1503
    %v1505 = vpop.f32.mrb[0].mxu0
    %v1506 = vadd.f32 %v1282, %v1505
    %1507 = vmatprep.mubr.bf16.mxu0 0
    %1508 = vmatmul.mubr.bf16.gmra.mrb[0].mxu0 %v1271
    %v1509 = vpop.f32.mrb[0].mxu0
    %v1510 = vadd.f32 %v1278, %v1509
    %v1511 = vpop.f32.mrb[0].mxu0
    %v1512 = vadd.f32 %v1282, %v1511
    %v1513 = vpop.f32.mrb[0].mxu0
    %v1514 = vpop.f32.mrb[0].mxu0
    %1515 = vdwg.mxu0
    %1516 = vmatprep.subr.bf16.mxu0 %v1394
    %1517 = vmatpush1.bf16.msra.mxu0 %v1393
    %1518 = vmatprep.subr.bf16.mxu0 %v1398
    %1519 = vmatpush1.bf16.msra.mxu0 %v1397
    %1520 = vmatprep.subr.bf16.mxu0 %v1402
    %1521 = vmatpush1.bf16.msra.mxu0 %v1401
    %1522 = vmatprep.subr.bf16.mxu0 %v1406
    %1523 = vmatpush1.bf16.msra.mxu0 %v1405
    %1524 = vmatprep.subr.bf16.mxu0 %v1410
    %1525 = vmatpush1.bf16.msra.mxu0 %v1409
    %1526 = vmatprep.subr.bf16.mxu0 %v1414
    %1527 = vmatpush1.bf16.msra.mxu0 %v1413
    %1528 = vmatprep.subr.bf16.mxu0 %v1418
    %1529 = vmatpush1.bf16.msra.mxu0 %v1417
    %1530 = vmatprep.subr.bf16.mxu0 %v1422
    %1531 = vmatpush1.bf16.msra.mxu0 %v1421
    %1532 = vmatprep.subr.bf16.mxu0 0
    %1533 = vmatpush1.bf16.msra.mxu0 0
    %1534 = vmatprep.subr.bf16.mxu0 0
    %1535 = vmatpush1.bf16.msra.mxu0 0
    %1536 = vmatprep.subr.bf16.mxu0 0
    %1537 = vmatpush1.bf16.msra.mxu0 0
    %1538 = vmatprep.subr.bf16.mxu0 0
    %1539 = vmatpush1.bf16.msra.mxu0 0
    %1540 = vmatprep.subr.bf16.mxu0 0
    %1541 = vmatpush1.bf16.msra.mxu0 0
    %1542 = vmatprep.subr.bf16.mxu0 0
    %1543 = vmatpush1.bf16.msra.mxu0 0
    %1544 = vmatprep.subr.bf16.mxu0 0
    %1545 = vmatpush1.bf16.msra.mxu0 0
    %1546 = vmatprep.subr.bf16.mxu0 0
    %1547 = vmatpush1.bf16.msra.mxu0 0
    %1548 = vmatprep.mubr.bf16.mxu0 0
    %1549 = vmatmul.mubr.bf16.gmra.mrb[0].mxu0 %v1269
    %v1550 = vpop.f32.mrb[0].mxu0
    %v1551 = vadd.f32 %v1286, %v1550
    %v1552 = vpop.f32.mrb[0].mxu0
    %v1553 = vadd.f32 %v1290, %v1552
    %v1554 = vpop.f32.mrb[0].mxu0
    %v1555 = vadd.f32 %v1286, %v1554
    %v1556 = vpop.f32.mrb[0].mxu0
    %v1557 = vadd.f32 %v1290, %v1556
    %1558 = vmatprep.mubr.bf16.mxu0 0
    %1559 = vmatmul.mubr.bf16.gmra.mrb[0].mxu0 %v1270
    %v1560 = vpop.f32.mrb[0].mxu0
    %v1561 = vadd.f32 %v1286, %v1560
    %v1562 = vpop.f32.mrb[0].mxu0
    %v1563 = vadd.f32 %v1290, %v1562
    %v1564 = vpop.f32.mrb[0].mxu0
    %v1565 = vadd.f32 %v1286, %v1564
    %v1566 = vpop.f32.mrb[0].mxu0
    %v1567 = vadd.f32 %v1290, %v1566
    %1568 = vmatprep.mubr.bf16.mxu0 0
    %1569 = vmatmul.mubr.bf16.gmra.mrb[0].mxu0 %v1271
    %v1570 = vpop.f32.mrb[0].mxu0
    %v1571 = vadd.f32 %v1286, %v1570
    %v1572 = vpop.f32.mrb[0].mxu0
    %v1573 = vadd.f32 %v1290, %v1572
    %v1574 = vpop.f32.mrb[0].mxu0
    %v1575 = vpop.f32.mrb[0].mxu0
    %1576 = vdwg.mxu0
    %1577 = vst [vmem:[#allocation5] sm:$0xff] %v1490
    %1578 = vst [vmem:[#allocation5 + $0x8] sm:$0xff] %v1492
    %1579 = vst [vmem:[#allocation5 + $0x10] sm:$0xff] %v1551
    %1580 = vst [vmem:[#allocation5 + $0x18] sm:$0xff] %v1553
    %1581 = vst [vmem:[#allocation5 + $0x20] sm:$0xff] %v1494
    %1582 = vst [vmem:[#allocation5 + $0x28] sm:$0xff] %v1496
    %1583 = vst [vmem:[#allocation5 + $0x30] sm:$0xff] %v1555
    %1584 = vst [vmem:[#allocation5 + $0x38] sm:$0xff] %v1557
    %1585 = vst [vmem:[#allocation5 + $0x40] sm:$0xff] %v1500
    %1586 = vst [vmem:[#allocation5 + $0x48] sm:$0xff] %v1502
    %1587 = vst [vmem:[#allocation5 + $0x50] sm:$0xff] %v1561
    %1588 = vst [vmem:[#allocation5 + $0x58] sm:$0xff] %v1563
    %1589 = vst [vmem:[#allocation5 + $0x60] sm:$0xff] %v1504
    %1590 = vst [vmem:[#allocation5 + $0x68] sm:$0xff] %v1506
    %1591 = vst [vmem:[#allocation5 + $0x70] sm:$0xff] %v1565
    %1592 = vst [vmem:[#allocation5 + $0x78] sm:$0xff] %v1567
    %1593 = vst [vmem:[#allocation5 + $0x80] sm:$0xff] %v1510
    %1594 = vst [vmem:[#allocation5 + $0x88] sm:$0xff] %v1512
    %1595 = vst [vmem:[#allocation5 + $0x90] sm:$0xff] %v1571
    %1596 = vst [vmem:[#allocation5 + $0x98] sm:$0xff] %v1573
    %v1597 = vld [vmem:[#allocation16] sm:$0xff]
    %v1598 = vld [vmem:[#allocation16 + $0x8] sm:$0xff]
    %v1599 = vld [vmem:[#allocation16 + $0x10] sm:$0xff]
    %v1600 = vld [vmem:[#allocation16 + $0x18] sm:$0xff]
    %v1601 = vld [vmem:[#allocation16 + $0x20] sm:$0xff]
    %v1602 = vld [vmem:[#allocation16 + $0x28] sm:$0xff]
    %v1603 = vld [vmem:[#allocation16 + $0x30] sm:$0xff]
    %v1604 = vld [vmem:[#allocation16 + $0x38] sm:$0xff]
    %v1605 = vld [vmem:[#allocation16 + $0x40] sm:$0xff]
    %v1606 = vld [vmem:[#allocation16 + $0x48] sm:$0xff]
    %v1607 = vld [vmem:[#allocation16 + $0x50] sm:$0xff]
    %v1608 = vld [vmem:[#allocation16 + $0x58] sm:$0xff]
    %v1609 = vld [vmem:[#allocation16 + $0x60] sm:$0xff]
    %v1610 = vld [vmem:[#allocation16 + $0x68] sm:$0xff]
    %v1611 = vld [vmem:[#allocation16 + $0x70] sm:$0xff]
    %v1612 = vld [vmem:[#allocation16 + $0x78] sm:$0xff]
    %v1613 = vld [vmem:[#allocation16 + $0x80] sm:$0xff]
    %v1614 = vld [vmem:[#allocation16 + $0x88] sm:$0xff]
    %v1615 = vld [vmem:[#allocation16 + $0x90] sm:$0xff]
    %v1616 = vld [vmem:[#allocation16 + $0x98] sm:$0xff]
    %v1617 = vld [vmem:[#allocation16 + $0xa0] sm:$0xff]
    %v1618 = vld [vmem:[#allocation16 + $0xa8] sm:$0xff]
    %v1619 = vld [vmem:[#allocation16 + $0xb0] sm:$0xff]
    %v1620 = vld [vmem:[#allocation16 + $0xb8] sm:$0xff]
    %v1621 = vld [vmem:[#allocation16 + $0xc0] sm:$0xff]
    %v1622 = vld [vmem:[#allocation16 + $0xc8] sm:$0xff]
    %v1623 = vld [vmem:[#allocation16 + $0xd0] sm:$0xff]
    %v1624 = vld [vmem:[#allocation16 + $0xd8] sm:$0xff]
    %v1625 = vld [vmem:[#allocation16 + $0xe0] sm:$0xff]
    %v1626 = vld [vmem:[#allocation16 + $0xe8] sm:$0xff]
    %v1627 = vld [vmem:[#allocation16 + $0xf0] sm:$0xff]
    %v1628 = vld [vmem:[#allocation16 + $0xf8] sm:$0xff]
    %v1629 = vld [vmem:[#allocation16 + $0x100] sm:$0xff]
    %v1630 = vld [vmem:[#allocation16 + $0x108] sm:$0xff]
    %v1631 = vld [vmem:[#allocation16 + $0x110] sm:$0xff]
    %v1632 = vld [vmem:[#allocation16 + $0x118] sm:$0xff]
    %v1633 = vld [vmem:[#allocation16 + $0x120] sm:$0xff]
    %v1634 = vld [vmem:[#allocation16 + $0x128] sm:$0xff]
    %v1635 = vld [vmem:[#allocation16 + $0x130] sm:$0xff]
    %v1636 = vld [vmem:[#allocation16 + $0x138] sm:$0xff]
    %v1637 = vld [vmem:[#allocation16 + $0x140] sm:$0xff]
    %v1638 = vld [vmem:[#allocation16 + $0x148] sm:$0xff]
    %v1639 = vld [vmem:[#allocation16 + $0x150] sm:$0xff]
    %v1640 = vld [vmem:[#allocation16 + $0x158] sm:$0xff]
    %v1641 = vld [vmem:[#allocation16 + $0x160] sm:$0xff]
    %v1642 = vld [vmem:[#allocation16 + $0x168] sm:$0xff]
    %v1643 = vld [vmem:[#allocation16 + $0x170] sm:$0xff]
    %v1644 = vld [vmem:[#allocation16 + $0x178] sm:$0xff]
    %v1645 = vld [vmem:[#allocation16 + $0x180] sm:$0xff]
    %v1646 = vld [vmem:[#allocation16 + $0x188] sm:$0xff]
    %v1647 = vld [vmem:[#allocation16 + $0x190] sm:$0xff]
    %v1648 = vld [vmem:[#allocation16 + $0x198] sm:$0xff]
    %v1649 = vld [vmem:[#allocation16 + $0x1a0] sm:$0xff]
    %v1650 = vld [vmem:[#allocation16 + $0x1a8] sm:$0xff]
    %v1651 = vld [vmem:[#allocation16 + $0x1b0] sm:$0xff]
    %v1652 = vld [vmem:[#allocation16 + $0x1b8] sm:$0xff]
    %v1653 = vld [vmem:[#allocation16 + $0x1c0] sm:$0xff]
    %v1654 = vld [vmem:[#allocation16 + $0x1c8] sm:$0xff]
    %v1655 = vld [vmem:[#allocation16 + $0x1d0] sm:$0xff]
    %v1656 = vld [vmem:[#allocation16 + $0x1d8] sm:$0xff]
    %v1657 = vld [vmem:[#allocation16 + $0x1e0] sm:$0xff]
    %v1658 = vld [vmem:[#allocation16 + $0x1e8] sm:$0xff]
    %v1659 = vld [vmem:[#allocation16 + $0x1f0] sm:$0xff]
    %v1660 = vld [vmem:[#allocation16 + $0x1f8] sm:$0xff]
    %v1661 = vld [vmem:[#allocation16 + $0x200] sm:$0xff]
    %v1662 = vld [vmem:[#allocation16 + $0x208] sm:$0xff]
    %v1663 = vld [vmem:[#allocation16 + $0x210] sm:$0xff]
    %v1664 = vld [vmem:[#allocation16 + $0x218] sm:$0xff]
    %v1665 = vld [vmem:[#allocation16 + $0x220] sm:$0xff]
    %v1666 = vld [vmem:[#allocation16 + $0x228] sm:$0xff]
    %v1667 = vld [vmem:[#allocation16 + $0x230] sm:$0xff]
    %v1668 = vld [vmem:[#allocation16 + $0x238] sm:$0xff]
    %v1669 = vld [vmem:[#allocation16 + $0x240] sm:$0xff]
    %v1670 = vld [vmem:[#allocation16 + $0x248] sm:$0xff]
    %v1671 = vld [vmem:[#allocation16 + $0x250] sm:$0xff]
    %v1672 = vld [vmem:[#allocation16 + $0x258] sm:$0xff]
    %v1673 = vld [vmem:[#allocation16 + $0x260] sm:$0xff]
    %v1674 = vld [vmem:[#allocation16 + $0x268] sm:$0xff]
    %v1675 = vld [vmem:[#allocation16 + $0x270] sm:$0xff]
    %v1676 = vld [vmem:[#allocation16 + $0x278] sm:$0xff]
    %v1677 = vld [vmem:[#allocation16 + $0x280] sm:$0xff]
    %v1678 = vld [vmem:[#allocation16 + $0x288] sm:$0xff]
    %v1679 = vld [vmem:[#allocation16 + $0x290] sm:$0xff]
    %v1680 = vld [vmem:[#allocation16 + $0x298] sm:$0xff]
    %v1681 = vld [vmem:[#allocation16 + $0x2a0] sm:$0xff]
    %v1682 = vld [vmem:[#allocation16 + $0x2a8] sm:$0xff]
    %v1683 = vld [vmem:[#allocation16 + $0x2b0] sm:$0xff]
    %v1684 = vld [vmem:[#allocation16 + $0x2b8] sm:$0xff]
    %v1685 = vld [vmem:[#allocation16 + $0x2c0] sm:$0xff]
    %v1686 = vld [vmem:[#allocation16 + $0x2c8] sm:$0xff]
    %v1687 = vld [vmem:[#allocation16 + $0x2d0] sm:$0xff]
    %v1688 = vld [vmem:[#allocation16 + $0x2d8] sm:$0xff]
    %v1689 = vld [vmem:[#allocation16 + $0x2e0] sm:$0xff]
    %v1690 = vld [vmem:[#allocation16 + $0x2e8] sm:$0xff]
    %v1691 = vld [vmem:[#allocation16 + $0x2f0] sm:$0xff]
    %v1692 = vld [vmem:[#allocation16 + $0x2f8] sm:$0xff]
    %v1693 = vld [vmem:[#allocation16 + $0x300] sm:$0xff]
    %v1694 = vld [vmem:[#allocation16 + $0x308] sm:$0xff]
    %v1695 = vld [vmem:[#allocation16 + $0x310] sm:$0xff]
    %v1696 = vld [vmem:[#allocation16 + $0x318] sm:$0xff]
    %v1697 = vld [vmem:[#allocation16 + $0x320] sm:$0xff]
    %v1698 = vld [vmem:[#allocation16 + $0x328] sm:$0xff]
    %v1699 = vld [vmem:[#allocation16 + $0x330] sm:$0xff]
    %v1700 = vld [vmem:[#allocation16 + $0x338] sm:$0xff]
    %v1701 = vld [vmem:[#allocation16 + $0x340] sm:$0xff]
    %v1702 = vld [vmem:[#allocation16 + $0x348] sm:$0xff]
    %v1703 = vld [vmem:[#allocation16 + $0x350] sm:$0xff]
    %v1704 = vld [vmem:[#allocation16 + $0x358] sm:$0xff]
    %v1705 = vld [vmem:[#allocation16 + $0x360] sm:$0xff]
    %v1706 = vld [vmem:[#allocation16 + $0x368] sm:$0xff]
    %v1707 = vld [vmem:[#allocation16 + $0x370] sm:$0xff]
    %v1708 = vld [vmem:[#allocation16 + $0x378] sm:$0xff]
    %v1709 = vld [vmem:[#allocation16 + $0x380] sm:$0xff]
    %v1710 = vld [vmem:[#allocation16 + $0x388] sm:$0xff]
    %v1711 = vld [vmem:[#allocation16 + $0x390] sm:$0xff]
    %v1712 = vld [vmem:[#allocation16 + $0x398] sm:$0xff]
    %v1713 = vld [vmem:[#allocation16 + $0x3a0] sm:$0xff]
    %v1714 = vld [vmem:[#allocation16 + $0x3a8] sm:$0xff]
    %v1715 = vld [vmem:[#allocation16 + $0x3b0] sm:$0xff]
    %v1716 = vld [vmem:[#allocation16 + $0x3b8] sm:$0xff]
    %v1717 = vld [vmem:[#allocation16 + $0x3c0] sm:$0xff]
    %v1718 = vld [vmem:[#allocation16 + $0x3c8] sm:$0xff]
    %v1719 = vld [vmem:[#allocation16 + $0x3d0] sm:$0xff]
    %v1720 = vld [vmem:[#allocation16 + $0x3d8] sm:$0xff]
    %v1721 = vld [vmem:[#allocation16 + $0x3e0] sm:$0xff]
    %v1722 = vld [vmem:[#allocation16 + $0x3e8] sm:$0xff]
    %v1723 = vld [vmem:[#allocation16 + $0x3f0] sm:$0xff]
    %v1724 = vld [vmem:[#allocation16 + $0x3f8] sm:$0xff]
    %v1725 = vpack.c.bf16 0.0, 0.0
    %v1854 = vunpack.c.l.b16 %v1597
    %v1855 = vunpack.c.h.b16 %v1597
    %v1856 = vunpack.c.l.b16 %v1598
    %v1857 = vunpack.c.h.b16 %v1598
    %v1858 = vunpack.c.l.b16 %v1599
    %v1859 = vunpack.c.h.b16 %v1599
    %v1860 = vunpack.c.l.b16 %v1600
    %v1861 = vunpack.c.h.b16 %v1600
    %v1862 = vunpack.c.l.b16 %v1601
    %v1863 = vunpack.c.h.b16 %v1601
    %v1864 = vunpack.c.l.b16 %v1602
    %v1865 = vunpack.c.h.b16 %v1602
    %v1866 = vunpack.c.l.b16 %v1603
    %v1867 = vunpack.c.h.b16 %v1603
    %v1868 = vunpack.c.l.b16 %v1604
    %v1869 = vunpack.c.h.b16 %v1604
    %v1870 = vunpack.c.l.b16 %v1605
    %v1871 = vunpack.c.h.b16 %v1605
    %v1872 = vunpack.c.l.b16 %v1606
    %v1873 = vunpack.c.h.b16 %v1606
    %v1874 = vunpack.c.l.b16 %v1607
    %v1875 = vunpack.c.h.b16 %v1607
    %v1876 = vunpack.c.l.b16 %v1608
    %v1877 = vunpack.c.h.b16 %v1608
    %v1878 = vunpack.c.l.b16 %v1609
    %v1879 = vunpack.c.h.b16 %v1609
    %v1880 = vunpack.c.l.b16 %v1610
    %v1881 = vunpack.c.h.b16 %v1610
    %v1882 = vunpack.c.l.b16 %v1611
    %v1883 = vunpack.c.h.b16 %v1611
    %v1884 = vunpack.c.l.b16 %v1612
    %v1885 = vunpack.c.h.b16 %v1612
    %v1886 = vunpack.c.l.b16 %v1613
    %v1887 = vunpack.c.h.b16 %v1613
    %v1888 = vunpack.c.l.b16 %v1614
    %v1889 = vunpack.c.h.b16 %v1614
    %v1890 = vunpack.c.l.b16 %v1615
    %v1891 = vunpack.c.h.b16 %v1615
    %v1892 = vunpack.c.l.b16 %v1616
    %v1893 = vunpack.c.h.b16 %v1616
    %v1894 = vunpack.c.l.b16 %v1617
    %v1895 = vunpack.c.h.b16 %v1617
    %v1896 = vunpack.c.l.b16 %v1618
    %v1897 = vunpack.c.h.b16 %v1618
    %v1898 = vunpack.c.l.b16 %v1619
    %v1899 = vunpack.c.h.b16 %v1619
    %v1900 = vunpack.c.l.b16 %v1620
    %v1901 = vunpack.c.h.b16 %v1620
    %v1902 = vunpack.c.l.b16 %v1621
    %v1903 = vunpack.c.h.b16 %v1621
    %v1904 = vunpack.c.l.b16 %v1622
    %v1905 = vunpack.c.h.b16 %v1622
    %v1906 = vunpack.c.l.b16 %v1623
    %v1907 = vunpack.c.h.b16 %v1623
    %v1908 = vunpack.c.l.b16 %v1624
    %v1909 = vunpack.c.h.b16 %v1624
    %v1910 = vunpack.c.l.b16 %v1625
    %v1911 = vunpack.c.h.b16 %v1625
    %v1912 = vunpack.c.l.b16 %v1626
    %v1913 = vunpack.c.h.b16 %v1626
    %v1914 = vunpack.c.l.b16 %v1627
    %v1915 = vunpack.c.h.b16 %v1627
    %v1916 = vunpack.c.l.b16 %v1628
    %v1917 = vunpack.c.h.b16 %v1628
    %v1918 = vunpack.c.l.b16 %v1629
    %v1919 = vunpack.c.h.b16 %v1629
    %v1920 = vunpack.c.l.b16 %v1630
    %v1921 = vunpack.c.h.b16 %v1630
    %v1922 = vunpack.c.l.b16 %v1631
    %v1923 = vunpack.c.h.b16 %v1631
    %v1924 = vunpack.c.l.b16 %v1632
    %v1925 = vunpack.c.h.b16 %v1632
    %v1926 = vunpack.c.l.b16 %v1633
    %v1927 = vunpack.c.h.b16 %v1633
    %v1928 = vunpack.c.l.b16 %v1634
    %v1929 = vunpack.c.h.b16 %v1634
    %v1930 = vunpack.c.l.b16 %v1635
    %v1931 = vunpack.c.h.b16 %v1635
    %v1932 = vunpack.c.l.b16 %v1636
    %v1933 = vunpack.c.h.b16 %v1636
    %v1934 = vunpack.c.l.b16 %v1637
    %v1935 = vunpack.c.h.b16 %v1637
    %v1936 = vunpack.c.l.b16 %v1638
    %v1937 = vunpack.c.h.b16 %v1638
    %v1938 = vunpack.c.l.b16 %v1639
    %v1939 = vunpack.c.h.b16 %v1639
    %v1940 = vunpack.c.l.b16 %v1640
    %v1941 = vunpack.c.h.b16 %v1640
    %v1942 = vunpack.c.l.b16 %v1641
    %v1943 = vunpack.c.h.b16 %v1641
    %v1944 = vunpack.c.l.b16 %v1642
    %v1945 = vunpack.c.h.b16 %v1642
    %v1946 = vunpack.c.l.b16 %v1643
    %v1947 = vunpack.c.h.b16 %v1643
    %v1948 = vunpack.c.l.b16 %v1644
    %v1949 = vunpack.c.h.b16 %v1644
    %v1950 = vunpack.c.l.b16 %v1645
    %v1951 = vunpack.c.h.b16 %v1645
    %v1952 = vunpack.c.l.b16 %v1646
    %v1953 = vunpack.c.h.b16 %v1646
    %v1954 = vunpack.c.l.b16 %v1647
    %v1955 = vunpack.c.h.b16 %v1647
    %v1956 = vunpack.c.l.b16 %v1648
    %v1957 = vunpack.c.h.b16 %v1648
    %v1958 = vunpack.c.l.b16 %v1649
    %v1959 = vunpack.c.h.b16 %v1649
    %v1960 = vunpack.c.l.b16 %v1650
    %v1961 = vunpack.c.h.b16 %v1650
    %v1962 = vunpack.c.l.b16 %v1651
    %v1963 = vunpack.c.h.b16 %v1651
    %v1964 = vunpack.c.l.b16 %v1652
    %v1965 = vunpack.c.h.b16 %v1652
    %v1966 = vunpack.c.l.b16 %v1653
    %v1967 = vunpack.c.h.b16 %v1653
    %v1968 = vunpack.c.l.b16 %v1654
    %v1969 = vunpack.c.h.b16 %v1654
    %v1970 = vunpack.c.l.b16 %v1655
    %v1971 = vunpack.c.h.b16 %v1655
    %v1972 = vunpack.c.l.b16 %v1656
    %v1973 = vunpack.c.h.b16 %v1656
    %v1974 = vunpack.c.l.b16 %v1657
    %v1975 = vunpack.c.h.b16 %v1657
    %v1976 = vunpack.c.l.b16 %v1658
    %v1977 = vunpack.c.h.b16 %v1658
    %v1978 = vunpack.c.l.b16 %v1659
    %v1979 = vunpack.c.h.b16 %v1659
    %v1980 = vunpack.c.l.b16 %v1660
    %v1981 = vunpack.c.h.b16 %v1660
    %v1982 = vunpack.c.l.b16 %v1661
    %v1983 = vunpack.c.h.b16 %v1661
    %v1984 = vunpack.c.l.b16 %v1662
    %v1985 = vunpack.c.h.b16 %v1662
    %v1986 = vunpack.c.l.b16 %v1663
    %v1987 = vunpack.c.h.b16 %v1663
    %v1988 = vunpack.c.l.b16 %v1664
    %v1989 = vunpack.c.h.b16 %v1664
    %v1990 = vunpack.c.l.b16 %v1665
    %v1991 = vunpack.c.h.b16 %v1665
    %v1992 = vunpack.c.l.b16 %v1666
    %v1993 = vunpack.c.h.b16 %v1666
    %v1994 = vunpack.c.l.b16 %v1667
    %v1995 = vunpack.c.h.b16 %v1667
    %v1996 = vunpack.c.l.b16 %v1668
    %v1997 = vunpack.c.h.b16 %v1668
    %v1998 = vunpack.c.l.b16 %v1669
    %v1999 = vunpack.c.h.b16 %v1669
    %v2000 = vunpack.c.l.b16 %v1670
    %v2001 = vunpack.c.h.b16 %v1670
    %v2002 = vunpack.c.l.b16 %v1671
    %v2003 = vunpack.c.h.b16 %v1671
    %v2004 = vunpack.c.l.b16 %v1672
    %v2005 = vunpack.c.h.b16 %v1672
    %v2006 = vunpack.c.l.b16 %v1673
    %v2007 = vunpack.c.h.b16 %v1673
    %v2008 = vunpack.c.l.b16 %v1674
    %v2009 = vunpack.c.h.b16 %v1674
    %v2010 = vunpack.c.l.b16 %v1675
    %v2011 = vunpack.c.h.b16 %v1675
    %v2012 = vunpack.c.l.b16 %v1676
    %v2013 = vunpack.c.h.b16 %v1676
    %v2014 = vunpack.c.l.b16 %v1677
    %v2015 = vunpack.c.h.b16 %v1677
    %v2016 = vunpack.c.l.b16 %v1678
    %v2017 = vunpack.c.h.b16 %v1678
    %v2018 = vunpack.c.l.b16 %v1679
    %v2019 = vunpack.c.h.b16 %v1679
    %v2020 = vunpack.c.l.b16 %v1680
    %v2021 = vunpack.c.h.b16 %v1680
    %v2022 = vunpack.c.l.b16 %v1681
    %v2023 = vunpack.c.h.b16 %v1681
    %v2024 = vunpack.c.l.b16 %v1682
    %v2025 = vunpack.c.h.b16 %v1682
    %v2026 = vunpack.c.l.b16 %v1683
    %v2027 = vunpack.c.h.b16 %v1683
    %v2028 = vunpack.c.l.b16 %v1684
    %v2029 = vunpack.c.h.b16 %v1684
    %v2030 = vunpack.c.l.b16 %v1685
    %v2031 = vunpack.c.h.b16 %v1685
    %v2032 = vunpack.c.l.b16 %v1686
    %v2033 = vunpack.c.h.b16 %v1686
    %v2034 = vunpack.c.l.b16 %v1687
    %v2035 = vunpack.c.h.b16 %v1687
    %v2036 = vunpack.c.l.b16 %v1688
    %v2037 = vunpack.c.h.b16 %v1688
    %v2038 = vunpack.c.l.b16 %v1689
    %v2039 = vunpack.c.h.b16 %v1689
    %v2040 = vunpack.c.l.b16 %v1690
    %v2041 = vunpack.c.h.b16 %v1690
    %v2042 = vunpack.c.l.b16 %v1691
    %v2043 = vunpack.c.h.b16 %v1691
    %v2044 = vunpack.c.l.b16 %v1692
    %v2045 = vunpack.c.h.b16 %v1692
    %v2046 = vunpack.c.l.b16 %v1693
    %v2047 = vunpack.c.h.b16 %v1693
    %v2048 = vunpack.c.l.b16 %v1694
    %v2049 = vunpack.c.h.b16 %v1694
    %v2050 = vunpack.c.l.b16 %v1695
    %v2051 = vunpack.c.h.b16 %v1695
    %v2052 = vunpack.c.l.b16 %v1696
    %v2053 = vunpack.c.h.b16 %v1696
    %v2054 = vunpack.c.l.b16 %v1697
    %v2055 = vunpack.c.h.b16 %v1697
    %v2056 = vunpack.c.l.b16 %v1698
    %v2057 = vunpack.c.h.b16 %v1698
    %v2058 = vunpack.c.l.b16 %v1699
    %v2059 = vunpack.c.h.b16 %v1699
    %v2060 = vunpack.c.l.b16 %v1700
    %v2061 = vunpack.c.h.b16 %v1700
    %v2062 = vunpack.c.l.b16 %v1701
    %v2063 = vunpack.c.h.b16 %v1701
    %v2064 = vunpack.c.l.b16 %v1702
    %v2065 = vunpack.c.h.b16 %v1702
    %v2066 = vunpack.c.l.b16 %v1703
    %v2067 = vunpack.c.h.b16 %v1703
    %v2068 = vunpack.c.l.b16 %v1704
    %v2069 = vunpack.c.h.b16 %v1704
    %v2070 = vunpack.c.l.b16 %v1705
    %v2071 = vunpack.c.h.b16 %v1705
    %v2072 = vunpack.c.l.b16 %v1706
    %v2073 = vunpack.c.h.b16 %v1706
    %v2074 = vunpack.c.l.b16 %v1707
    %v2075 = vunpack.c.h.b16 %v1707
    %v2076 = vunpack.c.l.b16 %v1708
    %v2077 = vunpack.c.h.b16 %v1708
    %v2078 = vunpack.c.l.b16 %v1709
    %v2079 = vunpack.c.h.b16 %v1709
    %v2080 = vunpack.c.l.b16 %v1710
    %v2081 = vunpack.c.h.b16 %v1710
    %v2082 = vunpack.c.l.b16 %v1711
    %v2083 = vunpack.c.h.b16 %v1711
    %v2084 = vunpack.c.l.b16 %v1712
    %v2085 = vunpack.c.h.b16 %v1712
    %v2086 = vunpack.c.l.b16 %v1713
    %v2087 = vunpack.c.h.b16 %v1713
    %v2088 = vunpack.c.l.b16 %v1714
    %v2089 = vunpack.c.h.b16 %v1714
    %v2090 = vunpack.c.l.b16 %v1715
    %v2091 = vunpack.c.h.b16 %v1715
    %v2092 = vunpack.c.l.b16 %v1716
    %v2093 = vunpack.c.h.b16 %v1716
    %v2094 = vunpack.c.l.b16 %v1717
    %v2095 = vunpack.c.h.b16 %v1717
    %v2096 = vunpack.c.l.b16 %v1718
    %v2097 = vunpack.c.h.b16 %v1718
    %v2098 = vunpack.c.l.b16 %v1719
    %v2099 = vunpack.c.h.b16 %v1719
    %v2100 = vunpack.c.l.b16 %v1720
    %v2101 = vunpack.c.h.b16 %v1720
    %v2102 = vunpack.c.l.b16 %v1721
    %v2103 = vunpack.c.h.b16 %v1721
    %v2104 = vunpack.c.l.b16 %v1722
    %v2105 = vunpack.c.h.b16 %v1722
    %v2106 = vunpack.c.l.b16 %v1723
    %v2107 = vunpack.c.h.b16 %v1723
    %v2108 = vunpack.c.l.b16 %v1724
    %v2109 = vunpack.c.h.b16 %v1724
    %v2110 = vpack.c.b16 %v1862, %v1854
    %v2111 = vpack.c.b16 %v1863, %v1855
    %v2112 = vpack.c.b16 %v1864, %v1856
    %v2113 = vpack.c.b16 %v1865, %v1857
    %v2114 = vpack.c.b16 %v1866, %v1858
    %v2115 = vpack.c.b16 %v1867, %v1859
    %v2116 = vpack.c.b16 %v1868, %v1860
    %v2117 = vpack.c.b16 %v1869, %v1861
    %v2118 = vpack.c.b16 %v1878, %v1870
    %v2119 = vpack.c.b16 %v1879, %v1871
    %v2120 = vpack.c.b16 %v1880, %v1872
    %v2121 = vpack.c.b16 %v1881, %v1873
    %v2122 = vpack.c.b16 %v1882, %v1874
    %v2123 = vpack.c.b16 %v1883, %v1875
    %v2124 = vpack.c.b16 %v1884, %v1876
    %v2125 = vpack.c.b16 %v1885, %v1877
    %v2126 = vpack.c.b16 %v1894, %v1886
    %v2127 = vpack.c.b16 %v1895, %v1887
    %v2128 = vpack.c.b16 %v1896, %v1888
    %v2129 = vpack.c.b16 %v1897, %v1889
    %v2130 = vpack.c.b16 %v1898, %v1890
    %v2131 = vpack.c.b16 %v1899, %v1891
    %v2132 = vpack.c.b16 %v1900, %v1892
    %v2133 = vpack.c.b16 %v1901, %v1893
    %v2134 = vpack.c.b16 %v1910, %v1902
    %v2135 = vpack.c.b16 %v1911, %v1903
    %v2136 = vpack.c.b16 %v1912, %v1904
    %v2137 = vpack.c.b16 %v1913, %v1905
    %v2138 = vpack.c.b16 %v1914, %v1906
    %v2139 = vpack.c.b16 %v1915, %v1907
    %v2140 = vpack.c.b16 %v1916, %v1908
    %v2141 = vpack.c.b16 %v1917, %v1909
    %v2142 = vpack.c.b16 %v1926, %v1918
    %v2143 = vpack.c.b16 %v1927, %v1919
    %v2144 = vpack.c.b16 %v1928, %v1920
    %v2145 = vpack.c.b16 %v1929, %v1921
    %v2146 = vpack.c.b16 %v1930, %v1922
    %v2147 = vpack.c.b16 %v1931, %v1923
    %v2148 = vpack.c.b16 %v1932, %v1924
    %v2149 = vpack.c.b16 %v1933, %v1925
    %v2150 = vpack.c.b16 %v1942, %v1934
    %v2151 = vpack.c.b16 %v1943, %v1935
    %v2152 = vpack.c.b16 %v1944, %v1936
    %v2153 = vpack.c.b16 %v1945, %v1937
    %v2154 = vpack.c.b16 %v1946, %v1938
    %v2155 = vpack.c.b16 %v1947, %v1939
    %v2156 = vpack.c.b16 %v1948, %v1940
    %v2157 = vpack.c.b16 %v1949, %v1941
    %v2158 = vpack.c.b16 %v1958, %v1950
    %v2159 = vpack.c.b16 %v1959, %v1951
    %v2160 = vpack.c.b16 %v1960, %v1952
    %v2161 = vpack.c.b16 %v1961, %v1953
    %v2162 = vpack.c.b16 %v1962, %v1954
    %v2163 = vpack.c.b16 %v1963, %v1955
    %v2164 = vpack.c.b16 %v1964, %v1956
    %v2165 = vpack.c.b16 %v1965, %v1957
    %v2166 = vpack.c.b16 %v1974, %v1966
    %v2167 = vpack.c.b16 %v1975, %v1967
    %v2168 = vpack.c.b16 %v1976, %v1968
    %v2169 = vpack.c.b16 %v1977, %v1969
    %v2170 = vpack.c.b16 %v1978, %v1970
    %v2171 = vpack.c.b16 %v1979, %v1971
    %v2172 = vpack.c.b16 %v1980, %v1972
    %v2173 = vpack.c.b16 %v1981, %v1973
    %v2174 = vpack.c.b16 %v1990, %v1982
    %v2175 = vpack.c.b16 %v1991, %v1983
    %v2176 = vpack.c.b16 %v1992, %v1984
    %v2177 = vpack.c.b16 %v1993, %v1985
    %v2178 = vpack.c.b16 %v1994, %v1986
    %v2179 = vpack.c.b16 %v1995, %v1987
    %v2180 = vpack.c.b16 %v1996, %v1988
    %v2181 = vpack.c.b16 %v1997, %v1989
    %v2182 = vpack.c.b16 %v2006, %v1998
    %v2183 = vpack.c.b16 %v2007, %v1999
    %v2184 = vpack.c.b16 %v2008, %v2000
    %v2185 = vpack.c.b16 %v2009, %v2001
    %v2186 = vpack.c.b16 %v2010, %v2002
    %v2187 = vpack.c.b16 %v2011, %v2003
    %v2188 = vpack.c.b16 %v2012, %v2004
    %v2189 = vpack.c.b16 %v2013, %v2005
    %v2190 = vpack.c.b16 %v2022, %v2014
    %v2191 = vpack.c.b16 %v2023, %v2015
    %v2192 = vpack.c.b16 %v2024, %v2016
    %v2193 = vpack.c.b16 %v2025, %v2017
    %v2194 = vpack.c.b16 %v2026, %v2018
    %v2195 = vpack.c.b16 %v2027, %v2019
    %v2196 = vpack.c.b16 %v2028, %v2020
    %v2197 = vpack.c.b16 %v2029, %v2021
    %v2198 = vpack.c.b16 %v2038, %v2030
    %v2199 = vpack.c.b16 %v2039, %v2031
    %v2200 = vpack.c.b16 %v2040, %v2032
    %v2201 = vpack.c.b16 %v2041, %v2033
    %v2202 = vpack.c.b16 %v2042, %v2034
    %v2203 = vpack.c.b16 %v2043, %v2035
    %v2204 = vpack.c.b16 %v2044, %v2036
    %v2205 = vpack.c.b16 %v2045, %v2037
    %v2206 = vpack.c.b16 %v2054, %v2046
    %v2207 = vpack.c.b16 %v2055, %v2047
    %v2208 = vpack.c.b16 %v2056, %v2048
    %v2209 = vpack.c.b16 %v2057, %v2049
    %v2210 = vpack.c.b16 %v2058, %v2050
    %v2211 = vpack.c.b16 %v2059, %v2051
    %v2212 = vpack.c.b16 %v2060, %v2052
    %v2213 = vpack.c.b16 %v2061, %v2053
    %v2214 = vpack.c.b16 %v2070, %v2062
    %v2215 = vpack.c.b16 %v2071, %v2063
    %v2216 = vpack.c.b16 %v2072, %v2064
    %v2217 = vpack.c.b16 %v2073, %v2065
    %v2218 = vpack.c.b16 %v2074, %v2066
    %v2219 = vpack.c.b16 %v2075, %v2067
    %v2220 = vpack.c.b16 %v2076, %v2068
    %v2221 = vpack.c.b16 %v2077, %v2069
    %v2222 = vpack.c.b16 %v2086, %v2078
    %v2223 = vpack.c.b16 %v2087, %v2079
    %v2224 = vpack.c.b16 %v2088, %v2080
    %v2225 = vpack.c.b16 %v2089, %v2081
    %v2226 = vpack.c.b16 %v2090, %v2082
    %v2227 = vpack.c.b16 %v2091, %v2083
    %v2228 = vpack.c.b16 %v2092, %v2084
    %v2229 = vpack.c.b16 %v2093, %v2085
    %v2230 = vpack.c.b16 %v2102, %v2094
    %v2231 = vpack.c.b16 %v2103, %v2095
    %v2232 = vpack.c.b16 %v2104, %v2096
    %v2233 = vpack.c.b16 %v2105, %v2097
    %v2234 = vpack.c.b16 %v2106, %v2098
    %v2235 = vpack.c.b16 %v2107, %v2099
    %v2236 = vpack.c.b16 %v2108, %v2100
    %v2237 = vpack.c.b16 %v2109, %v2101
    %2366 = vmatprep.subr.bf16.mxu0 %v2111
    %2367 = vmatpush1.bf16.msra.mxu0 %v2110
    %2368 = vmatprep.subr.bf16.mxu0 %v2119
    %2369 = vmatpush1.bf16.msra.mxu0 %v2118
    %2370 = vmatprep.subr.bf16.mxu0 %v2127
    %2371 = vmatpush1.bf16.msra.mxu0 %v2126
    %2372 = vmatprep.subr.bf16.mxu0 %v2135
    %2373 = vmatpush1.bf16.msra.mxu0 %v2134
    %2374 = vmatprep.subr.bf16.mxu0 %v2143
    %2375 = vmatpush1.bf16.msra.mxu0 %v2142
    %2376 = vmatprep.subr.bf16.mxu0 %v2151
    %2377 = vmatpush1.bf16.msra.mxu0 %v2150
    %2378 = vmatprep.subr.bf16.mxu0 %v2159
    %2379 = vmatpush1.bf16.msra.mxu0 %v2158
    %2380 = vmatprep.subr.bf16.mxu0 %v2167
    %2381 = vmatpush1.bf16.msra.mxu0 %v2166
    %2382 = vmatprep.subr.bf16.mxu0 %v2175
    %2383 = vmatpush1.bf16.msra.mxu0 %v2174
    %2384 = vmatprep.subr.bf16.mxu0 %v2183
    %2385 = vmatpush1.bf16.msra.mxu0 %v2182
    %2386 = vmatprep.subr.bf16.mxu0 %v2191
    %2387 = vmatpush1.bf16.msra.mxu0 %v2190
    %2388 = vmatprep.subr.bf16.mxu0 %v2199
    %2389 = vmatpush1.bf16.msra.mxu0 %v2198
    %2390 = vmatprep.subr.bf16.mxu0 %v2207
    %2391 = vmatpush1.bf16.msra.mxu0 %v2206
    %2392 = vmatprep.subr.bf16.mxu0 %v2215
    %2393 = vmatpush1.bf16.msra.mxu0 %v2214
    %2394 = vmatprep.subr.bf16.mxu0 %v2223
    %2395 = vmatpush1.bf16.msra.mxu0 %v2222
    %2396 = vmatprep.subr.bf16.mxu0 %v2231
    %2397 = vmatpush1.bf16.msra.mxu0 %v2230
    %2398 = vmatprep.mubr.bf16.mxu0 %v1725
    %2399 = vmatmul.mubr.bf16.gmra.mrb[0].mxu0 %v1725
    %v2400 = vpop.f32.mrb[0].mxu0
    %v2401 = vadd.f32 0.0, %v2400
    %v2402 = vpop.f32.mrb[0].mxu0
    %v2403 = vadd.f32 0.0, %v2402
    %v2404 = vpop.f32.mrb[0].mxu0
    %v2405 = vpop.f32.mrb[0].mxu0
    %2406 = vdwg.mxu0
    %2407 = vmatprep.subr.bf16.mxu0 %v2113
    %2408 = vmatpush1.bf16.msra.mxu0 %v2112
    %2409 = vmatprep.subr.bf16.mxu0 %v2121
    %2410 = vmatpush1.bf16.msra.mxu0 %v2120
    %2411 = vmatprep.subr.bf16.mxu0 %v2129
    %2412 = vmatpush1.bf16.msra.mxu0 %v2128
    %2413 = vmatprep.subr.bf16.mxu0 %v2137
    %2414 = vmatpush1.bf16.msra.mxu0 %v2136
    %2415 = vmatprep.subr.bf16.mxu0 %v2145
    %2416 = vmatpush1.bf16.msra.mxu0 %v2144
    %2417 = vmatprep.subr.bf16.mxu0 %v2153
    %2418 = vmatpush1.bf16.msra.mxu0 %v2152
    %2419 = vmatprep.subr.bf16.mxu0 %v2161
    %2420 = vmatpush1.bf16.msra.mxu0 %v2160
    %2421 = vmatprep.subr.bf16.mxu0 %v2169
    %2422 = vmatpush1.bf16.msra.mxu0 %v2168
    %2423 = vmatprep.subr.bf16.mxu0 %v2177
    %2424 = vmatpush1.bf16.msra.mxu0 %v2176
    %2425 = vmatprep.subr.bf16.mxu0 %v2185
    %2426 = vmatpush1.bf16.msra.mxu0 %v2184
    %2427 = vmatprep.subr.bf16.mxu0 %v2193
    %2428 = vmatpush1.bf16.msra.mxu0 %v2192
    %2429 = vmatprep.subr.bf16.mxu0 %v2201
    %2430 = vmatpush1.bf16.msra.mxu0 %v2200
    %2431 = vmatprep.subr.bf16.mxu0 %v2209
    %2432 = vmatpush1.bf16.msra.mxu0 %v2208
    %2433 = vmatprep.subr.bf16.mxu0 %v2217
    %2434 = vmatpush1.bf16.msra.mxu0 %v2216
    %2435 = vmatprep.subr.bf16.mxu0 %v2225
    %2436 = vmatpush1.bf16.msra.mxu0 %v2224
    %2437 = vmatprep.subr.bf16.mxu0 %v2233
    %2438 = vmatpush1.bf16.msra.mxu0 %v2232
    %2439 = vmatprep.mubr.bf16.mxu0 %v1725
    %2440 = vmatmul.mubr.bf16.gmra.mrb[0].mxu0 %v1725
    %v2441 = vpop.f32.mrb[0].mxu0
    %v2442 = vadd.f32 0.0, %v2441
    %v2443 = vpop.f32.mrb[0].mxu0
    %v2444 = vadd.f32 0.0, %v2443
    %v2445 = vpop.f32.mrb[0].mxu0
    %v2446 = vpop.f32.mrb[0].mxu0
    %2447 = vdwg.mxu0
    %2448 = vmatprep.subr.bf16.mxu0 %v2115
    %2449 = vmatpush1.bf16.msra.mxu0 %v2114
    %2450 = vmatprep.subr.bf16.mxu0 %v2123
    %2451 = vmatpush1.bf16.msra.mxu0 %v2122
    %2452 = vmatprep.subr.bf16.mxu0 %v2131
    %2453 = vmatpush1.bf16.msra.mxu0 %v2130
    %2454 = vmatprep.subr.bf16.mxu0 %v2139
    %2455 = vmatpush1.bf16.msra.mxu0 %v2138
    %2456 = vmatprep.subr.bf16.mxu0 %v2147
    %2457 = vmatpush1.bf16.msra.mxu0 %v2146
    %2458 = vmatprep.subr.bf16.mxu0 %v2155
    %2459 = vmatpush1.bf16.msra.mxu0 %v2154
    %2460 = vmatprep.subr.bf16.mxu0 %v2163
    %2461 = vmatpush1.bf16.msra.mxu0 %v2162
    %2462 = vmatprep.subr.bf16.mxu0 %v2171
    %2463 = vmatpush1.bf16.msra.mxu0 %v2170
    %2464 = vmatprep.subr.bf16.mxu0 %v2179
    %2465 = vmatpush1.bf16.msra.mxu0 %v2178
    %2466 = vmatprep.subr.bf16.mxu0 %v2187
    %2467 = vmatpush1.bf16.msra.mxu0 %v2186
    %2468 = vmatprep.subr.bf16.mxu0 %v2195
    %2469 = vmatpush1.bf16.msra.mxu0 %v2194
    %2470 = vmatprep.subr.bf16.mxu0 %v2203
    %2471 = vmatpush1.bf16.msra.mxu0 %v2202
    %2472 = vmatprep.subr.bf16.mxu0 %v2211
    %2473 = vmatpush1.bf16.msra.mxu0 %v2210
    %2474 = vmatprep.subr.bf16.mxu0 %v2219
    %2475 = vmatpush1.bf16.msra.mxu0 %v2218
    %2476 = vmatprep.subr.bf16.mxu0 %v2227
    %2477 = vmatpush1.bf16.msra.mxu0 %v2226
    %2478 = vmatprep.subr.bf16.mxu0 %v2235
    %2479 = vmatpush1.bf16.msra.mxu0 %v2234
    %2480 = vmatprep.mubr.bf16.mxu0 %v1725
    %2481 = vmatmul.mubr.bf16.gmra.mrb[0].mxu0 %v1725
    %v2482 = vpop.f32.mrb[0].mxu0
    %v2483 = vadd.f32 0.0, %v2482
    %v2484 = vpop.f32.mrb[0].mxu0
    %v2485 = vadd.f32 0.0, %v2484
    %v2486 = vpop.f32.mrb[0].mxu0
    %v2487 = vpop.f32.mrb[0].mxu0
    %2488 = vdwg.mxu0
    %2489 = vmatprep.subr.bf16.mxu0 %v2117
    %2490 = vmatpush1.bf16.msra.mxu0 %v2116
    %2491 = vmatprep.subr.bf16.mxu0 %v2125
    %2492 = vmatpush1.bf16.msra.mxu0 %v2124
    %2493 = vmatprep.subr.bf16.mxu0 %v2133
    %2494 = vmatpush1.bf16.msra.mxu0 %v2132
    %2495 = vmatprep.subr.bf16.mxu0 %v2141
    %2496 = vmatpush1.bf16.msra.mxu0 %v2140
    %2497 = vmatprep.subr.bf16.mxu0 %v2149
    %2498 = vmatpush1.bf16.msra.mxu0 %v2148
    %2499 = vmatprep.subr.bf16.mxu0 %v2157
    %2500 = vmatpush1.bf16.msra.mxu0 %v2156
    %2501 = vmatprep.subr.bf16.mxu0 %v2165
    %2502 = vmatpush1.bf16.msra.mxu0 %v2164
    %2503 = vmatprep.subr.bf16.mxu0 %v2173
    %2504 = vmatpush1.bf16.msra.mxu0 %v2172
    %2505 = vmatprep.subr.bf16.mxu0 %v2181
    %2506 = vmatpush1.bf16.msra.mxu0 %v2180
    %2507 = vmatprep.subr.bf16.mxu0 %v2189
    %2508 = vmatpush1.bf16.msra.mxu0 %v2188
    %2509 = vmatprep.subr.bf16.mxu0 %v2197
    %2510 = vmatpush1.bf16.msra.mxu0 %v2196
    %2511 = vmatprep.subr.bf16.mxu0 %v2205
    %2512 = vmatpush1.bf16.msra.mxu0 %v2204
    %2513 = vmatprep.subr.bf16.mxu0 %v2213
    %2514 = vmatpush1.bf16.msra.mxu0 %v2212
    %2515 = vmatprep.subr.bf16.mxu0 %v2221
    %2516 = vmatpush1.bf16.msra.mxu0 %v2220
    %2517 = vmatprep.subr.bf16.mxu0 %v2229
    %2518 = vmatpush1.bf16.msra.mxu0 %v2228
    %2519 = vmatprep.subr.bf16.mxu0 %v2237
    %2520 = vmatpush1.bf16.msra.mxu0 %v2236
    %2521 = vmatprep.mubr.bf16.mxu0 %v1725
    %2522 = vmatmul.mubr.bf16.gmra.mrb[0].mxu0 %v1725
    %v2523 = vpop.f32.mrb[0].mxu0
    %v2524 = vadd.f32 0.0, %v2523
    %v2525 = vpop.f32.mrb[0].mxu0
    %v2526 = vadd.f32 0.0, %v2525
    %v2527 = vpop.f32.mrb[0].mxu0
    %v2528 = vpop.f32.mrb[0].mxu0
    %2529 = vdwg.mxu0
    %v2530 = vld [vmem:[#allocation4] sm:$0xff]
    %v2531 = vld [vmem:[#allocation4 + $0x8] sm:$0xff]
    %v2532 = vld [vmem:[#allocation4 + $0x10] sm:$0xff]
    %v2533 = vld [vmem:[#allocation4 + $0x18] sm:$0xff]
    %v2534 = vadd.f32 %v2530, %v2401
    %v2535 = vadd.f32 %v2531, %v2403
    %v2536 = vadd.f32 %v2532, %v2442
    %v2537 = vadd.f32 %v2533, %v2444
    %v2538 = vmul.f32 %v2534, 0.5
    %v2539 = vtanh.pop %v2538
    %v2540 = vmul.f32 %v2539, 0.5
    %v2541 = vadd.f32 %v2540, 0.5
    %v2542 = vmul.f32 %v2535, 0.5
    %v2543 = vtanh.pop %v2542
    %v2544 = vmul.f32 %v2543, 0.5
    %v2545 = vadd.f32 %v2544, 0.5
    %v2546 = vtanh.pop %v2536
    %v2547 = vmul.f32 %v2537, 0.5
    %v2548 = vtanh.pop %v2547
    %v2549 = vmul.f32 %v2548, 0.5
    %v2550 = vadd.f32 %v2549, 0.5
    %v2551 = vmul.f32 %v2545, 0.0
    %v2552 = vmul.f32 %v2541, %v2546
    %v2553 = vadd.f32 %v2551, %v2552
    %v2554 = vtanh.pop %v2553
    %v2555 = vmul.f32 %v2550, %v2554
    %v2556 = vld [vmem:[#allocation5] sm:$0xff]
    %v2557 = vld [vmem:[#allocation5 + $0x8] sm:$0xff]
    %v2558 = vld [vmem:[#allocation5 + $0x10] sm:$0xff]
    %v2559 = vld [vmem:[#allocation5 + $0x18] sm:$0xff]
    %v2560 = vadd.f32 %v2556, %v2483
    %v2561 = vadd.f32 %v2557, %v2485
    %v2562 = vadd.f32 %v2558, %v2524
    %v2563 = vadd.f32 %v2559, %v2526
    %v2564 = vmul.f32 %v2560, 0.5
    %v2565 = vtanh.pop %v2564
    %v2566 = vmul.f32 %v2565, 0.5
    %v2567 = vadd.f32 %v2566, 0.5
    %v2568 = vmul.f32 %v2561, 0.5
    %v2569 = vtanh.pop %v2568
    %v2570 = vmul.f32 %v2569, 0.5
    %v2571 = vadd.f32 %v2570, 0.5
    %v2572 = vtanh.pop %v2562
    %v2573 = vmul.f32 %v2563, 0.5
    %v2574 = vtanh.pop %v2573
    %v2575 = vmul.f32 %v2574, 0.5
    %v2576 = vadd.f32 %v2575, 0.5
    %v2577 = vmul.f32 %v2571, 0.0
    %v2578 = vmul.f32 %v2567, %v2572
    %v2579 = vadd.f32 %v2577, %v2578
    %v2580 = vtanh.pop %v2579
    %v2581 = vmul.f32 %v2576, %v2580
    %v2582 = vpack.c.bf16 %v2555, %v2555
    %v2583 = vpack.c.bf16 %v2581, %v2581
    %2584 = vmatprep.subr.bf16.mxu0 %v2111
    %2585 = vmatpush1.bf16.msra.mxu0 %v2110
    %2586 = vmatprep.subr.bf16.mxu0 %v2119
    %2587 = vmatpush1.bf16.msra.mxu0 %v2118
    %2588 = vmatprep.subr.bf16.mxu0 %v2127
    %2589 = vmatpush1.bf16.msra.mxu0 %v2126
    %2590 = vmatprep.subr.bf16.mxu0 %v2135
    %2591 = vmatpush1.bf16.msra.mxu0 %v2134
    %2592 = vmatprep.subr.bf16.mxu0 %v2143
    %2593 = vmatpush1.bf16.msra.mxu0 %v2142
    %2594 = vmatprep.subr.bf16.mxu0 %v2151
    %2595 = vmatpush1.bf16.msra.mxu0 %v2150
    %2596 = vmatprep.subr.bf16.mxu0 %v2159
    %2597 = vmatpush1.bf16.msra.mxu0 %v2158
    %2598 = vmatprep.subr.bf16.mxu0 %v2167
    %2599 = vmatpush1.bf16.msra.mxu0 %v2166
    %2600 = vmatprep.subr.bf16.mxu0 %v2175
    %2601 = vmatpush1.bf16.msra.mxu0 %v2174
    %2602 = vmatprep.subr.bf16.mxu0 %v2183
    %2603 = vmatpush1.bf16.msra.mxu0 %v2182
    %2604 = vmatprep.subr.bf16.mxu0 %v2191
    %2605 = vmatpush1.bf16.msra.mxu0 %v2190
    %2606 = vmatprep.subr.bf16.mxu0 %v2199
    %2607 = vmatpush1.bf16.msra.mxu0 %v2198
    %2608 = vmatprep.subr.bf16.mxu0 %v2207
    %2609 = vmatpush1.bf16.msra.mxu0 %v2206
    %2610 = vmatprep.subr.bf16.mxu0 %v2215
    %2611 = vmatpush1.bf16.msra.mxu0 %v2214
    %2612 = vmatprep.subr.bf16.mxu0 %v2223
    %2613 = vmatpush1.bf16.msra.mxu0 %v2222
    %2614 = vmatprep.subr.bf16.mxu0 %v2231
    %2615 = vmatpush1.bf16.msra.mxu0 %v2230
    %2616 = vmatprep.mubr.bf16.mxu0 %v2583
    %2617 = vmatmul.mubr.bf16.gmra.mrb[0].mxu0 %v2582
    %v2618 = vpop.f32.mrb[0].mxu0
    %v2619 = vadd.f32 0.0, %v2618
    %v2620 = vpop.f32.mrb[0].mxu0
    %v2621 = vadd.f32 0.0, %v2620
    %v2622 = vpop.f32.mrb[0].mxu0
    %v2623 = vpop.f32.mrb[0].mxu0
    %2624 = vdwg.mxu0
    %2625 = vmatprep.subr.bf16.mxu0 %v2113
    %2626 = vmatpush1.bf16.msra.mxu0 %v2112
    %2627 = vmatprep.subr.bf16.mxu0 %v2121
    %2628 = vmatpush1.bf16.msra.mxu0 %v2120
    %2629 = vmatprep.subr.bf16.mxu0 %v2129
    %2630 = vmatpush1.bf16.msra.mxu0 %v2128
    %2631 = vmatprep.subr.bf16.mxu0 %v2137
    %2632 = vmatpush1.bf16.msra.mxu0 %v2136
    %2633 = vmatprep.subr.bf16.mxu0 %v2145
    %2634 = vmatpush1.bf16.msra.mxu0 %v2144
    %2635 = vmatprep.subr.bf16.mxu0 %v2153
    %2636 = vmatpush1.bf16.msra.mxu0 %v2152
    %2637 = vmatprep.subr.bf16.mxu0 %v2161
    %2638 = vmatpush1.bf16.msra.mxu0 %v2160
    %2639 = vmatprep.subr.bf16.mxu0 %v2169
    %2640 = vmatpush1.bf16.msra.mxu0 %v2168
    %2641 = vmatprep.subr.bf16.mxu0 %v2177
    %2642 = vmatpush1.bf16.msra.mxu0 %v2176
    %2643 = vmatprep.subr.bf16.mxu0 %v2185
    %2644 = vmatpush1.bf16.msra.mxu0 %v2184
    %2645 = vmatprep.subr.bf16.mxu0 %v2193
    %2646 = vmatpush1.bf16.msra.mxu0 %v2192
    %2647 = vmatprep.subr.bf16.mxu0 %v2201
    %2648 = vmatpush1.bf16.msra.mxu0 %v2200
    %2649 = vmatprep.subr.bf16.mxu0 %v2209
    %2650 = vmatpush1.bf16.msra.mxu0 %v2208
    %2651 = vmatprep.subr.bf16.mxu0 %v2217
    %2652 = vmatpush1.bf16.msra.mxu0 %v2216
    %2653 = vmatprep.subr.bf16.mxu0 %v2225
    %2654 = vmatpush1.bf16.msra.mxu0 %v2224
    %2655 = vmatprep.subr.bf16.mxu0 %v2233
    %2656 = vmatpush1.bf16.msra.mxu0 %v2232
    %2657 = vmatprep.mubr.bf16.mxu0 %v2583
    %2658 = vmatmul.mubr.bf16.gmra.mrb[0].mxu0 %v2582
    %v2659 = vpop.f32.mrb[0].mxu0
    %v2660 = vadd.f32 0.0, %v2659
    %v2661 = vpop.f32.mrb[0].mxu0
    %v2662 = vadd.f32 0.0, %v2661
    %v2663 = vpop.f32.mrb[0].mxu0
    %v2664 = vpop.f32.mrb[0].mxu0
    %2665 = vdwg.mxu0
    %2666 = vmatprep.subr.bf16.mxu0 %v2115
    %2667 = vmatpush1.bf16.msra.mxu0 %v2114
    %2668 = vmatprep.subr.bf16.mxu0 %v2123
    %2669 = vmatpush1.bf16.msra.mxu0 %v2122
    %2670 = vmatprep.subr.bf16.mxu0 %v2131
    %2671 = vmatpush1.bf16.msra.mxu0 %v2130
    %2672 = vmatprep.subr.bf16.mxu0 %v2139
    %2673 = vmatpush1.bf16.msra.mxu0 %v2138
    %2674 = vmatprep.subr.bf16.mxu0 %v2147
    %2675 = vmatpush1.bf16.msra.mxu0 %v2146
    %2676 = vmatprep.subr.bf16.mxu0 %v2155
    %2677 = vmatpush1.bf16.msra.mxu0 %v2154
    %2678 = vmatprep.subr.bf16.mxu0 %v2163
    %2679 = vmatpush1.bf16.msra.mxu0 %v2162
    %2680 = vmatprep.subr.bf16.mxu0 %v2171
    %2681 = vmatpush1.bf16.msra.mxu0 %v2170
    %2682 = vmatprep.subr.bf16.mxu0 %v2179
    %2683 = vmatpush1.bf16.msra.mxu0 %v2178
    %2684 = vmatprep.subr.bf16.mxu0 %v2187
    %2685 = vmatpush1.bf16.msra.mxu0 %v2186
    %2686 = vmatprep.subr.bf16.mxu0 %v2195
    %2687 = vmatpush1.bf16.msra.mxu0 %v2194
    %2688 = vmatprep.subr.bf16.mxu0 %v2203
    %2689 = vmatpush1.bf16.msra.mxu0 %v2202
    %2690 = vmatprep.subr.bf16.mxu0 %v2211
    %2691 = vmatpush1.bf16.msra.mxu0 %v2210
    %2692 = vmatprep.subr.bf16.mxu0 %v2219
    %2693 = vmatpush1.bf16.msra.mxu0 %v2218
    %2694 = vmatprep.subr.bf16.mxu0 %v2227
    %2695 = vmatpush1.bf16.msra.mxu0 %v2226
    %2696 = vmatprep.subr.bf16.mxu0 %v2235
    %2697 = vmatpush1.bf16.msra.mxu0 %v2234
    %2698 = vmatprep.mubr.bf16.mxu0 %v2583
    %2699 = vmatmul.mubr.bf16.gmra.mrb[0].mxu0 %v2582
    %v2700 = vpop.f32.mrb[0].mxu0
    %v2701 = vadd.f32 0.0, %v2700
    %v2702 = vpop.f32.mrb[0].mxu0
    %v2703 = vadd.f32 0.0, %v2702
    %v2704 = vpop.f32.mrb[0].mxu0
    %v2705 = vpop.f32.mrb[0].mxu0
    %2706 = vdwg.mxu0
    %2707 = vmatprep.subr.bf16.mxu0 %v2117
    %2708 = vmatpush1.bf16.msra.mxu0 %v2116
    %2709 = vmatprep.subr.bf16.mxu0 %v2125
    %2710 = vmatpush1.bf16.msra.mxu0 %v2124
    %2711 = vmatprep.subr.bf16.mxu0 %v2133
    %2712 = vmatpush1.bf16.msra.mxu0 %v2132
    %2713 = vmatprep.subr.bf16.mxu0 %v2141
    %2714 = vmatpush1.bf16.msra.mxu0 %v2140
    %2715 = vmatprep.subr.bf16.mxu0 %v2149
    %2716 = vmatpush1.bf16.msra.mxu0 %v2148
    %2717 = vmatprep.subr.bf16.mxu0 %v2157
    %2718 = vmatpush1.bf16.msra.mxu0 %v2156
    %2719 = vmatprep.subr.bf16.mxu0 %v2165
    %2720 = vmatpush1.bf16.msra.mxu0 %v2164
    %2721 = vmatprep.subr.bf16.mxu0 %v2173
    %2722 = vmatpush1.bf16.msra.mxu0 %v2172
    %2723 = vmatprep.subr.bf16.mxu0 %v2181
    %2724 = vmatpush1.bf16.msra.mxu0 %v2180
    %2725 = vmatprep.subr.bf16.mxu0 %v2189
    %2726 = vmatpush1.bf16.msra.mxu0 %v2188
    %2727 = vmatprep.subr.bf16.mxu0 %v2197
    %2728 = vmatpush1.bf16.msra.mxu0 %v2196
    %2729 = vmatprep.subr.bf16.mxu0 %v2205
    %2730 = vmatpush1.bf16.msra.mxu0 %v2204
    %2731 = vmatprep.subr.bf16.mxu0 %v2213
    %2732 = vmatpush1.bf16.msra.mxu0 %v2212
    %2733 = vmatprep.subr.bf16.mxu0 %v2221
    %2734 = vmatpush1.bf16.msra.mxu0 %v2220
    %2735 = vmatprep.subr.bf16.mxu0 %v2229
    %2736 = vmatpush1.bf16.msra.mxu0 %v2228
    %2737 = vmatprep.subr.bf16.mxu0 %v2237
    %2738 = vmatpush1.bf16.msra.mxu0 %v2236
    %2739 = vmatprep.mubr.bf16.mxu0 %v2583
    %2740 = vmatmul.mubr.bf16.gmra.mrb[0].mxu0 %v2582
    %v2741 = vpop.f32.mrb[0].mxu0
    %v2742 = vadd.f32 0.0, %v2741
    %v2743 = vpop.f32.mrb[0].mxu0
    %v2744 = vadd.f32 0.0, %v2743
    %v2745 = vpop.f32.mrb[0].mxu0
    %v2746 = vpop.f32.mrb[0].mxu0
    %2747 = vdwg.mxu0
    %v2748 = vld [vmem:[#allocation4 + $0x20] sm:$0xff]
    %v2749 = vld [vmem:[#allocation4 + $0x28] sm:$0xff]
    %v2750 = vld [vmem:[#allocation4 + $0x30] sm:$0xff]
    %v2751 = vld [vmem:[#allocation4 + $0x38] sm:$0xff]
    %v2752 = vadd.f32 %v2748, %v2619
    %v2753 = vadd.f32 %v2749, %v2621
    %v2754 = vadd.f32 %v2750, %v2660
    %v2755 = vadd.f32 %v2751, %v2662
    %v2756 = vmul.f32 %v2752, 0.5
    %v2757 = vtanh.pop %v2756
    %v2758 = vmul.f32 %v2757, 0.5
    %v2759 = vadd.f32 %v2758, 0.5
    %v2760 = vmul.f32 %v2753, 0.5
    %v2761 = vtanh.pop %v2760
    %v2762 = vmul.f32 %v2761, 0.5
    %v2763 = vadd.f32 %v2762, 0.5
    %v2764 = vtanh.pop %v2754
    %v2765 = vmul.f32 %v2755, 0.5
    %v2766 = vtanh.pop %v2765
    %v2767 = vmul.f32 %v2766, 0.5
    %v2768 = vadd.f32 %v2767, 0.5
    %v2769 = vmul.f32 %v2763, %v2553
    %v2770 = vmul.f32 %v2759, %v2764
    %v2771 = vadd.f32 %v2769, %v2770
    %v2772 = vtanh.pop %v2771
    %v2773 = vmul.f32 %v2768, %v2772
    %v2774 = vld [vmem:[#allocation5 + $0x20] sm:$0xff]
    %v2775 = vld [vmem:[#allocation5 + $0x28] sm:$0xff]
    %v2776 = vld [vmem:[#allocation5 + $0x30] sm:$0xff]
    %v2777 = vld [vmem:[#allocation5 + $0x38] sm:$0xff]
    %v2778 = vadd.f32 %v2774, %v2701
    %v2779 = vadd.f32 %v2775, %v2703
    %v2780 = vadd.f32 %v2776, %v2742
    %v2781 = vadd.f32 %v2777, %v2744
    %v2782 = vmul.f32 %v2778, 0.5
    %v2783 = vtanh.pop %v2782
    %v2784 = vmul.f32 %v2783, 0.5
    %v2785 = vadd.f32 %v2784, 0.5
    %v2786 = vmul.f32 %v2779, 0.5
    %v2787 = vtanh.pop %v2786
    %v2788 = vmul.f32 %v2787, 0.5
    %v2789 = vadd.f32 %v2788, 0.5
    %v2790 = vtanh.pop %v2780
    %v2791 = vmul.f32 %v2781, 0.5
    %v2792 = vtanh.pop %v2791
    %v2793 = vmul.f32 %v2792, 0.5
    %v2794 = vadd.f32 %v2793, 0.5
    %v2795 = vmul.f32 %v2789, %v2579
    %v2796 = vmul.f32 %v2785, %v2790
    %v2797 = vadd.f32 %v2795, %v2796
    %v2798 = vtanh.pop %v2797
    %v2799 = vmul.f32 %v2794, %v2798
    %v2800 = vpack.c.bf16 %v2773, %v2773
    %v2801 = vpack.c.bf16 %v2799, %v2799
    %2802 = vmatprep.subr.bf16.mxu0 %v2111
    %2803 = vmatpush1.bf16.msra.mxu0 %v2110
    %2804 = vmatprep.subr.bf16.mxu0 %v2119
    %2805 = vmatpush1.bf16.msra.mxu0 %v2118
    %2806 = vmatprep.subr.bf16.mxu0 %v2127
    %2807 = vmatpush1.bf16.msra.mxu0 %v2126
    %2808 = vmatprep.subr.bf16.mxu0 %v2135
    %2809 = vmatpush1.bf16.msra.mxu0 %v2134
    %2810 = vmatprep.subr.bf16.mxu0 %v2143
    %2811 = vmatpush1.bf16.msra.mxu0 %v2142
    %2812 = vmatprep.subr.bf16.mxu0 %v2151
    %2813 = vmatpush1.bf16.msra.mxu0 %v2150
    %2814 = vmatprep.subr.bf16.mxu0 %v2159
    %2815 = vmatpush1.bf16.msra.mxu0 %v2158
    %2816 = vmatprep.subr.bf16.mxu0 %v2167
    %2817 = vmatpush1.bf16.msra.mxu0 %v2166
    %2818 = vmatprep.subr.bf16.mxu0 %v2175
    %2819 = vmatpush1.bf16.msra.mxu0 %v2174
    %2820 = vmatprep.subr.bf16.mxu0 %v2183
    %2821 = vmatpush1.bf16.msra.mxu0 %v2182
    %2822 = vmatprep.subr.bf16.mxu0 %v2191
    %2823 = vmatpush1.bf16.msra.mxu0 %v2190
    %2824 = vmatprep.subr.bf16.mxu0 %v2199
    %2825 = vmatpush1.bf16.msra.mxu0 %v2198
    %2826 = vmatprep.subr.bf16.mxu0 %v2207
    %2827 = vmatpush1.bf16.msra.mxu0 %v2206
    %2828 = vmatprep.subr.bf16.mxu0 %v2215
    %2829 = vmatpush1.bf16.msra.mxu0 %v2214
    %2830 = vmatprep.subr.bf16.mxu0 %v2223
    %2831 = vmatpush1.bf16.msra.mxu0 %v2222
    %2832 = vmatprep.subr.bf16.mxu0 %v2231
    %2833 = vmatpush1.bf16.msra.mxu0 %v2230
    %2834 = vmatprep.mubr.bf16.mxu0 %v2801
    %2835 = vmatmul.mubr.bf16.gmra.mrb[0].mxu0 %v2800
    %v2836 = vpop.f32.mrb[0].mxu0
    %v2837 = vadd.f32 0.0, %v2836
    %v2838 = vpop.f32.mrb[0].mxu0
    %v2839 = vadd.f32 0.0, %v2838
    %v2840 = vpop.f32.mrb[0].mxu0
    %v2841 = vpop.f32.mrb[0].mxu0
    %2842 = vdwg.mxu0
    %2843 = vmatprep.subr.bf16.mxu0 %v2113
    %2844 = vmatpush1.bf16.msra.mxu0 %v2112
    %2845 = vmatprep.subr.bf16.mxu0 %v2121
    %2846 = vmatpush1.bf16.msra.mxu0 %v2120
    %2847 = vmatprep.subr.bf16.mxu0 %v2129
    %2848 = vmatpush1.bf16.msra.mxu0 %v2128
    %2849 = vmatprep.subr.bf16.mxu0 %v2137
    %2850 = vmatpush1.bf16.msra.mxu0 %v2136
    %2851 = vmatprep.subr.bf16.mxu0 %v2145
    %2852 = vmatpush1.bf16.msra.mxu0 %v2144
    %2853 = vmatprep.subr.bf16.mxu0 %v2153
    %2854 = vmatpush1.bf16.msra.mxu0 %v2152
    %2855 = vmatprep.subr.bf16.mxu0 %v2161
    %2856 = vmatpush1.bf16.msra.mxu0 %v2160
    %2857 = vmatprep.subr.bf16.mxu0 %v2169
    %2858 = vmatpush1.bf16.msra.mxu0 %v2168
    %2859 = vmatprep.subr.bf16.mxu0 %v2177
    %2860 = vmatpush1.bf16.msra.mxu0 %v2176
    %2861 = vmatprep.subr.bf16.mxu0 %v2185
    %2862 = vmatpush1.bf16.msra.mxu0 %v2184
    %2863 = vmatprep.subr.bf16.mxu0 %v2193
    %2864 = vmatpush1.bf16.msra.mxu0 %v2192
    %2865 = vmatprep.subr.bf16.mxu0 %v2201
    %2866 = vmatpush1.bf16.msra.mxu0 %v2200
    %2867 = vmatprep.subr.bf16.mxu0 %v2209
    %2868 = vmatpush1.bf16.msra.mxu0 %v2208
    %2869 = vmatprep.subr.bf16.mxu0 %v2217
    %2870 = vmatpush1.bf16.msra.mxu0 %v2216
    %2871 = vmatprep.subr.bf16.mxu0 %v2225
    %2872 = vmatpush1.bf16.msra.mxu0 %v2224
    %2873 = vmatprep.subr.bf16.mxu0 %v2233
    %2874 = vmatpush1.bf16.msra.mxu0 %v2232
    %2875 = vmatprep.mubr.bf16.mxu0 %v2801
    %2876 = vmatmul.mubr.bf16.gmra.mrb[0].mxu0 %v2800
    %v2877 = vpop.f32.mrb[0].mxu0
    %v2878 = vadd.f32 0.0, %v2877
    %v2879 = vpop.f32.mrb[0].mxu0
    %v2880 = vadd.f32 0.0, %v2879
    %v2881 = vpop.f32.mrb[0].mxu0
    %v2882 = vpop.f32.mrb[0].mxu0
    %2883 = vdwg.mxu0
    %2884 = vmatprep.subr.bf16.mxu0 %v2115
    %2885 = vmatpush1.bf16.msra.mxu0 %v2114
    %2886 = vmatprep.subr.bf16.mxu0 %v2123
    %2887 = vmatpush1.bf16.msra.mxu0 %v2122
    %2888 = vmatprep.subr.bf16.mxu0 %v2131
    %2889 = vmatpush1.bf16.msra.mxu0 %v2130
    %2890 = vmatprep.subr.bf16.mxu0 %v2139
    %2891 = vmatpush1.bf16.msra.mxu0 %v2138
    %2892 = vmatprep.subr.bf16.mxu0 %v2147
    %2893 = vmatpush1.bf16.msra.mxu0 %v2146
    %2894 = vmatprep.subr.bf16.mxu0 %v2155
    %2895 = vmatpush1.bf16.msra.mxu0 %v2154
    %2896 = vmatprep.subr.bf16.mxu0 %v2163
    %2897 = vmatpush1.bf16.msra.mxu0 %v2162
    %2898 = vmatprep.subr.bf16.mxu0 %v2171
    %2899 = vmatpush1.bf16.msra.mxu0 %v2170
    %2900 = vmatprep.subr.bf16.mxu0 %v2179
    %2901 = vmatpush1.bf16.msra.mxu0 %v2178
    %2902 = vmatprep.subr.bf16.mxu0 %v2187
    %2903 = vmatpush1.bf16.msra.mxu0 %v2186
    %2904 = vmatprep.subr.bf16.mxu0 %v2195
    %2905 = vmatpush1.bf16.msra.mxu0 %v2194
    %2906 = vmatprep.subr.bf16.mxu0 %v2203
    %2907 = vmatpush1.bf16.msra.mxu0 %v2202
    %2908 = vmatprep.subr.bf16.mxu0 %v2211
    %2909 = vmatpush1.bf16.msra.mxu0 %v2210
    %2910 = vmatprep.subr.bf16.mxu0 %v2219
    %2911 = vmatpush1.bf16.msra.mxu0 %v2218
    %2912 = vmatprep.subr.bf16.mxu0 %v2227
    %2913 = vmatpush1.bf16.msra.mxu0 %v2226
    %2914 = vmatprep.subr.bf16.mxu0 %v2235
    %2915 = vmatpush1.bf16.msra.mxu0 %v2234
    %2916 = vmatprep.mubr.bf16.mxu0 %v2801
    %2917 = vmatmul.mubr.bf16.gmra.mrb[0].mxu0 %v2800
    %v2918 = vpop.f32.mrb[0].mxu0
    %v2919 = vadd.f32 0.0, %v2918
    %v2920 = vpop.f32.mrb[0].mxu0
    %v2921 = vadd.f32 0.0, %v2920
    %v2922 = vpop.f32.mrb[0].mxu0
    %v2923 = vpop.f32.mrb[0].mxu0
    %2924 = vdwg.mxu0
    %2925 = vmatprep.subr.bf16.mxu0 %v2117
    %2926 = vmatpush1.bf16.msra.mxu0 %v2116
    %2927 = vmatprep.subr.bf16.mxu0 %v2125
    %2928 = vmatpush1.bf16.msra.mxu0 %v2124
    %2929 = vmatprep.subr.bf16.mxu0 %v2133
    %2930 = vmatpush1.bf16.msra.mxu0 %v2132
    %2931 = vmatprep.subr.bf16.mxu0 %v2141
    %2932 = vmatpush1.bf16.msra.mxu0 %v2140
    %2933 = vmatprep.subr.bf16.mxu0 %v2149
    %2934 = vmatpush1.bf16.msra.mxu0 %v2148
    %2935 = vmatprep.subr.bf16.mxu0 %v2157
    %2936 = vmatpush1.bf16.msra.mxu0 %v2156
    %2937 = vmatprep.subr.bf16.mxu0 %v2165
    %2938 = vmatpush1.bf16.msra.mxu0 %v2164
    %2939 = vmatprep.subr.bf16.mxu0 %v2173
    %2940 = vmatpush1.bf16.msra.mxu0 %v2172
    %2941 = vmatprep.subr.bf16.mxu0 %v2181
    %2942 = vmatpush1.bf16.msra.mxu0 %v2180
    %2943 = vmatprep.subr.bf16.mxu0 %v2189
    %2944 = vmatpush1.bf16.msra.mxu0 %v2188
    %2945 = vmatprep.subr.bf16.mxu0 %v2197
    %2946 = vmatpush1.bf16.msra.mxu0 %v2196
    %2947 = vmatprep.subr.bf16.mxu0 %v2205
    %2948 = vmatpush1.bf16.msra.mxu0 %v2204
    %2949 = vmatprep.subr.bf16.mxu0 %v2213
    %2950 = vmatpush1.bf16.msra.mxu0 %v2212
    %2951 = vmatprep.subr.bf16.mxu0 %v2221
    %2952 = vmatpush1.bf16.msra.mxu0 %v2220
    %2953 = vmatprep.subr.bf16.mxu0 %v2229
    %2954 = vmatpush1.bf16.msra.mxu0 %v2228
    %2955 = vmatprep.subr.bf16.mxu0 %v2237
    %2956 = vmatpush1.bf16.msra.mxu0 %v2236
    %2957 = vmatprep.mubr.bf16.mxu0 %v2801
    %2958 = vmatmul.mubr.bf16.gmra.mrb[0].mxu0 %v2800
    %v2959 = vpop.f32.mrb[0].mxu0
    %v2960 = vadd.f32 0.0, %v2959
    %v2961 = vpop.f32.mrb[0].mxu0
    %v2962 = vadd.f32 0.0, %v2961
    %v2963 = vpop.f32.mrb[0].mxu0
    %v2964 = vpop.f32.mrb[0].mxu0
    %2965 = vdwg.mxu0
    %v2966 = vld [vmem:[#allocation4 + $0x40] sm:$0xff]
    %v2967 = vld [vmem:[#allocation4 + $0x48] sm:$0xff]
    %v2968 = vld [vmem:[#allocation4 + $0x50] sm:$0xff]
    %v2969 = vld [vmem:[#allocation4 + $0x58] sm:$0xff]
    %v2970 = vadd.f32 %v2966, %v2837
    %v2971 = vadd.f32 %v2967, %v2839
    %v2972 = vadd.f32 %v2968, %v2878
    %v2973 = vadd.f32 %v2969, %v2880
    %v2974 = vmul.f32 %v2970, 0.5
    %v2975 = vtanh.pop %v2974
    %v2976 = vmul.f32 %v2975, 0.5
    %v2977 = vadd.f32 %v2976, 0.5
    %v2978 = vmul.f32 %v2971, 0.5
    %v2979 = vtanh.pop %v2978
    %v2980 = vmul.f32 %v2979, 0.5
    %v2981 = vadd.f32 %v2980, 0.5
    %v2982 = vtanh.pop %v2972
    %v2983 = vmul.f32 %v2973, 0.5
    %v2984 = vtanh.pop %v2983
    %v2985 = vmul.f32 %v2984, 0.5
    %v2986 = vadd.f32 %v2985, 0.5
    %v2987 = vmul.f32 %v2981, %v2771
    %v2988 = vmul.f32 %v2977, %v2982
    %v2989 = vadd.f32 %v2987, %v2988
    %v2990 = vtanh.pop %v2989
    %v2991 = vmul.f32 %v2986, %v2990
    %v2992 = vld [vmem:[#allocation5 + $0x40] sm:$0xff]
    %v2993 = vld [vmem:[#allocation5 + $0x48] sm:$0xff]
    %v2994 = vld [vmem:[#allocation5 + $0x50] sm:$0xff]
    %v2995 = vld [vmem:[#allocation5 + $0x58] sm:$0xff]
    %v2996 = vadd.f32 %v2992, %v2919
    %v2997 = vadd.f32 %v2993, %v2921
    %v2998 = vadd.f32 %v2994, %v2960
    %v2999 = vadd.f32 %v2995, %v2962
    %v3000 = vmul.f32 %v2996, 0.5
    %v3001 = vtanh.pop %v3000
    %v3002 = vmul.f32 %v3001, 0.5
    %v3003 = vadd.f32 %v3002, 0.5
    %v3004 = vmul.f32 %v2997, 0.5
    %v3005 = vtanh.pop %v3004
    %v3006 = vmul.f32 %v3005, 0.5
    %v3007 = vadd.f32 %v3006, 0.5
    %v3008 = vtanh.pop %v2998
    %v3009 = vmul.f32 %v2999, 0.5
    %v3010 = vtanh.pop %v3009
    %v3011 = vmul.f32 %v3010, 0.5
    %v3012 = vadd.f32 %v3011, 0.5
    %v3013 = vmul.f32 %v3007, %v2797
    %v3014 = vmul.f32 %v3003, %v3008
    %v3015 = vadd.f32 %v3013, %v3014
    %v3016 = vtanh.pop %v3015
    %v3017 = vmul.f32 %v3012, %v3016
    %v3018 = vpack.c.bf16 %v2991, %v2991
    %v3019 = vpack.c.bf16 %v3017, %v3017
    %3020 = vmatprep.subr.bf16.mxu0 %v2111
    %3021 = vmatpush1.bf16.msra.mxu0 %v2110
    %3022 = vmatprep.subr.bf16.mxu0 %v2119
    %3023 = vmatpush1.bf16.msra.mxu0 %v2118
    %3024 = vmatprep.subr.bf16.mxu0 %v2127
    %3025 = vmatpush1.bf16.msra.mxu0 %v2126
    %3026 = vmatprep.subr.bf16.mxu0 %v2135
    %3027 = vmatpush1.bf16.msra.mxu0 %v2134
    %3028 = vmatprep.subr.bf16.mxu0 %v2143
    %3029 = vmatpush1.bf16.msra.mxu0 %v2142
    %3030 = vmatprep.subr.bf16.mxu0 %v2151
    %3031 = vmatpush1.bf16.msra.mxu0 %v2150
    %3032 = vmatprep.subr.bf16.mxu0 %v2159
    %3033 = vmatpush1.bf16.msra.mxu0 %v2158
    %3034 = vmatprep.subr.bf16.mxu0 %v2167
    %3035 = vmatpush1.bf16.msra.mxu0 %v2166
    %3036 = vmatprep.subr.bf16.mxu0 %v2175
    %3037 = vmatpush1.bf16.msra.mxu0 %v2174
    %3038 = vmatprep.subr.bf16.mxu0 %v2183
    %3039 = vmatpush1.bf16.msra.mxu0 %v2182
    %3040 = vmatprep.subr.bf16.mxu0 %v2191
    %3041 = vmatpush1.bf16.msra.mxu0 %v2190
    %3042 = vmatprep.subr.bf16.mxu0 %v2199
    %3043 = vmatpush1.bf16.msra.mxu0 %v2198
    %3044 = vmatprep.subr.bf16.mxu0 %v2207
    %3045 = vmatpush1.bf16.msra.mxu0 %v2206
    %3046 = vmatprep.subr.bf16.mxu0 %v2215
    %3047 = vmatpush1.bf16.msra.mxu0 %v2214
    %3048 = vmatprep.subr.bf16.mxu0 %v2223
    %3049 = vmatpush1.bf16.msra.mxu0 %v2222
    %3050 = vmatprep.subr.bf16.mxu0 %v2231
    %3051 = vmatpush1.bf16.msra.mxu0 %v2230
    %3052 = vmatprep.mubr.bf16.mxu0 %v3019
    %3053 = vmatmul.mubr.bf16.gmra.mrb[0].mxu0 %v3018
    %v3054 = vpop.f32.mrb[0].mxu0
    %v3055 = vadd.f32 0.0, %v3054
    %v3056 = vpop.f32.mrb[0].mxu0
    %v3057 = vadd.f32 0.0, %v3056
    %v3058 = vpop.f32.mrb[0].mxu0
    %v3059 = vpop.f32.mrb[0].mxu0
    %3060 = vdwg.mxu0
    %3061 = vmatprep.subr.bf16.mxu0 %v2113
    %3062 = vmatpush1.bf16.msra.mxu0 %v2112
    %3063 = vmatprep.subr.bf16.mxu0 %v2121
    %3064 = vmatpush1.bf16.msra.mxu0 %v2120
    %3065 = vmatprep.subr.bf16.mxu0 %v2129
    %3066 = vmatpush1.bf16.msra.mxu0 %v2128
    %3067 = vmatprep.subr.bf16.mxu0 %v2137
    %3068 = vmatpush1.bf16.msra.mxu0 %v2136
    %3069 = vmatprep.subr.bf16.mxu0 %v2145
    %3070 = vmatpush1.bf16.msra.mxu0 %v2144
    %3071 = vmatprep.subr.bf16.mxu0 %v2153
    %3072 = vmatpush1.bf16.msra.mxu0 %v2152
    %3073 = vmatprep.subr.bf16.mxu0 %v2161
    %3074 = vmatpush1.bf16.msra.mxu0 %v2160
    %3075 = vmatprep.subr.bf16.mxu0 %v2169
    %3076 = vmatpush1.bf16.msra.mxu0 %v2168
    %3077 = vmatprep.subr.bf16.mxu0 %v2177
    %3078 = vmatpush1.bf16.msra.mxu0 %v2176
    %3079 = vmatprep.subr.bf16.mxu0 %v2185
    %3080 = vmatpush1.bf16.msra.mxu0 %v2184
    %3081 = vmatprep.subr.bf16.mxu0 %v2193
    %3082 = vmatpush1.bf16.msra.mxu0 %v2192
    %3083 = vmatprep.subr.bf16.mxu0 %v2201
    %3084 = vmatpush1.bf16.msra.mxu0 %v2200
    %3085 = vmatprep.subr.bf16.mxu0 %v2209
    %3086 = vmatpush1.bf16.msra.mxu0 %v2208
    %3087 = vmatprep.subr.bf16.mxu0 %v2217
    %3088 = vmatpush1.bf16.msra.mxu0 %v2216
    %3089 = vmatprep.subr.bf16.mxu0 %v2225
    %3090 = vmatpush1.bf16.msra.mxu0 %v2224
    %3091 = vmatprep.subr.bf16.mxu0 %v2233
    %3092 = vmatpush1.bf16.msra.mxu0 %v2232
    %3093 = vmatprep.mubr.bf16.mxu0 %v3019
    %3094 = vmatmul.mubr.bf16.gmra.mrb[0].mxu0 %v3018
    %v3095 = vpop.f32.mrb[0].mxu0
    %v3096 = vadd.f32 0.0, %v3095
    %v3097 = vpop.f32.mrb[0].mxu0
    %v3098 = vadd.f32 0.0, %v3097
    %v3099 = vpop.f32.mrb[0].mxu0
    %v3100 = vpop.f32.mrb[0].mxu0
    %3101 = vdwg.mxu0
    %3102 = vmatprep.subr.bf16.mxu0 %v2115
    %3103 = vmatpush1.bf16.msra.mxu0 %v2114
    %3104 = vmatprep.subr.bf16.mxu0 %v2123
    %3105 = vmatpush1.bf16.msra.mxu0 %v2122
    %3106 = vmatprep.subr.bf16.mxu0 %v2131
    %3107 = vmatpush1.bf16.msra.mxu0 %v2130
    %3108 = vmatprep.subr.bf16.mxu0 %v2139
    %3109 = vmatpush1.bf16.msra.mxu0 %v2138
    %3110 = vmatprep.subr.bf16.mxu0 %v2147
    %3111 = vmatpush1.bf16.msra.mxu0 %v2146
    %3112 = vmatprep.subr.bf16.mxu0 %v2155
    %3113 = vmatpush1.bf16.msra.mxu0 %v2154
    %3114 = vmatprep.subr.bf16.mxu0 %v2163
    %3115 = vmatpush1.bf16.msra.mxu0 %v2162
    %3116 = vmatprep.subr.bf16.mxu0 %v2171
    %3117 = vmatpush1.bf16.msra.mxu0 %v2170
    %3118 = vmatprep.subr.bf16.mxu0 %v2179
    %3119 = vmatpush1.bf16.msra.mxu0 %v2178
    %3120 = vmatprep.subr.bf16.mxu0 %v2187
    %3121 = vmatpush1.bf16.msra.mxu0 %v2186
    %3122 = vmatprep.subr.bf16.mxu0 %v2195
    %3123 = vmatpush1.bf16.msra.mxu0 %v2194
    %3124 = vmatprep.subr.bf16.mxu0 %v2203
    %3125 = vmatpush1.bf16.msra.mxu0 %v2202
    %3126 = vmatprep.subr.bf16.mxu0 %v2211
    %3127 = vmatpush1.bf16.msra.mxu0 %v2210
    %3128 = vmatprep.subr.bf16.mxu0 %v2219
    %3129 = vmatpush1.bf16.msra.mxu0 %v2218
    %3130 = vmatprep.subr.bf16.mxu0 %v2227
    %3131 = vmatpush1.bf16.msra.mxu0 %v2226
    %3132 = vmatprep.subr.bf16.mxu0 %v2235
    %3133 = vmatpush1.bf16.msra.mxu0 %v2234
    %3134 = vmatprep.mubr.bf16.mxu0 %v3019
    %3135 = vmatmul.mubr.bf16.gmra.mrb[0].mxu0 %v3018
    %v3136 = vpop.f32.mrb[0].mxu0
    %v3137 = vadd.f32 0.0, %v3136
    %v3138 = vpop.f32.mrb[0].mxu0
    %v3139 = vadd.f32 0.0, %v3138
    %v3140 = vpop.f32.mrb[0].mxu0
    %v3141 = vpop.f32.mrb[0].mxu0
    %3142 = vdwg.mxu0
    %3143 = vmatprep.subr.bf16.mxu0 %v2117
    %3144 = vmatpush1.bf16.msra.mxu0 %v2116
    %3145 = vmatprep.subr.bf16.mxu0 %v2125
    %3146 = vmatpush1.bf16.msra.mxu0 %v2124
    %3147 = vmatprep.subr.bf16.mxu0 %v2133
    %3148 = vmatpush1.bf16.msra.mxu0 %v2132
    %3149 = vmatprep.subr.bf16.mxu0 %v2141
    %3150 = vmatpush1.bf16.msra.mxu0 %v2140
    %3151 = vmatprep.subr.bf16.mxu0 %v2149
    %3152 = vmatpush1.bf16.msra.mxu0 %v2148
    %3153 = vmatprep.subr.bf16.mxu0 %v2157
    %3154 = vmatpush1.bf16.msra.mxu0 %v2156
    %3155 = vmatprep.subr.bf16.mxu0 %v2165
    %3156 = vmatpush1.bf16.msra.mxu0 %v2164
    %3157 = vmatprep.subr.bf16.mxu0 %v2173
    %3158 = vmatpush1.bf16.msra.mxu0 %v2172
    %3159 = vmatprep.subr.bf16.mxu0 %v2181
    %3160 = vmatpush1.bf16.msra.mxu0 %v2180
    %3161 = vmatprep.subr.bf16.mxu0 %v2189
    %3162 = vmatpush1.bf16.msra.mxu0 %v2188
    %3163 = vmatprep.subr.bf16.mxu0 %v2197
    %3164 = vmatpush1.bf16.msra.mxu0 %v2196
    %3165 = vmatprep.subr.bf16.mxu0 %v2205
    %3166 = vmatpush1.bf16.msra.mxu0 %v2204
    %3167 = vmatprep.subr.bf16.mxu0 %v2213
    %3168 = vmatpush1.bf16.msra.mxu0 %v2212
    %3169 = vmatprep.subr.bf16.mxu0 %v2221
    %3170 = vmatpush1.bf16.msra.mxu0 %v2220
    %3171 = vmatprep.subr.bf16.mxu0 %v2229
    %3172 = vmatpush1.bf16.msra.mxu0 %v2228
    %3173 = vmatprep.subr.bf16.mxu0 %v2237
    %3174 = vmatpush1.bf16.msra.mxu0 %v2236
    %3175 = vmatprep.mubr.bf16.mxu0 %v3019
    %3176 = vmatmul.mubr.bf16.gmra.mrb[0].mxu0 %v3018
    %v3177 = vpop.f32.mrb[0].mxu0
    %v3178 = vadd.f32 0.0, %v3177
    %v3179 = vpop.f32.mrb[0].mxu0
    %v3180 = vadd.f32 0.0, %v3179
    %v3181 = vpop.f32.mrb[0].mxu0
    %v3182 = vpop.f32.mrb[0].mxu0
    %3183 = vdwg.mxu0
    %v3184 = vld [vmem:[#allocation4 + $0x60] sm:$0xff]
    %v3185 = vld [vmem:[#allocation4 + $0x68] sm:$0xff]
    %v3186 = vld [vmem:[#allocation4 + $0x70] sm:$0xff]
    %v3187 = vld [vmem:[#allocation4 + $0x78] sm:$0xff]
    %v3188 = vadd.f32 %v3184, %v3055
    %v3189 = vadd.f32 %v3185, %v3057
    %v3190 = vadd.f32 %v3186, %v3096
    %v3191 = vadd.f32 %v3187, %v3098
    %v3192 = vmul.f32 %v3188, 0.5
    %v3193 = vtanh.pop %v3192
    %v3194 = vmul.f32 %v3193, 0.5
    %v3195 = vadd.f32 %v3194, 0.5
    %v3196 = vmul.f32 %v3189, 0.5
    %v3197 = vtanh.pop %v3196
    %v3198 = vmul.f32 %v3197, 0.5
    %v3199 = vadd.f32 %v3198, 0.5
    %v3200 = vtanh.pop %v3190
    %v3201 = vmul.f32 %v3191, 0.5
    %v3202 = vtanh.pop %v3201
    %v3203 = vmul.f32 %v3202, 0.5
    %v3204 = vadd.f32 %v3203, 0.5
    %v3205 = vmul.f32 %v3199, %v2989
    %v3206 = vmul.f32 %v3195, %v3200
    %v3207 = vadd.f32 %v3205, %v3206
    %v3208 = vtanh.pop %v3207
    %v3209 = vmul.f32 %v3204, %v3208
    %v3210 = vld [vmem:[#allocation5 + $0x60] sm:$0xff]
    %v3211 = vld [vmem:[#allocation5 + $0x68] sm:$0xff]
    %v3212 = vld [vmem:[#allocation5 + $0x70] sm:$0xff]
    %v3213 = vld [vmem:[#allocation5 + $0x78] sm:$0xff]
    %v3214 = vadd.f32 %v3210, %v3137
    %v3215 = vadd.f32 %v3211, %v3139
    %v3216 = vadd.f32 %v3212, %v3178
    %v3217 = vadd.f32 %v3213, %v3180
    %v3218 = vmul.f32 %v3214, 0.5
    %v3219 = vtanh.pop %v3218
    %v3220 = vmul.f32 %v3219, 0.5
    %v3221 = vadd.f32 %v3220, 0.5
    %v3222 = vmul.f32 %v3215, 0.5
    %v3223 = vtanh.pop %v3222
    %v3224 = vmul.f32 %v3223, 0.5
    %v3225 = vadd.f32 %v3224, 0.5
    %v3226 = vtanh.pop %v3216
    %v3227 = vmul.f32 %v3217, 0.5
    %v3228 = vtanh.pop %v3227
    %v3229 = vmul.f32 %v3228, 0.5
    %v3230 = vadd.f32 %v3229, 0.5
    %v3231 = vmul.f32 %v3225, %v3015
    %v3232 = vmul.f32 %v3221, %v3226
    %v3233 = vadd.f32 %v3231, %v3232
    %v3234 = vtanh.pop %v3233
    %v3235 = vmul.f32 %v3230, %v3234
    %v3236 = vpack.c.bf16 %v3209, %v3209
    %v3237 = vpack.c.bf16 %v3235, %v3235
    %3238 = vmatprep.subr.bf16.mxu0 %v2111
    %3239 = vmatpush1.bf16.msra.mxu0 %v2110
    %3240 = vmatprep.subr.bf16.mxu0 %v2119
    %3241 = vmatpush1.bf16.msra.mxu0 %v2118
    %3242 = vmatprep.subr.bf16.mxu0 %v2127
    %3243 = vmatpush1.bf16.msra.mxu0 %v2126
    %3244 = vmatprep.subr.bf16.mxu0 %v2135
    %3245 = vmatpush1.bf16.msra.mxu0 %v2134
    %3246 = vmatprep.subr.bf16.mxu0 %v2143
    %3247 = vmatpush1.bf16.msra.mxu0 %v2142
    %3248 = vmatprep.subr.bf16.mxu0 %v2151
    %3249 = vmatpush1.bf16.msra.mxu0 %v2150
    %3250 = vmatprep.subr.bf16.mxu0 %v2159
    %3251 = vmatpush1.bf16.msra.mxu0 %v2158
    %3252 = vmatprep.subr.bf16.mxu0 %v2167
    %3253 = vmatpush1.bf16.msra.mxu0 %v2166
    %3254 = vmatprep.subr.bf16.mxu0 %v2175
    %3255 = vmatpush1.bf16.msra.mxu0 %v2174
    %3256 = vmatprep.subr.bf16.mxu0 %v2183
    %3257 = vmatpush1.bf16.msra.mxu0 %v2182
    %3258 = vmatprep.subr.bf16.mxu0 %v2191
    %3259 = vmatpush1.bf16.msra.mxu0 %v2190
    %3260 = vmatprep.subr.bf16.mxu0 %v2199
    %3261 = vmatpush1.bf16.msra.mxu0 %v2198
    %3262 = vmatprep.subr.bf16.mxu0 %v2207
    %3263 = vmatpush1.bf16.msra.mxu0 %v2206
    %3264 = vmatprep.subr.bf16.mxu0 %v2215
    %3265 = vmatpush1.bf16.msra.mxu0 %v2214
    %3266 = vmatprep.subr.bf16.mxu0 %v2223
    %3267 = vmatpush1.bf16.msra.mxu0 %v2222
    %3268 = vmatprep.subr.bf16.mxu0 %v2231
    %3269 = vmatpush1.bf16.msra.mxu0 %v2230
    %3270 = vmatprep.mubr.bf16.mxu0 %v3237
    %3271 = vmatmul.mubr.bf16.gmra.mrb[0].mxu0 %v3236
    %v3272 = vpop.f32.mrb[0].mxu0
    %v3273 = vadd.f32 0.0, %v3272
    %v3274 = vpop.f32.mrb[0].mxu0
    %v3275 = vadd.f32 0.0, %v3274
    %v3276 = vpop.f32.mrb[0].mxu0
    %v3277 = vpop.f32.mrb[0].mxu0
    %3278 = vdwg.mxu0
    %3279 = vmatprep.subr.bf16.mxu0 %v2113
    %3280 = vmatpush1.bf16.msra.mxu0 %v2112
    %3281 = vmatprep.subr.bf16.mxu0 %v2121
    %3282 = vmatpush1.bf16.msra.mxu0 %v2120
    %3283 = vmatprep.subr.bf16.mxu0 %v2129
    %3284 = vmatpush1.bf16.msra.mxu0 %v2128
    %3285 = vmatprep.subr.bf16.mxu0 %v2137
    %3286 = vmatpush1.bf16.msra.mxu0 %v2136
    %3287 = vmatprep.subr.bf16.mxu0 %v2145
    %3288 = vmatpush1.bf16.msra.mxu0 %v2144
    %3289 = vmatprep.subr.bf16.mxu0 %v2153
    %3290 = vmatpush1.bf16.msra.mxu0 %v2152
    %3291 = vmatprep.subr.bf16.mxu0 %v2161
    %3292 = vmatpush1.bf16.msra.mxu0 %v2160
    %3293 = vmatprep.subr.bf16.mxu0 %v2169
    %3294 = vmatpush1.bf16.msra.mxu0 %v2168
    %3295 = vmatprep.subr.bf16.mxu0 %v2177
    %3296 = vmatpush1.bf16.msra.mxu0 %v2176
    %3297 = vmatprep.subr.bf16.mxu0 %v2185
    %3298 = vmatpush1.bf16.msra.mxu0 %v2184
    %3299 = vmatprep.subr.bf16.mxu0 %v2193
    %3300 = vmatpush1.bf16.msra.mxu0 %v2192
    %3301 = vmatprep.subr.bf16.mxu0 %v2201
    %3302 = vmatpush1.bf16.msra.mxu0 %v2200
    %3303 = vmatprep.subr.bf16.mxu0 %v2209
    %3304 = vmatpush1.bf16.msra.mxu0 %v2208
    %3305 = vmatprep.subr.bf16.mxu0 %v2217
    %3306 = vmatpush1.bf16.msra.mxu0 %v2216
    %3307 = vmatprep.subr.bf16.mxu0 %v2225
    %3308 = vmatpush1.bf16.msra.mxu0 %v2224
    %3309 = vmatprep.subr.bf16.mxu0 %v2233
    %3310 = vmatpush1.bf16.msra.mxu0 %v2232
    %3311 = vmatprep.mubr.bf16.mxu0 %v3237
    %3312 = vmatmul.mubr.bf16.gmra.mrb[0].mxu0 %v3236
    %v3313 = vpop.f32.mrb[0].mxu0
    %v3314 = vadd.f32 0.0, %v3313
    %v3315 = vpop.f32.mrb[0].mxu0
    %v3316 = vadd.f32 0.0, %v3315
    %v3317 = vpop.f32.mrb[0].mxu0
    %v3318 = vpop.f32.mrb[0].mxu0
    %3319 = vdwg.mxu0
    %3320 = vmatprep.subr.bf16.mxu0 %v2115
    %3321 = vmatpush1.bf16.msra.mxu0 %v2114
    %3322 = vmatprep.subr.bf16.mxu0 %v2123
    %3323 = vmatpush1.bf16.msra.mxu0 %v2122
    %3324 = vmatprep.subr.bf16.mxu0 %v2131
    %3325 = vmatpush1.bf16.msra.mxu0 %v2130
    %3326 = vmatprep.subr.bf16.mxu0 %v2139
    %3327 = vmatpush1.bf16.msra.mxu0 %v2138
    %3328 = vmatprep.subr.bf16.mxu0 %v2147
    %3329 = vmatpush1.bf16.msra.mxu0 %v2146
    %3330 = vmatprep.subr.bf16.mxu0 %v2155
    %3331 = vmatpush1.bf16.msra.mxu0 %v2154
    %3332 = vmatprep.subr.bf16.mxu0 %v2163
    %3333 = vmatpush1.bf16.msra.mxu0 %v2162
    %3334 = vmatprep.subr.bf16.mxu0 %v2171
    %3335 = vmatpush1.bf16.msra.mxu0 %v2170
    %3336 = vmatprep.subr.bf16.mxu0 %v2179
    %3337 = vmatpush1.bf16.msra.mxu0 %v2178
    %3338 = vmatprep.subr.bf16.mxu0 %v2187
    %3339 = vmatpush1.bf16.msra.mxu0 %v2186
    %3340 = vmatprep.subr.bf16.mxu0 %v2195
    %3341 = vmatpush1.bf16.msra.mxu0 %v2194
    %3342 = vmatprep.subr.bf16.mxu0 %v2203
    %3343 = vmatpush1.bf16.msra.mxu0 %v2202
    %3344 = vmatprep.subr.bf16.mxu0 %v2211
    %3345 = vmatpush1.bf16.msra.mxu0 %v2210
    %3346 = vmatprep.subr.bf16.mxu0 %v2219
    %3347 = vmatpush1.bf16.msra.mxu0 %v2218
    %3348 = vmatprep.subr.bf16.mxu0 %v2227
    %3349 = vmatpush1.bf16.msra.mxu0 %v2226
    %3350 = vmatprep.subr.bf16.mxu0 %v2235
    %3351 = vmatpush1.bf16.msra.mxu0 %v2234
    %3352 = vmatprep.mubr.bf16.mxu0 %v3237
    %3353 = vmatmul.mubr.bf16.gmra.mrb[0].mxu0 %v3236
    %v3354 = vpop.f32.mrb[0].mxu0
    %v3355 = vadd.f32 0.0, %v3354
    %v3356 = vpop.f32.mrb[0].mxu0
    %v3357 = vadd.f32 0.0, %v3356
    %v3358 = vpop.f32.mrb[0].mxu0
    %v3359 = vpop.f32.mrb[0].mxu0
    %3360 = vdwg.mxu0
    %3361 = vmatprep.subr.bf16.mxu0 %v2117
    %3362 = vmatpush1.bf16.msra.mxu0 %v2116
    %3363 = vmatprep.subr.bf16.mxu0 %v2125
    %3364 = vmatpush1.bf16.msra.mxu0 %v2124
    %3365 = vmatprep.subr.bf16.mxu0 %v2133
    %3366 = vmatpush1.bf16.msra.mxu0 %v2132
    %3367 = vmatprep.subr.bf16.mxu0 %v2141
    %3368 = vmatpush1.bf16.msra.mxu0 %v2140
    %3369 = vmatprep.subr.bf16.mxu0 %v2149
    %3370 = vmatpush1.bf16.msra.mxu0 %v2148
    %3371 = vmatprep.subr.bf16.mxu0 %v2157
    %3372 = vmatpush1.bf16.msra.mxu0 %v2156
    %3373 = vmatprep.subr.bf16.mxu0 %v2165
    %3374 = vmatpush1.bf16.msra.mxu0 %v2164
    %3375 = vmatprep.subr.bf16.mxu0 %v2173
    %3376 = vmatpush1.bf16.msra.mxu0 %v2172
    %3377 = vmatprep.subr.bf16.mxu0 %v2181
    %3378 = vmatpush1.bf16.msra.mxu0 %v2180
    %3379 = vmatprep.subr.bf16.mxu0 %v2189
    %3380 = vmatpush1.bf16.msra.mxu0 %v2188
    %3381 = vmatprep.subr.bf16.mxu0 %v2197
    %3382 = vmatpush1.bf16.msra.mxu0 %v2196
    %3383 = vmatprep.subr.bf16.mxu0 %v2205
    %3384 = vmatpush1.bf16.msra.mxu0 %v2204
    %3385 = vmatprep.subr.bf16.mxu0 %v2213
    %3386 = vmatpush1.bf16.msra.mxu0 %v2212
    %3387 = vmatprep.subr.bf16.mxu0 %v2221
    %3388 = vmatpush1.bf16.msra.mxu0 %v2220
    %3389 = vmatprep.subr.bf16.mxu0 %v2229
    %3390 = vmatpush1.bf16.msra.mxu0 %v2228
    %3391 = vmatprep.subr.bf16.mxu0 %v2237
    %3392 = vmatpush1.bf16.msra.mxu0 %v2236
    %3393 = vmatprep.mubr.bf16.mxu0 %v3237
    %3394 = vmatmul.mubr.bf16.gmra.mrb[0].mxu0 %v3236
    %v3395 = vpop.f32.mrb[0].mxu0
    %v3396 = vadd.f32 0.0, %v3395
    %v3397 = vpop.f32.mrb[0].mxu0
    %v3398 = vadd.f32 0.0, %v3397
    %v3399 = vpop.f32.mrb[0].mxu0
    %v3400 = vpop.f32.mrb[0].mxu0
    %3401 = vdwg.mxu0
    %v3402 = vld [vmem:[#allocation4 + $0x80] sm:$0xff]
    %v3403 = vld [vmem:[#allocation4 + $0x88] sm:$0xff]
    %v3404 = vld [vmem:[#allocation4 + $0x90] sm:$0xff]
    %v3405 = vld [vmem:[#allocation4 + $0x98] sm:$0xff]
    %v3406 = vadd.f32 %v3402, %v3273
    %v3407 = vadd.f32 %v3403, %v3275
    %v3408 = vadd.f32 %v3404, %v3314
    %v3409 = vadd.f32 %v3405, %v3316
    %v3410 = vmul.f32 %v3406, 0.5
    %v3411 = vtanh.pop %v3410
    %v3412 = vmul.f32 %v3411, 0.5
    %v3413 = vadd.f32 %v3412, 0.5
    %v3414 = vmul.f32 %v3407, 0.5
    %v3415 = vtanh.pop %v3414
    %v3416 = vmul.f32 %v3415, 0.5
    %v3417 = vadd.f32 %v3416, 0.5
    %v3418 = vtanh.pop %v3408
    %v3419 = vmul.f32 %v3409, 0.5
    %v3420 = vtanh.pop %v3419
    %v3421 = vmul.f32 %v3420, 0.5
    %v3422 = vadd.f32 %v3421, 0.5
    %v3423 = vmul.f32 %v3417, %v3207
    %v3424 = vmul.f32 %v3413, %v3418
    %v3425 = vadd.f32 %v3423, %v3424
    %v3426 = vtanh.pop %v3425
    %v3427 = vmul.f32 %v3422, %v3426
    %v3428 = vld [vmem:[#allocation5 + $0x80] sm:$0xff]
    %v3429 = vld [vmem:[#allocation5 + $0x88] sm:$0xff]
    %v3430 = vld [vmem:[#allocation5 + $0x90] sm:$0xff]
    %v3431 = vld [vmem:[#allocation5 + $0x98] sm:$0xff]
    %v3432 = vadd.f32 %v3428, %v3355
    %v3433 = vadd.f32 %v3429, %v3357
    %v3434 = vadd.f32 %v3430, %v3396
    %v3435 = vadd.f32 %v3431, %v3398
    %v3436 = vmul.f32 %v3432, 0.5
    %v3437 = vtanh.pop %v3436
    %v3438 = vmul.f32 %v3437, 0.5
    %v3439 = vadd.f32 %v3438, 0.5
    %v3440 = vmul.f32 %v3433, 0.5
    %v3441 = vtanh.pop %v3440
    %v3442 = vmul.f32 %v3441, 0.5
    %v3443 = vadd.f32 %v3442, 0.5
    %v3444 = vtanh.pop %v3434
    %v3445 = vmul.f32 %v3435, 0.5
    %v3446 = vtanh.pop %v3445
    %v3447 = vmul.f32 %v3446, 0.5
    %v3448 = vadd.f32 %v3447, 0.5
    %v3449 = vmul.f32 %v3443, %v3233
    %v3450 = vmul.f32 %v3439, %v3444
    %v3451 = vadd.f32 %v3449, %v3450
    %v3452 = vtanh.pop %v3451
    %v3453 = vmul.f32 %v3448, %v3452
    %v3454 = vld [vmem:[#allocation4 + $0xa0] sm:$0xff]
    %v3455 = vld [vmem:[#allocation4 + $0xa8] sm:$0xff]
    %v3456 = vld [vmem:[#allocation4 + $0xb0] sm:$0xff]
    %v3457 = vld [vmem:[#allocation4 + $0xb8] sm:$0xff]
    %v3458 = vld [vmem:[#allocation16] sm:$0xff]
    %v3459 = vld [vmem:[#allocation16 + $0x8] sm:$0xff]
    %v3460 = vld [vmem:[#allocation16 + $0x20] sm:$0xff]
    %v3461 = vld [vmem:[#allocation16 + $0x28] sm:$0xff]
    %v3462 = vld [vmem:[#allocation16 + $0x40] sm:$0xff]
    %v3463 = vld [vmem:[#allocation16 + $0x48] sm:$0xff]
    %v3464 = vld [vmem:[#allocation16 + $0x60] sm:$0xff]
    %v3465 = vld [vmem:[#allocation16 + $0x68] sm:$0xff]
    %v3466 = vld [vmem:[#allocation16 + $0x80] sm:$0xff]
    %v3467 = vld [vmem:[#allocation16 + $0x88] sm:$0xff]
    %v3468 = vld [vmem:[#allocation16 + $0xa0] sm:$0xff]
    %v3469 = vld [vmem:[#allocation16 + $0xa8] sm:$0xff]
    %v3470 = vld [vmem:[#allocation16 + $0xc0] sm:$0xff]
    %v3471 = vld [vmem:[#allocation16 + $0xc8] sm:$0xff]
    %v3472 = vld [vmem:[#allocation16 + $0xe0] sm:$0xff]
    %v3473 = vld [vmem:[#allocation16 + $0xe8] sm:$0xff]
    %v3474 = vld [vmem:[#allocation16 + $0x100] sm:$0xff]
    %v3475 = vld [vmem:[#allocation16 + $0x108] sm:$0xff]
    %v3476 = vld [vmem:[#allocation16 + $0x120] sm:$0xff]
    %v3477 = vld [vmem:[#allocation16 + $0x128] sm:$0xff]
    %v3478 = vld [vmem:[#allocation16 + $0x140] sm:$0xff]
    %v3479 = vld [vmem:[#allocation16 + $0x148] sm:$0xff]
    %v3480 = vld [vmem:[#allocation16 + $0x160] sm:$0xff]
    %v3481 = vld [vmem:[#allocation16 + $0x168] sm:$0xff]
    %v3482 = vld [vmem:[#allocation16 + $0x180] sm:$0xff]
    %v3483 = vld [vmem:[#allocation16 + $0x188] sm:$0xff]
    %v3484 = vld [vmem:[#allocation16 + $0x1a0] sm:$0xff]
    %v3485 = vld [vmem:[#allocation16 + $0x1a8] sm:$0xff]
    %v3486 = vld [vmem:[#allocation16 + $0x1c0] sm:$0xff]
    %v3487 = vld [vmem:[#allocation16 + $0x1c8] sm:$0xff]
    %v3488 = vld [vmem:[#allocation16 + $0x1e0] sm:$0xff]
    %v3489 = vld [vmem:[#allocation16 + $0x1e8] sm:$0xff]
    %v3490 = vpack.c.bf16 %v3427, %v3427
    %v3523 = vunpack.c.l.b16 %v3458
    %v3524 = vunpack.c.h.b16 %v3458
    %v3525 = vunpack.c.l.b16 %v3459
    %v3526 = vunpack.c.h.b16 %v3459
    %v3527 = vunpack.c.l.b16 %v3460
    %v3528 = vunpack.c.h.b16 %v3460
    %v3529 = vunpack.c.l.b16 %v3461
    %v3530 = vunpack.c.h.b16 %v3461
    %v3531 = vunpack.c.l.b16 %v3462
    %v3532 = vunpack.c.h.b16 %v3462
    %v3533 = vunpack.c.l.b16 %v3463
    %v3534 = vunpack.c.h.b16 %v3463
    %v3535 = vunpack.c.l.b16 %v3464
    %v3536 = vunpack.c.h.b16 %v3464
    %v3537 = vunpack.c.l.b16 %v3465
    %v3538 = vunpack.c.h.b16 %v3465
    %v3539 = vunpack.c.l.b16 %v3466
    %v3540 = vunpack.c.h.b16 %v3466
    %v3541 = vunpack.c.l.b16 %v3467
    %v3542 = vunpack.c.h.b16 %v3467
    %v3543 = vunpack.c.l.b16 %v3468
    %v3544 = vunpack.c.h.b16 %v3468
    %v3545 = vunpack.c.l.b16 %v3469
    %v3546 = vunpack.c.h.b16 %v3469
    %v3547 = vunpack.c.l.b16 %v3470
    %v3548 = vunpack.c.h.b16 %v3470
    %v3549 = vunpack.c.l.b16 %v3471
    %v3550 = vunpack.c.h.b16 %v3471
    %v3551 = vunpack.c.l.b16 %v3472
    %v3552 = vunpack.c.h.b16 %v3472
    %v3553 = vunpack.c.l.b16 %v3473
    %v3554 = vunpack.c.h.b16 %v3473
    %v3555 = vunpack.c.l.b16 %v3474
    %v3556 = vunpack.c.h.b16 %v3474
    %v3557 = vunpack.c.l.b16 %v3475
    %v3558 = vunpack.c.h.b16 %v3475
    %v3559 = vunpack.c.l.b16 %v3476
    %v3560 = vunpack.c.h.b16 %v3476
    %v3561 = vunpack.c.l.b16 %v3477
    %v3562 = vunpack.c.h.b16 %v3477
    %v3563 = vunpack.c.l.b16 %v3478
    %v3564 = vunpack.c.h.b16 %v3478
    %v3565 = vunpack.c.l.b16 %v3479
    %v3566 = vunpack.c.h.b16 %v3479
    %v3567 = vunpack.c.l.b16 %v3480
    %v3568 = vunpack.c.h.b16 %v3480
    %v3569 = vunpack.c.l.b16 %v3481
    %v3570 = vunpack.c.h.b16 %v3481
    %v3571 = vunpack.c.l.b16 %v3482
    %v3572 = vunpack.c.h.b16 %v3482
    %v3573 = vunpack.c.l.b16 %v3483
    %v3574 = vunpack.c.h.b16 %v3483
    %v3575 = vunpack.c.l.b16 %v3484
    %v3576 = vunpack.c.h.b16 %v3484
    %v3577 = vunpack.c.l.b16 %v3485
    %v3578 = vunpack.c.h.b16 %v3485
    %v3579 = vunpack.c.l.b16 %v3486
    %v3580 = vunpack.c.h.b16 %v3486
    %v3581 = vunpack.c.l.b16 %v3487
    %v3582 = vunpack.c.h.b16 %v3487
    %v3583 = vunpack.c.l.b16 %v3488
    %v3584 = vunpack.c.h.b16 %v3488
    %v3585 = vunpack.c.l.b16 %v3489
    %v3586 = vunpack.c.h.b16 %v3489
    %v3587 = vpack.c.b16 %v3527, %v3523
    %v3588 = vpack.c.b16 %v3528, %v3524
    %v3589 = vpack.c.b16 %v3529, %v3525
    %v3590 = vpack.c.b16 %v3530, %v3526
    %v3591 = vpack.c.b16 %v3535, %v3531
    %v3592 = vpack.c.b16 %v3536, %v3532
    %v3593 = vpack.c.b16 %v3537, %v3533
    %v3594 = vpack.c.b16 %v3538, %v3534
    %v3595 = vpack.c.b16 %v3543, %v3539
    %v3596 = vpack.c.b16 %v3544, %v3540
    %v3597 = vpack.c.b16 %v3545, %v3541
    %v3598 = vpack.c.b16 %v3546, %v3542
    %v3599 = vpack.c.b16 %v3551, %v3547
    %v3600 = vpack.c.b16 %v3552, %v3548
    %v3601 = vpack.c.b16 %v3553, %v3549
    %v3602 = vpack.c.b16 %v3554, %v3550
    %v3603 = vpack.c.b16 %v3559, %v3555
    %v3604 = vpack.c.b16 %v3560, %v3556
    %v3605 = vpack.c.b16 %v3561, %v3557
    %v3606 = vpack.c.b16 %v3562, %v3558
    %v3607 = vpack.c.b16 %v3567, %v3563
    %v3608 = vpack.c.b16 %v3568, %v3564
    %v3609 = vpack.c.b16 %v3569, %v3565
    %v3610 = vpack.c.b16 %v3570, %v3566
    %v3611 = vpack.c.b16 %v3575, %v3571
    %v3612 = vpack.c.b16 %v3576, %v3572
    %v3613 = vpack.c.b16 %v3577, %v3573
    %v3614 = vpack.c.b16 %v3578, %v3574
    %v3615 = vpack.c.b16 %v3583, %v3579
    %v3616 = vpack.c.b16 %v3584, %v3580
    %v3617 = vpack.c.b16 %v3585, %v3581
    %v3618 = vpack.c.b16 %v3586, %v3582
    %3651 = vmatprep.subr.bf16.mxu0 %v3588
    %3652 = vmatpush1.bf16.msra.mxu0 %v3587
    %3653 = vmatprep.subr.bf16.mxu0 %v3592
    %3654 = vmatpush1.bf16.msra.mxu0 %v3591
    %3655 = vmatprep.subr.bf16.mxu0 %v3596
    %3656 = vmatpush1.bf16.msra.mxu0 %v3595
    %3657 = vmatprep.subr.bf16.mxu0 %v3600
    %3658 = vmatpush1.bf16.msra.mxu0 %v3599
    %3659 = vmatprep.subr.bf16.mxu0 %v3604
    %3660 = vmatpush1.bf16.msra.mxu0 %v3603
    %3661 = vmatprep.subr.bf16.mxu0 %v3608
    %3662 = vmatpush1.bf16.msra.mxu0 %v3607
    %3663 = vmatprep.subr.bf16.mxu0 %v3612
    %3664 = vmatpush1.bf16.msra.mxu0 %v3611
    %3665 = vmatprep.subr.bf16.mxu0 %v3616
    %3666 = vmatpush1.bf16.msra.mxu0 %v3615
    %3667 = vmatprep.subr.bf16.mxu0 0
    %3668 = vmatpush1.bf16.msra.mxu0 0
    %3669 = vmatprep.subr.bf16.mxu0 0
    %3670 = vmatpush1.bf16.msra.mxu0 0
    %3671 = vmatprep.subr.bf16.mxu0 0
    %3672 = vmatpush1.bf16.msra.mxu0 0
    %3673 = vmatprep.subr.bf16.mxu0 0
    %3674 = vmatpush1.bf16.msra.mxu0 0
    %3675 = vmatprep.subr.bf16.mxu0 0
    %3676 = vmatpush1.bf16.msra.mxu0 0
    %3677 = vmatprep.subr.bf16.mxu0 0
    %3678 = vmatpush1.bf16.msra.mxu0 0
    %3679 = vmatprep.subr.bf16.mxu0 0
    %3680 = vmatpush1.bf16.msra.mxu0 0
    %3681 = vmatprep.subr.bf16.mxu0 0
    %3682 = vmatpush1.bf16.msra.mxu0 0
    %3683 = vmatprep.mubr.bf16.mxu0 0
    %3684 = vmatmul.mubr.bf16.gmra.mrb[0].mxu0 %v3490
    %v3685 = vpop.f32.mrb[0].mxu0
    %v3686 = vadd.f32 0.0, %v3685
    %v3687 = vpop.f32.mrb[0].mxu0
    %v3688 = vadd.f32 0.0, %v3687
    %v3689 = vpop.f32.mrb[0].mxu0
    %v3690 = vpop.f32.mrb[0].mxu0
    %3691 = vdwg.mxu0
    %3692 = vmatprep.subr.bf16.mxu0 %v3590
    %3693 = vmatpush1.bf16.msra.mxu0 %v3589
    %3694 = vmatprep.subr.bf16.mxu0 %v3594
    %3695 = vmatpush1.bf16.msra.mxu0 %v3593
    %3696 = vmatprep.subr.bf16.mxu0 %v3598
    %3697 = vmatpush1.bf16.msra.mxu0 %v3597
    %3698 = vmatprep.subr.bf16.mxu0 %v3602
    %3699 = vmatpush1.bf16.msra.mxu0 %v3601
    %3700 = vmatprep.subr.bf16.mxu0 %v3606
    %3701 = vmatpush1.bf16.msra.mxu0 %v3605
    %3702 = vmatprep.subr.bf16.mxu0 %v3610
    %3703 = vmatpush1.bf16.msra.mxu0 %v3609
    %3704 = vmatprep.subr.bf16.mxu0 %v3614
    %3705 = vmatpush1.bf16.msra.mxu0 %v3613
    %3706 = vmatprep.subr.bf16.mxu0 %v3618
    %3707 = vmatpush1.bf16.msra.mxu0 %v3617
    %3708 = vmatprep.subr.bf16.mxu0 0
    %3709 = vmatpush1.bf16.msra.mxu0 0
    %3710 = vmatprep.subr.bf16.mxu0 0
    %3711 = vmatpush1.bf16.msra.mxu0 0
    %3712 = vmatprep.subr.bf16.mxu0 0
    %3713 = vmatpush1.bf16.msra.mxu0 0
    %3714 = vmatprep.subr.bf16.mxu0 0
    %3715 = vmatpush1.bf16.msra.mxu0 0
    %3716 = vmatprep.subr.bf16.mxu0 0
    %3717 = vmatpush1.bf16.msra.mxu0 0
    %3718 = vmatprep.subr.bf16.mxu0 0
    %3719 = vmatpush1.bf16.msra.mxu0 0
    %3720 = vmatprep.subr.bf16.mxu0 0
    %3721 = vmatpush1.bf16.msra.mxu0 0
    %3722 = vmatprep.subr.bf16.mxu0 0
    %3723 = vmatpush1.bf16.msra.mxu0 0
    %3724 = vmatprep.mubr.bf16.mxu0 0
    %3725 = vmatmul.mubr.bf16.gmra.mrb[0].mxu0 %v3490
    %v3726 = vpop.f32.mrb[0].mxu0
    %v3727 = vadd.f32 0.0, %v3726
    %v3728 = vpop.f32.mrb[0].mxu0
    %v3729 = vadd.f32 0.0, %v3728
    %v3730 = vpop.f32.mrb[0].mxu0
    %v3731 = vpop.f32.mrb[0].mxu0
    %3732 = vdwg.mxu0
    %v3733 = vadd.f32 %v3454, %v3686
    %v3734 = vadd.f32 %v3455, %v3688
    %v3735 = vadd.f32 %v3456, %v3727
    %v3736 = vadd.f32 %v3457, %v3729
    %v3737 = vmul.f32 %v3733, 0.5
    %v3738 = vtanh.pop %v3737
    %v3739 = vmul.f32 %v3738, 0.5
    %v3740 = vadd.f32 %v3739, 0.5
    %v3741 = vmul.f32 %v3734, 0.5
    %v3742 = vtanh.pop %v3741
    %v3743 = vmul.f32 %v3742, 0.5
    %v3744 = vadd.f32 %v3743, 0.5
    %v3745 = vtanh.pop %v3735
    %v3746 = vmul.f32 %v3736, 0.5
    %v3747 = vtanh.pop %v3746
    %v3748 = vmul.f32 %v3747, 0.5
    %v3749 = vadd.f32 %v3748, 0.5
    %v3750 = vmul.f32 %v3744, %v3425
    %v3751 = vmul.f32 %v3740, %v3745
    %v3752 = vadd.f32 %v3750, %v3751
    %v3753 = vtanh.pop %v3752
    %v3754 = vmul.f32 %v3749, %v3753
    %v3755 = vld [vmem:[#allocation4 + $0xc0] sm:$0xff]
    %v3756 = vld [vmem:[#allocation4 + $0xc8] sm:$0xff]
    %v3757 = vld [vmem:[#allocation4 + $0xd0] sm:$0xff]
    %v3758 = vld [vmem:[#allocation4 + $0xd8] sm:$0xff]
    %v3759 = vpack.c.bf16 %v3754, %v3754
    %3760 = vmatprep.subr.bf16.mxu0 %v3588
    %3761 = vmatpush1.bf16.msra.mxu0 %v3587
    %3762 = vmatprep.subr.bf16.mxu0 %v3592
    %3763 = vmatpush1.bf16.msra.mxu0 %v3591
    %3764 = vmatprep.subr.bf16.mxu0 %v3596
    %3765 = vmatpush1.bf16.msra.mxu0 %v3595
    %3766 = vmatprep.subr.bf16.mxu0 %v3600
    %3767 = vmatpush1.bf16.msra.mxu0 %v3599
    %3768 = vmatprep.subr.bf16.mxu0 %v3604
    %3769 = vmatpush1.bf16.msra.mxu0 %v3603
    %3770 = vmatprep.subr.bf16.mxu0 %v3608
    %3771 = vmatpush1.bf16.msra.mxu0 %v3607
    %3772 = vmatprep.subr.bf16.mxu0 %v3612
    %3773 = vmatpush1.bf16.msra.mxu0 %v3611
    %3774 = vmatprep.subr.bf16.mxu0 %v3616
    %3775 = vmatpush1.bf16.msra.mxu0 %v3615
    %3776 = vmatprep.subr.bf16.mxu0 0
    %3777 = vmatpush1.bf16.msra.mxu0 0
    %3778 = vmatprep.subr.bf16.mxu0 0
    %3779 = vmatpush1.bf16.msra.mxu0 0
    %3780 = vmatprep.subr.bf16.mxu0 0
    %3781 = vmatpush1.bf16.msra.mxu0 0
    %3782 = vmatprep.subr.bf16.mxu0 0
    %3783 = vmatpush1.bf16.msra.mxu0 0
    %3784 = vmatprep.subr.bf16.mxu0 0
    %3785 = vmatpush1.bf16.msra.mxu0 0
    %3786 = vmatprep.subr.bf16.mxu0 0
    %3787 = vmatpush1.bf16.msra.mxu0 0
    %3788 = vmatprep.subr.bf16.mxu0 0
    %3789 = vmatpush1.bf16.msra.mxu0 0
    %3790 = vmatprep.subr.bf16.mxu0 0
    %3791 = vmatpush1.bf16.msra.mxu0 0
    %3792 = vmatprep.mubr.bf16.mxu0 0
    %3793 = vmatmul.mubr.bf16.gmra.mrb[0].mxu0 %v3759
    %v3794 = vpop.f32.mrb[0].mxu0
    %v3795 = vadd.f32 0.0, %v3794
    %v3796 = vpop.f32.mrb[0].mxu0
    %v3797 = vadd.f32 0.0, %v3796
    %v3798 = vpop.f32.mrb[0].mxu0
    %v3799 = vpop.f32.mrb[0].mxu0
    %3800 = vdwg.mxu0
    %3801 = vmatprep.subr.bf16.mxu0 %v3590
    %3802 = vmatpush1.bf16.msra.mxu0 %v3589
    %3803 = vmatprep.subr.bf16.mxu0 %v3594
    %3804 = vmatpush1.bf16.msra.mxu0 %v3593
    %3805 = vmatprep.subr.bf16.mxu0 %v3598
    %3806 = vmatpush1.bf16.msra.mxu0 %v3597
    %3807 = vmatprep.subr.bf16.mxu0 %v3602
    %3808 = vmatpush1.bf16.msra.mxu0 %v3601
    %3809 = vmatprep.subr.bf16.mxu0 %v3606
    %3810 = vmatpush1.bf16.msra.mxu0 %v3605
    %3811 = vmatprep.subr.bf16.mxu0 %v3610
    %3812 = vmatpush1.bf16.msra.mxu0 %v3609
    %3813 = vmatprep.subr.bf16.mxu0 %v3614
    %3814 = vmatpush1.bf16.msra.mxu0 %v3613
    %3815 = vmatprep.subr.bf16.mxu0 %v3618
    %3816 = vmatpush1.bf16.msra.mxu0 %v3617
    %3817 = vmatprep.subr.bf16.mxu0 0
    %3818 = vmatpush1.bf16.msra.mxu0 0
    %3819 = vmatprep.subr.bf16.mxu0 0
    %3820 = vmatpush1.bf16.msra.mxu0 0
    %3821 = vmatprep.subr.bf16.mxu0 0
    %3822 = vmatpush1.bf16.msra.mxu0 0
    %3823 = vmatprep.subr.bf16.mxu0 0
    %3824 = vmatpush1.bf16.msra.mxu0 0
    %3825 = vmatprep.subr.bf16.mxu0 0
    %3826 = vmatpush1.bf16.msra.mxu0 0
    %3827 = vmatprep.subr.bf16.mxu0 0
    %3828 = vmatpush1.bf16.msra.mxu0 0
    %3829 = vmatprep.subr.bf16.mxu0 0
    %3830 = vmatpush1.bf16.msra.mxu0 0
    %3831 = vmatprep.subr.bf16.mxu0 0
    %3832 = vmatpush1.bf16.msra.mxu0 0
    %3833 = vmatprep.mubr.bf16.mxu0 0
    %3834 = vmatmul.mubr.bf16.gmra.mrb[0].mxu0 %v3759
    %v3835 = vpop.f32.mrb[0].mxu0
    %v3836 = vadd.f32 0.0, %v3835
    %v3837 = vpop.f32.mrb[0].mxu0
    %v3838 = vadd.f32 0.0, %v3837
    %v3839 = vpop.f32.mrb[0].mxu0
    %v3840 = vpop.f32.mrb[0].mxu0
    %3841 = vdwg.mxu0
    %v3842 = vadd.f32 %v3755, %v3795
    %v3843 = vadd.f32 %v3756, %v3797
    %v3844 = vadd.f32 %v3757, %v3836
    %v3845 = vadd.f32 %v3758, %v3838
    %v3846 = vmul.f32 %v3842, 0.5
    %v3847 = vtanh.pop %v3846
    %v3848 = vmul.f32 %v3847, 0.5
    %v3849 = vadd.f32 %v3848, 0.5
    %v3850 = vmul.f32 %v3843, 0.5
    %v3851 = vtanh.pop %v3850
    %v3852 = vmul.f32 %v3851, 0.5
    %v3853 = vadd.f32 %v3852, 0.5
    %v3854 = vtanh.pop %v3844
    %v3855 = vmul.f32 %v3845, 0.5
    %v3856 = vtanh.pop %v3855
    %v3857 = vmul.f32 %v3856, 0.5
    %v3858 = vadd.f32 %v3857, 0.5
    %v3859 = vmul.f32 %v3853, %v3752
    %v3860 = vmul.f32 %v3849, %v3854
    %v3861 = vadd.f32 %v3859, %v3860
    %v3862 = vtanh.pop %v3861
    %v3863 = vmul.f32 %v3858, %v3862
    %v3864 = vld [vmem:[#allocation4 + $0xe0] sm:$0xff]
    %v3865 = vld [vmem:[#allocation4 + $0xe8] sm:$0xff]
    %v3866 = vld [vmem:[#allocation4 + $0xf0] sm:$0xff]
    %v3867 = vld [vmem:[#allocation4 + $0xf8] sm:$0xff]
    %v3868 = vpack.c.bf16 %v3863, %v3863
    %3869 = vmatprep.subr.bf16.mxu0 %v3588
    %3870 = vmatpush1.bf16.msra.mxu0 %v3587
    %3871 = vmatprep.subr.bf16.mxu0 %v3592
    %3872 = vmatpush1.bf16.msra.mxu0 %v3591
    %3873 = vmatprep.subr.bf16.mxu0 %v3596
    %3874 = vmatpush1.bf16.msra.mxu0 %v3595
    %3875 = vmatprep.subr.bf16.mxu0 %v3600
    %3876 = vmatpush1.bf16.msra.mxu0 %v3599
    %3877 = vmatprep.subr.bf16.mxu0 %v3604
    %3878 = vmatpush1.bf16.msra.mxu0 %v3603
    %3879 = vmatprep.subr.bf16.mxu0 %v3608
    %3880 = vmatpush1.bf16.msra.mxu0 %v3607
    %3881 = vmatprep.subr.bf16.mxu0 %v3612
    %3882 = vmatpush1.bf16.msra.mxu0 %v3611
    %3883 = vmatprep.subr.bf16.mxu0 %v3616
    %3884 = vmatpush1.bf16.msra.mxu0 %v3615
    %3885 = vmatprep.subr.bf16.mxu0 0
    %3886 = vmatpush1.bf16.msra.mxu0 0
    %3887 = vmatprep.subr.bf16.mxu0 0
    %3888 = vmatpush1.bf16.msra.mxu0 0
    %3889 = vmatprep.subr.bf16.mxu0 0
    %3890 = vmatpush1.bf16.msra.mxu0 0
    %3891 = vmatprep.subr.bf16.mxu0 0
    %3892 = vmatpush1.bf16.msra.mxu0 0
    %3893 = vmatprep.subr.bf16.mxu0 0
    %3894 = vmatpush1.bf16.msra.mxu0 0
    %3895 = vmatprep.subr.bf16.mxu0 0
    %3896 = vmatpush1.bf16.msra.mxu0 0
    %3897 = vmatprep.subr.bf16.mxu0 0
    %3898 = vmatpush1.bf16.msra.mxu0 0
    %3899 = vmatprep.subr.bf16.mxu0 0
    %3900 = vmatpush1.bf16.msra.mxu0 0
    %3901 = vmatprep.mubr.bf16.mxu0 0
    %3902 = vmatmul.mubr.bf16.gmra.mrb[0].mxu0 %v3868
    %v3903 = vpop.f32.mrb[0].mxu0
    %v3904 = vadd.f32 0.0, %v3903
    %v3905 = vpop.f32.mrb[0].mxu0
    %v3906 = vadd.f32 0.0, %v3905
    %v3907 = vpop.f32.mrb[0].mxu0
    %v3908 = vpop.f32.mrb[0].mxu0
    %3909 = vdwg.mxu0
    %3910 = vmatprep.subr.bf16.mxu0 %v3590
    %3911 = vmatpush1.bf16.msra.mxu0 %v3589
    %3912 = vmatprep.subr.bf16.mxu0 %v3594
    %3913 = vmatpush1.bf16.msra.mxu0 %v3593
    %3914 = vmatprep.subr.bf16.mxu0 %v3598
    %3915 = vmatpush1.bf16.msra.mxu0 %v3597
    %3916 = vmatprep.subr.bf16.mxu0 %v3602
    %3917 = vmatpush1.bf16.msra.mxu0 %v3601
    %3918 = vmatprep.subr.bf16.mxu0 %v3606
    %3919 = vmatpush1.bf16.msra.mxu0 %v3605
    %3920 = vmatprep.subr.bf16.mxu0 %v3610
    %3921 = vmatpush1.bf16.msra.mxu0 %v3609
    %3922 = vmatprep.subr.bf16.mxu0 %v3614
    %3923 = vmatpush1.bf16.msra.mxu0 %v3613
    %3924 = vmatprep.subr.bf16.mxu0 %v3618
    %3925 = vmatpush1.bf16.msra.mxu0 %v3617
    %3926 = vmatprep.subr.bf16.mxu0 0
    %3927 = vmatpush1.bf16.msra.mxu0 0
    %3928 = vmatprep.subr.bf16.mxu0 0
    %3929 = vmatpush1.bf16.msra.mxu0 0
    %3930 = vmatprep.subr.bf16.mxu0 0
    %3931 = vmatpush1.bf16.msra.mxu0 0
    %3932 = vmatprep.subr.bf16.mxu0 0
    %3933 = vmatpush1.bf16.msra.mxu0 0
    %3934 = vmatprep.subr.bf16.mxu0 0
    %3935 = vmatpush1.bf16.msra.mxu0 0
    %3936 = vmatprep.subr.bf16.mxu0 0
    %3937 = vmatpush1.bf16.msra.mxu0 0
    %3938 = vmatprep.subr.bf16.mxu0 0
    %3939 = vmatpush1.bf16.msra.mxu0 0
    %3940 = vmatprep.subr.bf16.mxu0 0
    %3941 = vmatpush1.bf16.msra.mxu0 0
    %3942 = vmatprep.mubr.bf16.mxu0 0
    %3943 = vmatmul.mubr.bf16.gmra.mrb[0].mxu0 %v3868
    %v3944 = vpop.f32.mrb[0].mxu0
    %v3945 = vadd.f32 0.0, %v3944
    %v3946 = vpop.f32.mrb[0].mxu0
    %v3947 = vadd.f32 0.0, %v3946
    %v3948 = vpop.f32.mrb[0].mxu0
    %v3949 = vpop.f32.mrb[0].mxu0
    %3950 = vdwg.mxu0
    %v3951 = vadd.f32 %v3864, %v3904
    %v3952 = vadd.f32 %v3865, %v3906
    %v3953 = vadd.f32 %v3866, %v3945
    %v3954 = vadd.f32 %v3867, %v3947
    %v3955 = vmul.f32 %v3951, 0.5
    %v3956 = vtanh.pop %v3955
    %v3957 = vmul.f32 %v3956, 0.5
    %v3958 = vadd.f32 %v3957, 0.5
    %v3959 = vmul.f32 %v3952, 0.5
    %v3960 = vtanh.pop %v3959
    %v3961 = vmul.f32 %v3960, 0.5
    %v3962 = vadd.f32 %v3961, 0.5
    %v3963 = vtanh.pop %v3953
    %v3964 = vmul.f32 %v3954, 0.5
    %v3965 = vtanh.pop %v3964
    %v3966 = vmul.f32 %v3965, 0.5
    %v3967 = vadd.f32 %v3966, 0.5
    %v3968 = vmul.f32 %v3962, %v3861
    %v3969 = vmul.f32 %v3958, %v3963
    %v3970 = vadd.f32 %v3968, %v3969
    %v3971 = vtanh.pop %v3970
    %v3972 = vmul.f32 %v3967, %v3971
    %s3973 = scalar_lea.vmem [#allocation20], 64
    %v3974 = vld [vmem:[%s3973] sm:$0xf]
    %v3975 = vld [vmem:[%s3973 + $0x4] sm:$0xf]
    %v3976 = vld [vmem:[%s3973 + $0x8] sm:$0xf]
    %v3977 = vld [vmem:[%s3973 + $0xc] sm:$0xf]
    %v3978 = vld [vmem:[%s3973 + $0x10] sm:$0xf]
    %v3979 = vld [vmem:[%s3973 + $0x14] sm:$0xf]
    %v3980 = vld [vmem:[%s3973 + $0x18] sm:$0xf]
    %v3981 = vld [vmem:[%s3973 + $0x1c] sm:$0xf]
    %v3982 = vld [vmem:[%s3973 + $0x20] sm:$0xf]
    %v3983 = vld [vmem:[%s3973 + $0x24] sm:$0xf]
    %v3984 = vld [vmem:[%s3973 + $0x28] sm:$0xf]
    %v3985 = vld [vmem:[%s3973 + $0x2c] sm:$0xf]
    %v3986 = vld [vmem:[%s3973 + $0x30] sm:$0xf]
    %v3987 = vld [vmem:[%s3973 + $0x34] sm:$0xf]
    %v3988 = vld [vmem:[%s3973 + $0x38] sm:$0xf]
    %v3989 = vld [vmem:[%s3973 + $0x3c] sm:$0xf]
    %v3990 = vpack.c.bf16 %v3453, %v3453
    %v3991 = vld [vmem:[#allocation25 + $0x2] sm:$0x1]
    %v3992 = vlaneseq
    %v3993 = vshrl.u32 %v3992, 7
    %v3994 = vsub.s32 0, %v3993
    %v3995 = vrot.slane %v3991, %v3994
    %v4012 = vunpack.c.l.b16 %v3974
    %v4013 = vunpack.c.l.b16 %v3975
    %v4014 = vunpack.c.l.b16 %v3976
    %v4015 = vunpack.c.l.b16 %v3977
    %v4016 = vunpack.c.l.b16 %v3978
    %v4017 = vunpack.c.l.b16 %v3979
    %v4018 = vunpack.c.l.b16 %v3980
    %v4019 = vunpack.c.l.b16 %v3981
    %v4020 = vunpack.c.l.b16 %v3982
    %v4021 = vunpack.c.l.b16 %v3983
    %v4022 = vunpack.c.l.b16 %v3984
    %v4023 = vunpack.c.l.b16 %v3985
    %v4024 = vunpack.c.l.b16 %v3986
    %v4025 = vunpack.c.l.b16 %v3987
    %v4026 = vunpack.c.l.b16 %v3988
    %v4027 = vunpack.c.l.b16 %v3989
    %v4028 = vpack.c.b16 %v4013, %v4012
    %v4029 = vpack.c.b16 %v4015, %v4014
    %v4030 = vpack.c.b16 %v4017, %v4016
    %v4031 = vpack.c.b16 %v4019, %v4018
    %v4032 = vpack.c.b16 %v4021, %v4020
    %v4033 = vpack.c.b16 %v4023, %v4022
    %v4034 = vpack.c.b16 %v4025, %v4024
    %v4035 = vpack.c.b16 %v4027, %v4026
    %4044 = vmatprep.subr.bf16.mxu0 0
    %4045 = vmatpush1.bf16.msra.mxu0 %v4028
    %4046 = vmatprep.subr.bf16.mxu0 0
    %4047 = vmatpush1.bf16.msra.mxu0 %v4029
    %4048 = vmatprep.subr.bf16.mxu0 0
    %4049 = vmatpush1.bf16.msra.mxu0 %v4030
    %4050 = vmatprep.subr.bf16.mxu0 0
    %4051 = vmatpush1.bf16.msra.mxu0 %v4031
    %4052 = vmatprep.subr.bf16.mxu0 0
    %4053 = vmatpush1.bf16.msra.mxu0 %v4032
    %4054 = vmatprep.subr.bf16.mxu0 0
    %4055 = vmatpush1.bf16.msra.mxu0 %v4033
    %4056 = vmatprep.subr.bf16.mxu0 0
    %4057 = vmatpush1.bf16.msra.mxu0 %v4034
    %4058 = vmatprep.subr.bf16.mxu0 0
    %4059 = vmatpush1.bf16.msra.mxu0 %v4035
    %4060 = vmatprep.subr.bf16.mxu0 0
    %4061 = vmatpush1.bf16.msra.mxu0 0
    %4062 = vmatprep.subr.bf16.mxu0 0
    %4063 = vmatpush1.bf16.msra.mxu0 0
    %4064 = vmatprep.subr.bf16.mxu0 0
    %4065 = vmatpush1.bf16.msra.mxu0 0
    %4066 = vmatprep.subr.bf16.mxu0 0
    %4067 = vmatpush1.bf16.msra.mxu0 0
    %4068 = vmatprep.subr.bf16.mxu0 0
    %4069 = vmatpush1.bf16.msra.mxu0 0
    %4070 = vmatprep.subr.bf16.mxu0 0
    %4071 = vmatpush1.bf16.msra.mxu0 0
    %4072 = vmatprep.subr.bf16.mxu0 0
    %4073 = vmatpush1.bf16.msra.mxu0 0
    %4074 = vmatprep.subr.bf16.mxu0 0
    %4075 = vmatpush1.bf16.msra.mxu0 0
    %4076 = vmatprep.mubr.bf16.mxu0 0
    %4077 = vmatmul.mubr.bf16.gmra.mrb[0].mxu0 %v3990
    %v4078 = vpop.f32.mrb[0].mxu0
    %v4079 = vadd.f32 %v3995, %v4078
    %v4080 = vpop.f32.mrb[0].mxu0
    %v4081 = vpop.f32.mrb[0].mxu0
    %v4082 = vpop.f32.mrb[0].mxu0
    %4083 = vdwg.mxu0
    %v4084 = vtanh.pop %v4079
    %v4085 = vld [vmem:[#allocation22] sm:$0xf]
    %v4086 = vld [vmem:[#allocation22 + $0x4] sm:$0xf]
    %v4087 = vld [vmem:[#allocation22 + $0x8] sm:$0xf]
    %v4088 = vld [vmem:[#allocation22 + $0xc] sm:$0xf]
    %v4089 = vld [vmem:[#allocation22 + $0x10] sm:$0xf]
    %v4090 = vld [vmem:[#allocation22 + $0x14] sm:$0xf]
    %v4091 = vld [vmem:[#allocation22 + $0x18] sm:$0xf]
    %v4092 = vld [vmem:[#allocation22 + $0x1c] sm:$0xf]
    %v4093 = vld [vmem:[#allocation22 + $0x20] sm:$0xf]
    %v4094 = vld [vmem:[#allocation22 + $0x24] sm:$0xf]
    %v4095 = vld [vmem:[#allocation22 + $0x28] sm:$0xf]
    %v4096 = vld [vmem:[#allocation22 + $0x2c] sm:$0xf]
    %v4097 = vld [vmem:[#allocation22 + $0x30] sm:$0xf]
    %v4098 = vld [vmem:[#allocation22 + $0x34] sm:$0xf]
    %v4099 = vld [vmem:[#allocation22 + $0x38] sm:$0xf]
    %v4100 = vld [vmem:[#allocation22 + $0x3c] sm:$0xf]
    %v4101 = vld [vmem:[#allocation22 + $0x40] sm:$0xf]
    %v4102 = vld [vmem:[#allocation22 + $0x44] sm:$0xf]
    %v4103 = vld [vmem:[#allocation22 + $0x48] sm:$0xf]
    %v4104 = vld [vmem:[#allocation22 + $0x4c] sm:$0xf]
    %v4105 = vld [vmem:[#allocation22 + $0x50] sm:$0xf]
    %v4106 = vld [vmem:[#allocation22 + $0x54] sm:$0xf]
    %v4107 = vld [vmem:[#allocation22 + $0x58] sm:$0xf]
    %v4108 = vld [vmem:[#allocation22 + $0x5c] sm:$0xf]
    %v4109 = vld [vmem:[#allocation22 + $0x60] sm:$0xf]
    %v4110 = vld [vmem:[#allocation22 + $0x64] sm:$0xf]
    %v4111 = vld [vmem:[#allocation22 + $0x68] sm:$0xf]
    %v4112 = vld [vmem:[#allocation22 + $0x6c] sm:$0xf]
    %v4113 = vld [vmem:[#allocation22 + $0x70] sm:$0xf]
    %v4114 = vld [vmem:[#allocation22 + $0x74] sm:$0xf]
    %v4115 = vld [vmem:[#allocation22 + $0x78] sm:$0xf]
    %v4116 = vld [vmem:[#allocation22 + $0x7c] sm:$0xf]
    %v4117 = vld [vmem:[#allocation22 + $0x80] sm:$0xf]
    %v4118 = vld [vmem:[#allocation22 + $0x84] sm:$0xf]
    %v4119 = vld [vmem:[#allocation22 + $0x88] sm:$0xf]
    %v4120 = vld [vmem:[#allocation22 + $0x8c] sm:$0xf]
    %v4121 = vld [vmem:[#allocation22 + $0x90] sm:$0xf]
    %v4122 = vld [vmem:[#allocation22 + $0x94] sm:$0xf]
    %v4123 = vld [vmem:[#allocation22 + $0x98] sm:$0xf]
    %v4124 = vld [vmem:[#allocation22 + $0x9c] sm:$0xf]
    %v4125 = vld [vmem:[#allocation22 + $0xa0] sm:$0xf]
    %v4126 = vld [vmem:[#allocation22 + $0xa4] sm:$0xf]
    %v4127 = vld [vmem:[#allocation22 + $0xa8] sm:$0xf]
    %v4128 = vld [vmem:[#allocation22 + $0xac] sm:$0xf]
    %v4129 = vld [vmem:[#allocation22 + $0xb0] sm:$0xf]
    %v4130 = vld [vmem:[#allocation22 + $0xb4] sm:$0xf]
    %v4131 = vld [vmem:[#allocation22 + $0xb8] sm:$0xf]
    %v4132 = vld [vmem:[#allocation22 + $0xbc] sm:$0xf]
    %v4133 = vpack.c.bf16 %v774, %v774
    %v4134 = vpack.c.bf16 %v3972, %v3972
    %v4135 = vpack.c.bf16 %v4084, %v4084
    %v4136 = vld [vmem:[#allocation25 + $0x3] sm:$0x1]
    %v4137 = vlaneseq
    %v4138 = vshrl.u32 %v4137, 7
    %v4139 = vsub.s32 0, %v4138
    %v4140 = vrot.slane %v4136, %v4139
    %v4189 = vunpack.c.l.b16 %v4085
    %v4190 = vunpack.c.l.b16 %v4086
    %v4191 = vunpack.c.l.b16 %v4087
    %v4192 = vunpack.c.l.b16 %v4088
    %v4193 = vunpack.c.l.b16 %v4089
    %v4194 = vunpack.c.l.b16 %v4090
    %v4195 = vunpack.c.l.b16 %v4091
    %v4196 = vunpack.c.l.b16 %v4092
    %v4197 = vunpack.c.l.b16 %v4093
    %v4198 = vunpack.c.l.b16 %v4094
    %v4199 = vunpack.c.l.b16 %v4095
    %v4200 = vunpack.c.l.b16 %v4096
    %v4201 = vunpack.c.l.b16 %v4097
    %v4202 = vunpack.c.l.b16 %v4098
    %v4203 = vunpack.c.l.b16 %v4099
    %v4204 = vunpack.c.l.b16 %v4100
    %v4205 = vunpack.c.l.b16 %v4101
    %v4206 = vunpack.c.l.b16 %v4102
    %v4207 = vunpack.c.l.b16 %v4103
    %v4208 = vunpack.c.l.b16 %v4104
    %v4209 = vunpack.c.l.b16 %v4105
    %v4210 = vunpack.c.l.b16 %v4106
    %v4211 = vunpack.c.l.b16 %v4107
    %v4212 = vunpack.c.l.b16 %v4108
    %v4213 = vunpack.c.l.b16 %v4109
    %v4214 = vunpack.c.l.b16 %v4110
    %v4215 = vunpack.c.l.b16 %v4111
    %v4216 = vunpack.c.l.b16 %v4112
    %v4217 = vunpack.c.l.b16 %v4113
    %v4218 = vunpack.c.l.b16 %v4114
    %v4219 = vunpack.c.l.b16 %v4115
    %v4220 = vunpack.c.l.b16 %v4116
    %v4221 = vunpack.c.l.b16 %v4117
    %v4222 = vunpack.c.l.b16 %v4118
    %v4223 = vunpack.c.l.b16 %v4119
    %v4224 = vunpack.c.l.b16 %v4120
    %v4225 = vunpack.c.l.b16 %v4121
    %v4226 = vunpack.c.l.b16 %v4122
    %v4227 = vunpack.c.l.b16 %v4123
    %v4228 = vunpack.c.l.b16 %v4124
    %v4229 = vunpack.c.l.b16 %v4125
    %v4230 = vunpack.c.l.b16 %v4126
    %v4231 = vunpack.c.l.b16 %v4127
    %v4232 = vunpack.c.l.b16 %v4128
    %v4233 = vunpack.c.l.b16 %v4129
    %v4234 = vunpack.c.l.b16 %v4130
    %v4235 = vunpack.c.l.b16 %v4131
    %v4236 = vunpack.c.l.b16 %v4132
    %v4237 = vpack.c.b16 %v4190, %v4189
    %v4238 = vpack.c.b16 %v4192, %v4191
    %v4239 = vpack.c.b16 %v4194, %v4193
    %v4240 = vpack.c.b16 %v4196, %v4195
    %v4241 = vpack.c.b16 %v4198, %v4197
    %v4242 = vpack.c.b16 %v4200, %v4199
    %v4243 = vpack.c.b16 %v4202, %v4201
    %v4244 = vpack.c.b16 %v4204, %v4203
    %v4245 = vpack.c.b16 %v4206, %v4205
    %v4246 = vpack.c.b16 %v4208, %v4207
    %v4247 = vpack.c.b16 %v4210, %v4209
    %v4248 = vpack.c.b16 %v4212, %v4211
    %v4249 = vpack.c.b16 %v4214, %v4213
    %v4250 = vpack.c.b16 %v4216, %v4215
    %v4251 = vpack.c.b16 %v4218, %v4217
    %v4252 = vpack.c.b16 %v4220, %v4219
    %v4253 = vpack.c.b16 %v4222, %v4221
    %v4254 = vpack.c.b16 %v4224, %v4223
    %v4255 = vpack.c.b16 %v4226, %v4225
    %v4256 = vpack.c.b16 %v4228, %v4227
    %v4257 = vpack.c.b16 %v4230, %v4229
    %v4258 = vpack.c.b16 %v4232, %v4231
    %v4259 = vpack.c.b16 %v4234, %v4233
    %v4260 = vpack.c.b16 %v4236, %v4235
    %4285 = vmatprep.subr.bf16.mxu0 0
    %4286 = vmatpush1.bf16.msra.mxu0 %v4237
    %4287 = vmatprep.subr.bf16.mxu0 0
    %4288 = vmatpush1.bf16.msra.mxu0 %v4238
    %4289 = vmatprep.subr.bf16.mxu0 0
    %4290 = vmatpush1.bf16.msra.mxu0 %v4239
    %4291 = vmatprep.subr.bf16.mxu0 0
    %4292 = vmatpush1.bf16.msra.mxu0 %v4240
    %4293 = vmatprep.subr.bf16.mxu0 0
    %4294 = vmatpush1.bf16.msra.mxu0 %v4241
    %4295 = vmatprep.subr.bf16.mxu0 0
    %4296 = vmatpush1.bf16.msra.mxu0 %v4242
    %4297 = vmatprep.subr.bf16.mxu0 0
    %4298 = vmatpush1.bf16.msra.mxu0 %v4243
    %4299 = vmatprep.subr.bf16.mxu0 0
    %4300 = vmatpush1.bf16.msra.mxu0 %v4244
    %4301 = vmatprep.subr.bf16.mxu0 0
    %4302 = vmatpush1.bf16.msra.mxu0 %v4245
    %4303 = vmatprep.subr.bf16.mxu0 0
    %4304 = vmatpush1.bf16.msra.mxu0 %v4246
    %4305 = vmatprep.subr.bf16.mxu0 0
    %4306 = vmatpush1.bf16.msra.mxu0 %v4247
    %4307 = vmatprep.subr.bf16.mxu0 0
    %4308 = vmatpush1.bf16.msra.mxu0 %v4248
    %4309 = vmatprep.subr.bf16.mxu0 0
    %4310 = vmatpush1.bf16.msra.mxu0 %v4249
    %4311 = vmatprep.subr.bf16.mxu0 0
    %4312 = vmatpush1.bf16.msra.mxu0 %v4250
    %4313 = vmatprep.subr.bf16.mxu0 0
    %4314 = vmatpush1.bf16.msra.mxu0 %v4251
    %4315 = vmatprep.subr.bf16.mxu0 0
    %4316 = vmatpush1.bf16.msra.mxu0 %v4252
    %4317 = vmatprep.mubr.bf16.mxu0 %v4134
    %4318 = vmatmul.mubr.bf16.gmra.mrb[0].mxu0 %v4133
    %v4319 = vpop.f32.mrb[0].mxu0
    %v4320 = vadd.f32 %v4140, %v4319
    %v4321 = vpop.f32.mrb[0].mxu0
    %v4322 = vpop.f32.mrb[0].mxu0
    %v4323 = vpop.f32.mrb[0].mxu0
    %4324 = vdwg.mxu0
    %4325 = vmatprep.subr.bf16.mxu0 0
    %4326 = vmatpush1.bf16.msra.mxu0 %v4253
    %4327 = vmatprep.subr.bf16.mxu0 0
    %4328 = vmatpush1.bf16.msra.mxu0 %v4254
    %4329 = vmatprep.subr.bf16.mxu0 0
    %4330 = vmatpush1.bf16.msra.mxu0 %v4255
    %4331 = vmatprep.subr.bf16.mxu0 0
    %4332 = vmatpush1.bf16.msra.mxu0 %v4256
    %4333 = vmatprep.subr.bf16.mxu0 0
    %4334 = vmatpush1.bf16.msra.mxu0 %v4257
    %4335 = vmatprep.subr.bf16.mxu0 0
    %4336 = vmatpush1.bf16.msra.mxu0 %v4258
    %4337 = vmatprep.subr.bf16.mxu0 0
    %4338 = vmatpush1.bf16.msra.mxu0 %v4259
    %4339 = vmatprep.subr.bf16.mxu0 0
    %4340 = vmatpush1.bf16.msra.mxu0 %v4260
    %4341 = vmatprep.subr.bf16.mxu0 0
    %4342 = vmatpush1.bf16.msra.mxu0 0
    %4343 = vmatprep.subr.bf16.mxu0 0
    %4344 = vmatpush1.bf16.msra.mxu0 0
    %4345 = vmatprep.subr.bf16.mxu0 0
    %4346 = vmatpush1.bf16.msra.mxu0 0
    %4347 = vmatprep.subr.bf16.mxu0 0
    %4348 = vmatpush1.bf16.msra.mxu0 0
    %4349 = vmatprep.subr.bf16.mxu0 0
    %4350 = vmatpush1.bf16.msra.mxu0 0
    %4351 = vmatprep.subr.bf16.mxu0 0
    %4352 = vmatpush1.bf16.msra.mxu0 0
    %4353 = vmatprep.subr.bf16.mxu0 0
    %4354 = vmatpush1.bf16.msra.mxu0 0
    %4355 = vmatprep.subr.bf16.mxu0 0
    %4356 = vmatpush1.bf16.msra.mxu0 0
    %4357 = vmatprep.mubr.bf16.mxu0 0
    %4358 = vmatmul.mubr.bf16.gmra.mrb[0].mxu0 %v4135
    %v4359 = vpop.f32.mrb[0].mxu0
    %v4360 = vadd.f32 %v4320, %v4359
    %v4361 = vpop.f32.mrb[0].mxu0
    %v4362 = vpop.f32.mrb[0].mxu0
    %v4363 = vpop.f32.mrb[0].mxu0
    %4364 = vdwg.mxu0
    %v4365 = vmax.f32 %v4360, 0.0
    %s4366 = scalar_lea.vmem [#allocation20], 128
    %v4367 = vld [vmem:[%s4366] sm:$0xf]
    %v4368 = vld [vmem:[%s4366 + $0x4] sm:$0xf]
    %v4369 = vld [vmem:[%s4366 + $0x8] sm:$0xf]
    %v4370 = vld [vmem:[%s4366 + $0xc] sm:$0xf]
    %v4371 = vld [vmem:[%s4366 + $0x10] sm:$0xf]
    %v4372 = vld [vmem:[%s4366 + $0x14] sm:$0xf]
    %v4373 = vld [vmem:[%s4366 + $0x18] sm:$0xf]
    %v4374 = vld [vmem:[%s4366 + $0x1c] sm:$0xf]
    %v4375 = vld [vmem:[%s4366 + $0x20] sm:$0xf]
    %v4376 = vld [vmem:[%s4366 + $0x24] sm:$0xf]
    %v4377 = vld [vmem:[%s4366 + $0x28] sm:$0xf]
    %v4378 = vld [vmem:[%s4366 + $0x2c] sm:$0xf]
    %v4379 = vld [vmem:[%s4366 + $0x30] sm:$0xf]
    %v4380 = vld [vmem:[%s4366 + $0x34] sm:$0xf]
    %v4381 = vld [vmem:[%s4366 + $0x38] sm:$0xf]
    %v4382 = vld [vmem:[%s4366 + $0x3c] sm:$0xf]
    %v4383 = vpack.c.bf16 %v4365, %v4365
    %v4384 = vld [vmem:[#allocation25 + $0x4] sm:$0x1]
    %v4385 = vlaneseq
    %v4386 = vshrl.u32 %v4385, 7
    %v4387 = vsub.s32 0, %v4386
    %v4388 = vrot.slane %v4384, %v4387
    %v4405 = vunpack.c.l.b16 %v4367
    %v4406 = vunpack.c.l.b16 %v4368
    %v4407 = vunpack.c.l.b16 %v4369
    %v4408 = vunpack.c.l.b16 %v4370
    %v4409 = vunpack.c.l.b16 %v4371
    %v4410 = vunpack.c.l.b16 %v4372
    %v4411 = vunpack.c.l.b16 %v4373
    %v4412 = vunpack.c.l.b16 %v4374
    %v4413 = vunpack.c.l.b16 %v4375
    %v4414 = vunpack.c.l.b16 %v4376
    %v4415 = vunpack.c.l.b16 %v4377
    %v4416 = vunpack.c.l.b16 %v4378
    %v4417 = vunpack.c.l.b16 %v4379
    %v4418 = vunpack.c.l.b16 %v4380
    %v4419 = vunpack.c.l.b16 %v4381
    %v4420 = vunpack.c.l.b16 %v4382
    %v4421 = vpack.c.b16 %v4406, %v4405
    %v4422 = vpack.c.b16 %v4408, %v4407
    %v4423 = vpack.c.b16 %v4410, %v4409
    %v4424 = vpack.c.b16 %v4412, %v4411
    %v4425 = vpack.c.b16 %v4414, %v4413
    %v4426 = vpack.c.b16 %v4416, %v4415
    %v4427 = vpack.c.b16 %v4418, %v4417
    %v4428 = vpack.c.b16 %v4420, %v4419
    %4437 = vmatprep.subr.bf16.mxu0 0
    %4438 = vmatpush1.bf16.msra.mxu0 %v4421
    %4439 = vmatprep.subr.bf16.mxu0 0
    %4440 = vmatpush1.bf16.msra.mxu0 %v4422
    %4441 = vmatprep.subr.bf16.mxu0 0
    %4442 = vmatpush1.bf16.msra.mxu0 %v4423
    %4443 = vmatprep.subr.bf16.mxu0 0
    %4444 = vmatpush1.bf16.msra.mxu0 %v4424
    %4445 = vmatprep.subr.bf16.mxu0 0
    %4446 = vmatpush1.bf16.msra.mxu0 %v4425
    %4447 = vmatprep.subr.bf16.mxu0 0
    %4448 = vmatpush1.bf16.msra.mxu0 %v4426
    %4449 = vmatprep.subr.bf16.mxu0 0
    %4450 = vmatpush1.bf16.msra.mxu0 %v4427
    %4451 = vmatprep.subr.bf16.mxu0 0
    %4452 = vmatpush1.bf16.msra.mxu0 %v4428
    %4453 = vmatprep.subr.bf16.mxu0 0
    %4454 = vmatpush1.bf16.msra.mxu0 0
    %4455 = vmatprep.subr.bf16.mxu0 0
    %4456 = vmatpush1.bf16.msra.mxu0 0
    %4457 = vmatprep.subr.bf16.mxu0 0
    %4458 = vmatpush1.bf16.msra.mxu0 0
    %4459 = vmatprep.subr.bf16.mxu0 0
    %4460 = vmatpush1.bf16.msra.mxu0 0
    %4461 = vmatprep.subr.bf16.mxu0 0
    %4462 = vmatpush1.bf16.msra.mxu0 0
    %4463 = vmatprep.subr.bf16.mxu0 0
    %4464 = vmatpush1.bf16.msra.mxu0 0
    %4465 = vmatprep.subr.bf16.mxu0 0
    %4466 = vmatpush1.bf16.msra.mxu0 0
    %4467 = vmatprep.subr.bf16.mxu0 0
    %4468 = vmatpush1.bf16.msra.mxu0 0
    %4469 = vmatprep.mubr.bf16.mxu0 0
    %4470 = vmatmul.mubr.bf16.gmra.mrb[0].mxu0 %v4383
    %v4471 = vpop.f32.mrb[0].mxu0
    %v4472 = vadd.f32 %v4388, %v4471
    %v4473 = vpop.f32.mrb[0].mxu0
    %v4474 = vpop.f32.mrb[0].mxu0
    %v4475 = vpop.f32.mrb[0].mxu0
    %4476 = vdwg.mxu0
    %v4477 = vld [vmem:[#allocation25 + $0x5] sm:$0x1]
    %v4478 = vld [vmem:[#allocation25 + $0x6] sm:$0x1]
    %v4479 = vld [vmem:[#allocation25 + $0x7] sm:$0x1]
    %v4480 = vld [vmem:[#allocation23] sm:$0xff]
    %v4481 = vld [vmem:[#allocation23 + $0x8] sm:$0xf]
    %v4482 = vld [vmem:[#allocation23 + $0xc] sm:$0xff]
    %v4483 = vld [vmem:[#allocation23 + $0x14] sm:$0xf]
    %v4484 = vld [vmem:[#allocation23 + $0x18] sm:$0xff]
    %v4485 = vld [vmem:[#allocation23 + $0x20] sm:$0xf]
    %v4486 = vld [vmem:[#allocation23 + $0x24] sm:$0xff]
    %v4487 = vld [vmem:[#allocation23 + $0x2c] sm:$0xf]
    %v4488 = vld [vmem:[#allocation23 + $0x30] sm:$0xff]
    %v4489 = vld [vmem:[#allocation23 + $0x38] sm:$0xf]
    %v4490 = vld [vmem:[#allocation23 + $0x3c] sm:$0xff]
    %v4491 = vld [vmem:[#allocation23 + $0x44] sm:$0xf]
    %v4492 = vld [vmem:[#allocation23 + $0x48] sm:$0xff]
    %v4493 = vld [vmem:[#allocation23 + $0x50] sm:$0xf]
    %v4494 = vld [vmem:[#allocation23 + $0x54] sm:$0xff]
    %v4495 = vld [vmem:[#allocation23 + $0x5c] sm:$0xf]
    %v4496 = vld [vmem:[#allocation23 + $0x60] sm:$0xff]
    %v4497 = vld [vmem:[#allocation23 + $0x68] sm:$0xf]
    %v4498 = vld [vmem:[#allocation23 + $0x6c] sm:$0xff]
    %v4499 = vld [vmem:[#allocation23 + $0x74] sm:$0xf]
    %v4500 = vld [vmem:[#allocation23 + $0x78] sm:$0xff]
    %v4501 = vld [vmem:[#allocation23 + $0x80] sm:$0xf]
    %v4502 = vld [vmem:[#allocation23 + $0x84] sm:$0xff]
    %v4503 = vld [vmem:[#allocation23 + $0x8c] sm:$0xf]
    %v4504 = vld [vmem:[#allocation23 + $0x90] sm:$0xff]
    %v4505 = vld [vmem:[#allocation23 + $0x98] sm:$0xf]
    %v4506 = vld [vmem:[#allocation23 + $0x9c] sm:$0xff]
    %v4507 = vld [vmem:[#allocation23 + $0xa4] sm:$0xf]
    %v4508 = vld [vmem:[#allocation23 + $0xa8] sm:$0xff]
    %v4509 = vld [vmem:[#allocation23 + $0xb0] sm:$0xf]
    %v4510 = vld [vmem:[#allocation23 + $0xb4] sm:$0xff]
    %v4511 = vld [vmem:[#allocation23 + $0xbc] sm:$0xf]
    %v4512 = vpack.c.bf16 %v4472, %v4472
    %v4513 = vlaneseq
    %v4514 = vshrl.u32 %v4513, 7
    %v4515 = vsub.s32 0, %v4514
    %v4516 = vrot.slane %v4477, %v4515
    %v4517 = vlaneseq
    %v4518 = vshrl.u32 %v4517, 7
    %v4519 = vsub.s32 0, %v4518
    %v4520 = vrot.slane %v4478, %v4519
    %v4521 = vlaneseq
    %v4522 = vshrl.u32 %v4521, 7
    %v4523 = vsub.s32 0, %v4522
    %v4524 = vrot.slane %v4479, %v4523
    %v4557 = vunpack.c.l.b16 %v4480
    %v4558 = vunpack.c.h.b16 %v4480
    %v4559 = vunpack.c.l.b16 %v4481
    %v4560 = vunpack.c.l.b16 %v4482
    %v4561 = vunpack.c.h.b16 %v4482
    %v4562 = vunpack.c.l.b16 %v4483
    %v4563 = vunpack.c.l.b16 %v4484
    %v4564 = vunpack.c.h.b16 %v4484
    %v4565 = vunpack.c.l.b16 %v4485
    %v4566 = vunpack.c.l.b16 %v4486
    %v4567 = vunpack.c.h.b16 %v4486
    %v4568 = vunpack.c.l.b16 %v4487
    %v4569 = vunpack.c.l.b16 %v4488
    %v4570 = vunpack.c.h.b16 %v4488
    %v4571 = vunpack.c.l.b16 %v4489
    %v4572 = vunpack.c.l.b16 %v4490
    %v4573 = vunpack.c.h.b16 %v4490
    %v4574 = vunpack.c.l.b16 %v4491
    %v4575 = vunpack.c.l.b16 %v4492
    %v4576 = vunpack.c.h.b16 %v4492
    %v4577 = vunpack.c.l.b16 %v4493
    %v4578 = vunpack.c.l.b16 %v4494
    %v4579 = vunpack.c.h.b16 %v4494
    %v4580 = vunpack.c.l.b16 %v4495
    %v4581 = vunpack.c.l.b16 %v4496
    %v4582 = vunpack.c.h.b16 %v4496
    %v4583 = vunpack.c.l.b16 %v4497
    %v4584 = vunpack.c.l.b16 %v4498
    %v4585 = vunpack.c.h.b16 %v4498
    %v4586 = vunpack.c.l.b16 %v4499
    %v4587 = vunpack.c.l.b16 %v4500
    %v4588 = vunpack.c.h.b16 %v4500
    %v4589 = vunpack.c.l.b16 %v4501
    %v4590 = vunpack.c.l.b16 %v4502
    %v4591 = vunpack.c.h.b16 %v4502
    %v4592 = vunpack.c.l.b16 %v4503
    %v4593 = vunpack.c.l.b16 %v4504
    %v4594 = vunpack.c.h.b16 %v4504
    %v4595 = vunpack.c.l.b16 %v4505
    %v4596 = vunpack.c.l.b16 %v4506
    %v4597 = vunpack.c.h.b16 %v4506
    %v4598 = vunpack.c.l.b16 %v4507
    %v4599 = vunpack.c.l.b16 %v4508
    %v4600 = vunpack.c.h.b16 %v4508
    %v4601 = vunpack.c.l.b16 %v4509
    %v4602 = vunpack.c.l.b16 %v4510
    %v4603 = vunpack.c.h.b16 %v4510
    %v4604 = vunpack.c.l.b16 %v4511
    %v4605 = vpack.c.b16 %v4560, %v4557
    %v4606 = vpack.c.b16 %v4561, %v4558
    %v4607 = vpack.c.b16 %v4562, %v4559
    %v4608 = vpack.c.b16 %v4566, %v4563
    %v4609 = vpack.c.b16 %v4567, %v4564
    %v4610 = vpack.c.b16 %v4568, %v4565
    %v4611 = vpack.c.b16 %v4572, %v4569
    %v4612 = vpack.c.b16 %v4573, %v4570
    %v4613 = vpack.c.b16 %v4574, %v4571
    %v4614 = vpack.c.b16 %v4578, %v4575
    %v4615 = vpack.c.b16 %v4579, %v4576
    %v4616 = vpack.c.b16 %v4580, %v4577
    %v4617 = vpack.c.b16 %v4584, %v4581
    %v4618 = vpack.c.b16 %v4585, %v4582
    %v4619 = vpack.c.b16 %v4586, %v4583
    %v4620 = vpack.c.b16 %v4590, %v4587
    %v4621 = vpack.c.b16 %v4591, %v4588
    %v4622 = vpack.c.b16 %v4592, %v4589
    %v4623 = vpack.c.b16 %v4596, %v4593
    %v4624 = vpack.c.b16 %v4597, %v4594
    %v4625 = vpack.c.b16 %v4598, %v4595
    %v4626 = vpack.c.b16 %v4602, %v4599
    %v4627 = vpack.c.b16 %v4603, %v4600
    %v4628 = vpack.c.b16 %v4604, %v4601
    %4653 = vmatprep.subr.bf16.mxu0 %v4606
    %4654 = vmatpush1.bf16.msra.mxu0 %v4605
    %4655 = vmatprep.subr.bf16.mxu0 %v4609
    %4656 = vmatpush1.bf16.msra.mxu0 %v4608
    %4657 = vmatprep.subr.bf16.mxu0 %v4612
    %4658 = vmatpush1.bf16.msra.mxu0 %v4611
    %4659 = vmatprep.subr.bf16.mxu0 %v4615
    %4660 = vmatpush1.bf16.msra.mxu0 %v4614
    %4661 = vmatprep.subr.bf16.mxu0 %v4618
    %4662 = vmatpush1.bf16.msra.mxu0 %v4617
    %4663 = vmatprep.subr.bf16.mxu0 %v4621
    %4664 = vmatpush1.bf16.msra.mxu0 %v4620
    %4665 = vmatprep.subr.bf16.mxu0 %v4624
    %4666 = vmatpush1.bf16.msra.mxu0 %v4623
    %4667 = vmatprep.subr.bf16.mxu0 %v4627
    %4668 = vmatpush1.bf16.msra.mxu0 %v4626
    %4669 = vmatprep.subr.bf16.mxu0 0
    %4670 = vmatpush1.bf16.msra.mxu0 0
    %4671 = vmatprep.subr.bf16.mxu0 0
    %4672 = vmatpush1.bf16.msra.mxu0 0
    %4673 = vmatprep.subr.bf16.mxu0 0
    %4674 = vmatpush1.bf16.msra.mxu0 0
    %4675 = vmatprep.subr.bf16.mxu0 0
    %4676 = vmatpush1.bf16.msra.mxu0 0
    %4677 = vmatprep.subr.bf16.mxu0 0
    %4678 = vmatpush1.bf16.msra.mxu0 0
    %4679 = vmatprep.subr.bf16.mxu0 0
    %4680 = vmatpush1.bf16.msra.mxu0 0
    %4681 = vmatprep.subr.bf16.mxu0 0
    %4682 = vmatpush1.bf16.msra.mxu0 0
    %4683 = vmatprep.subr.bf16.mxu0 0
    %4684 = vmatpush1.bf16.msra.mxu0 0
    %4685 = vmatprep.mubr.bf16.mxu0 0
    %4686 = vmatmul.mubr.bf16.gmra.mrb[0].mxu0 %v4512
    %v4687 = vpop.f32.mrb[0].mxu0
    %v4688 = vadd.f32 %v4516, %v4687
    %v4689 = vpop.f32.mrb[0].mxu0
    %v4690 = vadd.f32 %v4520, %v4689
    %v4691 = vpop.f32.mrb[0].mxu0
    %v4692 = vpop.f32.mrb[0].mxu0
    %4693 = vdwg.mxu0
    %4694 = vmatprep.subr.bf16.mxu0 0
    %4695 = vmatpush1.bf16.msra.mxu0 %v4607
    %4696 = vmatprep.subr.bf16.mxu0 0
    %4697 = vmatpush1.bf16.msra.mxu0 %v4610
    %4698 = vmatprep.subr.bf16.mxu0 0
    %4699 = vmatpush1.bf16.msra.mxu0 %v4613
    %4700 = vmatprep.subr.bf16.mxu0 0
    %4701 = vmatpush1.bf16.msra.mxu0 %v4616
    %4702 = vmatprep.subr.bf16.mxu0 0
    %4703 = vmatpush1.bf16.msra.mxu0 %v4619
    %4704 = vmatprep.subr.bf16.mxu0 0
    %4705 = vmatpush1.bf16.msra.mxu0 %v4622
    %4706 = vmatprep.subr.bf16.mxu0 0
    %4707 = vmatpush1.bf16.msra.mxu0 %v4625
    %4708 = vmatprep.subr.bf16.mxu0 0
    %4709 = vmatpush1.bf16.msra.mxu0 %v4628
    %4710 = vmatprep.subr.bf16.mxu0 0
    %4711 = vmatpush1.bf16.msra.mxu0 0
    %4712 = vmatprep.subr.bf16.mxu0 0
    %4713 = vmatpush1.bf16.msra.mxu0 0
    %4714 = vmatprep.subr.bf16.mxu0 0
    %4715 = vmatpush1.bf16.msra.mxu0 0
    %4716 = vmatprep.subr.bf16.mxu0 0
    %4717 = vmatpush1.bf16.msra.mxu0 0
    %4718 = vmatprep.subr.bf16.mxu0 0
    %4719 = vmatpush1.bf16.msra.mxu0 0
    %4720 = vmatprep.subr.bf16.mxu0 0
    %4721 = vmatpush1.bf16.msra.mxu0 0
    %4722 = vmatprep.subr.bf16.mxu0 0
    %4723 = vmatpush1.bf16.msra.mxu0 0
    %4724 = vmatprep.subr.bf16.mxu0 0
    %4725 = vmatpush1.bf16.msra.mxu0 0
    %4726 = vmatprep.mubr.bf16.mxu0 0
    %4727 = vmatmul.mubr.bf16.gmra.mrb[0].mxu0 %v4512
    %v4728 = vpop.f32.mrb[0].mxu0
    %v4729 = vadd.f32 %v4524, %v4728
    %v4730 = vpop.f32.mrb[0].mxu0
    %v4731 = vpop.f32.mrb[0].mxu0
    %v4732 = vpop.f32.mrb[0].mxu0
    %4733 = vdwg.mxu0
    %v4734 = vmax.f32 %v4688, 0.0
    %v4735 = vmax.f32 %v4690, 0.0
    %v4736 = vmax.f32 %v4729, 0.0
    %s4737 = scalar_lea.vmem [#allocation22], 192
    %v4738 = vld [vmem:[%s4737] sm:$0xf]
    %v4739 = vld [vmem:[%s4737 + $0x4] sm:$0xf]
    %v4740 = vld [vmem:[%s4737 + $0x8] sm:$0xf]
    %v4741 = vld [vmem:[%s4737 + $0xc] sm:$0xf]
    %v4742 = vld [vmem:[%s4737 + $0x10] sm:$0xf]
    %v4743 = vld [vmem:[%s4737 + $0x14] sm:$0xf]
    %v4744 = vld [vmem:[%s4737 + $0x18] sm:$0xf]
    %v4745 = vld [vmem:[%s4737 + $0x1c] sm:$0xf]
    %v4746 = vld [vmem:[%s4737 + $0x20] sm:$0xf]
    %v4747 = vld [vmem:[%s4737 + $0x24] sm:$0xf]
    %v4748 = vld [vmem:[%s4737 + $0x28] sm:$0xf]
    %v4749 = vld [vmem:[%s4737 + $0x2c] sm:$0xf]
    %v4750 = vld [vmem:[%s4737 + $0x30] sm:$0xf]
    %v4751 = vld [vmem:[%s4737 + $0x34] sm:$0xf]
    %v4752 = vld [vmem:[%s4737 + $0x38] sm:$0xf]
    %v4753 = vld [vmem:[%s4737 + $0x3c] sm:$0xf]
    %v4754 = vld [vmem:[%s4737 + $0x40] sm:$0xf]
    %v4755 = vld [vmem:[%s4737 + $0x44] sm:$0xf]
    %v4756 = vld [vmem:[%s4737 + $0x48] sm:$0xf]
    %v4757 = vld [vmem:[%s4737 + $0x4c] sm:$0xf]
    %v4758 = vld [vmem:[%s4737 + $0x50] sm:$0xf]
    %v4759 = vld [vmem:[%s4737 + $0x54] sm:$0xf]
    %v4760 = vld [vmem:[%s4737 + $0x58] sm:$0xf]
    %v4761 = vld [vmem:[%s4737 + $0x5c] sm:$0xf]
    %v4762 = vld [vmem:[%s4737 + $0x60] sm:$0xf]
    %v4763 = vld [vmem:[%s4737 + $0x64] sm:$0xf]
    %v4764 = vld [vmem:[%s4737 + $0x68] sm:$0xf]
    %v4765 = vld [vmem:[%s4737 + $0x6c] sm:$0xf]
    %v4766 = vld [vmem:[%s4737 + $0x70] sm:$0xf]
    %v4767 = vld [vmem:[%s4737 + $0x74] sm:$0xf]
    %v4768 = vld [vmem:[%s4737 + $0x78] sm:$0xf]
    %v4769 = vld [vmem:[%s4737 + $0x7c] sm:$0xf]
    %v4770 = vld [vmem:[%s4737 + $0x80] sm:$0xf]
    %v4771 = vld [vmem:[%s4737 + $0x84] sm:$0xf]
    %v4772 = vld [vmem:[%s4737 + $0x88] sm:$0xf]
    %v4773 = vld [vmem:[%s4737 + $0x8c] sm:$0xf]
    %v4774 = vld [vmem:[%s4737 + $0x90] sm:$0xf]
    %v4775 = vld [vmem:[%s4737 + $0x94] sm:$0xf]
    %v4776 = vld [vmem:[%s4737 + $0x98] sm:$0xf]
    %v4777 = vld [vmem:[%s4737 + $0x9c] sm:$0xf]
    %v4778 = vld [vmem:[%s4737 + $0xa0] sm:$0xf]
    %v4779 = vld [vmem:[%s4737 + $0xa4] sm:$0xf]
    %v4780 = vld [vmem:[%s4737 + $0xa8] sm:$0xf]
    %v4781 = vld [vmem:[%s4737 + $0xac] sm:$0xf]
    %v4782 = vld [vmem:[%s4737 + $0xb0] sm:$0xf]
    %v4783 = vld [vmem:[%s4737 + $0xb4] sm:$0xf]
    %v4784 = vld [vmem:[%s4737 + $0xb8] sm:$0xf]
    %v4785 = vld [vmem:[%s4737 + $0xbc] sm:$0xf]
    %v4786 = vpack.c.bf16 %v4734, %v4734
    %v4787 = vpack.c.bf16 %v4735, %v4735
    %v4788 = vpack.c.bf16 %v4736, %v4736
    %v4789 = vld [vmem:[#allocation25 + $0x8] sm:$0x1]
    %v4790 = vlaneseq
    %v4791 = vshrl.u32 %v4790, 7
    %v4792 = vsub.s32 0, %v4791
    %v4793 = vrot.slane %v4789, %v4792
    %v4842 = vunpack.c.l.b16 %v4738
    %v4843 = vunpack.c.l.b16 %v4739
    %v4844 = vunpack.c.l.b16 %v4740
    %v4845 = vunpack.c.l.b16 %v4741
    %v4846 = vunpack.c.l.b16 %v4742
    %v4847 = vunpack.c.l.b16 %v4743
    %v4848 = vunpack.c.l.b16 %v4744
    %v4849 = vunpack.c.l.b16 %v4745
    %v4850 = vunpack.c.l.b16 %v4746
    %v4851 = vunpack.c.l.b16 %v4747
    %v4852 = vunpack.c.l.b16 %v4748
    %v4853 = vunpack.c.l.b16 %v4749
    %v4854 = vunpack.c.l.b16 %v4750
    %v4855 = vunpack.c.l.b16 %v4751
    %v4856 = vunpack.c.l.b16 %v4752
    %v4857 = vunpack.c.l.b16 %v4753
    %v4858 = vunpack.c.l.b16 %v4754
    %v4859 = vunpack.c.l.b16 %v4755
    %v4860 = vunpack.c.l.b16 %v4756
    %v4861 = vunpack.c.l.b16 %v4757
    %v4862 = vunpack.c.l.b16 %v4758
    %v4863 = vunpack.c.l.b16 %v4759
    %v4864 = vunpack.c.l.b16 %v4760
    %v4865 = vunpack.c.l.b16 %v4761
    %v4866 = vunpack.c.l.b16 %v4762
    %v4867 = vunpack.c.l.b16 %v4763
    %v4868 = vunpack.c.l.b16 %v4764
    %v4869 = vunpack.c.l.b16 %v4765
    %v4870 = vunpack.c.l.b16 %v4766
    %v4871 = vunpack.c.l.b16 %v4767
    %v4872 = vunpack.c.l.b16 %v4768
    %v4873 = vunpack.c.l.b16 %v4769
    %v4874 = vunpack.c.l.b16 %v4770
    %v4875 = vunpack.c.l.b16 %v4771
    %v4876 = vunpack.c.l.b16 %v4772
    %v4877 = vunpack.c.l.b16 %v4773
    %v4878 = vunpack.c.l.b16 %v4774
    %v4879 = vunpack.c.l.b16 %v4775
    %v4880 = vunpack.c.l.b16 %v4776
    %v4881 = vunpack.c.l.b16 %v4777
    %v4882 = vunpack.c.l.b16 %v4778
    %v4883 = vunpack.c.l.b16 %v4779
    %v4884 = vunpack.c.l.b16 %v4780
    %v4885 = vunpack.c.l.b16 %v4781
    %v4886 = vunpack.c.l.b16 %v4782
    %v4887 = vunpack.c.l.b16 %v4783
    %v4888 = vunpack.c.l.b16 %v4784
    %v4889 = vunpack.c.l.b16 %v4785
    %v4890 = vpack.c.b16 %v4843, %v4842
    %v4891 = vpack.c.b16 %v4845, %v4844
    %v4892 = vpack.c.b16 %v4847, %v4846
    %v4893 = vpack.c.b16 %v4849, %v4848
    %v4894 = vpack.c.b16 %v4851, %v4850
    %v4895 = vpack.c.b16 %v4853, %v4852
    %v4896 = vpack.c.b16 %v4855, %v4854
    %v4897 = vpack.c.b16 %v4857, %v4856
    %v4898 = vpack.c.b16 %v4859, %v4858
    %v4899 = vpack.c.b16 %v4861, %v4860
    %v4900 = vpack.c.b16 %v4863, %v4862
    %v4901 = vpack.c.b16 %v4865, %v4864
    %v4902 = vpack.c.b16 %v4867, %v4866
    %v4903 = vpack.c.b16 %v4869, %v4868
    %v4904 = vpack.c.b16 %v4871, %v4870
    %v4905 = vpack.c.b16 %v4873, %v4872
    %v4906 = vpack.c.b16 %v4875, %v4874
    %v4907 = vpack.c.b16 %v4877, %v4876
    %v4908 = vpack.c.b16 %v4879, %v4878
    %v4909 = vpack.c.b16 %v4881, %v4880
    %v4910 = vpack.c.b16 %v4883, %v4882
    %v4911 = vpack.c.b16 %v4885, %v4884
    %v4912 = vpack.c.b16 %v4887, %v4886
    %v4913 = vpack.c.b16 %v4889, %v4888
    %4938 = vmatprep.subr.bf16.mxu0 0
    %4939 = vmatpush1.bf16.msra.mxu0 %v4890
    %4940 = vmatprep.subr.bf16.mxu0 0
    %4941 = vmatpush1.bf16.msra.mxu0 %v4891
    %4942 = vmatprep.subr.bf16.mxu0 0
    %4943 = vmatpush1.bf16.msra.mxu0 %v4892
    %4944 = vmatprep.subr.bf16.mxu0 0
    %4945 = vmatpush1.bf16.msra.mxu0 %v4893
    %4946 = vmatprep.subr.bf16.mxu0 0
    %4947 = vmatpush1.bf16.msra.mxu0 %v4894
    %4948 = vmatprep.subr.bf16.mxu0 0
    %4949 = vmatpush1.bf16.msra.mxu0 %v4895
    %4950 = vmatprep.subr.bf16.mxu0 0
    %4951 = vmatpush1.bf16.msra.mxu0 %v4896
    %4952 = vmatprep.subr.bf16.mxu0 0
    %4953 = vmatpush1.bf16.msra.mxu0 %v4897
    %4954 = vmatprep.subr.bf16.mxu0 0
    %4955 = vmatpush1.bf16.msra.mxu0 %v4898
    %4956 = vmatprep.subr.bf16.mxu0 0
    %4957 = vmatpush1.bf16.msra.mxu0 %v4899
    %4958 = vmatprep.subr.bf16.mxu0 0
    %4959 = vmatpush1.bf16.msra.mxu0 %v4900
    %4960 = vmatprep.subr.bf16.mxu0 0
    %4961 = vmatpush1.bf16.msra.mxu0 %v4901
    %4962 = vmatprep.subr.bf16.mxu0 0
    %4963 = vmatpush1.bf16.msra.mxu0 %v4902
    %4964 = vmatprep.subr.bf16.mxu0 0
    %4965 = vmatpush1.bf16.msra.mxu0 %v4903
    %4966 = vmatprep.subr.bf16.mxu0 0
    %4967 = vmatpush1.bf16.msra.mxu0 %v4904
    %4968 = vmatprep.subr.bf16.mxu0 0
    %4969 = vmatpush1.bf16.msra.mxu0 %v4905
    %4970 = vmatprep.mubr.bf16.mxu0 %v4787
    %4971 = vmatmul.mubr.bf16.gmra.mrb[0].mxu0 %v4786
    %v4972 = vpop.f32.mrb[0].mxu0
    %v4973 = vadd.f32 %v4793, %v4972
    %v4974 = vpop.f32.mrb[0].mxu0
    %v4975 = vpop.f32.mrb[0].mxu0
    %v4976 = vpop.f32.mrb[0].mxu0
    %4977 = vdwg.mxu0
    %4978 = vmatprep.subr.bf16.mxu0 0
    %4979 = vmatpush1.bf16.msra.mxu0 %v4906
    %4980 = vmatprep.subr.bf16.mxu0 0
    %4981 = vmatpush1.bf16.msra.mxu0 %v4907
    %4982 = vmatprep.subr.bf16.mxu0 0
    %4983 = vmatpush1.bf16.msra.mxu0 %v4908
    %4984 = vmatprep.subr.bf16.mxu0 0
    %4985 = vmatpush1.bf16.msra.mxu0 %v4909
    %4986 = vmatprep.subr.bf16.mxu0 0
    %4987 = vmatpush1.bf16.msra.mxu0 %v4910
    %4988 = vmatprep.subr.bf16.mxu0 0
    %4989 = vmatpush1.bf16.msra.mxu0 %v4911
    %4990 = vmatprep.subr.bf16.mxu0 0
    %4991 = vmatpush1.bf16.msra.mxu0 %v4912
    %4992 = vmatprep.subr.bf16.mxu0 0
    %4993 = vmatpush1.bf16.msra.mxu0 %v4913
    %4994 = vmatprep.subr.bf16.mxu0 0
    %4995 = vmatpush1.bf16.msra.mxu0 0
    %4996 = vmatprep.subr.bf16.mxu0 0
    %4997 = vmatpush1.bf16.msra.mxu0 0
    %4998 = vmatprep.subr.bf16.mxu0 0
    %4999 = vmatpush1.bf16.msra.mxu0 0
    %5000 = vmatprep.subr.bf16.mxu0 0
    %5001 = vmatpush1.bf16.msra.mxu0 0
    %5002 = vmatprep.subr.bf16.mxu0 0
    %5003 = vmatpush1.bf16.msra.mxu0 0
    %5004 = vmatprep.subr.bf16.mxu0 0
    %5005 = vmatpush1.bf16.msra.mxu0 0
    %5006 = vmatprep.subr.bf16.mxu0 0
    %5007 = vmatpush1.bf16.msra.mxu0 0
    %5008 = vmatprep.subr.bf16.mxu0 0
    %5009 = vmatpush1.bf16.msra.mxu0 0
    %5010 = vmatprep.mubr.bf16.mxu0 0
    %5011 = vmatmul.mubr.bf16.gmra.mrb[0].mxu0 %v4788
    %v5012 = vpop.f32.mrb[0].mxu0
    %v5013 = vadd.f32 %v4973, %v5012
    %v5014 = vpop.f32.mrb[0].mxu0
    %v5015 = vpop.f32.mrb[0].mxu0
    %v5016 = vpop.f32.mrb[0].mxu0
    %5017 = vdwg.mxu0
    %v5018 = vmul.f32 %v5013, 0.5
    %v5019 = vtanh.pop %v5018
    %v5020 = vmul.f32 %v5019, 0.5
    %v5021 = vadd.f32 %v5020, 0.5
    %5022 = vst [vmem:[#allocation26] sm:$0xff] %v5021
    // Predicated region
    $region194: #{tpu_custom_call.1} parent=1 // pred_check
      _
    $region195: #{tpu_custom_call.1} parent=1 // pred_check_branch
      %5024 = sbr.rel (0) target = $region197
    $region196: #{tpu_custom_call.1} parent=1 // pred_region
      %s5026 = ssub.s32 128, 128
      %5027 = vsyncadd [#allocation9], %s5026
      %s5029 = sshll.u32 [#allocation26], 4
      %s5030 = int_to_ptr.vmem [resolvable:$true] %s5029
      %5032 = dma.vmem_to_hbm [thread:$0]  %s5030, 128, %s13, [#allocation9]
    $region197: #{tpu_custom_call.1} parent=1 // pred_fallthru
      _
    // Predicated region
    $region198: #{tpu_custom_call.1} parent=1 // pred_check
      _
    $region199: #{tpu_custom_call.1} parent=1 // pred_check_branch
      %5034 = sbr.rel (0) target = $region201
    $region200: #{tpu_custom_call.1} parent=1 // pred_region
      %5035 = dma.done [#allocation9], 128
    $region201: #{tpu_custom_call.1} parent=1 // pred_fallthru
      _
    %5036 = vsyncpa [#allocation8], 1
    %5037 = vsyncpa [#allocation15], 1
    %5038 = vsyncpa [#allocation18], 1
    %5039 = vsyncpa [#allocation21], 1
    %5040 = vsyncpa [#allocation24], 1
    %5041 = vsyncpa [#allocation9], 1
    %5042 = vsyncpa [#allocation10], 1
    %5043 = vsyncpa [#allocation13], 1
  %5044 = vsyncmov [#allocation6]
  %s5045 = vpop.sfrf %5044
  %p5046 = scmp.eq.s32.totalorder %s5045, 0
  %p5047 = pneg %p5046
  %5049 = shalt.err (%p5047)
  %s5050 = scalar_lea.sflag [#allocation6], 1
  %5051 = vsyncmov %s5050
  %s5052 = vpop.sfrf %5051
  %p5053 = scmp.eq.s32.totalorder %s5052, 0
  %p5054 = pneg %p5053
  %5056 = shalt.err (%p5054)
  %s5057 = scalar_lea.sflag [#allocation6], 2
  %5058 = vsyncmov %s5057
  %s5059 = vpop.sfrf %5058
  %p5060 = scmp.eq.s32.totalorder %s5059, 0
  %p5061 = pneg %p5060
  %5063 = shalt.err (%p5061)
  %s5064 = scalar_lea.sflag [#allocation6], 3
  %5065 = vsyncmov %s5064
  %s5066 = vpop.sfrf %5065
  %p5067 = scmp.eq.s32.totalorder %s5066, 0
  %p5068 = pneg %p5067
  %5070 = shalt.err (%p5068)
  %s5071 = scalar_lea.sflag [#allocation6], 4
  %5072 = vsyncmov %s5071
  %s5073 = vpop.sfrf %5072
  %p5074 = scmp.eq.s32.totalorder %s5073, 0
  %p5075 = pneg %p5074
  %5077 = shalt.err (%p5075)
  %s5078 = scalar_lea.sflag [#allocation6], 5
  %5079 = vsyncmov %s5078
  %s5080 = vpop.sfrf %5079
  %p5081 = scmp.eq.s32.totalorder %s5080, 0
  %p5082 = pneg %p5081
  %5084 = shalt.err (%p5082)
  %s5085 = scalar_lea.sflag [#allocation6], 6
  %5086 = vsyncmov %s5085
  %s5087 = vpop.sfrf %5086
  %p5088 = scmp.eq.s32.totalorder %s5087, 0
  %p5089 = pneg %p5088
  %5091 = shalt.err (%p5089)
  %s5092 = scalar_lea.sflag [#allocation6], 7
  %5093 = vsyncmov %s5092
  %s5094 = vpop.sfrf %5093
  %p5095 = scmp.eq.s32.totalorder %s5094, 0
  %p5096 = pneg %p5095
  %5098 = shalt.err (%p5096)
  %s5099 = scalar_lea.sflag [#allocation6], 8
  %5100 = vsyncmov %s5099
  %s5101 = vpop.sfrf %5100
  %p5102 = scmp.eq.s32.totalorder %s5101, 0
  %p5103 = pneg %p5102
  %5105 = shalt.err (%p5103)
  %s5106 = scalar_lea.sflag [#allocation6], 9
  %5107 = vsyncmov %s5106
  %s5108 = vpop.sfrf %5107
  %p5109 = scmp.eq.s32.totalorder %s5108, 0
  %p5110 = pneg %p5109
  %5112 = shalt.err (%p5110)
  %s5113 = scalar_lea.sflag [#allocation6], 10
  %5114 = vsyncmov %s5113
  %s5115 = vpop.sfrf %5114
  %p5116 = scmp.eq.s32.totalorder %s5115, 0
  %p5117 = pneg %p5116
  %5119 = shalt.err (%p5117)
  %s5120 = scalar_lea.sflag [#allocation6], 11
  %5121 = vsyncmov %s5120
  %s5122 = vpop.sfrf %5121
  %p5123 = scmp.eq.s32.totalorder %s5122, 0
  %p5124 = pneg %p5123
  %5126 = shalt.err (%p5124)
  %s5127 = scalar_lea.sflag [#allocation6], 12
  %5128 = vsyncmov %s5127
  %s5129 = vpop.sfrf %5128
  %p5130 = scmp.eq.s32.totalorder %s5129, 0
  %p5131 = pneg %p5130
  %5133 = shalt.err (%p5131)
  %s5134 = scalar_lea.sflag [#allocation6], 13
  %5135 = vsyncmov %s5134
  %s5136 = vpop.sfrf %5135
  %p5137 = scmp.eq.s32.totalorder %s5136, 0
  %p5138 = pneg %p5137
  %5140 = shalt.err (%p5138)
  %s5141 = scalar_lea.sflag [#allocation6], 14
  %5142 = vsyncmov %s5141
  %s5143 = vpop.sfrf %5142
  %p5144 = scmp.eq.s32.totalorder %s5143, 0
  %p5145 = pneg %p5144
  %5147 = shalt.err (%p5145)
  %s5148 = scalar_lea.sflag [#allocation6], 15
  %5149 = vsyncmov %s5148
  %s5150 = vpop.sfrf %5149
  %p5151 = scmp.eq.s32.totalorder %s5150, 0
  %p5152 = pneg %p5151
  %5154 = shalt.err (%p5152)
  %s5155 = scalar_lea.sflag [#allocation6], 16
  %5156 = vsyncmov %s5155
  %s5157 = vpop.sfrf %5156
  %p5158 = scmp.eq.s32.totalorder %s5157, 0
  %p5159 = pneg %p5158
  %5161 = shalt.err (%p5159)
  %s5162 = scalar_lea.sflag [#allocation6], 17
  %5163 = vsyncmov %s5162
  %s5164 = vpop.sfrf %5163
  %p5165 = scmp.eq.s32.totalorder %s5164, 0
  %p5166 = pneg %p5165
  %5168 = shalt.err (%p5166)
  %s5169 = scalar_lea.sflag [#allocation6], 18
  %5170 = vsyncmov %s5169
  %s5171 = vpop.sfrf %5170
  %p5172 = scmp.eq.s32.totalorder %s5171, 0
  %p5173 = pneg %p5172
  %5175 = shalt.err (%p5173)
  %s5176 = scalar_lea.sflag [#allocation6], 19
  %5177 = vsyncmov %s5176
  %s5178 = vpop.sfrf %5177
  %p5179 = scmp.eq.s32.totalorder %s5178, 0
  %p5180 = pneg %p5179
  %5182 = shalt.err (%p5180)
  %s5183 = scalar_lea.sflag [#allocation6], 20
  %5184 = vsyncmov %s5183
  %s5185 = vpop.sfrf %5184
  %p5186 = scmp.eq.s32.totalorder %s5185, 0
  %p5187 = pneg %p5186
  %5189 = shalt.err (%p5187)
  %s5190 = scalar_lea.sflag [#allocation6], 21
  %5191 = vsyncmov %s5190
  %s5192 = vpop.sfrf %5191
  %p5193 = scmp.eq.s32.totalorder %s5192, 0
  %p5194 = pneg %p5193
  %5196 = shalt.err (%p5194)
  %s5197 = scalar_lea.sflag [#allocation6], 22
  %5198 = vsyncmov %s5197
  %s5199 = vpop.sfrf %5198
  %p5200 = scmp.eq.s32.totalorder %s5199, 0
  %p5201 = pneg %p5200
  %5203 = shalt.err (%p5201)
  %s5204 = scalar_lea.sflag [#allocation6], 23
  %5205 = vsyncmov %s5204
  %s5206 = vpop.sfrf %5205
  %p5207 = scmp.eq.s32.totalorder %s5206, 0
  %p5208 = pneg %p5207
  %5210 = shalt.err (%p5208)
  %s5211 = scalar_lea.sflag [#allocation6], 24
  %5212 = vsyncmov %s5211
  %s5213 = vpop.sfrf %5212
  %p5214 = scmp.eq.s32.totalorder %s5213, 0
  %p5215 = pneg %p5214
  %5217 = shalt.err (%p5215)
  %s5218 = scalar_lea.sflag [#allocation6], 25
  %5219 = vsyncmov %s5218
  %s5220 = vpop.sfrf %5219
  %p5221 = scmp.eq.s32.totalorder %s5220, 0
  %p5222 = pneg %p5221
  %5224 = shalt.err (%p5222)

</llo_original>
